<compile_context>
chip_gen: v5e
topology: v5e:2x2
jax: 0.10.0
libtpu: 0.0.40
codegen_flags: <defaults>
</compile_context>

<pallas_src>
import functools

import jax
import jax.numpy as jnp
from jax.experimental import pallas as pl
from jax.experimental.pallas import tpu as pltpu

# -----------------------------------------------------------------------------
# Config
# -----------------------------------------------------------------------------
CFG = dict(
    n_mels=16,
    n_frames=32,
    audio_dim=32,
    num_stride_conv=2,       # num_of_conv - 1
    d_model=32,
    heads=4,
    ffn=64,
    vocab=64,
    enc_layers=2,
    dec_layers=2,
    max_pos=64,
    pad_token_id=1,
    decoder_start_token_id=2,
    label_smoothing=0.1,
)

VMEM = pl.BlockSpec(memory_space=pltpu.MemorySpace.VMEM)
NEG = -1e9  # additive mask value (applied post-accumulation in f32; HF uses dtype.min)


# -----------------------------------------------------------------------------
# In-kernel helpers (f32 statistics, bf16 MXU operands)
# -----------------------------------------------------------------------------
def _gelu(x):
    # PyTorch F.gelu default = exact erf GELU, kept in f32
    return 0.5 * x * (1.0 + jax.lax.erf(x * 0.7071067811865476))


def _layernorm(x, g, b, eps=1e-5):
    mu = jnp.mean(x, axis=-1, keepdims=True)
    var = jnp.mean((x - mu) ** 2, axis=-1, keepdims=True)
    return (x - mu) * jax.lax.rsqrt(var + eps) * g + b


def _mha(q, k, v, o_w_ref, heads, hd, mask=None):
    """All-heads attention + one D-wide output projection (no per-head matmul loop).

    q,k,v: (B, S, D) f32.  Heads are moved to a leading batch axis (leading-dim concat
    of lane slices); scores/softmax/context run as one batched einsum pair over B*heads;
    the contexts are lane-concatenated back to (B*Sq, D) so the output projection is a
    single D-wide MXU contraction.  Returns (B*Sq, D) f32."""
    B, Sq, D = q.shape
    scale = hd ** -0.5

    def to_heads(x):
        return jnp.concatenate(
            [x[:, :, h * hd:(h + 1) * hd] for h in range(heads)], axis=0)  # (H*B, S, hd)

    qh = to_heads(q * scale).astype(jnp.bfloat16)   # BART scales q
    kh = to_heads(k).astype(jnp.bfloat16)
    vh = to_heads(v).astype(jnp.bfloat16)

    s = jnp.einsum('nqd,nkd->nqk', qh, kh,
                   preferred_element_type=jnp.float32)              # (H*B, Sq, Sk) f32
    if mask is not None:
        s = s + jnp.concatenate([mask] * heads, axis=0)             # mask: (B, Sq, Sk)
    s = s - jnp.max(s, axis=-1, keepdims=True)
    p = jnp.exp(s)
    p = p * pl.reciprocal(jnp.sum(p, axis=-1, keepdims=True), approx=True)
    ctx = jnp.einsum('nqk,nkd->nqd', p.astype(jnp.bfloat16), vh,
                     preferred_element_type=jnp.float32)            # (H*B, Sq, hd) f32
    ctx = jnp.concatenate([ctx[h * B:(h + 1) * B] for h in range(heads)],
                          axis=-1)                                  # (B, Sq, D)
    return jnp.dot(ctx.reshape(B * Sq, D).astype(jnp.bfloat16), o_w_ref[...],
                   preferred_element_type=jnp.float32)              # one D-wide matmul


# -----------------------------------------------------------------------------
# Kernel 1: audio front-end (convs + GELU + sinusoid + proj + pos + embed LN)
# -----------------------------------------------------------------------------
def _audio_frontend_kernel(*refs, n_conv, t_in, t_out, c_in, A, D):
    x_ref = refs[0]
    conv_w = refs[1:1 + n_conv]                      # each (3*Cin, A) bf16
    proj_w_ref = refs[1 + n_conv]                    # (A, D) bf16
    sin_ref = refs[2 + n_conv]                       # (S_a, A) f32
    pos_ref = refs[3 + n_conv]                       # (S_a, D) f32
    sm_ref = refs[4 + n_conv]                        # (n_conv+2, 128) f32 small-param pack
    out_ref = refs[5 + n_conv]                       # (B*S_a, D) f32
    pads = refs[6 + n_conv:]                         # per-conv padded VMEM scratch

    B = x_ref.shape[0]
    sm = sm_ref[...]

    pads[0][...] = jnp.zeros(pads[0].shape, pads[0].dtype)
    pads[0][:, 1:t_in[0] + 1, :] = x_ref[...].astype(jnp.float32)

    y = None
    for i in range(n_conv):
        stride = 1 if i == 0 else 2
        Cin, Tout = c_in[i], t_out[i]
        acc = None
        for k in range(3):                           # 3 shifted-window matmuls per conv
            if stride == 1:
                win = pads[i][:, k:k + Tout, :]
            else:
                win = pads[i][:, k:k + 2 * Tout, :].reshape(B, Tout, 2, Cin)[:, :, 0, :]
            wk = conv_w[i][k * Cin:(k + 1) * Cin, :]
            c = jnp.dot(win.reshape(B * Tout, Cin).astype(jnp.bfloat16), wk,
                        preferred_element_type=jnp.float32)
            acc = c if acc is None else acc + c
        y = _gelu(acc + sm[i, :A])                   # (B*Tout, A) f32
        if i + 1 < n_conv:
            pads[i + 1][...] = jnp.zeros(pads[i + 1].shape, pads[i + 1].dtype)
            pads[i + 1][:, 1:Tout + 1, :] = y.reshape(B, Tout, A)

    S_a = t_out[-1]
    h = y.reshape(B, S_a, A) + sin_ref[...]          # Whisper-style sinusoids
    emb = jnp.dot(h.reshape(B * S_a, A).astype(jnp.bfloat16), proj_w_ref[...],
                  preferred_element_type=jnp.float32)  # audio_dim -> d_model (no bias)
    h = emb.reshape(B, S_a, D) + pos_ref[...]        # learned enc positions (offset 2)
    h = _layernorm(h, sm[n_conv, :D], sm[n_conv + 1, :D])
    out_ref[...] = h.reshape(B * S_a, D)


def audio_frontend(x, params, cfg):
    """x: (B, T, n_mels) f32 channel-last log-mel features -> (B*S_a, D) f32."""
    B, T, M = x.shape
    A, D = cfg["audio_dim"], cfg["d_model"]
    n_conv = 1 + cfg["num_stride_conv"]
    t_in, t_out, c_in = [], [], []
    t = T
    for i in range(n_conv):
        stride = 1 if i == 0 else 2
        t_in.append(t)
        c_in.append(M if i == 0 else A)
        t = t if stride == 1 else t // 2
        t_out.append(t)
    S_a = t_out[-1]

    ae = params["ae"]
    sin = sinusoids(S_a, A)
    enc_pos = params["enc"]["pos_emb"][2:2 + S_a]
    conv_ws = [ae[f"conv{i}_w"] for i in range(n_conv)]

    kernel = functools.partial(_audio_frontend_kernel, n_conv=n_conv,
                               t_in=tuple(t_in), t_out=tuple(t_out),
                               c_in=tuple(c_in), A=A, D=D)
    return pl.pallas_call(
        kernel,
        out_shape=jax.ShapeDtypeStruct((B * S_a, D), jnp.float32),
        in_specs=[VMEM] * (n_conv + 5),
        out_specs=VMEM,
        scratch_shapes=[pltpu.VMEM((B, t_in[i] + 2, c_in[i]), jnp.float32)
                        for i in range(n_conv)],
    )(x, *conv_ws, ae["proj_w"], sin, enc_pos, ae["smalls"])


# -----------------------------------------------------------------------------
# Kernel 2: BART encoder stack (grid over layers, f32 residual in VMEM scratch)
# small-param pack rows: 0 qkv_b | 1 o_b | 2 ln1_g | 3 ln1_b | 4 fc1_b | 5 fc2_b
#                        6 ln2_g | 7 ln2_b
# -----------------------------------------------------------------------------
def _encoder_stack_kernel(h_ref, qkv_w_ref, o_w_ref, fc1_w_ref, fc2_w_ref, sm_ref,
                          out_ref, acc_ref, *, heads, batch):
    l = pl.program_id(0)
    N, D = acc_ref.shape
    B, S = batch, N // batch
    hd = D // heads
    Ff = fc1_w_ref.shape[1]

    @pl.when(l == 0)
    def _():
        acc_ref[...] = h_ref[...]

    x2 = acc_ref[...]                                 # (N, D) f32 residual stream
    sm = sm_ref[...]

    qkv = jnp.dot(x2.astype(jnp.bfloat16), qkv_w_ref[...],
                  preferred_element_type=jnp.float32) + sm[0, :3 * D]
    q = qkv[:, :D].reshape(B, S, D)
    k = qkv[:, D:2 * D].reshape(B, S, D)
    v = qkv[:, 2 * D:].reshape(B, S, D)
    attn = _mha(q, k, v, o_w_ref, heads, hd) + sm[1, :D]   # encoder mask all-ones -> none
    h1 = _layernorm(x2 + attn, sm[2, :D], sm[3, :D])

    ff = _gelu(jnp.dot(h1.astype(jnp.bfloat16), fc1_w_ref[...],
                       preferred_element_type=jnp.float32) + sm[4, :Ff])
    ff = jnp.dot(ff.astype(jnp.bfloat16), fc2_w_ref[...],
                 preferred_element_type=jnp.float32) + sm[5, :D]
    h2 = _layernorm(h1 + ff, sm[6, :D], sm[7, :D])
    acc_ref[...] = h2

    @pl.when(l == pl.num_programs(0) - 1)
    def _():
        out_ref[...] = acc_ref[...].astype(out_ref.dtype)


def encoder_stack(h, p, heads, batch):
    N, D = h.shape
    L = p["qkv_w"].shape[0]
    Ff = p["fc1_w"].shape[2]
    R, W = p["smalls"].shape[1], p["smalls"].shape[2]
    return pl.pallas_call(
        functools.partial(_encoder_stack_kernel, heads=heads, batch=batch),
        out_shape=jax.ShapeDtypeStruct((N, D), jnp.bfloat16),
        grid_spec=pltpu.PrefetchScalarGridSpec(
            num_scalar_prefetch=0,
            grid=(L,),
            in_specs=[
                pl.BlockSpec((N, D), lambda l: (0, 0)),
                pl.BlockSpec((None, D, 3 * D), lambda l: (l, 0, 0)),
                pl.BlockSpec((None, D, D), lambda l: (l, 0, 0)),
                pl.BlockSpec((None, D, Ff), lambda l: (l, 0, 0)),
                pl.BlockSpec((None, Ff, D), lambda l: (l, 0, 0)),
                pl.BlockSpec((None, R, W), lambda l: (l, 0, 0)),
            ],
            out_specs=pl.BlockSpec((N, D), lambda l: (0, 0)),
            scratch_shapes=[pltpu.VMEM((N, D), jnp.float32)],
        ),
        compiler_params=pltpu.CompilerParams(dimension_semantics=("arbitrary",)),
    )(h, p["qkv_w"], p["o_w"], p["fc1_w"], p["fc2_w"], p["smalls"])


# -----------------------------------------------------------------------------
# Kernel 3: BART decoder stack (grid over layers; embedding fused into layer 0;
# causal+pad mask built once into VMEM scratch; encoder output resident)
# small-param pack rows: 0 sa_qkv_b | 1 sa_o_b | 2 sa_ln_g | 3 sa_ln_b | 4 ca_q_b
#   5 ca_kv_b | 6 ca_o_b | 7 ca_ln_g | 8 ca_ln_b | 9 fc1_b | 10 fc2_b | 11 ln3_g | 12 ln3_b
# -----------------------------------------------------------------------------
def _decoder_stack_kernel(tok_ref, pos_ref, embln_ref, enc_ref, am_ref,
                          sa_qkv_w_ref, sa_o_w_ref, ca_q_w_ref, ca_kv_w_ref, ca_o_w_ref,
                          fc1_w_ref, fc2_w_ref, sm_ref,
                          out_ref, acc_ref, mask_ref, *, heads, batch):
    l = pl.program_id(0)
    N, D = acc_ref.shape
    B = batch
    S = tok_ref.shape[1]
    S_a = enc_ref.shape[0] // B
    hd = D // heads
    Ff = fc1_w_ref.shape[1]

    @pl.when(l == 0)
    def _():
        # fused decoder embedding: tok + learned pos (offset 2) -> embed LayerNorm
        e = tok_ref[...].astype(jnp.float32) + pos_ref[...]
        acc_ref[...] = _layernorm(e, embln_ref[0, :], embln_ref[1, :]).reshape(N, D)
        # causal + pad additive mask, built once and reused by every layer
        row = jax.lax.broadcasted_iota(jnp.int32, (S, S), 0)
        col = jax.lax.broadcasted_iota(jnp.int32, (S, S), 1)
        causal = jnp.where(row >= col, 0.0, NEG)                   # (S, S)
        pad = (1.0 - am_ref[...])[:, None, :] * NEG                # (B, 1, S)
        mask_ref[...] = causal[None, :, :] + pad                   # (B, S, S)

    x2 = acc_ref[...]                                              # (N, D) f32
    sm = sm_ref[...]

    # --- self-attention (causal + pad mask) ---
    qkv = jnp.dot(x2.astype(jnp.bfloat16), sa_qkv_w_ref[...],
                  preferred_element_type=jnp.float32) + sm[0, :3 * D]
    q = qkv[:, :D].reshape(B, S, D)
    k = qkv[:, D:2 * D].reshape(B, S, D)
    v = qkv[:, 2 * D:].reshape(B, S, D)
    attn = _mha(q, k, v, sa_o_w_ref, heads, hd, mask=mask_ref[...]) + sm[1, :D]
    h1 = _layernorm(x2 + attn, sm[2, :D], sm[3, :D])

    # --- cross-attention on encoder output (encoder mask all-ones -> skipped) ---
    qc = jnp.dot(h1.astype(jnp.bfloat16), ca_q_w_ref[...],
                 preferred_element_type=jnp.float32) + sm[4, :D]
    kvc = jnp.dot(enc_ref[...], ca_kv_w_ref[...],
                  preferred_element_type=jnp.float32) + sm[5, :2 * D]
    qc = qc.reshape(B, S, D)
    kc = kvc[:, :D].reshape(B, S_a, D)
    vc = kvc[:, D:].reshape(B, S_a, D)
    cattn = _mha(qc, kc, vc, ca_o_w_ref, heads, hd) + sm[6, :D]
    h2 = _layernorm(h1 + cattn, sm[7, :D], sm[8, :D])

    # --- FFN ---
    ff = _gelu(jnp.dot(h2.astype(jnp.bfloat16), fc1_w_ref[...],
                       preferred_element_type=jnp.float32) + sm[9, :Ff])
    ff = jnp.dot(ff.astype(jnp.bfloat16), fc2_w_ref[...],
                 preferred_element_type=jnp.float32) + sm[10, :D]
    h3 = _layernorm(h2 + ff, sm[11, :D], sm[12, :D])
    acc_ref[...] = h3

    @pl.when(l == pl.num_programs(0) - 1)
    def _():
        out_ref[...] = acc_ref[...].astype(out_ref.dtype)


def decoder_stack(tok, dec_pos, p, enc_out, am, heads):
    B, S, D = tok.shape
    N = B * S
    N_a = enc_out.shape[0]
    L = p["sa_qkv_w"].shape[0]
    Ff = p["fc1_w"].shape[2]
    R, W = p["smalls"].shape[1], p["smalls"].shape[2]
    return pl.pallas_call(
        functools.partial(_decoder_stack_kernel, heads=heads, batch=B),
        out_shape=jax.ShapeDtypeStruct((N, D), jnp.bfloat16),
        grid_spec=pltpu.PrefetchScalarGridSpec(
            num_scalar_prefetch=0,
            grid=(L,),
            in_specs=[
                pl.BlockSpec((B, S, D), lambda l: (0, 0, 0)),      # tok embeddings
                pl.BlockSpec((S, D), lambda l: (0, 0)),            # dec learned pos
                pl.BlockSpec((2, D), lambda l: (0, 0)),            # embed LN g/b pack
                pl.BlockSpec((N_a, D), lambda l: (0, 0)),          # encoder output (resident)
                pl.BlockSpec((B, S), lambda l: (0, 0)),            # pad mask
                pl.BlockSpec((None, D, 3 * D), lambda l: (l, 0, 0)),
                pl.BlockSpec((None, D, D), lambda l: (l, 0, 0)),
                pl.BlockSpec((None, D, D), lambda l: (l, 0, 0)),
                pl.BlockSpec((None, D, 2 * D), lambda l: (l, 0, 0)),
                pl.BlockSpec((None, D, D), lambda l: (l, 0, 0)),
                pl.BlockSpec((None, D, Ff), lambda l: (l, 0, 0)),
                pl.BlockSpec((None, Ff, D), lambda l: (l, 0, 0)),
                pl.BlockSpec((None, R, W), lambda l: (l, 0, 0)),
            ],
            out_specs=pl.BlockSpec((N, D), lambda l: (0, 0)),
            scratch_shapes=[pltpu.VMEM((N, D), jnp.float32),
                            pltpu.VMEM((B, S, S), jnp.float32)],
        ),
        compiler_params=pltpu.CompilerParams(dimension_semantics=("arbitrary",)),
    )(tok, dec_pos, p["emb_ln"], enc_out, am,
      p["sa_qkv_w"], p["sa_o_w"], p["ca_q_w"], p["ca_kv_w"], p["ca_o_w"],
      p["fc1_w"], p["fc2_w"], p["smalls"])


# -----------------------------------------------------------------------------
# Kernel 4: lm_head (tied embedding) + label-smoothed CE, grid over vocab tiles
# with online log-sum-exp accumulators (logits never hit HBM)
# -----------------------------------------------------------------------------
def _lmhead_ce_kernel(h_ref, emb_ref, bias_ref, tgt_ref, loss_ref,
                      m_ref, se_ref, sl_ref, tl_ref, *, eps, ignore_index, vocab):
    j = pl.program_id(0)
    N = h_ref.shape[0]
    tv = emb_ref.shape[0]

    logits = jax.lax.dot_general(h_ref[...], emb_ref[...], (((1,), (1,)), ((), ())),
                                 preferred_element_type=jnp.float32)   # (N, tv)
    logits = logits + bias_ref[...]
    tgt = tgt_ref[...]                                                 # (N, 1) int32
    cls = j * tv + jax.lax.broadcasted_iota(jnp.int32, (N, tv), 1)

    @pl.when(j == 0)
    def _():
        m_ref[...] = jnp.full(m_ref.shape, -jnp.inf, m_ref.dtype)
        se_ref[...] = jnp.zeros(se_ref.shape, se_ref.dtype)
        sl_ref[...] = jnp.zeros(sl_ref.shape, sl_ref.dtype)
        tl_ref[...] = jnp.zeros(tl_ref.shape, tl_ref.dtype)

    m_prev = m_ref[...]
    m_new = jnp.maximum(m_prev, jnp.max(logits, axis=-1, keepdims=True))
    se_ref[...] = (se_ref[...] * jnp.exp(m_prev - m_new)
                   + jnp.sum(jnp.exp(logits - m_new), axis=-1, keepdims=True))
    m_ref[...] = m_new
    sl_ref[...] = sl_ref[...] + jnp.sum(logits, axis=-1, keepdims=True)
    tl_ref[...] = tl_ref[...] + jnp.sum(jnp.where(cls == tgt, logits, 0.0),
                                        axis=-1, keepdims=True)

    @pl.when(j == pl.num_programs(0) - 1)
    def _():
        lse = m_ref[...] + jnp.log(se_ref[...])                        # (N, 1)
        nll = lse - tl_ref[...]
        smooth = lse - sl_ref[...] / vocab                             # mean over classes
        per_tok = (1.0 - eps) * nll + eps * smooth
        valid = (tgt != ignore_index).astype(jnp.float32)
        total = jnp.sum(per_tok * valid, axis=0, keepdims=True)        # (1, 1)
        count = jnp.maximum(jnp.sum(valid, axis=0, keepdims=True), 1.0)
        loss_ref[...] = total / count


def lmhead_ce(h2d, shared_emb, final_logits_bias, tgt, cfg):
    N, D = h2d.shape
    V = cfg["vocab"]
    TV = min(32, V)                    # vocab tile (multiple of 8, divides V)
    NV = V // TV
    bias3d = final_logits_bias.reshape(NV, 1, TV)
    loss = pl.pallas_call(
        functools.partial(_lmhead_ce_kernel, eps=cfg["label_smoothing"],
                          ignore_index=-100, vocab=V),
        out_shape=jax.ShapeDtypeStruct((1, 1), jnp.float32),
        grid_spec=pltpu.PrefetchScalarGridSpec(
            num_scalar_prefetch=0,
            grid=(NV,),
            in_specs=[
                pl.BlockSpec((N, D), lambda j: (0, 0)),
                pl.BlockSpec((TV, D), lambda j: (j, 0)),
                pl.BlockSpec((None, 1, TV), lambda j: (j, 0, 0)),
                pl.BlockSpec((N, 1), lambda j: (0, 0)),
            ],
            out_specs=pl.BlockSpec((1, 1), lambda j: (0, 0)),
            scratch_shapes=[pltpu.VMEM((N, 1), jnp.float32)] * 4,
        ),
        compiler_params=pltpu.CompilerParams(dimension_semantics=("arbitrary",)),
    )(h2d, shared_emb, bias3d, tgt)
    return loss[0, 0]


# -----------------------------------------------------------------------------
# Model building blocks (host / XLA side)
# -----------------------------------------------------------------------------
def sinusoids(length, channels, max_timescale=10000.0):
    """Whisper-style positional sinusoids used by AudioEncoder."""
    log_ts_inc = jnp.log(max_timescale) / (channels // 2 - 1)
    inv_ts = jnp.exp(-log_ts_inc * jnp.arange(channels // 2, dtype=jnp.float32))
    scaled = jnp.arange(length, dtype=jnp.float32)[:, None] * inv_ts[None, :]
    return jnp.concatenate([jnp.sin(scaled), jnp.cos(scaled)], axis=1)


def shift_tokens_right(input_ids, pad_token_id, decoder_start_token_id):
    shifted = jnp.zeros_like(input_ids)
    shifted = shifted.at[:, 1:].set(input_ids[:, :-1])
    shifted = shifted.at[:, 0].set(decoder_start_token_id)
    return jnp.where(shifted == -100, pad_token_id, shifted)


# -----------------------------------------------------------------------------
# Full forward: audio -> audio_encoder -> BART encoder -> BART decoder -> loss
# -----------------------------------------------------------------------------
def bart_caption_forward(params, mel, input_ids, attention_mask, cfg):
    B = mel.shape[0]
    D, heads = cfg["d_model"], cfg["heads"]

    # ---- audio front-end (one fused kernel) ----
    mel_cl = jnp.transpose(mel, (0, 2, 1))                        # (B, T, n_mels)
    h_enc0 = audio_frontend(mel_cl, params, cfg)                  # (B*S_a, D) f32

    # ---- BART encoder stack (one kernel, grid over layers) ----
    enc_out = encoder_stack(h_enc0, params["enc"], heads, B)      # (B*S_a, D) bf16

    # ---- decoder targets / shifted inputs ----
    pad_id = cfg["pad_token_id"]
    decoder_targets = jnp.where(input_ids == pad_id, -100, input_ids)
    dec_input_ids = shift_tokens_right(decoder_targets, pad_id,
                                       cfg["decoder_start_token_id"])
    S_t = dec_input_ids.shape[1]

    # TODO(synk): token-embedding gather kept XLA-side; could move in-kernel via scalar prefetch.
    tok = jnp.take(params["shared_emb"], dec_input_ids, axis=0)   # (B, S_t, D) bf16
    dec_pos = params["dec"]["pos_emb"][2:2 + S_t]
    am = attention_mask.astype(jnp.float32)                       # (B, S_t)

    # ---- BART decoder stack (one kernel, grid over layers; embedding fused) ----
    dec_out = decoder_stack(tok, dec_pos, params["dec"], enc_out, am, heads)  # (B*S_t, D)

    # ---- fused lm_head (tied embedding) + label-smoothed CE, vocab-tiled ----
    tgt = decoder_targets.reshape(B * S_t, 1).astype(jnp.int32)
    return lmhead_ce(dec_out, params["shared_emb"], params["final_logits_bias"], tgt, cfg)


# -----------------------------------------------------------------------------
# Deterministic parameter init (matmul weights stored bf16 & layer-stacked;
# biases / LN gains packed into one (L, rows, 128) f32 array per stack)
# -----------------------------------------------------------------------------
def init_params(key, cfg):
    keys = iter(jax.random.split(key, 512))

    def nrm(*shape):
        return jax.random.normal(next(keys), shape, jnp.float32) * 0.02

    def zeros(*shape):
        return jnp.zeros(shape, jnp.float32)

    def ones(*shape):
        return jnp.ones(shape, jnp.float32)

    def bf(x):
        return x.astype(jnp.bfloat16)

    def pack_rows(vecs, width):
        return jnp.stack([jnp.pad(v.reshape(-1), (0, width - v.size)) for v in vecs], 0)

    def conv_wmat(w):  # (Cout, Cin, K) torch layout -> (K*Cin, Cout) shifted-window layout
        Cout, Cin, K = w.shape
        return jnp.transpose(w, (2, 1, 0)).reshape(K * Cin, Cout)

    D, A, V, Ff, M = (cfg["d_model"], cfg["audio_dim"], cfg["vocab"],
                      cfg["ffn"], cfg["n_mels"])
    Wpack = max(3 * D, Ff, 128)

    # ---- audio encoder ----
    n_conv = 1 + cfg["num_stride_conv"]
    ae = {}
    conv_biases = []
    for i in range(n_conv):
        cin = M if i == 0 else A
        ae[f"conv{i}_w"] = bf(conv_wmat(nrm(A, cin, 3)))
        conv_biases.append(zeros(A))
    ae["proj_w"] = bf(nrm(A, D))                       # Linear(audio_dim, d_model, bias=False)
    ae["smalls"] = pack_rows(conv_biases + [ones(D), zeros(D)], max(A, D, 128))

    # ---- encoder layers (stacked along a leading layer axis) ----
    def enc_layer():
        return dict(
            qkv_w=jnp.concatenate([nrm(D, D), nrm(D, D), nrm(D, D)], axis=1),
            o_w=nrm(D, D), fc1_w=nrm(D, Ff), fc2_w=nrm(Ff, D),
            smalls=pack_rows([zeros(3 * D), zeros(D), ones(D), zeros(D),
                              zeros(Ff), zeros(D), ones(D), zeros(D)], Wpack))

    els = [enc_layer() for _ in range(cfg["enc_layers"])]
    enc = dict(
        qkv_w=bf(jnp.stack([p["qkv_w"] for p in els])),
        o_w=bf(jnp.stack([p["o_w"] for p in els])),
        fc1_w=bf(jnp.stack([p["fc1_w"] for p in els])),
        fc2_w=bf(jnp.stack([p["fc2_w"] for p in els])),
        smalls=jnp.stack([p["smalls"] for p in els]),
        pos_emb=nrm(cfg["max_pos"] + 2, D),
    )

    # ---- decoder layers ----
    def dec_layer():
        return dict(
            sa_qkv_w=jnp.concatenate([nrm(D, D), nrm(D, D), nrm(D, D)], axis=1),
            sa_o_w=nrm(D, D), ca_q_w=nrm(D, D),
            ca_kv_w=jnp.concatenate([nrm(D, D), nrm(D, D)], axis=1),
            ca_o_w=nrm(D, D), fc1_w=nrm(D, Ff), fc2_w=nrm(Ff, D),
            smalls=pack_rows([zeros(3 * D), zeros(D), ones(D), zeros(D),
                              zeros(D), zeros(2 * D), zeros(D), ones(D), zeros(D),
                              zeros(Ff), zeros(D), ones(D), zeros(D)], Wpack))

    dls = [dec_layer() for _ in range(cfg["dec_layers"])]
    dec = dict(
        sa_qkv_w=bf(jnp.stack([p["sa_qkv_w"] for p in dls])),
        sa_o_w=bf(jnp.stack([p["sa_o_w"] for p in dls])),
        ca_q_w=bf(jnp.stack([p["ca_q_w"] for p in dls])),
        ca_kv_w=bf(jnp.stack([p["ca_kv_w"] for p in dls])),
        ca_o_w=bf(jnp.stack([p["ca_o_w"] for p in dls])),
        fc1_w=bf(jnp.stack([p["fc1_w"] for p in dls])),
        fc2_w=bf(jnp.stack([p["fc2_w"] for p in dls])),
        smalls=jnp.stack([p["smalls"] for p in dls]),
        pos_emb=nrm(cfg["max_pos"] + 2, D),
        emb_ln=jnp.stack([ones(D), zeros(D)], axis=0),
    )

    return dict(shared_emb=bf(nrm(V, D)), final_logits_bias=zeros(1, V),
                ae=ae, enc=enc, dec=dec)


# -----------------------------------------------------------------------------
# Main
# -----------------------------------------------------------------------------
if __name__ == "__main__":
    key = jax.random.PRNGKey(0)
    k_param, k_mel, k_txt = jax.random.split(key, 3)

    params = init_params(k_param, CFG)

    B, S_text = 2, 8
    mel = jax.random.normal(k_mel, (B, CFG["n_mels"], CFG["n_frames"]), jnp.float32)

    # pre-tokenized text (TODO(synk): real model uses BartTokenizer here)
    input_ids = jax.random.randint(k_txt, (B, S_text), 3, CFG["vocab"]).astype(jnp.int32)
    input_ids = input_ids.at[0, -2:].set(CFG["pad_token_id"])  # some padding
    attention_mask = (input_ids != CFG["pad_token_id"]).astype(jnp.int32)

    fwd = jax.jit(functools.partial(bart_caption_forward, cfg=CFG))
    loss = fwd(params, mel, input_ids, attention_mask)
    jax.block_until_ready(loss)
    assert loss.shape == () and bool(jnp.isfinite(loss))
    print("KERNEL_OK")
</pallas_src>

<mosaic_0001>
module attributes {stable_mosaic.version = 11 : i64} {
  func.func @_encoder_stack_kernel(%arg0: i32, %arg1: memref<16x32xf32, #tpu.memory_space<vmem>>, %arg2: memref<1x32x96xbf16, #tpu.memory_space<vmem>>, %arg3: memref<1x32x32xbf16, #tpu.memory_space<vmem>>, %arg4: memref<1x32x64xbf16, #tpu.memory_space<vmem>>, %arg5: memref<1x64x32xbf16, #tpu.memory_space<vmem>>, %arg6: memref<1x8x128xf32, #tpu.memory_space<vmem>>, %arg7: memref<16x32xbf16, #tpu.memory_space<vmem>>, %arg8: memref<16x32xf32, #tpu.memory_space<vmem>>) attributes {dimension_semantics = [#tpu.dimension_semantics<arbitrary>], iteration_bounds = array<i64: 2>, scalar_prefetch = 0 : i64, scratch_operands = 1 : i64, tpu.core_type = #tpu.core_type<tc>, window_params = [{pipeline_mode = #tpu.pipeline_mode<synchronous>, transform_indices = @transform_0, window_bounds = array<i64: 16, 32>}, {transform_indices = @transform_1, window_bounds = array<i64: 1, 32, 96>}, {transform_indices = @transform_2, window_bounds = array<i64: 1, 32, 32>}, {transform_indices = @transform_3, window_bounds = array<i64: 1, 32, 64>}, {transform_indices = @transform_4, window_bounds = array<i64: 1, 64, 32>}, {transform_indices = @transform_5, window_bounds = array<i64: 1, 8, 128>}, {pipeline_mode = #tpu.pipeline_mode<synchronous>, transform_indices = @transform_6, window_bounds = array<i64: 16, 32>}]} {
    %c0_i32 = arith.constant 0 : i32
    %0 = arith.cmpi eq, %arg0, %c0_i32 : i32
    %1 = arith.extui %0 : i1 to i32
    %c0_i32_0 = arith.constant 0 : i32
    %2 = arith.cmpi ne, %1, %c0_i32_0 : i32
    scf.if %2 {
      %c0_41 = arith.constant 0 : index
      %c0_42 = arith.constant 0 : index
      %157 = vector.load %arg1[%c0_41, %c0_42] : memref<16x32xf32, #tpu.memory_space<vmem>>, vector<16x32xf32>
      %c0_43 = arith.constant 0 : index
      %c0_44 = arith.constant 0 : index
      %158 = vector.load %arg8[%c0_43, %c0_44] : memref<16x32xf32, #tpu.memory_space<vmem>>, vector<16x32xf32>
      tpu.vector_store %arg8[%c0_43, %c0_44], %157 {strides = array<i32>} : memref<16x32xf32, #tpu.memory_space<vmem>>, vector<16x32xf32>,
    } else {
    }
    %c0 = arith.constant 0 : index
    %c0_1 = arith.constant 0 : index
    %3 = vector.load %arg8[%c0, %c0_1] : memref<16x32xf32, #tpu.memory_space<vmem>>, vector<16x32xf32>
    %c0_2 = arith.constant 0 : index
    %c0_3 = arith.constant 0 : index
    %c0_4 = arith.constant 0 : index
    %4 = vector.load %arg6[%c0_2, %c0_3, %c0_4] : memref<1x8x128xf32, #tpu.memory_space<vmem>>, vector<1x8x128xf32>
    %5 = vector.shape_cast %4 : vector<1x8x128xf32> to vector<8x128xf32>
    %6 = arith.truncf %3 : vector<16x32xf32> to vector<16x32xbf16>
    %c0_5 = arith.constant 0 : index
    %c0_6 = arith.constant 0 : index
    %c0_7 = arith.constant 0 : index
    %7 = vector.load %arg2[%c0_5, %c0_6, %c0_7] : memref<1x32x96xbf16, #tpu.memory_space<vmem>>, vector<1x32x96xbf16>
    %8 = vector.shape_cast %7 : vector<1x32x96xbf16> to vector<32x96xbf16>
    %cst = arith.constant dense<0.000000e+00> : vector<16x96xf32>
    %9 = tpu.matmul %6, %8, %cst {dimension_numbers = #tpu.dot_dimension_numbers<[1], [0], [0], [1], [0, 0, 1, 1], [], []>} : vector<16x32xbf16>, vector<32x96xbf16>, vector<16x96xf32> -> vector<16x96xf32>
    %10 = vector.extract_strided_slice %5 {offsets = [0, 0], sizes = [1, 96], strides = [1, 1]} : vector<8x128xf32> to vector<1x96xf32>
    %11 = vector.shape_cast %10 : vector<1x96xf32> to vector<96xf32>
    %12 = vector.shape_cast %11 : vector<96xf32> to vector<1x96xf32>
    %13 = vector.broadcast %12 : vector<1x96xf32> to vector<16x96xf32>
    %14 = arith.addf %9, %13 : vector<16x96xf32>
    %15 = vector.extract_strided_slice %14 {offsets = [0, 0], sizes = [16, 32], strides = [1, 1]} : vector<16x96xf32> to vector<16x32xf32>
    %16 = vector.shape_cast %15 : vector<16x32xf32> to vector<2x8x32xf32>
    %17 = vector.extract_strided_slice %14 {offsets = [0, 32], sizes = [16, 32], strides = [1, 1]} : vector<16x96xf32> to vector<16x32xf32>
    %18 = vector.shape_cast %17 : vector<16x32xf32> to vector<2x8x32xf32>
    %19 = vector.extract_strided_slice %14 {offsets = [0, 64], sizes = [16, 32], strides = [1, 1]} : vector<16x96xf32> to vector<16x32xf32>
    %20 = vector.shape_cast %19 : vector<16x32xf32> to vector<2x8x32xf32>
    %cst_8 = arith.constant 0.353553385 : f32
    %21 = vector.broadcast %cst_8 : f32 to vector<2x8x32xf32>
    %22 = arith.mulf %16, %21 : vector<2x8x32xf32>
    %23 = vector.extract_strided_slice %22 {offsets = [0, 0, 0], sizes = [2, 8, 8], strides = [1, 1, 1]} : vector<2x8x32xf32> to vector<2x8x8xf32>
    %24 = vector.extract_strided_slice %22 {offsets = [0, 0, 8], sizes = [2, 8, 8], strides = [1, 1, 1]} : vector<2x8x32xf32> to vector<2x8x8xf32>
    %25 = vector.extract_strided_slice %22 {offsets = [0, 0, 16], sizes = [2, 8, 8], strides = [1, 1, 1]} : vector<2x8x32xf32> to vector<2x8x8xf32>
    %26 = vector.extract_strided_slice %22 {offsets = [0, 0, 24], sizes = [2, 8, 8], strides = [1, 1, 1]} : vector<2x8x32xf32> to vector<2x8x8xf32>
    %27 = tpu.concatenate %23, %24, %25, %26 in 0 : vector<2x8x8xf32>, vector<2x8x8xf32>, vector<2x8x8xf32>, vector<2x8x8xf32> -> vector<8x8x8xf32>
    %28 = arith.truncf %27 : vector<8x8x8xf32> to vector<8x8x8xbf16>
    %29 = vector.extract_strided_slice %18 {offsets = [0, 0, 0], sizes = [2, 8, 8], strides = [1, 1, 1]} : vector<2x8x32xf32> to vector<2x8x8xf32>
    %30 = vector.extract_strided_slice %18 {offsets = [0, 0, 8], sizes = [2, 8, 8], strides = [1, 1, 1]} : vector<2x8x32xf32> to vector<2x8x8xf32>
    %31 = vector.extract_strided_slice %18 {offsets = [0, 0, 16], sizes = [2, 8, 8], strides = [1, 1, 1]} : vector<2x8x32xf32> to vector<2x8x8xf32>
    %32 = vector.extract_strided_slice %18 {offsets = [0, 0, 24], sizes = [2, 8, 8], strides = [1, 1, 1]} : vector<2x8x32xf32> to vector<2x8x8xf32>
    %33 = tpu.concatenate %29, %30, %31, %32 in 0 : vector<2x8x8xf32>, vector<2x8x8xf32>, vector<2x8x8xf32>, vector<2x8x8xf32> -> vector<8x8x8xf32>
    %34 = arith.truncf %33 : vector<8x8x8xf32> to vector<8x8x8xbf16>
    %35 = vector.extract_strided_slice %20 {offsets = [0, 0, 0], sizes = [2, 8, 8], strides = [1, 1, 1]} : vector<2x8x32xf32> to vector<2x8x8xf32>
    %36 = vector.extract_strided_slice %20 {offsets = [0, 0, 8], sizes = [2, 8, 8], strides = [1, 1, 1]} : vector<2x8x32xf32> to vector<2x8x8xf32>
    %37 = vector.extract_strided_slice %20 {offsets = [0, 0, 16], sizes = [2, 8, 8], strides = [1, 1, 1]} : vector<2x8x32xf32> to vector<2x8x8xf32>
    %38 = vector.extract_strided_slice %20 {offsets = [0, 0, 24], sizes = [2, 8, 8], strides = [1, 1, 1]} : vector<2x8x32xf32> to vector<2x8x8xf32>
    %39 = tpu.concatenate %35, %36, %37, %38 in 0 : vector<2x8x8xf32>, vector<2x8x8xf32>, vector<2x8x8xf32>, vector<2x8x8xf32> -> vector<8x8x8xf32>
    %40 = arith.truncf %39 : vector<8x8x8xf32> to vector<8x8x8xbf16>
    "tpu.trace_start"() <{level = 10 : i32, message = "nqd,nkd->nqk"}> : () -> ()
    %cst_9 = arith.constant dense<0.000000e+00> : vector<8x8x8xf32>
    %41 = tpu.matmul %28, %34, %cst_9 {dimension_numbers = #tpu.dot_dimension_numbers<[2], [2], [1], [1], [0, 0, 0, 1, 1, 1], [0], [0]>} : vector<8x8x8xbf16>, vector<8x8x8xbf16>, vector<8x8x8xf32> -> vector<8x8x8xf32>
    "tpu.trace_stop"() : () -> ()
    %cst_10 = arith.constant dense<0xFF800000> : vector<8x8xf32>
    %42 = vector.multi_reduction <maximumf>, %41, %cst_10 [2] : vector<8x8x8xf32> to vector<8x8xf32>
    %43 = vector.shape_cast %42 : vector<8x8xf32> to vector<8x8x1xf32>
    %44 = vector.broadcast %43 : vector<8x8x1xf32> to vector<8x8x8xf32>
    %45 = arith.subf %41, %44 : vector<8x8x8xf32>
    %46 = math.exp %45 : vector<8x8x8xf32>
    %cst_11 = arith.constant dense<0.000000e+00> : vector<8x8xf32>
    %47 = vector.multi_reduction <add>, %46, %cst_11 [2] : vector<8x8x8xf32> to vector<8x8xf32>
    %48 = vector.shape_cast %47 : vector<8x8xf32> to vector<8x8x1xf32>
    %49 = tpu.reciprocal %48 {approx = true} : vector<8x8x1xf32> -> vector<8x8x1xf32>
    %50 = vector.broadcast %49 : vector<8x8x1xf32> to vector<8x8x8xf32>
    %51 = arith.mulf %46, %50 : vector<8x8x8xf32>
    %52 = arith.truncf %51 : vector<8x8x8xf32> to vector<8x8x8xbf16>
    "tpu.trace_start"() <{level = 10 : i32, message = "nqk,nkd->nqd"}> : () -> ()
    %cst_12 = arith.constant dense<0.000000e+00> : vector<8x8x8xf32>
    %53 = tpu.matmul %52, %40, %cst_12 {dimension_numbers = #tpu.dot_dimension_numbers<[2], [1], [1], [2], [0, 0, 0, 1, 1, 2], [0], [0]>} : vector<8x8x8xbf16>, vector<8x8x8xbf16>, vector<8x8x8xf32> -> vector<8x8x8xf32>
    "tpu.trace_stop"() : () -> ()
    %54 = vector.extract_strided_slice %53 {offsets = [0, 0, 0], sizes = [2, 8, 8], strides = [1, 1, 1]} : vector<8x8x8xf32> to vector<2x8x8xf32>
    %55 = vector.extract_strided_slice %53 {offsets = [2, 0, 0], sizes = [2, 8, 8], strides = [1, 1, 1]} : vector<8x8x8xf32> to vector<2x8x8xf32>
    %56 = vector.extract_strided_slice %53 {offsets = [4, 0, 0], sizes = [2, 8, 8], strides = [1, 1, 1]} : vector<8x8x8xf32> to vector<2x8x8xf32>
    %57 = vector.extract_strided_slice %53 {offsets = [6, 0, 0], sizes = [2, 8, 8], strides = [1, 1, 1]} : vector<8x8x8xf32> to vector<2x8x8xf32>
    %58 = tpu.concatenate %54, %55, %56, %57 in 2 : vector<2x8x8xf32>, vector<2x8x8xf32>, vector<2x8x8xf32>, vector<2x8x8xf32> -> vector<2x8x32xf32>
    %59 = vector.shape_cast %58 : vector<2x8x32xf32> to vector<16x32xf32>
    %60 = arith.truncf %59 : vector<16x32xf32> to vector<16x32xbf16>
    %c0_13 = arith.constant 0 : index
    %c0_14 = arith.constant 0 : index
    %c0_15 = arith.constant 0 : index
    %61 = vector.load %arg3[%c0_13, %c0_14, %c0_15] : memref<1x32x32xbf16, #tpu.memory_space<vmem>>, vector<1x32x32xbf16>
    %62 = vector.shape_cast %61 : vector<1x32x32xbf16> to vector<32x32xbf16>
    %cst_16 = arith.constant dense<0.000000e+00> : vector<16x32xf32>
    %63 = tpu.matmul %60, %62, %cst_16 {dimension_numbers = #tpu.dot_dimension_numbers<[1], [0], [0], [1], [0, 0, 1, 1], [], []>} : vector<16x32xbf16>, vector<32x32xbf16>, vector<16x32xf32> -> vector<16x32xf32>
    %64 = vector.extract_strided_slice %5 {offsets = [1, 0], sizes = [1, 32], strides = [1, 1]} : vector<8x128xf32> to vector<1x32xf32>
    %65 = vector.shape_cast %64 : vector<1x32xf32> to vector<32xf32>
    %66 = vector.shape_cast %65 : vector<32xf32> to vector<1x32xf32>
    %67 = vector.broadcast %66 : vector<1x32xf32> to vector<16x32xf32>
    %68 = arith.addf %63, %67 : vector<16x32xf32>
    %69 = arith.addf %3, %68 : vector<16x32xf32>
    %70 = vector.extract_strided_slice %5 {offsets = [2, 0], sizes = [1, 32], strides = [1, 1]} : vector<8x128xf32> to vector<1x32xf32>
    %71 = vector.shape_cast %70 : vector<1x32xf32> to vector<32xf32>
    %72 = vector.extract_strided_slice %5 {offsets = [3, 0], sizes = [1, 32], strides = [1, 1]} : vector<8x128xf32> to vector<1x32xf32>
    %73 = vector.shape_cast %72 : vector<1x32xf32> to vector<32xf32>
    %cst_17 = arith.constant dense<0.000000e+00> : vector<16xf32>
    %74 = vector.multi_reduction <add>, %69, %cst_17 [1] : vector<16x32xf32> to vector<16xf32>
    %75 = vector.shape_cast %74 : vector<16xf32> to vector<16x1xf32>
    %cst_18 = arith.constant 3.200000e+01 : f32
    %76 = vector.broadcast %cst_18 : f32 to vector<16x1xf32>
    %77 = arith.divf %75, %76 : vector<16x1xf32>
    %78 = vector.broadcast %77 : vector<16x1xf32> to vector<16x32xf32>
    %79 = arith.subf %69, %78 : vector<16x32xf32>
    %80 = arith.mulf %79, %79 : vector<16x32xf32>
    %cst_19 = arith.constant dense<0.000000e+00> : vector<16xf32>
    %81 = vector.multi_reduction <add>, %80, %cst_19 [1] : vector<16x32xf32> to vector<16xf32>
    %82 = vector.shape_cast %81 : vector<16xf32> to vector<16x1xf32>
    %cst_20 = arith.constant 3.200000e+01 : f32
    %83 = vector.broadcast %cst_20 : f32 to vector<16x1xf32>
    %84 = arith.divf %82, %83 : vector<16x1xf32>
    %85 = vector.broadcast %77 : vector<16x1xf32> to vector<16x32xf32>
    %86 = arith.subf %69, %85 : vector<16x32xf32>
    %cst_21 = arith.constant 9.99999974E-6 : f32
    %87 = vector.broadcast %cst_21 : f32 to vector<16x1xf32>
    %88 = arith.addf %84, %87 : vector<16x1xf32>
    %89 = math.rsqrt %88 : vector<16x1xf32>
    %90 = vector.broadcast %89 : vector<16x1xf32> to vector<16x32xf32>
    %91 = arith.mulf %86, %90 : vector<16x32xf32>
    %92 = vector.shape_cast %71 : vector<32xf32> to vector<1x32xf32>
    %93 = vector.broadcast %92 : vector<1x32xf32> to vector<16x32xf32>
    %94 = arith.mulf %91, %93 : vector<16x32xf32>
    %95 = vector.shape_cast %73 : vector<32xf32> to vector<1x32xf32>
    %96 = vector.broadcast %95 : vector<1x32xf32> to vector<16x32xf32>
    %97 = arith.addf %94, %96 : vector<16x32xf32>
    %98 = arith.truncf %97 : vector<16x32xf32> to vector<16x32xbf16>
    %c0_22 = arith.constant 0 : index
    %c0_23 = arith.constant 0 : index
    %c0_24 = arith.constant 0 : index
    %99 = vector.load %arg4[%c0_22, %c0_23, %c0_24] : memref<1x32x64xbf16, #tpu.memory_space<vmem>>, vector<1x32x64xbf16>
    %100 = vector.shape_cast %99 : vector<1x32x64xbf16> to vector<32x64xbf16>
    %cst_25 = arith.constant dense<0.000000e+00> : vector<16x64xf32>
    %101 = tpu.matmul %98, %100, %cst_25 {dimension_numbers = #tpu.dot_dimension_numbers<[1], [0], [0], [1], [0, 0, 1, 1], [], []>} : vector<16x32xbf16>, vector<32x64xbf16>, vector<16x64xf32> -> vector<16x64xf32>
    %102 = vector.extract_strided_slice %5 {offsets = [4, 0], sizes = [1, 64], strides = [1, 1]} : vector<8x128xf32> to vector<1x64xf32>
    %103 = vector.shape_cast %102 : vector<1x64xf32> to vector<64xf32>
    %104 = vector.shape_cast %103 : vector<64xf32> to vector<1x64xf32>
    %105 = vector.broadcast %104 : vector<1x64xf32> to vector<16x64xf32>
    %106 = arith.addf %101, %105 : vector<16x64xf32>
    %cst_26 = arith.constant 5.000000e-01 : f32
    %107 = vector.broadcast %cst_26 : f32 to vector<16x64xf32>
    %108 = arith.mulf %107, %106 : vector<16x64xf32>
    %cst_27 = arith.constant 0.707106769 : f32
    %109 = vector.broadcast %cst_27 : f32 to vector<16x64xf32>
    %110 = arith.mulf %106, %109 : vector<16x64xf32>
    %111 = math.erf %110 : vector<16x64xf32>
    %cst_28 = arith.constant 1.000000e+00 : f32
    %112 = vector.broadcast %cst_28 : f32 to vector<16x64xf32>
    %113 = arith.addf %112, %111 : vector<16x64xf32>
    %114 = arith.mulf %108, %113 : vector<16x64xf32>
    %115 = arith.truncf %114 : vector<16x64xf32> to vector<16x64xbf16>
    %c0_29 = arith.constant 0 : index
    %c0_30 = arith.constant 0 : index
    %c0_31 = arith.constant 0 : index
    %116 = vector.load %arg5[%c0_29, %c0_30, %c0_31] : memref<1x64x32xbf16, #tpu.memory_space<vmem>>, vector<1x64x32xbf16>
    %117 = vector.shape_cast %116 : vector<1x64x32xbf16> to vector<64x32xbf16>
    %cst_32 = arith.constant dense<0.000000e+00> : vector<16x32xf32>
    %118 = tpu.matmul %115, %117, %cst_32 {dimension_numbers = #tpu.dot_dimension_numbers<[1], [0], [0], [1], [0, 0, 1, 1], [], []>} : vector<16x64xbf16>, vector<64x32xbf16>, vector<16x32xf32> -> vector<16x32xf32>
    %119 = vector.extract_strided_slice %5 {offsets = [5, 0], sizes = [1, 32], strides = [1, 1]} : vector<8x128xf32> to vector<1x32xf32>
    %120 = vector.shape_cast %119 : vector<1x32xf32> to vector<32xf32>
    %121 = vector.shape_cast %120 : vector<32xf32> to vector<1x32xf32>
    %122 = vector.broadcast %121 : vector<1x32xf32> to vector<16x32xf32>
    %123 = arith.addf %118, %122 : vector<16x32xf32>
    %124 = arith.addf %97, %123 : vector<16x32xf32>
    %125 = vector.extract_strided_slice %5 {offsets = [6, 0], sizes = [1, 32], strides = [1, 1]} : vector<8x128xf32> to vector<1x32xf32>
    %126 = vector.shape_cast %125 : vector<1x32xf32> to vector<32xf32>
    %127 = vector.extract_strided_slice %5 {offsets = [7, 0], sizes = [1, 32], strides = [1, 1]} : vector<8x128xf32> to vector<1x32xf32>
    %128 = vector.shape_cast %127 : vector<1x32xf32> to vector<32xf32>
    %cst_33 = arith.constant dense<0.000000e+00> : vector<16xf32>
    %129 = vector.multi_reduction <add>, %124, %cst_33 [1] : vector<16x32xf32> to vector<16xf32>
    %130 = vector.shape_cast %129 : vector<16xf32> to vector<16x1xf32>
    %cst_34 = arith.constant 3.200000e+01 : f32
    %131 = vector.broadcast %cst_34 : f32 to vector<16x1xf32>
    %132 = arith.divf %130, %131 : vector<16x1xf32>
    %133 = vector.broadcast %132 : vector<16x1xf32> to vector<16x32xf32>
    %134 = arith.subf %124, %133 : vector<16x32xf32>
    %135 = arith.mulf %134, %134 : vector<16x32xf32>
    %cst_35 = arith.constant dense<0.000000e+00> : vector<16xf32>
    %136 = vector.multi_reduction <add>, %135, %cst_35 [1] : vector<16x32xf32> to vector<16xf32>
    %137 = vector.shape_cast %136 : vector<16xf32> to vector<16x1xf32>
    %cst_36 = arith.constant 3.200000e+01 : f32
    %138 = vector.broadcast %cst_36 : f32 to vector<16x1xf32>
    %139 = arith.divf %137, %138 : vector<16x1xf32>
    %140 = vector.broadcast %132 : vector<16x1xf32> to vector<16x32xf32>
    %141 = arith.subf %124, %140 : vector<16x32xf32>
    %cst_37 = arith.constant 9.99999974E-6 : f32
    %142 = vector.broadcast %cst_37 : f32 to vector<16x1xf32>
    %143 = arith.addf %139, %142 : vector<16x1xf32>
    %144 = math.rsqrt %143 : vector<16x1xf32>
    %145 = vector.broadcast %144 : vector<16x1xf32> to vector<16x32xf32>
    %146 = arith.mulf %141, %145 : vector<16x32xf32>
    %147 = vector.shape_cast %126 : vector<32xf32> to vector<1x32xf32>
    %148 = vector.broadcast %147 : vector<1x32xf32> to vector<16x32xf32>
    %149 = arith.mulf %146, %148 : vector<16x32xf32>
    %150 = vector.shape_cast %128 : vector<32xf32> to vector<1x32xf32>
    %151 = vector.broadcast %150 : vector<1x32xf32> to vector<16x32xf32>
    %152 = arith.addf %149, %151 : vector<16x32xf32>
    %c0_38 = arith.constant 0 : index
    %c0_39 = arith.constant 0 : index
    %153 = vector.load %arg8[%c0_38, %c0_39] : memref<16x32xf32, #tpu.memory_space<vmem>>, vector<16x32xf32>
    tpu.vector_store %arg8[%c0_38, %c0_39], %152 {strides = array<i32>} : memref<16x32xf32, #tpu.memory_space<vmem>>, vector<16x32xf32>,
    %c1_i32 = arith.constant 1 : i32
    %154 = arith.cmpi eq, %arg0, %c1_i32 : i32
    %155 = arith.extui %154 : i1 to i32
    %c0_i32_40 = arith.constant 0 : i32
    %156 = arith.cmpi ne, %155, %c0_i32_40 : i32
    scf.if %156 {
      %c0_41 = arith.constant 0 : index
      %c0_42 = arith.constant 0 : index
      %157 = vector.load %arg8[%c0_41, %c0_42] : memref<16x32xf32, #tpu.memory_space<vmem>>, vector<16x32xf32>
      %158 = arith.truncf %157 : vector<16x32xf32> to vector<16x32xbf16>
      %c0_43 = arith.constant 0 : index
      %c0_44 = arith.constant 0 : index
      %159 = vector.load %arg7[%c0_43, %c0_44] : memref<16x32xbf16, #tpu.memory_space<vmem>>, vector<16x32xbf16>
      tpu.vector_store %arg7[%c0_43, %c0_44], %158 {strides = array<i32>} : memref<16x32xbf16, #tpu.memory_space<vmem>>, vector<16x32xbf16>,
    } else {
    }
    return
  }
  func.func @transform_0(%arg0: i32) -> (i32, i32) {
    %c0_i32 = arith.constant 0 : i32
    %c0_i32_0 = arith.constant 0 : i32
    %c0_i32_1 = arith.constant 0 : i32
    return %c0_i32, %c0_i32_0 : i32, i32
  }
  func.func @transform_1(%arg0: i32) -> (i32, i32, i32) {
    %c0_i32 = arith.constant 0 : i32
    %c0_i32_0 = arith.constant 0 : i32
    %c0_i32_1 = arith.constant 0 : i32
    return %arg0, %c0_i32, %c0_i32_0 : i32, i32, i32
  }
  func.func @transform_2(%arg0: i32) -> (i32, i32, i32) {
    %c0_i32 = arith.constant 0 : i32
    %c0_i32_0 = arith.constant 0 : i32
    %c0_i32_1 = arith.constant 0 : i32
    return %arg0, %c0_i32, %c0_i32_0 : i32, i32, i32
  }
  func.func @transform_3(%arg0: i32) -> (i32, i32, i32) {
    %c0_i32 = arith.constant 0 : i32
    %c0_i32_0 = arith.constant 0 : i32
    %c0_i32_1 = arith.constant 0 : i32
    return %arg0, %c0_i32, %c0_i32_0 : i32, i32, i32
  }
  func.func @transform_4(%arg0: i32) -> (i32, i32, i32) {
    %c0_i32 = arith.constant 0 : i32
    %c0_i32_0 = arith.constant 0 : i32
    %c0_i32_1 = arith.constant 0 : i32
    return %arg0, %c0_i32, %c0_i32_0 : i32, i32, i32
  }
  func.func @transform_5(%arg0: i32) -> (i32, i32, i32) {
    %c0_i32 = arith.constant 0 : i32
    %c0_i32_0 = arith.constant 0 : i32
    %c0_i32_1 = arith.constant 0 : i32
    return %arg0, %c0_i32, %c0_i32_0 : i32, i32, i32
  }
  func.func @transform_6(%arg0: i32) -> (i32, i32) {
    %c0_i32 = arith.constant 0 : i32
    %c0_i32_0 = arith.constant 0 : i32
    %c0_i32_1 = arith.constant 0 : i32
    return %c0_i32, %c0_i32_0 : i32, i32
  }
}

module attributes {stable_mosaic.version = 11 : i64} {
  func.func @_decoder_stack_kernel(%arg0: i32, %arg1: memref<2x8x32xbf16, #tpu.memory_space<vmem>>, %arg2: memref<8x32xf32, #tpu.memory_space<vmem>>, %arg3: memref<2x32xf32, #tpu.memory_space<vmem>>, %arg4: memref<16x32xbf16, #tpu.memory_space<vmem>>, %arg5: memref<2x8xf32, #tpu.memory_space<vmem>>, %arg6: memref<1x32x96xbf16, #tpu.memory_space<vmem>>, %arg7: memref<1x32x32xbf16, #tpu.memory_space<vmem>>, %arg8: memref<1x32x32xbf16, #tpu.memory_space<vmem>>, %arg9: memref<1x32x64xbf16, #tpu.memory_space<vmem>>, %arg10: memref<1x32x32xbf16, #tpu.memory_space<vmem>>, %arg11: memref<1x32x64xbf16, #tpu.memory_space<vmem>>, %arg12: memref<1x64x32xbf16, #tpu.memory_space<vmem>>, %arg13: memref<1x13x128xf32, #tpu.memory_space<vmem>>, %arg14: memref<16x32xbf16, #tpu.memory_space<vmem>>, %arg15: memref<16x32xf32, #tpu.memory_space<vmem>>, %arg16: memref<2x8x8xf32, #tpu.memory_space<vmem>>) attributes {dimension_semantics = [#tpu.dimension_semantics<arbitrary>], iteration_bounds = array<i64: 2>, scalar_prefetch = 0 : i64, scratch_operands = 2 : i64, tpu.core_type = #tpu.core_type<tc>, window_params = [{pipeline_mode = #tpu.pipeline_mode<synchronous>, transform_indices = @transform_0, window_bounds = array<i64: 2, 8, 32>}, {pipeline_mode = #tpu.pipeline_mode<synchronous>, transform_indices = @transform_1, window_bounds = array<i64: 8, 32>}, {pipeline_mode = #tpu.pipeline_mode<synchronous>, transform_indices = @transform_2, window_bounds = array<i64: 2, 32>}, {pipeline_mode = #tpu.pipeline_mode<synchronous>, transform_indices = @transform_3, window_bounds = array<i64: 16, 32>}, {pipeline_mode = #tpu.pipeline_mode<synchronous>, transform_indices = @transform_4, window_bounds = array<i64: 2, 8>}, {transform_indices = @transform_5, window_bounds = array<i64: 1, 32, 96>}, {transform_indices = @transform_6, window_bounds = array<i64: 1, 32, 32>}, {transform_indices = @transform_7, window_bounds = array<i64: 1, 32, 32>}, {transform_indices = @transform_8, window_bounds = array<i64: 1, 32, 64>}, {transform_indices = @transform_9, window_bounds = array<i64: 1, 32, 32>}, {transform_indices = @transform_10, window_bounds = array<i64: 1, 32, 64>}, {transform_indices = @transform_11, window_bounds = array<i64: 1, 64, 32>}, {transform_indices = @transform_12, window_bounds = array<i64: 1, 13, 128>}, {pipeline_mode = #tpu.pipeline_mode<synchronous>, transform_indices = @transform_13, window_bounds = array<i64: 16, 32>}]} {
    %c0_i32 = arith.constant 0 : i32
    %0 = arith.cmpi eq, %arg0, %c0_i32 : i32
    %1 = arith.extui %0 : i1 to i32
    %c0_i32_0 = arith.constant 0 : i32
    %2 = arith.cmpi ne, %1, %c0_i32_0 : i32
    scf.if %2 {
      %c0_68 = arith.constant 0 : index
      %c0_69 = arith.constant 0 : index
      %c0_70 = arith.constant 0 : index
      %260 = vector.load %arg1[%c0_68, %c0_69, %c0_70] : memref<2x8x32xbf16, #tpu.memory_space<vmem>>, vector<2x8x32xbf16>
      %261 = arith.extf %260 : vector<2x8x32xbf16> to vector<2x8x32xf32>
      %c0_71 = arith.constant 0 : index
      %c0_72 = arith.constant 0 : index
      %262 = vector.load %arg2[%c0_71, %c0_72] : memref<8x32xf32, #tpu.memory_space<vmem>>, vector<8x32xf32>
      %263 = vector.shape_cast %262 : vector<8x32xf32> to vector<1x8x32xf32>
      %264 = vector.broadcast %263 : vector<1x8x32xf32> to vector<2x8x32xf32>
      %265 = arith.addf %261, %264 : vector<2x8x32xf32>
      %c0_73 = arith.constant 0 : index
      %c0_74 = arith.constant 0 : index
      %266 = vector.load %arg3[%c0_73, %c0_74] : memref<2x32xf32, #tpu.memory_space<vmem>>, vector<1x32xf32>
      %267 = vector.shape_cast %266 : vector<1x32xf32> to vector<32xf32>
      %c1 = arith.constant 1 : index
      %c0_75 = arith.constant 0 : index
      %268 = vector.load %arg3[%c1, %c0_75] : memref<2x32xf32, #tpu.memory_space<vmem>>, vector<1x32xf32>
      %269 = vector.shape_cast %268 : vector<1x32xf32> to vector<32xf32>
      %cst_76 = arith.constant dense<0.000000e+00> : vector<2x8xf32>
      %270 = vector.multi_reduction <add>, %265, %cst_76 [2] : vector<2x8x32xf32> to vector<2x8xf32>
      %271 = vector.shape_cast %270 : vector<2x8xf32> to vector<2x8x1xf32>
      %cst_77 = arith.constant 3.200000e+01 : f32
      %272 = vector.broadcast %cst_77 : f32 to vector<2x8x1xf32>
      %273 = arith.divf %271, %272 : vector<2x8x1xf32>
      %274 = vector.broadcast %273 : vector<2x8x1xf32> to vector<2x8x32xf32>
      %275 = arith.subf %265, %274 : vector<2x8x32xf32>
      %276 = arith.mulf %275, %275 : vector<2x8x32xf32>
      %cst_78 = arith.constant dense<0.000000e+00> : vector<2x8xf32>
      %277 = vector.multi_reduction <add>, %276, %cst_78 [2] : vector<2x8x32xf32> to vector<2x8xf32>
      %278 = vector.shape_cast %277 : vector<2x8xf32> to vector<2x8x1xf32>
      %cst_79 = arith.constant 3.200000e+01 : f32
      %279 = vector.broadcast %cst_79 : f32 to vector<2x8x1xf32>
      %280 = arith.divf %278, %279 : vector<2x8x1xf32>
      %281 = vector.broadcast %273 : vector<2x8x1xf32> to vector<2x8x32xf32>
      %282 = arith.subf %265, %281 : vector<2x8x32xf32>
      %cst_80 = arith.constant 9.99999974E-6 : f32
      %283 = vector.broadcast %cst_80 : f32 to vector<2x8x1xf32>
      %284 = arith.addf %280, %283 : vector<2x8x1xf32>
      %285 = math.rsqrt %284 : vector<2x8x1xf32>
      %286 = vector.broadcast %285 : vector<2x8x1xf32> to vector<2x8x32xf32>
      %287 = arith.mulf %282, %286 : vector<2x8x32xf32>
      %288 = vector.shape_cast %267 : vector<32xf32> to vector<1x1x32xf32>
      %289 = vector.broadcast %288 : vector<1x1x32xf32> to vector<2x8x32xf32>
      %290 = arith.mulf %287, %289 : vector<2x8x32xf32>
      %291 = vector.shape_cast %269 : vector<32xf32> to vector<1x1x32xf32>
      %292 = vector.broadcast %291 : vector<1x1x32xf32> to vector<2x8x32xf32>
      %293 = arith.addf %290, %292 : vector<2x8x32xf32>
      %294 = vector.shape_cast %293 : vector<2x8x32xf32> to vector<16x32xf32>
      %c0_81 = arith.constant 0 : index
      %c0_82 = arith.constant 0 : index
      %295 = vector.load %arg15[%c0_81, %c0_82] : memref<16x32xf32, #tpu.memory_space<vmem>>, vector<16x32xf32>
      tpu.vector_store %arg15[%c0_81, %c0_82], %294 {strides = array<i32>} : memref<16x32xf32, #tpu.memory_space<vmem>>, vector<16x32xf32>,
      %296 = tpu.iota {dimensions = array<i32: 0>} : vector<8x8xi32>
      %297 = tpu.iota {dimensions = array<i32: 1>} : vector<8x8xi32>
      %298 = arith.cmpi sge, %296, %297 : vector<8x8xi32>
      %cst_83 = arith.constant 0.000000e+00 : f32
      %cst_84 = arith.constant -1.000000e+09 : f32
      %299 = vector.broadcast %cst_83 : f32 to vector<8x8xf32>
      %300 = vector.broadcast %cst_84 : f32 to vector<8x8xf32>
      %301 = arith.select %298, %299, %300 : vector<8x8xi1>, vector<8x8xf32>
      %c0_85 = arith.constant 0 : index
      %c0_86 = arith.constant 0 : index
      %302 = vector.load %arg5[%c0_85, %c0_86] : memref<2x8xf32, #tpu.memory_space<vmem>>, vector<2x8xf32>
      %cst_87 = arith.constant 1.000000e+00 : f32
      %303 = vector.broadcast %cst_87 : f32 to vector<2x8xf32>
      %304 = arith.subf %303, %302 : vector<2x8xf32>
      %305 = vector.shape_cast %304 : vector<2x8xf32> to vector<2x1x8xf32>
      %cst_88 = arith.constant -1.000000e+09 : f32
      %306 = vector.broadcast %cst_88 : f32 to vector<2x1x8xf32>
      %307 = arith.mulf %305, %306 : vector<2x1x8xf32>
      %308 = vector.shape_cast %301 : vector<8x8xf32> to vector<1x8x8xf32>
      %309 = vector.broadcast %308 : vector<1x8x8xf32> to vector<2x8x8xf32>
      %310 = vector.broadcast %307 : vector<2x1x8xf32> to vector<2x8x8xf32>
      %311 = arith.addf %309, %310 : vector<2x8x8xf32>
      %c0_89 = arith.constant 0 : index
      %c0_90 = arith.constant 0 : index
      %c0_91 = arith.constant 0 : index
      %312 = vector.load %arg16[%c0_89, %c0_90, %c0_91] : memref<2x8x8xf32, #tpu.memory_space<vmem>>, vector<2x8x8xf32>
      tpu.vector_store %arg16[%c0_89, %c0_90, %c0_91], %311 {strides = array<i32>} : memref<2x8x8xf32, #tpu.memory_space<vmem>>, vector<2x8x8xf32>,
    } else {
    }
    %c0 = arith.constant 0 : index
    %c0_1 = arith.constant 0 : index
    %3 = vector.load %arg15[%c0, %c0_1] : memref<16x32xf32, #tpu.memory_space<vmem>>, vector<16x32xf32>
    %c0_2 = arith.constant 0 : index
    %c0_3 = arith.constant 0 : index
    %c0_4 = arith.constant 0 : index
    %4 = vector.load %arg13[%c0_2, %c0_3, %c0_4] : memref<1x13x128xf32, #tpu.memory_space<vmem>>, vector<1x13x128xf32>
    %5 = vector.shape_cast %4 : vector<1x13x128xf32> to vector<13x128xf32>
    %6 = arith.truncf %3 : vector<16x32xf32> to vector<16x32xbf16>
    %c0_5 = arith.constant 0 : index
    %c0_6 = arith.constant 0 : index
    %c0_7 = arith.constant 0 : index
    %7 = vector.load %arg6[%c0_5, %c0_6, %c0_7] : memref<1x32x96xbf16, #tpu.memory_space<vmem>>, vector<1x32x96xbf16>
    %8 = vector.shape_cast %7 : vector<1x32x96xbf16> to vector<32x96xbf16>
    %cst = arith.constant dense<0.000000e+00> : vector<16x96xf32>
    %9 = tpu.matmul %6, %8, %cst {dimension_numbers = #tpu.dot_dimension_numbers<[1], [0], [0], [1], [0, 0, 1, 1], [], []>} : vector<16x32xbf16>, vector<32x96xbf16>, vector<16x96xf32> -> vector<16x96xf32>
    %10 = vector.extract_strided_slice %5 {offsets = [0, 0], sizes = [1, 96], strides = [1, 1]} : vector<13x128xf32> to vector<1x96xf32>
    %11 = vector.shape_cast %10 : vector<1x96xf32> to vector<96xf32>
    %12 = vector.shape_cast %11 : vector<96xf32> to vector<1x96xf32>
    %13 = vector.broadcast %12 : vector<1x96xf32> to vector<16x96xf32>
    %14 = arith.addf %9, %13 : vector<16x96xf32>
    %15 = vector.extract_strided_slice %14 {offsets = [0, 0], sizes = [16, 32], strides = [1, 1]} : vector<16x96xf32> to vector<16x32xf32>
    %16 = vector.shape_cast %15 : vector<16x32xf32> to vector<2x8x32xf32>
    %17 = vector.extract_strided_slice %14 {offsets = [0, 32], sizes = [16, 32], strides = [1, 1]} : vector<16x96xf32> to vector<16x32xf32>
    %18 = vector.shape_cast %17 : vector<16x32xf32> to vector<2x8x32xf32>
    %19 = vector.extract_strided_slice %14 {offsets = [0, 64], sizes = [16, 32], strides = [1, 1]} : vector<16x96xf32> to vector<16x32xf32>
    %20 = vector.shape_cast %19 : vector<16x32xf32> to vector<2x8x32xf32>
    %c0_8 = arith.constant 0 : index
    %c0_9 = arith.constant 0 : index
    %c0_10 = arith.constant 0 : index
    %21 = vector.load %arg16[%c0_8, %c0_9, %c0_10] : memref<2x8x8xf32, #tpu.memory_space<vmem>>, vector<2x8x8xf32>
    %cst_11 = arith.constant 0.353553385 : f32
    %22 = vector.broadcast %cst_11 : f32 to vector<2x8x32xf32>
    %23 = arith.mulf %16, %22 : vector<2x8x32xf32>
    %24 = vector.extract_strided_slice %23 {offsets = [0, 0, 0], sizes = [2, 8, 8], strides = [1, 1, 1]} : vector<2x8x32xf32> to vector<2x8x8xf32>
    %25 = vector.extract_strided_slice %23 {offsets = [0, 0, 8], sizes = [2, 8, 8], strides = [1, 1, 1]} : vector<2x8x32xf32> to vector<2x8x8xf32>
    %26 = vector.extract_strided_slice %23 {offsets = [0, 0, 16], sizes = [2, 8, 8], strides = [1, 1, 1]} : vector<2x8x32xf32> to vector<2x8x8xf32>
    %27 = vector.extract_strided_slice %23 {offsets = [0, 0, 24], sizes = [2, 8, 8], strides = [1, 1, 1]} : vector<2x8x32xf32> to vector<2x8x8xf32>
    %28 = tpu.concatenate %24, %25, %26, %27 in 0 : vector<2x8x8xf32>, vector<2x8x8xf32>, vector<2x8x8xf32>, vector<2x8x8xf32> -> vector<8x8x8xf32>
    %29 = arith.truncf %28 : vector<8x8x8xf32> to vector<8x8x8xbf16>
    %30 = vector.extract_strided_slice %18 {offsets = [0, 0, 0], sizes = [2, 8, 8], strides = [1, 1, 1]} : vector<2x8x32xf32> to vector<2x8x8xf32>
    %31 = vector.extract_strided_slice %18 {offsets = [0, 0, 8], sizes = [2, 8, 8], strides = [1, 1, 1]} : vector<2x8x32xf32> to vector<2x8x8xf32>
    %32 = vector.extract_strided_slice %18 {offsets = [0, 0, 16], sizes = [2, 8, 8], strides = [1, 1, 1]} : vector<2x8x32xf32> to vector<2x8x8xf32>
    %33 = vector.extract_strided_slice %18 {offsets = [0, 0, 24], sizes = [2, 8, 8], strides = [1, 1, 1]} : vector<2x8x32xf32> to vector<2x8x8xf32>
    %34 = tpu.concatenate %30, %31, %32, %33 in 0 : vector<2x8x8xf32>, vector<2x8x8xf32>, vector<2x8x8xf32>, vector<2x8x8xf32> -> vector<8x8x8xf32>
    %35 = arith.truncf %34 : vector<8x8x8xf32> to vector<8x8x8xbf16>
    %36 = vector.extract_strided_slice %20 {offsets = [0, 0, 0], sizes = [2, 8, 8], strides = [1, 1, 1]} : vector<2x8x32xf32> to vector<2x8x8xf32>
    %37 = vector.extract_strided_slice %20 {offsets = [0, 0, 8], sizes = [2, 8, 8], strides = [1, 1, 1]} : vector<2x8x32xf32> to vector<2x8x8xf32>
    %38 = vector.extract_strided_slice %20 {offsets = [0, 0, 16], sizes = [2, 8, 8], strides = [1, 1, 1]} : vector<2x8x32xf32> to vector<2x8x8xf32>
    %39 = vector.extract_strided_slice %20 {offsets = [0, 0, 24], sizes = [2, 8, 8], strides = [1, 1, 1]} : vector<2x8x32xf32> to vector<2x8x8xf32>
    %40 = tpu.concatenate %36, %37, %38, %39 in 0 : vector<2x8x8xf32>, vector<2x8x8xf32>, vector<2x8x8xf32>, vector<2x8x8xf32> -> vector<8x8x8xf32>
    %41 = arith.truncf %40 : vector<8x8x8xf32> to vector<8x8x8xbf16>
    "tpu.trace_start"() <{level = 10 : i32, message = "nqd,nkd->nqk"}> : () -> ()
    %cst_12 = arith.constant dense<0.000000e+00> : vector<8x8x8xf32>
    %42 = tpu.matmul %29, %35, %cst_12 {dimension_numbers = #tpu.dot_dimension_numbers<[2], [2], [1], [1], [0, 0, 0, 1, 1, 1], [0], [0]>} : vector<8x8x8xbf16>, vector<8x8x8xbf16>, vector<8x8x8xf32> -> vector<8x8x8xf32>
    "tpu.trace_stop"() : () -> ()
    %43 = tpu.concatenate %21, %21, %21, %21 in 0 : vector<2x8x8xf32>, vector<2x8x8xf32>, vector<2x8x8xf32>, vector<2x8x8xf32> -> vector<8x8x8xf32>
    %44 = arith.addf %42, %43 : vector<8x8x8xf32>
    %cst_13 = arith.constant dense<0xFF800000> : vector<8x8xf32>
    %45 = vector.multi_reduction <maximumf>, %44, %cst_13 [2] : vector<8x8x8xf32> to vector<8x8xf32>
    %46 = vector.shape_cast %45 : vector<8x8xf32> to vector<8x8x1xf32>
    %47 = vector.broadcast %46 : vector<8x8x1xf32> to vector<8x8x8xf32>
    %48 = arith.subf %44, %47 : vector<8x8x8xf32>
    %49 = math.exp %48 : vector<8x8x8xf32>
    %cst_14 = arith.constant dense<0.000000e+00> : vector<8x8xf32>
    %50 = vector.multi_reduction <add>, %49, %cst_14 [2] : vector<8x8x8xf32> to vector<8x8xf32>
    %51 = vector.shape_cast %50 : vector<8x8xf32> to vector<8x8x1xf32>
    %52 = tpu.reciprocal %51 {approx = true} : vector<8x8x1xf32> -> vector<8x8x1xf32>
    %53 = vector.broadcast %52 : vector<8x8x1xf32> to vector<8x8x8xf32>
    %54 = arith.mulf %49, %53 : vector<8x8x8xf32>
    %55 = arith.truncf %54 : vector<8x8x8xf32> to vector<8x8x8xbf16>
    "tpu.trace_start"() <{level = 10 : i32, message = "nqk,nkd->nqd"}> : () -> ()
    %cst_15 = arith.constant dense<0.000000e+00> : vector<8x8x8xf32>
    %56 = tpu.matmul %55, %41, %cst_15 {dimension_numbers = #tpu.dot_dimension_numbers<[2], [1], [1], [2], [0, 0, 0, 1, 1, 2], [0], [0]>} : vector<8x8x8xbf16>, vector<8x8x8xbf16>, vector<8x8x8xf32> -> vector<8x8x8xf32>
    "tpu.trace_stop"() : () -> ()
    %57 = vector.extract_strided_slice %56 {offsets = [0, 0, 0], sizes = [2, 8, 8], strides = [1, 1, 1]} : vector<8x8x8xf32> to vector<2x8x8xf32>
    %58 = vector.extract_strided_slice %56 {offsets = [2, 0, 0], sizes = [2, 8, 8], strides = [1, 1, 1]} : vector<8x8x8xf32> to vector<2x8x8xf32>
    %59 = vector.extract_strided_slice %56 {offsets = [4, 0, 0], sizes = [2, 8, 8], strides = [1, 1, 1]} : vector<8x8x8xf32> to vector<2x8x8xf32>
    %60 = vector.extract_strided_slice %56 {offsets = [6, 0, 0], sizes = [2, 8, 8], strides = [1, 1, 1]} : vector<8x8x8xf32> to vector<2x8x8xf32>
    %61 = tpu.concatenate %57, %58, %59, %60 in 2 : vector<2x8x8xf32>, vector<2x8x8xf32>, vector<2x8x8xf32>, vector<2x8x8xf32> -> vector<2x8x32xf32>
    %62 = vector.shape_cast %61 : vector<2x8x32xf32> to vector<16x32xf32>
    %63 = arith.truncf %62 : vector<16x32xf32> to vector<16x32xbf16>
    %c0_16 = arith.constant 0 : index
    %c0_17 = arith.constant 0 : index
    %c0_18 = arith.constant 0 : index
    %64 = vector.load %arg7[%c0_16, %c0_17, %c0_18] : memref<1x32x32xbf16, #tpu.memory_space<vmem>>, vector<1x32x32xbf16>
    %65 = vector.shape_cast %64 : vector<1x32x32xbf16> to vector<32x32xbf16>
    %cst_19 = arith.constant dense<0.000000e+00> : vector<16x32xf32>
    %66 = tpu.matmul %63, %65, %cst_19 {dimension_numbers = #tpu.dot_dimension_numbers<[1], [0], [0], [1], [0, 0, 1, 1], [], []>} : vector<16x32xbf16>, vector<32x32xbf16>, vector<16x32xf32> -> vector<16x32xf32>
    %67 = vector.extract_strided_slice %5 {offsets = [1, 0], sizes = [1, 32], strides = [1, 1]} : vector<13x128xf32> to vector<1x32xf32>
    %68 = vector.shape_cast %67 : vector<1x32xf32> to vector<32xf32>
    %69 = vector.shape_cast %68 : vector<32xf32> to vector<1x32xf32>
    %70 = vector.broadcast %69 : vector<1x32xf32> to vector<16x32xf32>
    %71 = arith.addf %66, %70 : vector<16x32xf32>
    %72 = arith.addf %3, %71 : vector<16x32xf32>
    %73 = vector.extract_strided_slice %5 {offsets = [2, 0], sizes = [1, 32], strides = [1, 1]} : vector<13x128xf32> to vector<1x32xf32>
    %74 = vector.shape_cast %73 : vector<1x32xf32> to vector<32xf32>
    %75 = vector.extract_strided_slice %5 {offsets = [3, 0], sizes = [1, 32], strides = [1, 1]} : vector<13x128xf32> to vector<1x32xf32>
    %76 = vector.shape_cast %75 : vector<1x32xf32> to vector<32xf32>
    %cst_20 = arith.constant dense<0.000000e+00> : vector<16xf32>
    %77 = vector.multi_reduction <add>, %72, %cst_20 [1] : vector<16x32xf32> to vector<16xf32>
    %78 = vector.shape_cast %77 : vector<16xf32> to vector<16x1xf32>
    %cst_21 = arith.constant 3.200000e+01 : f32
    %79 = vector.broadcast %cst_21 : f32 to vector<16x1xf32>
    %80 = arith.divf %78, %79 : vector<16x1xf32>
    %81 = vector.broadcast %80 : vector<16x1xf32> to vector<16x32xf32>
    %82 = arith.subf %72, %81 : vector<16x32xf32>
    %83 = arith.mulf %82, %82 : vector<16x32xf32>
    %cst_22 = arith.constant dense<0.000000e+00> : vector<16xf32>
    %84 = vector.multi_reduction <add>, %83, %cst_22 [1] : vector<16x32xf32> to vector<16xf32>
    %85 = vector.shape_cast %84 : vector<16xf32> to vector<16x1xf32>
    %cst_23 = arith.constant 3.200000e+01 : f32
    %86 = vector.broadcast %cst_23 : f32 to vector<16x1xf32>
    %87 = arith.divf %85, %86 : vector<16x1xf32>
    %88 = vector.broadcast %80 : vector<16x1xf32> to vector<16x32xf32>
    %89 = arith.subf %72, %88 : vector<16x32xf32>
    %cst_24 = arith.constant 9.99999974E-6 : f32
    %90 = vector.broadcast %cst_24 : f32 to vector<16x1xf32>
    %91 = arith.addf %87, %90 : vector<16x1xf32>
    %92 = math.rsqrt %91 : vector<16x1xf32>
    %93 = vector.broadcast %92 : vector<16x1xf32> to vector<16x32xf32>
    %94 = arith.mulf %89, %93 : vector<16x32xf32>
    %95 = vector.shape_cast %74 : vector<32xf32> to vector<1x32xf32>
    %96 = vector.broadcast %95 : vector<1x32xf32> to vector<16x32xf32>
    %97 = arith.mulf %94, %96 : vector<16x32xf32>
    %98 = vector.shape_cast %76 : vector<32xf32> to vector<1x32xf32>
    %99 = vector.broadcast %98 : vector<1x32xf32> to vector<16x32xf32>
    %100 = arith.addf %97, %99 : vector<16x32xf32>
    %101 = arith.truncf %100 : vector<16x32xf32> to vector<16x32xbf16>
    %c0_25 = arith.constant 0 : index
    %c0_26 = arith.constant 0 : index
    %c0_27 = arith.constant 0 : index
    %102 = vector.load %arg8[%c0_25, %c0_26, %c0_27] : memref<1x32x32xbf16, #tpu.memory_space<vmem>>, vector<1x32x32xbf16>
    %103 = vector.shape_cast %102 : vector<1x32x32xbf16> to vector<32x32xbf16>
    %cst_28 = arith.constant dense<0.000000e+00> : vector<16x32xf32>
    %104 = tpu.matmul %101, %103, %cst_28 {dimension_numbers = #tpu.dot_dimension_numbers<[1], [0], [0], [1], [0, 0, 1, 1], [], []>} : vector<16x32xbf16>, vector<32x32xbf16>, vector<16x32xf32> -> vector<16x32xf32>
    %105 = vector.extract_strided_slice %5 {offsets = [4, 0], sizes = [1, 32], strides = [1, 1]} : vector<13x128xf32> to vector<1x32xf32>
    %106 = vector.shape_cast %105 : vector<1x32xf32> to vector<32xf32>
    %107 = vector.shape_cast %106 : vector<32xf32> to vector<1x32xf32>
    %108 = vector.broadcast %107 : vector<1x32xf32> to vector<16x32xf32>
    %109 = arith.addf %104, %108 : vector<16x32xf32>
    %c0_29 = arith.constant 0 : index
    %c0_30 = arith.constant 0 : index
    %110 = vector.load %arg4[%c0_29, %c0_30] : memref<16x32xbf16, #tpu.memory_space<vmem>>, vector<16x32xbf16>
    %c0_31 = arith.constant 0 : index
    %c0_32 = arith.constant 0 : index
    %c0_33 = arith.constant 0 : index
    %111 = vector.load %arg9[%c0_31, %c0_32, %c0_33] : memref<1x32x64xbf16, #tpu.memory_space<vmem>>, vector<1x32x64xbf16>
    %112 = vector.shape_cast %111 : vector<1x32x64xbf16> to vector<32x64xbf16>
    %cst_34 = arith.constant dense<0.000000e+00> : vector<16x64xf32>
    %113 = tpu.matmul %110, %112, %cst_34 {dimension_numbers = #tpu.dot_dimension_numbers<[1], [0], [0], [1], [0, 0, 1, 1], [], []>} : vector<16x32xbf16>, vector<32x64xbf16>, vector<16x64xf32> -> vector<16x64xf32>
    %114 = vector.extract_strided_slice %5 {offsets = [5, 0], sizes = [1, 64], strides = [1, 1]} : vector<13x128xf32> to vector<1x64xf32>
    %115 = vector.shape_cast %114 : vector<1x64xf32> to vector<64xf32>
    %116 = vector.shape_cast %115 : vector<64xf32> to vector<1x64xf32>
    %117 = vector.broadcast %116 : vector<1x64xf32> to vector<16x64xf32>
    %118 = arith.addf %113, %117 : vector<16x64xf32>
    %119 = vector.shape_cast %109 : vector<16x32xf32> to vector<2x8x32xf32>
    %120 = vector.extract_strided_slice %118 {offsets = [0, 0], sizes = [16, 32], strides = [1, 1]} : vector<16x64xf32> to vector<16x32xf32>
    %121 = vector.shape_cast %120 : vector<16x32xf32> to vector<2x8x32xf32>
    %122 = vector.extract_strided_slice %118 {offsets = [0, 32], sizes = [16, 32], strides = [1, 1]} : vector<16x64xf32> to vector<16x32xf32>
    %123 = vector.shape_cast %122 : vector<16x32xf32> to vector<2x8x32xf32>
    %cst_35 = arith.constant 0.353553385 : f32
    %124 = vector.broadcast %cst_35 : f32 to vector<2x8x32xf32>
    %125 = arith.mulf %119, %124 : vector<2x8x32xf32>
    %126 = vector.extract_strided_slice %125 {offsets = [0, 0, 0], sizes = [2, 8, 8], strides = [1, 1, 1]} : vector<2x8x32xf32> to vector<2x8x8xf32>
    %127 = vector.extract_strided_slice %125 {offsets = [0, 0, 8], sizes = [2, 8, 8], strides = [1, 1, 1]} : vector<2x8x32xf32> to vector<2x8x8xf32>
    %128 = vector.extract_strided_slice %125 {offsets = [0, 0, 16], sizes = [2, 8, 8], strides = [1, 1, 1]} : vector<2x8x32xf32> to vector<2x8x8xf32>
    %129 = vector.extract_strided_slice %125 {offsets = [0, 0, 24], sizes = [2, 8, 8], strides = [1, 1, 1]} : vector<2x8x32xf32> to vector<2x8x8xf32>
    %130 = tpu.concatenate %126, %127, %128, %129 in 0 : vector<2x8x8xf32>, vector<2x8x8xf32>, vector<2x8x8xf32>, vector<2x8x8xf32> -> vector<8x8x8xf32>
    %131 = arith.truncf %130 : vector<8x8x8xf32> to vector<8x8x8xbf16>
    %132 = vector.extract_strided_slice %121 {offsets = [0, 0, 0], sizes = [2, 8, 8], strides = [1, 1, 1]} : vector<2x8x32xf32> to vector<2x8x8xf32>
    %133 = vector.extract_strided_slice %121 {offsets = [0, 0, 8], sizes = [2, 8, 8], strides = [1, 1, 1]} : vector<2x8x32xf32> to vector<2x8x8xf32>
    %134 = vector.extract_strided_slice %121 {offsets = [0, 0, 16], sizes = [2, 8, 8], strides = [1, 1, 1]} : vector<2x8x32xf32> to vector<2x8x8xf32>
    %135 = vector.extract_strided_slice %121 {offsets = [0, 0, 24], sizes = [2, 8, 8], strides = [1, 1, 1]} : vector<2x8x32xf32> to vector<2x8x8xf32>
    %136 = tpu.concatenate %132, %133, %134, %135 in 0 : vector<2x8x8xf32>, vector<2x8x8xf32>, vector<2x8x8xf32>, vector<2x8x8xf32> -> vector<8x8x8xf32>
    %137 = arith.truncf %136 : vector<8x8x8xf32> to vector<8x8x8xbf16>
    %138 = vector.extract_strided_slice %123 {offsets = [0, 0, 0], sizes = [2, 8, 8], strides = [1, 1, 1]} : vector<2x8x32xf32> to vector<2x8x8xf32>
    %139 = vector.extract_strided_slice %123 {offsets = [0, 0, 8], sizes = [2, 8, 8], strides = [1, 1, 1]} : vector<2x8x32xf32> to vector<2x8x8xf32>
    %140 = vector.extract_strided_slice %123 {offsets = [0, 0, 16], sizes = [2, 8, 8], strides = [1, 1, 1]} : vector<2x8x32xf32> to vector<2x8x8xf32>
    %141 = vector.extract_strided_slice %123 {offsets = [0, 0, 24], sizes = [2, 8, 8], strides = [1, 1, 1]} : vector<2x8x32xf32> to vector<2x8x8xf32>
    %142 = tpu.concatenate %138, %139, %140, %141 in 0 : vector<2x8x8xf32>, vector<2x8x8xf32>, vector<2x8x8xf32>, vector<2x8x8xf32> -> vector<8x8x8xf32>
    %143 = arith.truncf %142 : vector<8x8x8xf32> to vector<8x8x8xbf16>
    "tpu.trace_start"() <{level = 10 : i32, message = "nqd,nkd->nqk"}> : () -> ()
    %cst_36 = arith.constant dense<0.000000e+00> : vector<8x8x8xf32>
    %144 = tpu.matmul %131, %137, %cst_36 {dimension_numbers = #tpu.dot_dimension_numbers<[2], [2], [1], [1], [0, 0, 0, 1, 1, 1], [0], [0]>} : vector<8x8x8xbf16>, vector<8x8x8xbf16>, vector<8x8x8xf32> -> vector<8x8x8xf32>
    "tpu.trace_stop"() : () -> ()
    %cst_37 = arith.constant dense<0xFF800000> : vector<8x8xf32>
    %145 = vector.multi_reduction <maximumf>, %144, %cst_37 [2] : vector<8x8x8xf32> to vector<8x8xf32>
    %146 = vector.shape_cast %145 : vector<8x8xf32> to vector<8x8x1xf32>
    %147 = vector.broadcast %146 : vector<8x8x1xf32> to vector<8x8x8xf32>
    %148 = arith.subf %144, %147 : vector<8x8x8xf32>
    %149 = math.exp %148 : vector<8x8x8xf32>
    %cst_38 = arith.constant dense<0.000000e+00> : vector<8x8xf32>
    %150 = vector.multi_reduction <add>, %149, %cst_38 [2] : vector<8x8x8xf32> to vector<8x8xf32>
    %151 = vector.shape_cast %150 : vector<8x8xf32> to vector<8x8x1xf32>
    %152 = tpu.reciprocal %151 {approx = true} : vector<8x8x1xf32> -> vector<8x8x1xf32>
    %153 = vector.broadcast %152 : vector<8x8x1xf32> to vector<8x8x8xf32>
    %154 = arith.mulf %149, %153 : vector<8x8x8xf32>
    %155 = arith.truncf %154 : vector<8x8x8xf32> to vector<8x8x8xbf16>
    "tpu.trace_start"() <{level = 10 : i32, message = "nqk,nkd->nqd"}> : () -> ()
    %cst_39 = arith.constant dense<0.000000e+00> : vector<8x8x8xf32>
    %156 = tpu.matmul %155, %143, %cst_39 {dimension_numbers = #tpu.dot_dimension_numbers<[2], [1], [1], [2], [0, 0, 0, 1, 1, 2], [0], [0]>} : vector<8x8x8xbf16>, vector<8x8x8xbf16>, vector<8x8x8xf32> -> vector<8x8x8xf32>
    "tpu.trace_stop"() : () -> ()
    %157 = vector.extract_strided_slice %156 {offsets = [0, 0, 0], sizes = [2, 8, 8], strides = [1, 1, 1]} : vector<8x8x8xf32> to vector<2x8x8xf32>
    %158 = vector.extract_strided_slice %156 {offsets = [2, 0, 0], sizes = [2, 8, 8], strides = [1, 1, 1]} : vector<8x8x8xf32> to vector<2x8x8xf32>
    %159 = vector.extract_strided_slice %156 {offsets = [4, 0, 0], sizes = [2, 8, 8], strides = [1, 1, 1]} : vector<8x8x8xf32> to vector<2x8x8xf32>
    %160 = vector.extract_strided_slice %156 {offsets = [6, 0, 0], sizes = [2, 8, 8], strides = [1, 1, 1]} : vector<8x8x8xf32> to vector<2x8x8xf32>
    %161 = tpu.concatenate %157, %158, %159, %160 in 2 : vector<2x8x8xf32>, vector<2x8x8xf32>, vector<2x8x8xf32>, vector<2x8x8xf32> -> vector<2x8x32xf32>
    %162 = vector.shape_cast %161 : vector<2x8x32xf32> to vector<16x32xf32>
    %163 = arith.truncf %162 : vector<16x32xf32> to vector<16x32xbf16>
    %c0_40 = arith.constant 0 : index
    %c0_41 = arith.constant 0 : index
    %c0_42 = arith.constant 0 : index
    %164 = vector.load %arg10[%c0_40, %c0_41, %c0_42] : memref<1x32x32xbf16, #tpu.memory_space<vmem>>, vector<1x32x32xbf16>
    %165 = vector.shape_cast %164 : vector<1x32x32xbf16> to vector<32x32xbf16>
    %cst_43 = arith.constant dense<0.000000e+00> : vector<16x32xf32>
    %166 = tpu.matmul %163, %165, %cst_43 {dimension_numbers = #tpu.dot_dimension_numbers<[1], [0], [0], [1], [0, 0, 1, 1], [], []>} : vector<16x32xbf16>, vector<32x32xbf16>, vector<16x32xf32> -> vector<16x32xf32>
    %167 = vector.extract_strided_slice %5 {offsets = [6, 0], sizes = [1, 32], strides = [1, 1]} : vector<13x128xf32> to vector<1x32xf32>
    %168 = vector.shape_cast %167 : vector<1x32xf32> to vector<32xf32>
    %169 = vector.shape_cast %168 : vector<32xf32> to vector<1x32xf32>
    %170 = vector.broadcast %169 : vector<1x32xf32> to vector<16x32xf32>
    %171 = arith.addf %166, %170 : vector<16x32xf32>
    %172 = arith.addf %100, %171 : vector<16x32xf32>
    %173 = vector.extract_strided_slice %5 {offsets = [7, 0], sizes = [1, 32], strides = [1, 1]} : vector<13x128xf32> to vector<1x32xf32>
    %174 = vector.shape_cast %173 : vector<1x32xf32> to vector<32xf32>
    %175 = vector.extract_strided_slice %5 {offsets = [8, 0], sizes = [1, 32], strides = [1, 1]} : vector<13x128xf32> to vector<1x32xf32>
    %176 = vector.shape_cast %175 : vector<1x32xf32> to vector<32xf32>
    %cst_44 = arith.constant dense<0.000000e+00> : vector<16xf32>
    %177 = vector.multi_reduction <add>, %172, %cst_44 [1] : vector<16x32xf32> to vector<16xf32>
    %178 = vector.shape_cast %177 : vector<16xf32> to vector<16x1xf32>
    %cst_45 = arith.constant 3.200000e+01 : f32
    %179 = vector.broadcast %cst_45 : f32 to vector<16x1xf32>
    %180 = arith.divf %178, %179 : vector<16x1xf32>
    %181 = vector.broadcast %180 : vector<16x1xf32> to vector<16x32xf32>
    %182 = arith.subf %172, %181 : vector<16x32xf32>
    %183 = arith.mulf %182, %182 : vector<16x32xf32>
    %cst_46 = arith.constant dense<0.000000e+00> : vector<16xf32>
    %184 = vector.multi_reduction <add>, %183, %cst_46 [1] : vector<16x32xf32> to vector<16xf32>
    %185 = vector.shape_cast %184 : vector<16xf32> to vector<16x1xf32>
    %cst_47 = arith.constant 3.200000e+01 : f32
    %186 = vector.broadcast %cst_47 : f32 to vector<16x1xf32>
    %187 = arith.divf %185, %186 : vector<16x1xf32>
    %188 = vector.broadcast %180 : vector<16x1xf32> to vector<16x32xf32>
    %189 = arith.subf %172, %188 : vector<16x32xf32>
    %cst_48 = arith.constant 9.99999974E-6 : f32
    %190 = vector.broadcast %cst_48 : f32 to vector<16x1xf32>
    %191 = arith.addf %187, %190 : vector<16x1xf32>
    %192 = math.rsqrt %191 : vector<16x1xf32>
    %193 = vector.broadcast %192 : vector<16x1xf32> to vector<16x32xf32>
    %194 = arith.mulf %189, %193 : vector<16x32xf32>
    %195 = vector.shape_cast %174 : vector<32xf32> to vector<1x32xf32>
    %196 = vector.broadcast %195 : vector<1x32xf32> to vector<16x32xf32>
    %197 = arith.mulf %194, %196 : vector<16x32xf32>
    %198 = vector.shape_cast %176 : vector<32xf32> to vector<1x32xf32>
    %199 = vector.broadcast %198 : vector<1x32xf32> to vector<16x32xf32>
    %200 = arith.addf %197, %199 : vector<16x32xf32>
    %201 = arith.truncf %200 : vector<16x32xf32> to vector<16x32xbf16>
    %c0_49 = arith.constant 0 : index
    %c0_50 = arith.constant 0 : index
    %c0_51 = arith.constant 0 : index
    %202 = vector.load %arg11[%c0_49, %c0_50, %c0_51] : memref<1x32x64xbf16, #tpu.memory_space<vmem>>, vector<1x32x64xbf16>
    %203 = vector.shape_cast %202 : vector<1x32x64xbf16> to vector<32x64xbf16>
    %cst_52 = arith.constant dense<0.000000e+00> : vector<16x64xf32>
    %204 = tpu.matmul %201, %203, %cst_52 {dimension_numbers = #tpu.dot_dimension_numbers<[1], [0], [0], [1], [0, 0, 1, 1], [], []>} : vector<16x32xbf16>, vector<32x64xbf16>, vector<16x64xf32> -> vector<16x64xf32>
    %205 = vector.extract_strided_slice %5 {offsets = [9, 0], sizes = [1, 64], strides = [1, 1]} : vector<13x128xf32> to vector<1x64xf32>
    %206 = vector.shape_cast %205 : vector<1x64xf32> to vector<64xf32>
    %207 = vector.shape_cast %206 : vector<64xf32> to vector<1x64xf32>
    %208 = vector.broadcast %207 : vector<1x64xf32> to vector<16x64xf32>
    %209 = arith.addf %204, %208 : vector<16x64xf32>
    %cst_53 = arith.constant 5.000000e-01 : f32
    %210 = vector.broadcast %cst_53 : f32 to vector<16x64xf32>
    %211 = arith.mulf %210, %209 : vector<16x64xf32>
    %cst_54 = arith.constant 0.707106769 : f32
    %212 = vector.broadcast %cst_54 : f32 to vector<16x64xf32>
    %213 = arith.mulf %209, %212 : vector<16x64xf32>
    %214 = math.erf %213 : vector<16x64xf32>
    %cst_55 = arith.constant 1.000000e+00 : f32
    %215 = vector.broadcast %cst_55 : f32 to vector<16x64xf32>
    %216 = arith.addf %215, %214 : vector<16x64xf32>
    %217 = arith.mulf %211, %216 : vector<16x64xf32>
    %218 = arith.truncf %217 : vector<16x64xf32> to vector<16x64xbf16>
    %c0_56 = arith.constant 0 : index
    %c0_57 = arith.constant 0 : index
    %c0_58 = arith.constant 0 : index
    %219 = vector.load %arg12[%c0_56, %c0_57, %c0_58] : memref<1x64x32xbf16, #tpu.memory_space<vmem>>, vector<1x64x32xbf16>
    %220 = vector.shape_cast %219 : vector<1x64x32xbf16> to vector<64x32xbf16>
    %cst_59 = arith.constant dense<0.000000e+00> : vector<16x32xf32>
    %221 = tpu.matmul %218, %220, %cst_59 {dimension_numbers = #tpu.dot_dimension_numbers<[1], [0], [0], [1], [0, 0, 1, 1], [], []>} : vector<16x64xbf16>, vector<64x32xbf16>, vector<16x32xf32> -> vector<16x32xf32>
    %222 = vector.extract_strided_slice %5 {offsets = [10, 0], sizes = [1, 32], strides = [1, 1]} : vector<13x128xf32> to vector<1x32xf32>
    %223 = vector.shape_cast %222 : vector<1x32xf32> to vector<32xf32>
    %224 = vector.shape_cast %223 : vector<32xf32> to vector<1x32xf32>
    %225 = vector.broadcast %224 : vector<1x32xf32> to vector<16x32xf32>
    %226 = arith.addf %221, %225 : vector<16x32xf32>
    %227 = arith.addf %200, %226 : vector<16x32xf32>
    %228 = vector.extract_strided_slice %5 {offsets = [11, 0], sizes = [1, 32], strides = [1, 1]} : vector<13x128xf32> to vector<1x32xf32>
    %229 = vector.shape_cast %228 : vector<1x32xf32> to vector<32xf32>
    %230 = vector.extract_strided_slice %5 {offsets = [12, 0], sizes = [1, 32], strides = [1, 1]} : vector<13x128xf32> to vector<1x32xf32>
    %231 = vector.shape_cast %230 : vector<1x32xf32> to vector<32xf32>
    %cst_60 = arith.constant dense<0.000000e+00> : vector<16xf32>
    %232 = vector.multi_reduction <add>, %227, %cst_60 [1] : vector<16x32xf32> to vector<16xf32>
    %233 = vector.shape_cast %232 : vector<16xf32> to vector<16x1xf32>
    %cst_61 = arith.constant 3.200000e+01 : f32
    %234 = vector.broadcast %cst_61 : f32 to vector<16x1xf32>
    %235 = arith.divf %233, %234 : vector<16x1xf32>
    %236 = vector.broadcast %235 : vector<16x1xf32> to vector<16x32xf32>
    %237 = arith.subf %227, %236 : vector<16x32xf32>
    %238 = arith.mulf %237, %237 : vector<16x32xf32>
    %cst_62 = arith.constant dense<0.000000e+00> : vector<16xf32>
    %239 = vector.multi_reduction <add>, %238, %cst_62 [1] : vector<16x32xf32> to vector<16xf32>
    %240 = vector.shape_cast %239 : vector<16xf32> to vector<16x1xf32>
    %cst_63 = arith.constant 3.200000e+01 : f32
    %241 = vector.broadcast %cst_63 : f32 to vector<16x1xf32>
    %242 = arith.divf %240, %241 : vector<16x1xf32>
    %243 = vector.broadcast %235 : vector<16x1xf32> to vector<16x32xf32>
    %244 = arith.subf %227, %243 : vector<16x32xf32>
    %cst_64 = arith.constant 9.99999974E-6 : f32
    %245 = vector.broadcast %cst_64 : f32 to vector<16x1xf32>
    %246 = arith.addf %242, %245 : vector<16x1xf32>
    %247 = math.rsqrt %246 : vector<16x1xf32>
    %248 = vector.broadcast %247 : vector<16x1xf32> to vector<16x32xf32>
    %249 = arith.mulf %244, %248 : vector<16x32xf32>
    %250 = vector.shape_cast %229 : vector<32xf32> to vector<1x32xf32>
    %251 = vector.broadcast %250 : vector<1x32xf32> to vector<16x32xf32>
    %252 = arith.mulf %249, %251 : vector<16x32xf32>
    %253 = vector.shape_cast %231 : vector<32xf32> to vector<1x32xf32>
    %254 = vector.broadcast %253 : vector<1x32xf32> to vector<16x32xf32>
    %255 = arith.addf %252, %254 : vector<16x32xf32>
    %c0_65 = arith.constant 0 : index
    %c0_66 = arith.constant 0 : index
    %256 = vector.load %arg15[%c0_65, %c0_66] : memref<16x32xf32, #tpu.memory_space<vmem>>, vector<16x32xf32>
    tpu.vector_store %arg15[%c0_65, %c0_66], %255 {strides = array<i32>} : memref<16x32xf32, #tpu.memory_space<vmem>>, vector<16x32xf32>,
    %c1_i32 = arith.constant 1 : i32
    %257 = arith.cmpi eq, %arg0, %c1_i32 : i32
    %258 = arith.extui %257 : i1 to i32
    %c0_i32_67 = arith.constant 0 : i32
    %259 = arith.cmpi ne, %258, %c0_i32_67 : i32
    scf.if %259 {
      %c0_68 = arith.constant 0 : index
      %c0_69 = arith.constant 0 : index
      %260 = vector.load %arg15[%c0_68, %c0_69] : memref<16x32xf32, #tpu.memory_space<vmem>>, vector<16x32xf32>
      %261 = arith.truncf %260 : vector<16x32xf32> to vector<16x32xbf16>
      %c0_70 = arith.constant 0 : index
      %c0_71 = arith.constant 0 : index
      %262 = vector.load %arg14[%c0_70, %c0_71] : memref<16x32xbf16, #tpu.memory_space<vmem>>, vector<16x32xbf16>
      tpu.vector_store %arg14[%c0_70, %c0_71], %261 {strides = array<i32>} : memref<16x32xbf16, #tpu.memory_space<vmem>>, vector<16x32xbf16>,
    } else {
    }
    return
  }
  func.func @transform_0(%arg0: i32) -> (i32, i32, i32) {
    %c0_i32 = arith.constant 0 : i32
    %c0_i32_0 = arith.constant 0 : i32
    %c0_i32_1 = arith.constant 0 : i32
    %c0_i32_2 = arith.constant 0 : i32
    return %c0_i32, %c0_i32_0, %c0_i32_1 : i32, i32, i32
  }
  func.func @transform_1(%arg0: i32) -> (i32, i32) {
    %c0_i32 = arith.constant 0 : i32
    %c0_i32_0 = arith.constant 0 : i32
    %c0_i32_1 = arith.constant 0 : i32
    return %c0_i32, %c0_i32_0 : i32, i32
  }
  func.func @transform_2(%arg0: i32) -> (i32, i32) {
    %c0_i32 = arith.constant 0 : i32
    %c0_i32_0 = arith.constant 0 : i32
    %c0_i32_1 = arith.constant 0 : i32
    return %c0_i32, %c0_i32_0 : i32, i32
  }
  func.func @transform_3(%arg0: i32) -> (i32, i32) {
    %c0_i32 = arith.constant 0 : i32
    %c0_i32_0 = arith.constant 0 : i32
    %c0_i32_1 = arith.constant 0 : i32
    return %c0_i32, %c0_i32_0 : i32, i32
  }
  func.func @transform_4(%arg0: i32) -> (i32, i32) {
    %c0_i32 = arith.constant 0 : i32
    %c0_i32_0 = arith.constant 0 : i32
    %c0_i32_1 = arith.constant 0 : i32
    return %c0_i32, %c0_i32_0 : i32, i32
  }
  func.func @transform_5(%arg0: i32) -> (i32, i32, i32) {
    %c0_i32 = arith.constant 0 : i32
    %c0_i32_0 = arith.constant 0 : i32
    %c0_i32_1 = arith.constant 0 : i32
    return %arg0, %c0_i32, %c0_i32_0 : i32, i32, i32
  }
  func.func @transform_6(%arg0: i32) -> (i32, i32, i32) {
    %c0_i32 = arith.constant 0 : i32
    %c0_i32_0 = arith.constant 0 : i32
    %c0_i32_1 = arith.constant 0 : i32
    return %arg0, %c0_i32, %c0_i32_0 : i32, i32, i32
  }
  func.func @transform_7(%arg0: i32) -> (i32, i32, i32) {
    %c0_i32 = arith.constant 0 : i32
    %c0_i32_0 = arith.constant 0 : i32
    %c0_i32_1 = arith.constant 0 : i32
    return %arg0, %c0_i32, %c0_i32_0 : i32, i32, i32
  }
  func.func @transform_8(%arg0: i32) -> (i32, i32, i32) {
    %c0_i32 = arith.constant 0 : i32
    %c0_i32_0 = arith.constant 0 : i32
    %c0_i32_1 = arith.constant 0 : i32
    return %arg0, %c0_i32, %c0_i32_0 : i32, i32, i32
  }
  func.func @transform_9(%arg0: i32) -> (i32, i32, i32) {
    %c0_i32 = arith.constant 0 : i32
    %c0_i32_0 = arith.constant 0 : i32
    %c0_i32_1 = arith.constant 0 : i32
    return %arg0, %c0_i32, %c0_i32_0 : i32, i32, i32
  }
  func.func @transform_10(%arg0: i32) -> (i32, i32, i32) {
    %c0_i32 = arith.constant 0 : i32
    %c0_i32_0 = arith.constant 0 : i32
    %c0_i32_1 = arith.constant 0 : i32
    return %arg0, %c0_i32, %c0_i32_0 : i32, i32, i32
  }
  func.func @transform_11(%arg0: i32) -> (i32, i32, i32) {
    %c0_i32 = arith.constant 0 : i32
    %c0_i32_0 = arith.constant 0 : i32
    %c0_i32_1 = arith.constant 0 : i32
    return %arg0, %c0_i32, %c0_i32_0 : i32, i32, i32
  }
  func.func @transform_12(%arg0: i32) -> (i32, i32, i32) {
    %c0_i32 = arith.constant 0 : i32
    %c0_i32_0 = arith.constant 0 : i32
    %c0_i32_1 = arith.constant 0 : i32
    return %arg0, %c0_i32, %c0_i32_0 : i32, i32, i32
  }
  func.func @transform_13(%arg0: i32) -> (i32, i32) {
    %c0_i32 = arith.constant 0 : i32
    %c0_i32_0 = arith.constant 0 : i32
    %c0_i32_1 = arith.constant 0 : i32
    return %c0_i32, %c0_i32_0 : i32, i32
  }
}

module attributes {stable_mosaic.version = 11 : i64} {
  func.func @_audio_frontend_kernel(%arg0: memref<2x32x16xf32, #tpu.memory_space<vmem>>, %arg1: memref<48x32xbf16, #tpu.memory_space<vmem>>, %arg2: memref<96x32xbf16, #tpu.memory_space<vmem>>, %arg3: memref<96x32xbf16, #tpu.memory_space<vmem>>, %arg4: memref<32x32xbf16, #tpu.memory_space<vmem>>, %arg5: memref<8x32xf32, #tpu.memory_space<vmem>>, %arg6: memref<8x32xf32, #tpu.memory_space<vmem>>, %arg7: memref<5x128xf32, #tpu.memory_space<vmem>>, %arg8: memref<16x32xf32, #tpu.memory_space<vmem>>, %arg9: memref<2x34x16xf32, #tpu.memory_space<vmem>>, %arg10: memref<2x34x32xf32, #tpu.memory_space<vmem>>, %arg11: memref<2x18x32xf32, #tpu.memory_space<vmem>>) attributes {dimension_semantics = [], scalar_prefetch = 0 : i64, scratch_operands = 3 : i64, tpu.core_type = #tpu.core_type<tc>} {
    %c0 = arith.constant 0 : index
    %c0_0 = arith.constant 0 : index
    %0 = vector.load %arg7[%c0, %c0_0] : memref<5x128xf32, #tpu.memory_space<vmem>>, vector<5x128xf32>
    %cst = arith.constant 0.000000e+00 : f32
    %1 = vector.broadcast %cst : f32 to vector<2x34x16xf32>
    %c0_1 = arith.constant 0 : index
    %c0_2 = arith.constant 0 : index
    %c0_3 = arith.constant 0 : index
    %2 = vector.load %arg9[%c0_1, %c0_2, %c0_3] : memref<2x34x16xf32, #tpu.memory_space<vmem>>, vector<2x34x16xf32>
    tpu.vector_store %arg9[%c0_1, %c0_2, %c0_3], %1 {strides = array<i32>} : memref<2x34x16xf32, #tpu.memory_space<vmem>>, vector<2x34x16xf32>,
    %c0_4 = arith.constant 0 : index
    %c0_5 = arith.constant 0 : index
    %c0_6 = arith.constant 0 : index
    %3 = vector.load %arg0[%c0_4, %c0_5, %c0_6] : memref<2x32x16xf32, #tpu.memory_space<vmem>>, vector<2x32x16xf32>
    %c0_7 = arith.constant 0 : index
    %c1 = arith.constant 1 : index
    %c0_8 = arith.constant 0 : index
    %4 = vector.load %arg9[%c0_7, %c1, %c0_8] : memref<2x34x16xf32, #tpu.memory_space<vmem>>, vector<2x32x16xf32>
    tpu.vector_store %arg9[%c0_7, %c1, %c0_8], %3 {strides = array<i32>} : memref<2x34x16xf32, #tpu.memory_space<vmem>>, vector<2x32x16xf32>,
    %c0_9 = arith.constant 0 : index
    %c0_10 = arith.constant 0 : index
    %c0_11 = arith.constant 0 : index
    %5 = vector.load %arg9[%c0_9, %c0_10, %c0_11] : memref<2x34x16xf32, #tpu.memory_space<vmem>>, vector<2x32x16xf32>
    %c0_12 = arith.constant 0 : index
    %c0_13 = arith.constant 0 : index
    %6 = vector.load %arg1[%c0_12, %c0_13] : memref<48x32xbf16, #tpu.memory_space<vmem>>, vector<16x32xbf16>
    %7 = vector.shape_cast %5 : vector<2x32x16xf32> to vector<64x16xf32>
    %8 = arith.truncf %7 : vector<64x16xf32> to vector<64x16xbf16>
    %cst_14 = arith.constant dense<0.000000e+00> : vector<64x32xf32>
    %9 = tpu.matmul %8, %6, %cst_14 {dimension_numbers = #tpu.dot_dimension_numbers<[1], [0], [0], [1], [0, 0, 1, 1], [], []>} : vector<64x16xbf16>, vector<16x32xbf16>, vector<64x32xf32> -> vector<64x32xf32>
    %c0_15 = arith.constant 0 : index
    %c1_16 = arith.constant 1 : index
    %c0_17 = arith.constant 0 : index
    %10 = vector.load %arg9[%c0_15, %c1_16, %c0_17] : memref<2x34x16xf32, #tpu.memory_space<vmem>>, vector<2x32x16xf32>
    %c16 = arith.constant 16 : index
    %c0_18 = arith.constant 0 : index
    %11 = vector.load %arg1[%c16, %c0_18] : memref<48x32xbf16, #tpu.memory_space<vmem>>, vector<16x32xbf16>
    %12 = vector.shape_cast %10 : vector<2x32x16xf32> to vector<64x16xf32>
    %13 = arith.truncf %12 : vector<64x16xf32> to vector<64x16xbf16>
    %cst_19 = arith.constant dense<0.000000e+00> : vector<64x32xf32>
    %14 = tpu.matmul %13, %11, %cst_19 {dimension_numbers = #tpu.dot_dimension_numbers<[1], [0], [0], [1], [0, 0, 1, 1], [], []>} : vector<64x16xbf16>, vector<16x32xbf16>, vector<64x32xf32> -> vector<64x32xf32>
    %15 = arith.addf %9, %14 : vector<64x32xf32>
    %c0_20 = arith.constant 0 : index
    %c2 = arith.constant 2 : index
    %c0_21 = arith.constant 0 : index
    %16 = vector.load %arg9[%c0_20, %c2, %c0_21] : memref<2x34x16xf32, #tpu.memory_space<vmem>>, vector<2x32x16xf32>
    %c32 = arith.constant 32 : index
    %c0_22 = arith.constant 0 : index
    %17 = vector.load %arg1[%c32, %c0_22] : memref<48x32xbf16, #tpu.memory_space<vmem>>, vector<16x32xbf16>
    %18 = vector.shape_cast %16 : vector<2x32x16xf32> to vector<64x16xf32>
    %19 = arith.truncf %18 : vector<64x16xf32> to vector<64x16xbf16>
    %cst_23 = arith.constant dense<0.000000e+00> : vector<64x32xf32>
    %20 = tpu.matmul %19, %17, %cst_23 {dimension_numbers = #tpu.dot_dimension_numbers<[1], [0], [0], [1], [0, 0, 1, 1], [], []>} : vector<64x16xbf16>, vector<16x32xbf16>, vector<64x32xf32> -> vector<64x32xf32>
    %21 = arith.addf %15, %20 : vector<64x32xf32>
    %22 = vector.extract_strided_slice %0 {offsets = [0, 0], sizes = [1, 32], strides = [1, 1]} : vector<5x128xf32> to vector<1x32xf32>
    %23 = vector.shape_cast %22 : vector<1x32xf32> to vector<32xf32>
    %24 = vector.shape_cast %23 : vector<32xf32> to vector<1x32xf32>
    %25 = vector.broadcast %24 : vector<1x32xf32> to vector<64x32xf32>
    %26 = arith.addf %21, %25 : vector<64x32xf32>
    %cst_24 = arith.constant 5.000000e-01 : f32
    %27 = vector.broadcast %cst_24 : f32 to vector<64x32xf32>
    %28 = arith.mulf %27, %26 : vector<64x32xf32>
    %cst_25 = arith.constant 0.707106769 : f32
    %29 = vector.broadcast %cst_25 : f32 to vector<64x32xf32>
    %30 = arith.mulf %26, %29 : vector<64x32xf32>
    %31 = math.erf %30 : vector<64x32xf32>
    %cst_26 = arith.constant 1.000000e+00 : f32
    %32 = vector.broadcast %cst_26 : f32 to vector<64x32xf32>
    %33 = arith.addf %32, %31 : vector<64x32xf32>
    %34 = arith.mulf %28, %33 : vector<64x32xf32>
    %cst_27 = arith.constant 0.000000e+00 : f32
    %35 = vector.broadcast %cst_27 : f32 to vector<2x34x32xf32>
    %c0_28 = arith.constant 0 : index
    %c0_29 = arith.constant 0 : index
    %c0_30 = arith.constant 0 : index
    %36 = vector.load %arg10[%c0_28, %c0_29, %c0_30] : memref<2x34x32xf32, #tpu.memory_space<vmem>>, vector<2x34x32xf32>
    tpu.vector_store %arg10[%c0_28, %c0_29, %c0_30], %35 {strides = array<i32>} : memref<2x34x32xf32, #tpu.memory_space<vmem>>, vector<2x34x32xf32>,
    %37 = vector.shape_cast %34 : vector<64x32xf32> to vector<2x32x32xf32>
    %c0_31 = arith.constant 0 : index
    %c1_32 = arith.constant 1 : index
    %c0_33 = arith.constant 0 : index
    %38 = vector.load %arg10[%c0_31, %c1_32, %c0_33] : memref<2x34x32xf32, #tpu.memory_space<vmem>>, vector<2x32x32xf32>
    tpu.vector_store %arg10[%c0_31, %c1_32, %c0_33], %37 {strides = array<i32>} : memref<2x34x32xf32, #tpu.memory_space<vmem>>, vector<2x32x32xf32>,
    %c0_34 = arith.constant 0 : index
    %c0_35 = arith.constant 0 : index
    %c0_36 = arith.constant 0 : index
    %39 = vector.load %arg10[%c0_34, %c0_35, %c0_36] : memref<2x34x32xf32, #tpu.memory_space<vmem>>, vector<2x32x32xf32>
    %40 = vector.shape_cast %39 : vector<2x32x32xf32> to vector<2x16x2x32xf32>
    %41 = vector.extract_strided_slice %40 {offsets = [0, 0, 0, 0], sizes = [2, 16, 1, 32], strides = [1, 1, 1, 1]} : vector<2x16x2x32xf32> to vector<2x16x1x32xf32>
    %42 = vector.shape_cast %41 : vector<2x16x1x32xf32> to vector<2x16x32xf32>
    %c0_37 = arith.constant 0 : index
    %c0_38 = arith.constant 0 : index
    %43 = vector.load %arg2[%c0_37, %c0_38] : memref<96x32xbf16, #tpu.memory_space<vmem>>, vector<32x32xbf16>
    %44 = vector.shape_cast %42 : vector<2x16x32xf32> to vector<32x32xf32>
    %45 = arith.truncf %44 : vector<32x32xf32> to vector<32x32xbf16>
    %cst_39 = arith.constant dense<0.000000e+00> : vector<32x32xf32>
    %46 = tpu.matmul %45, %43, %cst_39 {dimension_numbers = #tpu.dot_dimension_numbers<[1], [0], [0], [1], [0, 0, 1, 1], [], []>} : vector<32x32xbf16>, vector<32x32xbf16>, vector<32x32xf32> -> vector<32x32xf32>
    %c0_40 = arith.constant 0 : index
    %c1_41 = arith.constant 1 : index
    %c0_42 = arith.constant 0 : index
    %47 = vector.load %arg10[%c0_40, %c1_41, %c0_42] : memref<2x34x32xf32, #tpu.memory_space<vmem>>, vector<2x32x32xf32>
    %48 = vector.shape_cast %47 : vector<2x32x32xf32> to vector<2x16x2x32xf32>
    %49 = vector.extract_strided_slice %48 {offsets = [0, 0, 0, 0], sizes = [2, 16, 1, 32], strides = [1, 1, 1, 1]} : vector<2x16x2x32xf32> to vector<2x16x1x32xf32>
    %50 = vector.shape_cast %49 : vector<2x16x1x32xf32> to vector<2x16x32xf32>
    %c32_43 = arith.constant 32 : index
    %c0_44 = arith.constant 0 : index
    %51 = vector.load %arg2[%c32_43, %c0_44] : memref<96x32xbf16, #tpu.memory_space<vmem>>, vector<32x32xbf16>
    %52 = vector.shape_cast %50 : vector<2x16x32xf32> to vector<32x32xf32>
    %53 = arith.truncf %52 : vector<32x32xf32> to vector<32x32xbf16>
    %cst_45 = arith.constant dense<0.000000e+00> : vector<32x32xf32>
    %54 = tpu.matmul %53, %51, %cst_45 {dimension_numbers = #tpu.dot_dimension_numbers<[1], [0], [0], [1], [0, 0, 1, 1], [], []>} : vector<32x32xbf16>, vector<32x32xbf16>, vector<32x32xf32> -> vector<32x32xf32>
    %55 = arith.addf %46, %54 : vector<32x32xf32>
    %c0_46 = arith.constant 0 : index
    %c2_47 = arith.constant 2 : index
    %c0_48 = arith.constant 0 : index
    %56 = vector.load %arg10[%c0_46, %c2_47, %c0_48] : memref<2x34x32xf32, #tpu.memory_space<vmem>>, vector<2x32x32xf32>
    %57 = vector.shape_cast %56 : vector<2x32x32xf32> to vector<2x16x2x32xf32>
    %58 = vector.extract_strided_slice %57 {offsets = [0, 0, 0, 0], sizes = [2, 16, 1, 32], strides = [1, 1, 1, 1]} : vector<2x16x2x32xf32> to vector<2x16x1x32xf32>
    %59 = vector.shape_cast %58 : vector<2x16x1x32xf32> to vector<2x16x32xf32>
    %c64 = arith.constant 64 : index
    %c0_49 = arith.constant 0 : index
    %60 = vector.load %arg2[%c64, %c0_49] : memref<96x32xbf16, #tpu.memory_space<vmem>>, vector<32x32xbf16>
    %61 = vector.shape_cast %59 : vector<2x16x32xf32> to vector<32x32xf32>
    %62 = arith.truncf %61 : vector<32x32xf32> to vector<32x32xbf16>
    %cst_50 = arith.constant dense<0.000000e+00> : vector<32x32xf32>
    %63 = tpu.matmul %62, %60, %cst_50 {dimension_numbers = #tpu.dot_dimension_numbers<[1], [0], [0], [1], [0, 0, 1, 1], [], []>} : vector<32x32xbf16>, vector<32x32xbf16>, vector<32x32xf32> -> vector<32x32xf32>
    %64 = arith.addf %55, %63 : vector<32x32xf32>
    %65 = vector.extract_strided_slice %0 {offsets = [1, 0], sizes = [1, 32], strides = [1, 1]} : vector<5x128xf32> to vector<1x32xf32>
    %66 = vector.shape_cast %65 : vector<1x32xf32> to vector<32xf32>
    %67 = vector.shape_cast %66 : vector<32xf32> to vector<1x32xf32>
    %68 = vector.broadcast %67 : vector<1x32xf32> to vector<32x32xf32>
    %69 = arith.addf %64, %68 : vector<32x32xf32>
    %cst_51 = arith.constant 5.000000e-01 : f32
    %70 = vector.broadcast %cst_51 : f32 to vector<32x32xf32>
    %71 = arith.mulf %70, %69 : vector<32x32xf32>
    %cst_52 = arith.constant 0.707106769 : f32
    %72 = vector.broadcast %cst_52 : f32 to vector<32x32xf32>
    %73 = arith.mulf %69, %72 : vector<32x32xf32>
    %74 = math.erf %73 : vector<32x32xf32>
    %cst_53 = arith.constant 1.000000e+00 : f32
    %75 = vector.broadcast %cst_53 : f32 to vector<32x32xf32>
    %76 = arith.addf %75, %74 : vector<32x32xf32>
    %77 = arith.mulf %71, %76 : vector<32x32xf32>
    %cst_54 = arith.constant 0.000000e+00 : f32
    %78 = vector.broadcast %cst_54 : f32 to vector<2x18x32xf32>
    %c0_55 = arith.constant 0 : index
    %c0_56 = arith.constant 0 : index
    %c0_57 = arith.constant 0 : index
    %79 = vector.load %arg11[%c0_55, %c0_56, %c0_57] : memref<2x18x32xf32, #tpu.memory_space<vmem>>, vector<2x18x32xf32>
    tpu.vector_store %arg11[%c0_55, %c0_56, %c0_57], %78 {strides = array<i32>} : memref<2x18x32xf32, #tpu.memory_space<vmem>>, vector<2x18x32xf32>,
    %80 = vector.shape_cast %77 : vector<32x32xf32> to vector<2x16x32xf32>
    %c0_58 = arith.constant 0 : index
    %c1_59 = arith.constant 1 : index
    %c0_60 = arith.constant 0 : index
    %81 = vector.load %arg11[%c0_58, %c1_59, %c0_60] : memref<2x18x32xf32, #tpu.memory_space<vmem>>, vector<2x16x32xf32>
    tpu.vector_store %arg11[%c0_58, %c1_59, %c0_60], %80 {strides = array<i32>} : memref<2x18x32xf32, #tpu.memory_space<vmem>>, vector<2x16x32xf32>,
    %c0_61 = arith.constant 0 : index
    %c0_62 = arith.constant 0 : index
    %c0_63 = arith.constant 0 : index
    %82 = vector.load %arg11[%c0_61, %c0_62, %c0_63] : memref<2x18x32xf32, #tpu.memory_space<vmem>>, vector<2x16x32xf32>
    %83 = vector.shape_cast %82 : vector<2x16x32xf32> to vector<2x8x2x32xf32>
    %84 = vector.extract_strided_slice %83 {offsets = [0, 0, 0, 0], sizes = [2, 8, 1, 32], strides = [1, 1, 1, 1]} : vector<2x8x2x32xf32> to vector<2x8x1x32xf32>
    %85 = vector.shape_cast %84 : vector<2x8x1x32xf32> to vector<2x8x32xf32>
    %c0_64 = arith.constant 0 : index
    %c0_65 = arith.constant 0 : index
    %86 = vector.load %arg3[%c0_64, %c0_65] : memref<96x32xbf16, #tpu.memory_space<vmem>>, vector<32x32xbf16>
    %87 = vector.shape_cast %85 : vector<2x8x32xf32> to vector<16x32xf32>
    %88 = arith.truncf %87 : vector<16x32xf32> to vector<16x32xbf16>
    %cst_66 = arith.constant dense<0.000000e+00> : vector<16x32xf32>
    %89 = tpu.matmul %88, %86, %cst_66 {dimension_numbers = #tpu.dot_dimension_numbers<[1], [0], [0], [1], [0, 0, 1, 1], [], []>} : vector<16x32xbf16>, vector<32x32xbf16>, vector<16x32xf32> -> vector<16x32xf32>
    %c0_67 = arith.constant 0 : index
    %c1_68 = arith.constant 1 : index
    %c0_69 = arith.constant 0 : index
    %90 = vector.load %arg11[%c0_67, %c1_68, %c0_69] : memref<2x18x32xf32, #tpu.memory_space<vmem>>, vector<2x16x32xf32>
    %91 = vector.shape_cast %90 : vector<2x16x32xf32> to vector<2x8x2x32xf32>
    %92 = vector.extract_strided_slice %91 {offsets = [0, 0, 0, 0], sizes = [2, 8, 1, 32], strides = [1, 1, 1, 1]} : vector<2x8x2x32xf32> to vector<2x8x1x32xf32>
    %93 = vector.shape_cast %92 : vector<2x8x1x32xf32> to vector<2x8x32xf32>
    %c32_70 = arith.constant 32 : index
    %c0_71 = arith.constant 0 : index
    %94 = vector.load %arg3[%c32_70, %c0_71] : memref<96x32xbf16, #tpu.memory_space<vmem>>, vector<32x32xbf16>
    %95 = vector.shape_cast %93 : vector<2x8x32xf32> to vector<16x32xf32>
    %96 = arith.truncf %95 : vector<16x32xf32> to vector<16x32xbf16>
    %cst_72 = arith.constant dense<0.000000e+00> : vector<16x32xf32>
    %97 = tpu.matmul %96, %94, %cst_72 {dimension_numbers = #tpu.dot_dimension_numbers<[1], [0], [0], [1], [0, 0, 1, 1], [], []>} : vector<16x32xbf16>, vector<32x32xbf16>, vector<16x32xf32> -> vector<16x32xf32>
    %98 = arith.addf %89, %97 : vector<16x32xf32>
    %c0_73 = arith.constant 0 : index
    %c2_74 = arith.constant 2 : index
    %c0_75 = arith.constant 0 : index
    %99 = vector.load %arg11[%c0_73, %c2_74, %c0_75] : memref<2x18x32xf32, #tpu.memory_space<vmem>>, vector<2x16x32xf32>
    %100 = vector.shape_cast %99 : vector<2x16x32xf32> to vector<2x8x2x32xf32>
    %101 = vector.extract_strided_slice %100 {offsets = [0, 0, 0, 0], sizes = [2, 8, 1, 32], strides = [1, 1, 1, 1]} : vector<2x8x2x32xf32> to vector<2x8x1x32xf32>
    %102 = vector.shape_cast %101 : vector<2x8x1x32xf32> to vector<2x8x32xf32>
    %c64_76 = arith.constant 64 : index
    %c0_77 = arith.constant 0 : index
    %103 = vector.load %arg3[%c64_76, %c0_77] : memref<96x32xbf16, #tpu.memory_space<vmem>>, vector<32x32xbf16>
    %104 = vector.shape_cast %102 : vector<2x8x32xf32> to vector<16x32xf32>
    %105 = arith.truncf %104 : vector<16x32xf32> to vector<16x32xbf16>
    %cst_78 = arith.constant dense<0.000000e+00> : vector<16x32xf32>
    %106 = tpu.matmul %105, %103, %cst_78 {dimension_numbers = #tpu.dot_dimension_numbers<[1], [0], [0], [1], [0, 0, 1, 1], [], []>} : vector<16x32xbf16>, vector<32x32xbf16>, vector<16x32xf32> -> vector<16x32xf32>
    %107 = arith.addf %98, %106 : vector<16x32xf32>
    %108 = vector.extract_strided_slice %0 {offsets = [2, 0], sizes = [1, 32], strides = [1, 1]} : vector<5x128xf32> to vector<1x32xf32>
    %109 = vector.shape_cast %108 : vector<1x32xf32> to vector<32xf32>
    %110 = vector.shape_cast %109 : vector<32xf32> to vector<1x32xf32>
    %111 = vector.broadcast %110 : vector<1x32xf32> to vector<16x32xf32>
    %112 = arith.addf %107, %111 : vector<16x32xf32>
    %cst_79 = arith.constant 5.000000e-01 : f32
    %113 = vector.broadcast %cst_79 : f32 to vector<16x32xf32>
    %114 = arith.mulf %113, %112 : vector<16x32xf32>
    %cst_80 = arith.constant 0.707106769 : f32
    %115 = vector.broadcast %cst_80 : f32 to vector<16x32xf32>
    %116 = arith.mulf %112, %115 : vector<16x32xf32>
    %117 = math.erf %116 : vector<16x32xf32>
    %cst_81 = arith.constant 1.000000e+00 : f32
    %118 = vector.broadcast %cst_81 : f32 to vector<16x32xf32>
    %119 = arith.addf %118, %117 : vector<16x32xf32>
    %120 = arith.mulf %114, %119 : vector<16x32xf32>
    %121 = vector.shape_cast %120 : vector<16x32xf32> to vector<2x8x32xf32>
    %c0_82 = arith.constant 0 : index
    %c0_83 = arith.constant 0 : index
    %122 = vector.load %arg5[%c0_82, %c0_83] : memref<8x32xf32, #tpu.memory_space<vmem>>, vector<8x32xf32>
    %123 = vector.shape_cast %122 : vector<8x32xf32> to vector<1x8x32xf32>
    %124 = vector.broadcast %123 : vector<1x8x32xf32> to vector<2x8x32xf32>
    %125 = arith.addf %121, %124 : vector<2x8x32xf32>
    %126 = vector.shape_cast %125 : vector<2x8x32xf32> to vector<16x32xf32>
    %127 = arith.truncf %126 : vector<16x32xf32> to vector<16x32xbf16>
    %c0_84 = arith.constant 0 : index
    %c0_85 = arith.constant 0 : index
    %128 = vector.load %arg4[%c0_84, %c0_85] : memref<32x32xbf16, #tpu.memory_space<vmem>>, vector<32x32xbf16>
    %cst_86 = arith.constant dense<0.000000e+00> : vector<16x32xf32>
    %129 = tpu.matmul %127, %128, %cst_86 {dimension_numbers = #tpu.dot_dimension_numbers<[1], [0], [0], [1], [0, 0, 1, 1], [], []>} : vector<16x32xbf16>, vector<32x32xbf16>, vector<16x32xf32> -> vector<16x32xf32>
    %130 = vector.shape_cast %129 : vector<16x32xf32> to vector<2x8x32xf32>
    %c0_87 = arith.constant 0 : index
    %c0_88 = arith.constant 0 : index
    %131 = vector.load %arg6[%c0_87, %c0_88] : memref<8x32xf32, #tpu.memory_space<vmem>>, vector<8x32xf32>
    %132 = vector.shape_cast %131 : vector<8x32xf32> to vector<1x8x32xf32>
    %133 = vector.broadcast %132 : vector<1x8x32xf32> to vector<2x8x32xf32>
    %134 = arith.addf %130, %133 : vector<2x8x32xf32>
    %135 = vector.extract_strided_slice %0 {offsets = [3, 0], sizes = [1, 32], strides = [1, 1]} : vector<5x128xf32> to vector<1x32xf32>
    %136 = vector.shape_cast %135 : vector<1x32xf32> to vector<32xf32>
    %137 = vector.extract_strided_slice %0 {offsets = [4, 0], sizes = [1, 32], strides = [1, 1]} : vector<5x128xf32> to vector<1x32xf32>
    %138 = vector.shape_cast %137 : vector<1x32xf32> to vector<32xf32>
    %cst_89 = arith.constant dense<0.000000e+00> : vector<2x8xf32>
    %139 = vector.multi_reduction <add>, %134, %cst_89 [2] : vector<2x8x32xf32> to vector<2x8xf32>
    %140 = vector.shape_cast %139 : vector<2x8xf32> to vector<2x8x1xf32>
    %cst_90 = arith.constant 3.200000e+01 : f32
    %141 = vector.broadcast %cst_90 : f32 to vector<2x8x1xf32>
    %142 = arith.divf %140, %141 : vector<2x8x1xf32>
    %143 = vector.broadcast %142 : vector<2x8x1xf32> to vector<2x8x32xf32>
    %144 = arith.subf %134, %143 : vector<2x8x32xf32>
    %145 = arith.mulf %144, %144 : vector<2x8x32xf32>
    %cst_91 = arith.constant dense<0.000000e+00> : vector<2x8xf32>
    %146 = vector.multi_reduction <add>, %145, %cst_91 [2] : vector<2x8x32xf32> to vector<2x8xf32>
    %147 = vector.shape_cast %146 : vector<2x8xf32> to vector<2x8x1xf32>
    %cst_92 = arith.constant 3.200000e+01 : f32
    %148 = vector.broadcast %cst_92 : f32 to vector<2x8x1xf32>
    %149 = arith.divf %147, %148 : vector<2x8x1xf32>
    %150 = vector.broadcast %142 : vector<2x8x1xf32> to vector<2x8x32xf32>
    %151 = arith.subf %134, %150 : vector<2x8x32xf32>
    %cst_93 = arith.constant 9.99999974E-6 : f32
    %152 = vector.broadcast %cst_93 : f32 to vector<2x8x1xf32>
    %153 = arith.addf %149, %152 : vector<2x8x1xf32>
    %154 = math.rsqrt %153 : vector<2x8x1xf32>
    %155 = vector.broadcast %154 : vector<2x8x1xf32> to vector<2x8x32xf32>
    %156 = arith.mulf %151, %155 : vector<2x8x32xf32>
    %157 = vector.shape_cast %136 : vector<32xf32> to vector<1x1x32xf32>
    %158 = vector.broadcast %157 : vector<1x1x32xf32> to vector<2x8x32xf32>
    %159 = arith.mulf %156, %158 : vector<2x8x32xf32>
    %160 = vector.shape_cast %138 : vector<32xf32> to vector<1x1x32xf32>
    %161 = vector.broadcast %160 : vector<1x1x32xf32> to vector<2x8x32xf32>
    %162 = arith.addf %159, %161 : vector<2x8x32xf32>
    %163 = vector.shape_cast %162 : vector<2x8x32xf32> to vector<16x32xf32>
    %c0_94 = arith.constant 0 : index
    %c0_95 = arith.constant 0 : index
    %164 = vector.load %arg8[%c0_94, %c0_95] : memref<16x32xf32, #tpu.memory_space<vmem>>, vector<16x32xf32>
    tpu.vector_store %arg8[%c0_94, %c0_95], %163 {strides = array<i32>} : memref<16x32xf32, #tpu.memory_space<vmem>>, vector<16x32xf32>,
    return
  }
}

module attributes {stable_mosaic.version = 11 : i64} {
  func.func @_lmhead_ce_kernel(%arg0: i32, %arg1: memref<16x32xbf16, #tpu.memory_space<vmem>>, %arg2: memref<32x32xbf16, #tpu.memory_space<vmem>>, %arg3: memref<1x1x32xf32, #tpu.memory_space<vmem>>, %arg4: memref<16x1xi32, #tpu.memory_space<vmem>>, %arg5: memref<1x1xf32, #tpu.memory_space<vmem>>, %arg6: memref<16x1xf32, #tpu.memory_space<vmem>>, %arg7: memref<16x1xf32, #tpu.memory_space<vmem>>, %arg8: memref<16x1xf32, #tpu.memory_space<vmem>>, %arg9: memref<16x1xf32, #tpu.memory_space<vmem>>) attributes {dimension_semantics = [#tpu.dimension_semantics<arbitrary>], iteration_bounds = array<i64: 2>, scalar_prefetch = 0 : i64, scratch_operands = 4 : i64, tpu.core_type = #tpu.core_type<tc>, window_params = [{pipeline_mode = #tpu.pipeline_mode<synchronous>, transform_indices = @transform_0, window_bounds = array<i64: 16, 32>}, {transform_indices = @transform_1, window_bounds = array<i64: 32, 32>}, {transform_indices = @transform_2, window_bounds = array<i64: 1, 1, 32>}, {pipeline_mode = #tpu.pipeline_mode<synchronous>, transform_indices = @transform_3, window_bounds = array<i64: 16, 1>}, {pipeline_mode = #tpu.pipeline_mode<synchronous>, transform_indices = @transform_4, window_bounds = array<i64: 1, 1>}]} {
    %c0 = arith.constant 0 : index
    %c0_0 = arith.constant 0 : index
    %0 = vector.load %arg1[%c0, %c0_0] : memref<16x32xbf16, #tpu.memory_space<vmem>>, vector<16x32xbf16>
    %c0_1 = arith.constant 0 : index
    %c0_2 = arith.constant 0 : index
    %1 = vector.load %arg2[%c0_1, %c0_2] : memref<32x32xbf16, #tpu.memory_space<vmem>>, vector<32x32xbf16>
    %cst = arith.constant dense<0.000000e+00> : vector<16x32xf32>
    %2 = tpu.matmul %0, %1, %cst {dimension_numbers = #tpu.dot_dimension_numbers<[1], [1], [0], [0], [0, 0, 1, 0], [], []>} : vector<16x32xbf16>, vector<32x32xbf16>, vector<16x32xf32> -> vector<16x32xf32>
    %c0_3 = arith.constant 0 : index
    %c0_4 = arith.constant 0 : index
    %c0_5 = arith.constant 0 : index
    %3 = vector.load %arg3[%c0_3, %c0_4, %c0_5] : memref<1x1x32xf32, #tpu.memory_space<vmem>>, vector<1x1x32xf32>
    %4 = vector.shape_cast %3 : vector<1x1x32xf32> to vector<1x32xf32>
    %5 = vector.broadcast %4 : vector<1x32xf32> to vector<16x32xf32>
    %6 = arith.addf %2, %5 : vector<16x32xf32>
    %c0_6 = arith.constant 0 : index
    %c0_7 = arith.constant 0 : index
    %7 = vector.load %arg4[%c0_6, %c0_7] : memref<16x1xi32, #tpu.memory_space<vmem>>, vector<16x1xi32>
    %c32_i32 = arith.constant 32 : i32
    %8 = arith.muli %arg0, %c32_i32 : i32
    %9 = tpu.iota {dimensions = array<i32: 1>} : vector<16x32xi32>
    %10 = vector.broadcast %8 : i32 to vector<16x32xi32>
    %11 = arith.addi %10, %9 : vector<16x32xi32>
    %c0_i32 = arith.constant 0 : i32
    %12 = arith.cmpi eq, %arg0, %c0_i32 : i32
    %13 = arith.extui %12 : i1 to i32
    %c0_i32_8 = arith.constant 0 : i32
    %14 = arith.cmpi ne, %13, %c0_i32_8 : i32
    scf.if %14 {
      %cst_31 = arith.constant 0xFF800000 : f32
      %48 = vector.broadcast %cst_31 : f32 to vector<16x1xf32>
      %c0_32 = arith.constant 0 : index
      %c0_33 = arith.constant 0 : index
      %49 = vector.load %arg6[%c0_32, %c0_33] : memref<16x1xf32, #tpu.memory_space<vmem>>, vector<16x1xf32>
      tpu.vector_store %arg6[%c0_32, %c0_33], %48 {strides = array<i32>} : memref<16x1xf32, #tpu.memory_space<vmem>>, vector<16x1xf32>,
      %cst_34 = arith.constant 0.000000e+00 : f32
      %50 = vector.broadcast %cst_34 : f32 to vector<16x1xf32>
      %c0_35 = arith.constant 0 : index
      %c0_36 = arith.constant 0 : index
      %51 = vector.load %arg7[%c0_35, %c0_36] : memref<16x1xf32, #tpu.memory_space<vmem>>, vector<16x1xf32>
      tpu.vector_store %arg7[%c0_35, %c0_36], %50 {strides = array<i32>} : memref<16x1xf32, #tpu.memory_space<vmem>>, vector<16x1xf32>,
      %cst_37 = arith.constant 0.000000e+00 : f32
      %52 = vector.broadcast %cst_37 : f32 to vector<16x1xf32>
      %c0_38 = arith.constant 0 : index
      %c0_39 = arith.constant 0 : index
      %53 = vector.load %arg8[%c0_38, %c0_39] : memref<16x1xf32, #tpu.memory_space<vmem>>, vector<16x1xf32>
      tpu.vector_store %arg8[%c0_38, %c0_39], %52 {strides = array<i32>} : memref<16x1xf32, #tpu.memory_space<vmem>>, vector<16x1xf32>,
      %cst_40 = arith.constant 0.000000e+00 : f32
      %54 = vector.broadcast %cst_40 : f32 to vector<16x1xf32>
      %c0_41 = arith.constant 0 : index
      %c0_42 = arith.constant 0 : index
      %55 = vector.load %arg9[%c0_41, %c0_42] : memref<16x1xf32, #tpu.memory_space<vmem>>, vector<16x1xf32>
      tpu.vector_store %arg9[%c0_41, %c0_42], %54 {strides = array<i32>} : memref<16x1xf32, #tpu.memory_space<vmem>>, vector<16x1xf32>,
    } else {
    }
    %c0_9 = arith.constant 0 : index
    %c0_10 = arith.constant 0 : index
    %15 = vector.load %arg6[%c0_9, %c0_10] : memref<16x1xf32, #tpu.memory_space<vmem>>, vector<16x1xf32>
    %cst_11 = arith.constant dense<0xFF800000> : vector<16xf32>
    %16 = vector.multi_reduction <maximumf>, %6, %cst_11 [1] : vector<16x32xf32> to vector<16xf32>
    %17 = vector.shape_cast %16 : vector<16xf32> to vector<16x1xf32>
    %18 = arith.maximumf %15, %17 : vector<16x1xf32>
    %c0_12 = arith.constant 0 : index
    %c0_13 = arith.constant 0 : index
    %19 = vector.load %arg7[%c0_12, %c0_13] : memref<16x1xf32, #tpu.memory_space<vmem>>, vector<16x1xf32>
    %20 = arith.subf %15, %18 : vector<16x1xf32>
    %21 = math.exp %20 : vector<16x1xf32>
    %22 = arith.mulf %19, %21 : vector<16x1xf32>
    %23 = vector.broadcast %18 : vector<16x1xf32> to vector<16x32xf32>
    %24 = arith.subf %6, %23 : vector<16x32xf32>
    %25 = math.exp %24 : vector<16x32xf32>
    %cst_14 = arith.constant dense<0.000000e+00> : vector<16xf32>
    %26 = vector.multi_reduction <add>, %25, %cst_14 [1] : vector<16x32xf32> to vector<16xf32>
    %27 = vector.shape_cast %26 : vector<16xf32> to vector<16x1xf32>
    %28 = arith.addf %22, %27 : vector<16x1xf32>
    %c0_15 = arith.constant 0 : index
    %c0_16 = arith.constant 0 : index
    %29 = vector.load %arg7[%c0_15, %c0_16] : memref<16x1xf32, #tpu.memory_space<vmem>>, vector<16x1xf32>
    tpu.vector_store %arg7[%c0_15, %c0_16], %28 {strides = array<i32>} : memref<16x1xf32, #tpu.memory_space<vmem>>, vector<16x1xf32>,
    %c0_17 = arith.constant 0 : index
    %c0_18 = arith.constant 0 : index
    %30 = vector.load %arg6[%c0_17, %c0_18] : memref<16x1xf32, #tpu.memory_space<vmem>>, vector<16x1xf32>
    tpu.vector_store %arg6[%c0_17, %c0_18], %18 {strides = array<i32>} : memref<16x1xf32, #tpu.memory_space<vmem>>, vector<16x1xf32>,
    %c0_19 = arith.constant 0 : index
    %c0_20 = arith.constant 0 : index
    %31 = vector.load %arg8[%c0_19, %c0_20] : memref<16x1xf32, #tpu.memory_space<vmem>>, vector<16x1xf32>
    %cst_21 = arith.constant dense<0.000000e+00> : vector<16xf32>
    %32 = vector.multi_reduction <add>, %6, %cst_21 [1] : vector<16x32xf32> to vector<16xf32>
    %33 = vector.shape_cast %32 : vector<16xf32> to vector<16x1xf32>
    %34 = arith.addf %31, %33 : vector<16x1xf32>
    %c0_22 = arith.constant 0 : index
    %c0_23 = arith.constant 0 : index
    %35 = vector.load %arg8[%c0_22, %c0_23] : memref<16x1xf32, #tpu.memory_space<vmem>>, vector<16x1xf32>
    tpu.vector_store %arg8[%c0_22, %c0_23], %34 {strides = array<i32>} : memref<16x1xf32, #tpu.memory_space<vmem>>, vector<16x1xf32>,
    %c0_24 = arith.constant 0 : index
    %c0_25 = arith.constant 0 : index
    %36 = vector.load %arg9[%c0_24, %c0_25] : memref<16x1xf32, #tpu.memory_space<vmem>>, vector<16x1xf32>
    %37 = vector.broadcast %7 : vector<16x1xi32> to vector<16x32xi32>
    %38 = arith.cmpi eq, %11, %37 : vector<16x32xi32>
    %cst_26 = arith.constant 0.000000e+00 : f32
    %39 = vector.broadcast %cst_26 : f32 to vector<16x32xf32>
    %40 = arith.select %38, %6, %39 : vector<16x32xi1>, vector<16x32xf32>
    %cst_27 = arith.constant dense<0.000000e+00> : vector<16xf32>
    %41 = vector.multi_reduction <add>, %40, %cst_27 [1] : vector<16x32xf32> to vector<16xf32>
    %42 = vector.shape_cast %41 : vector<16xf32> to vector<16x1xf32>
    %43 = arith.addf %36, %42 : vector<16x1xf32>
    %c0_28 = arith.constant 0 : index
    %c0_29 = arith.constant 0 : index
    %44 = vector.load %arg9[%c0_28, %c0_29] : memref<16x1xf32, #tpu.memory_space<vmem>>, vector<16x1xf32>
    tpu.vector_store %arg9[%c0_28, %c0_29], %43 {strides = array<i32>} : memref<16x1xf32, #tpu.memory_space<vmem>>, vector<16x1xf32>,
    %c1_i32 = arith.constant 1 : i32
    %45 = arith.cmpi eq, %arg0, %c1_i32 : i32
    %46 = arith.extui %45 : i1 to i32
    %c0_i32_30 = arith.constant 0 : i32
    %47 = arith.cmpi ne, %46, %c0_i32_30 : i32
    scf.if %47 {
      %c0_31 = arith.constant 0 : index
      %c0_32 = arith.constant 0 : index
      %48 = vector.load %arg6[%c0_31, %c0_32] : memref<16x1xf32, #tpu.memory_space<vmem>>, vector<16x1xf32>
      %c0_33 = arith.constant 0 : index
      %c0_34 = arith.constant 0 : index
      %49 = vector.load %arg7[%c0_33, %c0_34] : memref<16x1xf32, #tpu.memory_space<vmem>>, vector<16x1xf32>
      %50 = math.log %49 : vector<16x1xf32>
      %51 = arith.addf %48, %50 : vector<16x1xf32>
      %c0_35 = arith.constant 0 : index
      %c0_36 = arith.constant 0 : index
      %52 = vector.load %arg9[%c0_35, %c0_36] : memref<16x1xf32, #tpu.memory_space<vmem>>, vector<16x1xf32>
      %53 = arith.subf %51, %52 : vector<16x1xf32>
      %c0_37 = arith.constant 0 : index
      %c0_38 = arith.constant 0 : index
      %54 = vector.load %arg8[%c0_37, %c0_38] : memref<16x1xf32, #tpu.memory_space<vmem>>, vector<16x1xf32>
      %cst_39 = arith.constant 6.400000e+01 : f32
      %55 = vector.broadcast %cst_39 : f32 to vector<16x1xf32>
      %56 = arith.divf %54, %55 : vector<16x1xf32>
      %57 = arith.subf %51, %56 : vector<16x1xf32>
      %cst_40 = arith.constant 0.899999976 : f32
      %58 = vector.broadcast %cst_40 : f32 to vector<16x1xf32>
      %59 = arith.mulf %58, %53 : vector<16x1xf32>
      %cst_41 = arith.constant 1.000000e-01 : f32
      %60 = vector.broadcast %cst_41 : f32 to vector<16x1xf32>
      %61 = arith.mulf %60, %57 : vector<16x1xf32>
      %62 = arith.addf %59, %61 : vector<16x1xf32>
      %c-100_i32 = arith.constant -100 : i32
      %63 = vector.broadcast %c-100_i32 : i32 to vector<16x1xi32>
      %64 = arith.cmpi ne, %7, %63 : vector<16x1xi32>
      %65 = arith.extui %64 : vector<16x1xi1> to vector<16x1xi32>
      %66 = arith.sitofp %65 : vector<16x1xi32> to vector<16x1xf32>
      %67 = arith.mulf %62, %66 : vector<16x1xf32>
      %cst_42 = arith.constant dense<0.000000e+00> : vector<1xf32>
      %68 = vector.multi_reduction <add>, %67, %cst_42 [0] : vector<16x1xf32> to vector<1xf32>
      %69 = vector.shape_cast %68 : vector<1xf32> to vector<1x1xf32>
      %cst_43 = arith.constant dense<0.000000e+00> : vector<1xf32>
      %70 = vector.multi_reduction <add>, %66, %cst_43 [0] : vector<16x1xf32> to vector<1xf32>
      %71 = vector.shape_cast %70 : vector<1xf32> to vector<1x1xf32>
      %cst_44 = arith.constant 1.000000e+00 : f32
      %72 = vector.broadcast %cst_44 : f32 to vector<1x1xf32>
      %73 = arith.maximumf %71, %72 : vector<1x1xf32>
      %74 = arith.divf %69, %73 : vector<1x1xf32>
      %c0_45 = arith.constant 0 : index
      %c0_46 = arith.constant 0 : index
      %75 = vector.load %arg5[%c0_45, %c0_46] : memref<1x1xf32, #tpu.memory_space<vmem>>, vector<1x1xf32>
      tpu.vector_store %arg5[%c0_45, %c0_46], %74 {strides = array<i32>} : memref<1x1xf32, #tpu.memory_space<vmem>>, vector<1x1xf32>,
    } else {
    }
    return
  }
  func.func @transform_0(%arg0: i32) -> (i32, i32) {
    %c0_i32 = arith.constant 0 : i32
    %c0_i32_0 = arith.constant 0 : i32
    %c0_i32_1 = arith.constant 0 : i32
    return %c0_i32, %c0_i32_0 : i32, i32
  }
  func.func @transform_1(%arg0: i32) -> (i32, i32) {
    %c0_i32 = arith.constant 0 : i32
    %c0_i32_0 = arith.constant 0 : i32
    return %arg0, %c0_i32 : i32, i32
  }
  func.func @transform_2(%arg0: i32) -> (i32, i32, i32) {
    %c0_i32 = arith.constant 0 : i32
    %c0_i32_0 = arith.constant 0 : i32
    %c0_i32_1 = arith.constant 0 : i32
    return %arg0, %c0_i32, %c0_i32_0 : i32, i32, i32
  }
  func.func @transform_3(%arg0: i32) -> (i32, i32) {
    %c0_i32 = arith.constant 0 : i32
    %c0_i32_0 = arith.constant 0 : i32
    %c0_i32_1 = arith.constant 0 : i32
    return %c0_i32, %c0_i32_0 : i32, i32
  }
  func.func @transform_4(%arg0: i32) -> (i32, i32) {
    %c0_i32 = arith.constant 0 : i32
    %c0_i32_0 = arith.constant 0 : i32
    %c0_i32_1 = arith.constant 0 : i32
    return %c0_i32, %c0_i32_0 : i32, i32
  }
}

</mosaic_0001>

<llo_original>
// kernel: bart_caption_forward.7
$region0: #{bart_caption_forward.7}
  #allocation0 [shape = 'u32[]', space=smem, size = 0x4, offset = 0x4, fixed_abs, tag = 'smem constant byte address 0x4 - core index']
  #allocation1 [shape = 'u32[72,128]{1,0:T(1,128)}', space=vmem, size = 0x9000, scoped, tag = 'internal scratch']
  #allocation2 [shape = 'f32[16,1]{1,0:T(8,128)}', space=vmem, size = 0x2000, scoped, tag = 'scratch operand']
  #allocation3 [shape = 'f32[16,1]{1,0:T(8,128)}', space=vmem, size = 0x2000, scoped, tag = 'scratch operand']
  #allocation4 [shape = 'f32[16,1]{1,0:T(8,128)}', space=vmem, size = 0x2000, scoped, tag = 'scratch operand']
  #allocation5 [shape = 'f32[16,1]{1,0:T(8,128)}', space=vmem, size = 0x2000, scoped, tag = 'scratch operand']
  %s0 = inlined_call_operand.vmem [shape: bf16[16,32], index: 0, kind: input, shape index: {}]
  %s1 = inlined_call_operand.vmem [shape: bf16[64,32], index: 1, kind: input, shape index: {}]
  %s2 = inlined_call_operand.vmem [shape: f32[2,1,32], index: 2, kind: input, shape index: {}]
  %s3 = inlined_call_operand.vmem [shape: s32[16,1], index: 3, kind: input, shape index: {}]
  %s4 = inlined_call_operand.hbm [shape: f32[1,1], index: 4, kind: output, shape index: {}]
  %s5 = sld [smem:[#allocation0]]
  $region57: #{bart_caption_forward.7} parent=0
    _
  %s7 = ssub.s32 1, %s5
  %s8 = scalar_select 0, %s7, %s5
  $region1: #{bart_caption_forward.7} parent=0
    #allocation6 [shape = 'u8[512]{0}', space=vmem, size = 0x400, scoped, tag = 'output window, operand 0, single buffered']
    #allocation7 [shape = 's32[2]{0}', space=sflag, size = 0x8, scoped, tag = 'scoped memory for bart_caption_forward.7']
    %9 = vsyncpa [#allocation7], 0
    loop: start=0, step=1, limit=4
    $region2: #{bart_caption_forward.7} parent=1 // loop_pre_header
      _
    $region3: #{bart_caption_forward.7} parent=1 // loop_header
      %s11 = sphi 0, %s15
      %p12 = scmp.ge.s32.totalorder %s11, 4
      %s19 = sphi 0, %s19
      %s21 = sphi 0, %s19
      %s22 = sphi 0, %s21
      %s36 = sphi 0, %s22
      %s42 = sphi 0, %s44
      %s45 = sphi 0, %s42
      %s46 = sphi 0, %s45
      %s62 = sphi 0, %s46
      %s68 = sphi 0, %s70
      %s71 = sphi 0, %s68
      %s72 = sphi 0, %s71
      %s88 = sphi 0, %s72
      %s92 = sphi 0, %s92
      %s94 = sphi 0, %s92
      %s95 = sphi 0, %s94
      %s109 = sphi 0, %s95
      %s113 = sphi 0, %s113
      %s115 = sphi 0, %s113
      %s116 = sphi 0, %s115
      %s130 = sphi 0, %s116
    $region4: #{bart_caption_forward.7} parent=1 // loop_header_branch
      %14 = sbr.rel (%p12) target = $region8
    $region5: #{bart_caption_forward.7} parent=1 // loop_body
      %s16 = ssub.s32 %s11, 1
      %s17 = ssub.s32 %s11, 2
      %s18 = sadd.s32 %s11, 1
      %s20 = sadd.s32 %s19, 1
      %p23 = scmp.eq.s32.totalorder %s11, 1
      %p24 = scmp.ne.s32.totalorder %s19, %s21
      %p25 = scmp.eq.s32.totalorder %s11, 0
      %p26 = por %p24, %p25
      %p27 = scmp.ne.s32.totalorder %s19, %s21
      %p28 = scmp.eq.s32.totalorder %s16, 1
      %p29 = por %p27, %p28
      %p30 = scmp.ne.s32.totalorder %s21, %s22
      %p31 = scmp.eq.s32.totalorder %s16, 0
      %p32 = por %p30, %p31
      %p33 = scmp.ne.s32.totalorder %s21, %s22
      %p34 = scmp.eq.s32.totalorder %s17, 1
      %p35 = por %p33, %p34
      %p37 = scmp.ne.s32.totalorder %s22, %s36
      %p38 = scmp.eq.s32.totalorder %s17, 0
      %p39 = por %p37, %p38
      %s40 = ssub.s32 %s11, %s18
      %p41 = scmp.eq.s32.totalorder %s40, 0
      %s43 = sadd.s32 %s42, 1
      %s44 = scalar_select %p41, %s42, %s43
      %p47 = pneg %p41
      %p48 = scmp.eq.s32.totalorder %s11, 1
      %p49 = por %p47, %p48
      %p50 = scmp.ne.s32.totalorder %s42, %s45
      %p51 = scmp.eq.s32.totalorder %s11, 0
      %p52 = por %p50, %p51
      %p53 = scmp.ne.s32.totalorder %s42, %s45
      %p54 = scmp.eq.s32.totalorder %s16, 1
      %p55 = por %p53, %p54
      %p56 = scmp.ne.s32.totalorder %s45, %s46
      %p57 = scmp.eq.s32.totalorder %s16, 0
      %p58 = por %p56, %p57
      %p59 = scmp.ne.s32.totalorder %s45, %s46
      %p60 = scmp.eq.s32.totalorder %s17, 1
      %p61 = por %p59, %p60
      %p63 = scmp.ne.s32.totalorder %s46, %s62
      %p64 = scmp.eq.s32.totalorder %s17, 0
      %p65 = por %p63, %p64
      %s66 = ssub.s32 %s11, %s18
      %p67 = scmp.eq.s32.totalorder %s66, 0
      %s69 = sadd.s32 %s68, 1
      %s70 = scalar_select %p67, %s68, %s69
      %p73 = pneg %p67
      %p74 = scmp.eq.s32.totalorder %s11, 1
      %p75 = por %p73, %p74
      %p76 = scmp.ne.s32.totalorder %s68, %s71
      %p77 = scmp.eq.s32.totalorder %s11, 0
      %p78 = por %p76, %p77
      %p79 = scmp.ne.s32.totalorder %s68, %s71
      %p80 = scmp.eq.s32.totalorder %s16, 1
      %p81 = por %p79, %p80
      %p82 = scmp.ne.s32.totalorder %s71, %s72
      %p83 = scmp.eq.s32.totalorder %s16, 0
      %p84 = por %p82, %p83
      %p85 = scmp.ne.s32.totalorder %s71, %s72
      %p86 = scmp.eq.s32.totalorder %s17, 1
      %p87 = por %p85, %p86
      %p89 = scmp.ne.s32.totalorder %s72, %s88
      %p90 = scmp.eq.s32.totalorder %s17, 0
      %p91 = por %p89, %p90
      %s93 = sadd.s32 %s92, 1
      %p96 = scmp.eq.s32.totalorder %s11, 1
      %p97 = scmp.ne.s32.totalorder %s92, %s94
      %p98 = scmp.eq.s32.totalorder %s11, 0
      %p99 = por %p97, %p98
      %p100 = scmp.ne.s32.totalorder %s92, %s94
      %p101 = scmp.eq.s32.totalorder %s16, 1
      %p102 = por %p100, %p101
      %p103 = scmp.ne.s32.totalorder %s94, %s95
      %p104 = scmp.eq.s32.totalorder %s16, 0
      %p105 = por %p103, %p104
      %p106 = scmp.ne.s32.totalorder %s94, %s95
      %p107 = scmp.eq.s32.totalorder %s17, 1
      %p108 = por %p106, %p107
      %p110 = scmp.ne.s32.totalorder %s95, %s109
      %p111 = scmp.eq.s32.totalorder %s17, 0
      %p112 = por %p110, %p111
      %s114 = sadd.s32 %s113, 1
      %p117 = scmp.eq.s32.totalorder %s11, 1
      %p118 = scmp.ne.s32.totalorder %s113, %s115
      %p119 = scmp.eq.s32.totalorder %s11, 0
      %p120 = por %p118, %p119
      %p121 = scmp.ne.s32.totalorder %s113, %s115
      %p122 = scmp.eq.s32.totalorder %s16, 1
      %p123 = por %p121, %p122
      %p124 = scmp.ne.s32.totalorder %s115, %s116
      %p125 = scmp.eq.s32.totalorder %s16, 0
      %p126 = por %p124, %p125
      %p127 = scmp.ne.s32.totalorder %s115, %s116
      %p128 = scmp.eq.s32.totalorder %s17, 1
      %p129 = por %p127, %p128
      %p131 = scmp.ne.s32.totalorder %s116, %s130
      %p132 = scmp.eq.s32.totalorder %s17, 0
      %p133 = por %p131, %p132
      %p134 = scmp.le.s32.totalorder 1, %s11
      %p135 = scmp.lt.s32.totalorder %s11, 3
      %p136 = pnand %p134, %p135
      %p137 = pneg %p136
      // Predicated region
      $region9: #{bart_caption_forward.7} parent=5 // pred_check
        _
      $region10: #{bart_caption_forward.7} parent=5 // pred_check_branch
        %139 = sbr.rel (%p136) target = $region12
      $region11: #{bart_caption_forward.7} parent=5 // pred_region
        %s140 = ssub.s32 %s11, 1
        // Predicated region
        $region13: #{bart_caption_forward.7} parent=11 // pred_check
          %p141 = pneg %p32
        $region14: #{bart_caption_forward.7} parent=11 // pred_check_branch
          %143 = sbr.rel (%p141) target = $region16
        $region15: #{bart_caption_forward.7} parent=11 // pred_region
          _
        $region16: #{bart_caption_forward.7} parent=11 // pred_fallthru
          _
        // Predicated region
        $region17: #{bart_caption_forward.7} parent=11 // pred_check
          %p144 = pneg %p105
        $region18: #{bart_caption_forward.7} parent=11 // pred_check_branch
          %146 = sbr.rel (%p144) target = $region20
        $region19: #{bart_caption_forward.7} parent=11 // pred_region
          _
        $region20: #{bart_caption_forward.7} parent=11 // pred_fallthru
          _
      $region12: #{bart_caption_forward.7} parent=5 // pred_fallthru
        _
      %p147 = scmp.lt.s32.totalorder %s11, 2
      // Predicated region
      $region21: #{bart_caption_forward.7} parent=5 // pred_check
        %p148 = pneg %p147
      $region22: #{bart_caption_forward.7} parent=5 // pred_check_branch
        %150 = sbr.rel (%p148) target = $region24
      $region23: #{bart_caption_forward.7} parent=5 // pred_region
        // Predicated region
        $region25: #{bart_caption_forward.7} parent=23 // pred_check
          %p151 = pneg %p52
        $region26: #{bart_caption_forward.7} parent=23 // pred_check_branch
          %153 = sbr.rel (%p151) target = $region28
        $region27: #{bart_caption_forward.7} parent=23 // pred_region
          %s154 = smul.u32 4, %s11
          %p155 = scmp.lt.s32.totalorder %s154, 7
          %s156 = scalar_select %p155, %s154, 7
          %s157 = smul.addr %s156, 4
          %s158 = scalar_lea.vmem %s1, %s157
          %s159 = smul.u32 4, %s11
        $region28: #{bart_caption_forward.7} parent=23 // pred_fallthru
          _
        // Predicated region
        $region29: #{bart_caption_forward.7} parent=23 // pred_check
          %p160 = pneg %p78
        $region30: #{bart_caption_forward.7} parent=23 // pred_check_branch
          %162 = sbr.rel (%p160) target = $region32
        $region31: #{bart_caption_forward.7} parent=23 // pred_region
          %p163 = scmp.lt.s32.totalorder %s11, 1
          %s164 = scalar_select %p163, %s11, 1
          %s165 = scalar_lea.vmem %s2, %s164
        $region32: #{bart_caption_forward.7} parent=23 // pred_fallthru
          _
      $region24: #{bart_caption_forward.7} parent=5 // pred_fallthru
        _
      %p166 = scmp.le.s32.totalorder 1, %s11
      %p167 = scmp.lt.s32.totalorder %s11, 3
      %p168 = pnand %p166, %p167
      %p169 = pneg %p168
      // Predicated region
      $region33: #{bart_caption_forward.7} parent=5 // pred_check
        _
      $region34: #{bart_caption_forward.7} parent=5 // pred_check_branch
        %171 = sbr.rel (%p168) target = $region36
      $region35: #{bart_caption_forward.7} parent=5 // pred_region
        %s172 = ssub.s32 %s11, 1
        %p173 = pneg %p32
        %p174 = pneg %p29
        %s175 = smul.u32 4, %s16
        %p176 = scmp.lt.s32.totalorder %s175, 7
        %s177 = scalar_select %p176, %s175, 7
        %s178 = smul.addr %s177, 4
        %s179 = scalar_lea.vmem %s1, %s178
        %p180 = pneg %p58
        %p181 = pneg %p55
        %p182 = scmp.lt.s32.totalorder %s16, 1
        %s183 = scalar_select %p182, %s16, 1
        %s184 = scalar_lea.vmem %s2, %s183
        %p185 = pneg %p84
        %p186 = pneg %p81
        %p187 = pneg %p105
        %p188 = pneg %p102
        %p189 = pneg %p126
        %p190 = pneg %p123
        %s191 = smul.u32 4, %s16
        %p192 = scmp.lt.s32.totalorder %s191, 7
        %s193 = scalar_select %p192, %s191, 7
        %s194 = smul.addr %s193, 4
        %s195 = scalar_lea.vmem %s1, %s194
        %s196 = smul.u32 4, %s16
        %p197 = scmp.lt.s32.totalorder %s16, 1
        %s198 = scalar_select %p197, %s16, 1
        %s199 = scalar_lea.vmem %s2, %s198
        %v201 = vld [vmem:[%s0] sm:$0xf]
        %v202 = vld [vmem:[%s0 + $0x4] sm:$0xf]
        %v203 = vld [vmem:[%s195] sm:$0xf]
        %v204 = vld [vmem:[%s195 + $0x4] sm:$0xf]
        %v205 = vld [vmem:[%s195 + $0x8] sm:$0xf]
        %v206 = vld [vmem:[%s195 + $0xc] sm:$0xf]
        %v207 = vld [vmem:[%s199] sm:$0x1]
        %v209 = vperm.slane %v207, 0
        %v213 = vunpack.c.l.b16 %v201
        %v214 = vunpack.c.l.b16 %v202
        %v215 = vpack.c.b16 %v214, %v213
        %v220 = vunpack.c.l.b16 %v203
        %v221 = vunpack.c.l.b16 %v204
        %v222 = vunpack.c.l.b16 %v205
        %v223 = vunpack.c.l.b16 %v206
        %v224 = vpack.c.b16 %v221, %v220
        %v225 = vpack.c.b16 %v223, %v222
        %vm226 = vcmask 261120
        %v228 = vsel %vm226, %v215, 0
        %v231 = vsel %vm226, %v224, 0
        %v234 = vsel %vm226, %v225, 0
        %236 = vmatpush.bf16.xpose.msra.mxu0 0
        %237 = vmatpush.bf16.xpose.msra.mxu0 0
        %238 = vmatpush.bf16.xpose.msra.mxu0 0
        %239 = vmatpush.bf16.xpose.msra.mxu0 0
        %240 = vmatpush.bf16.xpose.msra.mxu0 0
        %241 = vmatpush.bf16.xpose.msra.mxu0 0
        %242 = vmatpush.bf16.xpose.msra.mxu0 %v234
        %243 = vmatpush.bf16.xpose.msra.mxu0 %v231
        %244 = vmatmul.bf16.gmra.mxu0 %v228
        %v245 = vpop.f32.mrf.mxu0
        %v246 = vadd.f32 %v209, %v245
        %v247 = vpop.f32.mrf.mxu0
        %v248 = vadd.f32 %v209, %v247
        %249 = vdwg.mxu0
        %v250 = vld [vmem:[%s3] sm:$0xff]
        %v251 = vld [vmem:[%s3 + $0x8] sm:$0xff]
        %s252 = smul.u32 %s16, 32
        %v253 = vlaneseq
        %v254 = vand.u32 %v253, 127
        %v255 = vstv %s252
        %v256 = vadd.s32 %v255, %v254
        %p257 = scmp.eq.s32.totalorder %s16, 0
        // Predicated region
        $region37: #{bart_caption_forward.7} parent=35 // pred_check
          %p258 = pneg %p257
        $region38: #{bart_caption_forward.7} parent=35 // pred_check_branch
          %260 = sbr.rel (%p258) target = $region40
        $region39: #{bart_caption_forward.7} parent=35 // pred_region
          %vm261 = vcmask 7168
          %262 = vst.msk [vmem:[#allocation2] sm:$0xff] %vm261, -inf
          %263 = vst.msk [vmem:[#allocation2 + $0x8] sm:$0xff] %vm261, -inf
          %264 = vst.msk [vmem:[#allocation3] sm:$0xff] %vm261, 0.0
          %265 = vst.msk [vmem:[#allocation3 + $0x8] sm:$0xff] %vm261, 0.0
          %266 = vst.msk [vmem:[#allocation4] sm:$0xff] %vm261, 0.0
          %267 = vst.msk [vmem:[#allocation4 + $0x8] sm:$0xff] %vm261, 0.0
          %268 = vst.msk [vmem:[#allocation5] sm:$0xff] %vm261, 0.0
          %269 = vst.msk [vmem:[#allocation5 + $0x8] sm:$0xff] %vm261, 0.0
        $region40: #{bart_caption_forward.7} parent=35 // pred_fallthru
          _
        %v270 = vld [vmem:[#allocation2] sm:$0xff]
        %v271 = vld [vmem:[#allocation2 + $0x8] sm:$0xff]
        %v272 = vsel %vm226, %v246, -inf
        %273 = vmax.xlane.f32.xlu0 %v272
        %v274 = vpop.xlane.xlu0 %273
        %v275 = vsel %vm226, %v248, -inf
        %276 = vmax.xlane.f32.xlu0 %v275
        %v277 = vpop.xlane.xlu0 %276
        %v278 = vmax.f32 %v270, %v274
        %v279 = vmax.f32 %v271, %v277
        %v280 = vld [vmem:[#allocation3] sm:$0xff]
        %v281 = vld [vmem:[#allocation3 + $0x8] sm:$0xff]
        %v282 = vsub.f32 %v270, %v278
        %v283 = vsub.f32 %v271, %v279
        %v284 = vmul.f32 %v282, 1.442695
        %v285 = vpow.pop %v284
        %v286 = vmul.f32 %v283, 1.442695
        %v287 = vpow.pop %v286
        %v288 = vmul.f32 %v280, %v285
        %v289 = vmul.f32 %v281, %v287
        %291 = vset.pattern.permute.xlu0 0
        %292 = vperm.xlu0 %291, %v278
        %v293 = vpop.permute.xlu0 %292
        %296 = vset.pattern.permute.xlu0 0
        %297 = vperm.xlu0 %296, %v279
        %v298 = vpop.permute.xlu0 %297
        %v300 = vsub.f32 %v246, %v293
        %v301 = vsub.f32 %v248, %v298
        %v302 = vmul.f32 %v300, 1.442695
        %v303 = vpow.pop %v302
        %v304 = vmul.f32 %v301, 1.442695
        %v305 = vpow.pop %v304
        %v306 = vsel %vm226, %v303, 0.0
        %307 = vadd.xlane.f32.xlu0 %v306
        %v308 = vpop.xlane.xlu0 %307
        %v309 = vsel %vm226, %v305, 0.0
        %310 = vadd.xlane.f32.xlu0 %v309
        %v311 = vpop.xlane.xlu0 %310
        %v312 = vadd.f32 %v288, %v308
        %v313 = vadd.f32 %v289, %v311
        %vm314 = vcmask 7168
        %315 = vst.msk [vmem:[#allocation3] sm:$0xff] %vm314, %v312
        %316 = vst.msk [vmem:[#allocation3 + $0x8] sm:$0xff] %vm314, %v313
        %317 = vst.msk [vmem:[#allocation2] sm:$0xff] %vm314, %v278
        %318 = vst.msk [vmem:[#allocation2 + $0x8] sm:$0xff] %vm314, %v279
        %v319 = vld [vmem:[#allocation4] sm:$0xff]
        %v320 = vld [vmem:[#allocation4 + $0x8] sm:$0xff]
        %v321 = vsel %vm226, %v246, 0.0
        %322 = vadd.xlane.f32.xlu0 %v321
        %v323 = vpop.xlane.xlu0 %322
        %v324 = vsel %vm226, %v248, 0.0
        %325 = vadd.xlane.f32.xlu0 %v324
        %v326 = vpop.xlane.xlu0 %325
        %v327 = vadd.f32 %v319, %v323
        %v328 = vadd.f32 %v320, %v326
        %329 = vst.msk [vmem:[#allocation4] sm:$0xff] %vm314, %v327
        %330 = vst.msk [vmem:[#allocation4 + $0x8] sm:$0xff] %vm314, %v328
        %v331 = vld [vmem:[#allocation5] sm:$0xff]
        %v332 = vld [vmem:[#allocation5 + $0x8] sm:$0xff]
        %333 = vset.pattern.permute.xlu0 0
        %334 = vperm.xlu0 %333, %v250
        %v335 = vpop.permute.xlu0 %334
        %336 = vset.pattern.permute.xlu0 0
        %337 = vperm.xlu0 %336, %v251
        %v338 = vpop.permute.xlu0 %337
        %vm339 = vcmp.eq.s32.totalorder %v256, %v335
        %vm340 = vcmp.eq.s32.totalorder %v256, %v338
        %v341 = vsel %vm339, %v246, 0.0
        %v342 = vsel %vm340, %v248, 0.0
        %v343 = vsel %vm226, %v341, 0.0
        %344 = vadd.xlane.f32.xlu0 %v343
        %v345 = vpop.xlane.xlu0 %344
        %v346 = vsel %vm226, %v342, 0.0
        %347 = vadd.xlane.f32.xlu0 %v346
        %v348 = vpop.xlane.xlu0 %347
        %v349 = vadd.f32 %v331, %v345
        %v350 = vadd.f32 %v332, %v348
        %351 = vst.msk [vmem:[#allocation5] sm:$0xff] %vm314, %v349
        %352 = vst.msk [vmem:[#allocation5 + $0x8] sm:$0xff] %vm314, %v350
        %p353 = scmp.eq.s32.totalorder %s16, 1
        // Predicated region
        $region41: #{bart_caption_forward.7} parent=35 // pred_check
          %p354 = pneg %p353
        $region42: #{bart_caption_forward.7} parent=35 // pred_check_branch
          %356 = sbr.rel (%p354) target = $region44
        $region43: #{bart_caption_forward.7} parent=35 // pred_region
          %v357 = vld [vmem:[#allocation2] sm:$0xff]
          %v358 = vld [vmem:[#allocation2 + $0x8] sm:$0xff]
          %v359 = vld [vmem:[#allocation3] sm:$0xff]
          %v360 = vld [vmem:[#allocation3 + $0x8] sm:$0xff]
          %v361 = vlog2.pop %v359
          %v362 = vmul.f32 %v361, 0.6931472
          %v363 = vlog2.pop %v360
          %v364 = vmul.f32 %v363, 0.6931472
          %v365 = vadd.f32 %v357, %v362
          %v366 = vadd.f32 %v358, %v364
          %v367 = vld [vmem:[#allocation5] sm:$0xff]
          %v368 = vld [vmem:[#allocation5 + $0x8] sm:$0xff]
          %v369 = vsub.f32 %v365, %v367
          %v370 = vsub.f32 %v366, %v368
          %v371 = vld [vmem:[#allocation4] sm:$0xff]
          %v372 = vld [vmem:[#allocation4 + $0x8] sm:$0xff]
          %v373 = vrcp.pop 64.0
          %v374 = vmul.f32 64.0, %v373
          %v375 = vsub.f32 1.0, %v374
          %v376 = vmul.f32 %v373, %v375
          %v377 = vadd.f32 %v373, %v376
          %vm378 = vweird.f32 %v373
          %v379 = vsel %vm378, %v373, %v377
          %v380 = vmul.f32 %v371, %v379
          %v381 = vmul.f32 %v372, %v379
          %v382 = vsub.f32 %v365, %v380
          %v383 = vsub.f32 %v366, %v381
          %v384 = vmul.f32 %v369, 0.9
          %v385 = vmul.f32 %v370, 0.9
          %v386 = vmul.f32 %v382, 0.1
          %v387 = vmul.f32 %v383, 0.1
          %v388 = vadd.f32 %v384, %v386
          %v389 = vadd.f32 %v385, %v387
          %vm390 = vcmp.ne.s32.totalorder %v250, 4294967196
          %vm391 = vcmp.ne.s32.totalorder %v251, 4294967196
          %v392 = vsel %vm390, 1, 0
          %v393 = vsel %vm391, 1, 0
          %v394 = vcvt.s32.f32 %v392
          %v395 = vcvt.s32.f32 %v393
          %v396 = vmul.f32 %v388, %v394
          %v397 = vmul.f32 %v389, %v395
          %v398 = vsel %vm314, %v396, 0.0
          %v399 = vsel %vm314, %v397, 0.0
          %v400 = vadd.f32 %v398, %v399
          %v401 = vrot.slane %v400, 4
          %v402 = vadd.f32 %v400, %v401
          %v403 = vrot.slane %v402, 2
          %v404 = vadd.f32 %v402, %v403
          %v405 = vrot.slane %v404, 1
          %v406 = vadd.f32 %v404, %v405
          %v407 = vsel %vm314, %v394, 0.0
          %v408 = vsel %vm314, %v395, 0.0
          %v409 = vadd.f32 %v407, %v408
          %v410 = vrot.slane %v409, 4
          %v411 = vadd.f32 %v409, %v410
          %v412 = vrot.slane %v411, 2
          %v413 = vadd.f32 %v411, %v412
          %v414 = vrot.slane %v413, 1
          %v415 = vadd.f32 %v413, %v414
          %v416 = vmax.f32 %v415, 1.0
          %v417 = vrcp.pop %v416
          %v418 = vmul.f32 %v416, %v417
          %v419 = vsub.f32 1.0, %v418
          %v420 = vmul.f32 %v417, %v419
          %v421 = vadd.f32 %v417, %v420
          %vm422 = vweird.f32 %v416
          %vm423 = vweird.f32 %v417
          %vm424 = vmor %vm422, %vm423
          %v425 = vsel %vm424, %v417, %v421
          %v426 = vand.u32 2147483647, %v416
          %vm427 = vcmp.eq.f32.partialorder %v426, 8.507059e+37
          %v428 = vand.u32 %v416, 2147483648
          %v429 = vor.u32 1.1754944e-38, %v428
          %v430 = vsel %vm427, %v429, %v425
          %v431 = vmul.f32 %v406, %v430
          %vm432 = vcmask 0
          %433 = vst.msk [vmem:[#allocation6] sm:$0x1] %vm432, %v431
        $region44: #{bart_caption_forward.7} parent=35 // pred_fallthru
          _
        // Predicated region
        $region45: #{bart_caption_forward.7} parent=35 // pred_check
          %p434 = pneg %p123
        $region46: #{bart_caption_forward.7} parent=35 // pred_check_branch
          %436 = sbr.rel (%p434) target = $region48
        $region47: #{bart_caption_forward.7} parent=35 // pred_region
          %438 = vsyncadd [#allocation7], 0
          %s440 = sshll.u32 [#allocation6], 4
          %s441 = int_to_ptr.vmem [resolvable:$true] %s440
          %s442 = sshll.u32 %s4, 4
          %s443 = int_to_ptr.hbm [resolvable:$true] %s442
          %445 = dma.vmem_to_hbm [thread:$0]  %s441, 16, %s443, [#allocation7]
        $region48: #{bart_caption_forward.7} parent=35 // pred_fallthru
          _
        // Predicated region
        $region49: #{bart_caption_forward.7} parent=35 // pred_check
          %p446 = pneg %p123
        $region50: #{bart_caption_forward.7} parent=35 // pred_check_branch
          %448 = sbr.rel (%p446) target = $region52
        $region51: #{bart_caption_forward.7} parent=35 // pred_region
          %450 = dma.done [#allocation7], 16
        $region52: #{bart_caption_forward.7} parent=35 // pred_fallthru
          _
      $region36: #{bart_caption_forward.7} parent=5 // pred_fallthru
        _
      %p451 = scmp.le.s32.totalorder 2, %s11
      // Predicated region
      $region53: #{bart_caption_forward.7} parent=5 // pred_check
        %p452 = pneg %p451
      $region54: #{bart_caption_forward.7} parent=5 // pred_check_branch
        %454 = sbr.rel (%p452) target = $region56
      $region55: #{bart_caption_forward.7} parent=5 // pred_region
        %s455 = ssub.s32 %s11, 2
      $region56: #{bart_caption_forward.7} parent=5 // pred_fallthru
        _
    $region6: #{bart_caption_forward.7} parent=1 // loop_footer
      %s15 = sadd.s32 1, %s11
    $region7: #{bart_caption_forward.7} parent=1 // loop_footer_branch
      %10 = sbr.rel target = $region3
    $region8: #{bart_caption_forward.7} parent=1 // loop_exit
      _
    %456 = vsyncpa [#allocation7], 1
    %s457 = scalar_lea.sflag [#allocation7], 1
    %458 = vsyncpa %s457, 1

// kernel: bart_caption_forward.5
$region0: #{bart_caption_forward.5}
  #allocation0 [shape = 'u32[]', space=smem, size = 0x4, offset = 0x4, fixed_abs, tag = 'smem constant byte address 0x4 - core index']
  #allocation1 [shape = 'u32[72,128]{1,0:T(1,128)}', space=vmem, size = 0x9000, scoped, tag = 'internal scratch']
  #allocation2 [shape = 'f32[16,32]{1,0:T(8,128)}', space=vmem, size = 0x2000, scoped, tag = 'scratch operand']
  %s0 = inlined_call_operand.vmem [shape: f32[16,32], index: 0, kind: input, shape index: {}]
  %s1 = inlined_call_operand.vmem [shape: bf16[2,32,96], index: 1, kind: input, shape index: {}]
  %s2 = inlined_call_operand.vmem [shape: bf16[2,32,32], index: 2, kind: input, shape index: {}]
  %s3 = inlined_call_operand.vmem [shape: bf16[2,32,64], index: 3, kind: input, shape index: {}]
  %s4 = inlined_call_operand.vmem [shape: bf16[2,64,32], index: 4, kind: input, shape index: {}]
  %s5 = inlined_call_operand.vmem [shape: f32[2,8,128], index: 5, kind: input, shape index: {}]
  %s6 = inlined_call_operand.vmem [shape: bf16[16,32], index: 6, kind: output, shape index: {}]
  %s7 = sld [smem:[#allocation0]]
  $region65: #{bart_caption_forward.5} parent=0
    _
  %s9 = ssub.s32 1, %s7
  %s10 = scalar_select 0, %s9, %s7
  loop: start=0, step=1, limit=4
  $region2: #{bart_caption_forward.5} parent=0 // loop_pre_header
    _
  $region3: #{bart_caption_forward.5} parent=0 // loop_header
    %s12 = sphi 0, %s16
    %p13 = scmp.ge.s32.totalorder %s12, 4
    %s20 = sphi 0, %s20
    %s22 = sphi 0, %s20
    %s23 = sphi 0, %s22
    %s37 = sphi 0, %s23
    %s43 = sphi 0, %s45
    %s46 = sphi 0, %s43
    %s47 = sphi 0, %s46
    %s63 = sphi 0, %s47
    %s69 = sphi 0, %s71
    %s72 = sphi 0, %s69
    %s73 = sphi 0, %s72
    %s89 = sphi 0, %s73
    %s95 = sphi 0, %s97
    %s98 = sphi 0, %s95
    %s99 = sphi 0, %s98
    %s115 = sphi 0, %s99
    %s121 = sphi 0, %s123
    %s124 = sphi 0, %s121
    %s125 = sphi 0, %s124
    %s141 = sphi 0, %s125
    %s147 = sphi 0, %s149
    %s150 = sphi 0, %s147
    %s151 = sphi 0, %s150
    %s167 = sphi 0, %s151
    %s171 = sphi 0, %s171
    %s173 = sphi 0, %s171
    %s174 = sphi 0, %s173
    %s188 = sphi 0, %s174
  $region4: #{bart_caption_forward.5} parent=0 // loop_header_branch
    %15 = sbr.rel (%p13) target = $region8
  $region5: #{bart_caption_forward.5} parent=0 // loop_body
    %s17 = ssub.s32 %s12, 1
    %s18 = ssub.s32 %s12, 2
    %s19 = sadd.s32 %s12, 1
    %s21 = sadd.s32 %s20, 1
    %p24 = scmp.eq.s32.totalorder %s12, 1
    %p25 = scmp.ne.s32.totalorder %s20, %s22
    %p26 = scmp.eq.s32.totalorder %s12, 0
    %p27 = por %p25, %p26
    %p28 = scmp.ne.s32.totalorder %s20, %s22
    %p29 = scmp.eq.s32.totalorder %s17, 1
    %p30 = por %p28, %p29
    %p31 = scmp.ne.s32.totalorder %s22, %s23
    %p32 = scmp.eq.s32.totalorder %s17, 0
    %p33 = por %p31, %p32
    %p34 = scmp.ne.s32.totalorder %s22, %s23
    %p35 = scmp.eq.s32.totalorder %s18, 1
    %p36 = por %p34, %p35
    %p38 = scmp.ne.s32.totalorder %s23, %s37
    %p39 = scmp.eq.s32.totalorder %s18, 0
    %p40 = por %p38, %p39
    %s41 = ssub.s32 %s12, %s19
    %p42 = scmp.eq.s32.totalorder %s41, 0
    %s44 = sadd.s32 %s43, 1
    %s45 = scalar_select %p42, %s43, %s44
    %p48 = pneg %p42
    %p49 = scmp.eq.s32.totalorder %s12, 1
    %p50 = por %p48, %p49
    %p51 = scmp.ne.s32.totalorder %s43, %s46
    %p52 = scmp.eq.s32.totalorder %s12, 0
    %p53 = por %p51, %p52
    %p54 = scmp.ne.s32.totalorder %s43, %s46
    %p55 = scmp.eq.s32.totalorder %s17, 1
    %p56 = por %p54, %p55
    %p57 = scmp.ne.s32.totalorder %s46, %s47
    %p58 = scmp.eq.s32.totalorder %s17, 0
    %p59 = por %p57, %p58
    %p60 = scmp.ne.s32.totalorder %s46, %s47
    %p61 = scmp.eq.s32.totalorder %s18, 1
    %p62 = por %p60, %p61
    %p64 = scmp.ne.s32.totalorder %s47, %s63
    %p65 = scmp.eq.s32.totalorder %s18, 0
    %p66 = por %p64, %p65
    %s67 = ssub.s32 %s12, %s19
    %p68 = scmp.eq.s32.totalorder %s67, 0
    %s70 = sadd.s32 %s69, 1
    %s71 = scalar_select %p68, %s69, %s70
    %p74 = pneg %p68
    %p75 = scmp.eq.s32.totalorder %s12, 1
    %p76 = por %p74, %p75
    %p77 = scmp.ne.s32.totalorder %s69, %s72
    %p78 = scmp.eq.s32.totalorder %s12, 0
    %p79 = por %p77, %p78
    %p80 = scmp.ne.s32.totalorder %s69, %s72
    %p81 = scmp.eq.s32.totalorder %s17, 1
    %p82 = por %p80, %p81
    %p83 = scmp.ne.s32.totalorder %s72, %s73
    %p84 = scmp.eq.s32.totalorder %s17, 0
    %p85 = por %p83, %p84
    %p86 = scmp.ne.s32.totalorder %s72, %s73
    %p87 = scmp.eq.s32.totalorder %s18, 1
    %p88 = por %p86, %p87
    %p90 = scmp.ne.s32.totalorder %s73, %s89
    %p91 = scmp.eq.s32.totalorder %s18, 0
    %p92 = por %p90, %p91
    %s93 = ssub.s32 %s12, %s19
    %p94 = scmp.eq.s32.totalorder %s93, 0
    %s96 = sadd.s32 %s95, 1
    %s97 = scalar_select %p94, %s95, %s96
    %p100 = pneg %p94
    %p101 = scmp.eq.s32.totalorder %s12, 1
    %p102 = por %p100, %p101
    %p103 = scmp.ne.s32.totalorder %s95, %s98
    %p104 = scmp.eq.s32.totalorder %s12, 0
    %p105 = por %p103, %p104
    %p106 = scmp.ne.s32.totalorder %s95, %s98
    %p107 = scmp.eq.s32.totalorder %s17, 1
    %p108 = por %p106, %p107
    %p109 = scmp.ne.s32.totalorder %s98, %s99
    %p110 = scmp.eq.s32.totalorder %s17, 0
    %p111 = por %p109, %p110
    %p112 = scmp.ne.s32.totalorder %s98, %s99
    %p113 = scmp.eq.s32.totalorder %s18, 1
    %p114 = por %p112, %p113
    %p116 = scmp.ne.s32.totalorder %s99, %s115
    %p117 = scmp.eq.s32.totalorder %s18, 0
    %p118 = por %p116, %p117
    %s119 = ssub.s32 %s12, %s19
    %p120 = scmp.eq.s32.totalorder %s119, 0
    %s122 = sadd.s32 %s121, 1
    %s123 = scalar_select %p120, %s121, %s122
    %p126 = pneg %p120
    %p127 = scmp.eq.s32.totalorder %s12, 1
    %p128 = por %p126, %p127
    %p129 = scmp.ne.s32.totalorder %s121, %s124
    %p130 = scmp.eq.s32.totalorder %s12, 0
    %p131 = por %p129, %p130
    %p132 = scmp.ne.s32.totalorder %s121, %s124
    %p133 = scmp.eq.s32.totalorder %s17, 1
    %p134 = por %p132, %p133
    %p135 = scmp.ne.s32.totalorder %s124, %s125
    %p136 = scmp.eq.s32.totalorder %s17, 0
    %p137 = por %p135, %p136
    %p138 = scmp.ne.s32.totalorder %s124, %s125
    %p139 = scmp.eq.s32.totalorder %s18, 1
    %p140 = por %p138, %p139
    %p142 = scmp.ne.s32.totalorder %s125, %s141
    %p143 = scmp.eq.s32.totalorder %s18, 0
    %p144 = por %p142, %p143
    %s145 = ssub.s32 %s12, %s19
    %p146 = scmp.eq.s32.totalorder %s145, 0
    %s148 = sadd.s32 %s147, 1
    %s149 = scalar_select %p146, %s147, %s148
    %p152 = pneg %p146
    %p153 = scmp.eq.s32.totalorder %s12, 1
    %p154 = por %p152, %p153
    %p155 = scmp.ne.s32.totalorder %s147, %s150
    %p156 = scmp.eq.s32.totalorder %s12, 0
    %p157 = por %p155, %p156
    %p158 = scmp.ne.s32.totalorder %s147, %s150
    %p159 = scmp.eq.s32.totalorder %s17, 1
    %p160 = por %p158, %p159
    %p161 = scmp.ne.s32.totalorder %s150, %s151
    %p162 = scmp.eq.s32.totalorder %s17, 0
    %p163 = por %p161, %p162
    %p164 = scmp.ne.s32.totalorder %s150, %s151
    %p165 = scmp.eq.s32.totalorder %s18, 1
    %p166 = por %p164, %p165
    %p168 = scmp.ne.s32.totalorder %s151, %s167
    %p169 = scmp.eq.s32.totalorder %s18, 0
    %p170 = por %p168, %p169
    %s172 = sadd.s32 %s171, 1
    %p175 = scmp.eq.s32.totalorder %s12, 1
    %p176 = scmp.ne.s32.totalorder %s171, %s173
    %p177 = scmp.eq.s32.totalorder %s12, 0
    %p178 = por %p176, %p177
    %p179 = scmp.ne.s32.totalorder %s171, %s173
    %p180 = scmp.eq.s32.totalorder %s17, 1
    %p181 = por %p179, %p180
    %p182 = scmp.ne.s32.totalorder %s173, %s174
    %p183 = scmp.eq.s32.totalorder %s17, 0
    %p184 = por %p182, %p183
    %p185 = scmp.ne.s32.totalorder %s173, %s174
    %p186 = scmp.eq.s32.totalorder %s18, 1
    %p187 = por %p185, %p186
    %p189 = scmp.ne.s32.totalorder %s174, %s188
    %p190 = scmp.eq.s32.totalorder %s18, 0
    %p191 = por %p189, %p190
    %p192 = scmp.le.s32.totalorder 1, %s12
    %p193 = scmp.lt.s32.totalorder %s12, 3
    %p194 = pnand %p192, %p193
    %p195 = pneg %p194
    // Predicated region
    $region9: #{bart_caption_forward.5} parent=5 // pred_check
      _
    $region10: #{bart_caption_forward.5} parent=5 // pred_check_branch
      %197 = sbr.rel (%p194) target = $region12
    $region11: #{bart_caption_forward.5} parent=5 // pred_region
      %s198 = ssub.s32 %s12, 1
      // Predicated region
      $region13: #{bart_caption_forward.5} parent=11 // pred_check
        %p199 = pneg %p33
      $region14: #{bart_caption_forward.5} parent=11 // pred_check_branch
        %201 = sbr.rel (%p199) target = $region16
      $region15: #{bart_caption_forward.5} parent=11 // pred_region
        _
      $region16: #{bart_caption_forward.5} parent=11 // pred_fallthru
        _
    $region12: #{bart_caption_forward.5} parent=5 // pred_fallthru
      _
    %p202 = scmp.lt.s32.totalorder %s12, 2
    // Predicated region
    $region17: #{bart_caption_forward.5} parent=5 // pred_check
      %p203 = pneg %p202
    $region18: #{bart_caption_forward.5} parent=5 // pred_check_branch
      %205 = sbr.rel (%p203) target = $region20
    $region19: #{bart_caption_forward.5} parent=5 // pred_region
      // Predicated region
      $region21: #{bart_caption_forward.5} parent=19 // pred_check
        %p206 = pneg %p53
      $region22: #{bart_caption_forward.5} parent=19 // pred_check_branch
        %208 = sbr.rel (%p206) target = $region24
      $region23: #{bart_caption_forward.5} parent=19 // pred_region
        %p209 = scmp.lt.s32.totalorder %s12, 1
        %s210 = scalar_select %p209, %s12, 1
        %s211 = smul.addr %s210, 4
        %s212 = smul.addr %s211, 4
        %s213 = scalar_lea.vmem %s1, %s212
      $region24: #{bart_caption_forward.5} parent=19 // pred_fallthru
        _
      // Predicated region
      $region25: #{bart_caption_forward.5} parent=19 // pred_check
        %p214 = pneg %p79
      $region26: #{bart_caption_forward.5} parent=19 // pred_check_branch
        %216 = sbr.rel (%p214) target = $region28
      $region27: #{bart_caption_forward.5} parent=19 // pred_region
        %p217 = scmp.lt.s32.totalorder %s12, 1
        %s218 = scalar_select %p217, %s12, 1
        %s219 = smul.addr %s218, 4
        %s220 = smul.addr %s219, 4
        %s221 = scalar_lea.vmem %s2, %s220
      $region28: #{bart_caption_forward.5} parent=19 // pred_fallthru
        _
      // Predicated region
      $region29: #{bart_caption_forward.5} parent=19 // pred_check
        %p222 = pneg %p105
      $region30: #{bart_caption_forward.5} parent=19 // pred_check_branch
        %224 = sbr.rel (%p222) target = $region32
      $region31: #{bart_caption_forward.5} parent=19 // pred_region
        %p225 = scmp.lt.s32.totalorder %s12, 1
        %s226 = scalar_select %p225, %s12, 1
        %s227 = smul.addr %s226, 4
        %s228 = smul.addr %s227, 4
        %s229 = scalar_lea.vmem %s3, %s228
      $region32: #{bart_caption_forward.5} parent=19 // pred_fallthru
        _
      // Predicated region
      $region33: #{bart_caption_forward.5} parent=19 // pred_check
        %p230 = pneg %p131
      $region34: #{bart_caption_forward.5} parent=19 // pred_check_branch
        %232 = sbr.rel (%p230) target = $region36
      $region35: #{bart_caption_forward.5} parent=19 // pred_region
        %p233 = scmp.lt.s32.totalorder %s12, 1
        %s234 = scalar_select %p233, %s12, 1
        %s235 = smul.addr %s234, 8
        %s236 = smul.addr %s235, 4
        %s237 = scalar_lea.vmem %s4, %s236
      $region36: #{bart_caption_forward.5} parent=19 // pred_fallthru
        _
      // Predicated region
      $region37: #{bart_caption_forward.5} parent=19 // pred_check
        %p238 = pneg %p157
      $region38: #{bart_caption_forward.5} parent=19 // pred_check_branch
        %240 = sbr.rel (%p238) target = $region40
      $region39: #{bart_caption_forward.5} parent=19 // pred_region
        %p241 = scmp.lt.s32.totalorder %s12, 1
        %s242 = scalar_select %p241, %s12, 1
        %s243 = smul.addr %s242, 8
        %s244 = scalar_lea.vmem %s5, %s243
      $region40: #{bart_caption_forward.5} parent=19 // pred_fallthru
        _
    $region20: #{bart_caption_forward.5} parent=5 // pred_fallthru
      _
    %p245 = scmp.le.s32.totalorder 1, %s12
    %p246 = scmp.lt.s32.totalorder %s12, 3
    %p247 = pnand %p245, %p246
    %p248 = pneg %p247
    // Predicated region
    $region41: #{bart_caption_forward.5} parent=5 // pred_check
      _
    $region42: #{bart_caption_forward.5} parent=5 // pred_check_branch
      %250 = sbr.rel (%p247) target = $region44
    $region43: #{bart_caption_forward.5} parent=5 // pred_region
      %s251 = ssub.s32 %s12, 1
      %p252 = pneg %p33
      %p253 = pneg %p30
      %p254 = scmp.lt.s32.totalorder %s17, 1
      %s255 = scalar_select %p254, %s17, 1
      %s256 = smul.addr %s255, 4
      %s257 = smul.addr %s256, 4
      %s258 = scalar_lea.vmem %s1, %s257
      %p259 = pneg %p59
      %p260 = pneg %p56
      %p261 = scmp.lt.s32.totalorder %s17, 1
      %s262 = scalar_select %p261, %s17, 1
      %s263 = smul.addr %s262, 4
      %s264 = smul.addr %s263, 4
      %s265 = scalar_lea.vmem %s2, %s264
      %p266 = pneg %p85
      %p267 = pneg %p82
      %p268 = scmp.lt.s32.totalorder %s17, 1
      %s269 = scalar_select %p268, %s17, 1
      %s270 = smul.addr %s269, 4
      %s271 = smul.addr %s270, 4
      %s272 = scalar_lea.vmem %s3, %s271
      %p273 = pneg %p111
      %p274 = pneg %p108
      %p275 = scmp.lt.s32.totalorder %s17, 1
      %s276 = scalar_select %p275, %s17, 1
      %s277 = smul.addr %s276, 8
      %s278 = smul.addr %s277, 4
      %s279 = scalar_lea.vmem %s4, %s278
      %p280 = pneg %p137
      %p281 = pneg %p134
      %p282 = scmp.lt.s32.totalorder %s17, 1
      %s283 = scalar_select %p282, %s17, 1
      %s284 = smul.addr %s283, 8
      %s285 = scalar_lea.vmem %s5, %s284
      %p286 = pneg %p163
      %p287 = pneg %p160
      %p288 = pneg %p184
      %p289 = pneg %p181
      %p290 = scmp.lt.s32.totalorder %s17, 1
      %s291 = scalar_select %p290, %s17, 1
      %s292 = smul.addr %s291, 4
      %s293 = smul.addr %s292, 4
      %s294 = scalar_lea.vmem %s1, %s293
      %p295 = scmp.lt.s32.totalorder %s17, 1
      %s296 = scalar_select %p295, %s17, 1
      %s297 = smul.addr %s296, 4
      %s298 = smul.addr %s297, 4
      %s299 = scalar_lea.vmem %s2, %s298
      %p300 = scmp.lt.s32.totalorder %s17, 1
      %s301 = scalar_select %p300, %s17, 1
      %s302 = smul.addr %s301, 4
      %s303 = smul.addr %s302, 4
      %s304 = scalar_lea.vmem %s3, %s303
      %p305 = scmp.lt.s32.totalorder %s17, 1
      %s306 = scalar_select %p305, %s17, 1
      %s307 = smul.addr %s306, 8
      %s308 = smul.addr %s307, 4
      %s309 = scalar_lea.vmem %s4, %s308
      %p310 = scmp.lt.s32.totalorder %s17, 1
      %s311 = scalar_select %p310, %s17, 1
      %s312 = smul.addr %s311, 8
      %s313 = scalar_lea.vmem %s5, %s312
      %p315 = scmp.eq.s32.totalorder %s17, 0
      // Predicated region
      $region45: #{bart_caption_forward.5} parent=43 // pred_check
        %p316 = pneg %p315
      $region46: #{bart_caption_forward.5} parent=43 // pred_check_branch
        %318 = sbr.rel (%p316) target = $region48
      $region47: #{bart_caption_forward.5} parent=43 // pred_region
        %v319 = vld [vmem:[%s0] sm:$0xff]
        %v320 = vld [vmem:[%s0 + $0x8] sm:$0xff]
        %vm321 = vcmask 261120
        %322 = vst.msk [vmem:[#allocation2] sm:$0xff] %vm321, %v319
        %323 = vst.msk [vmem:[#allocation2 + $0x8] sm:$0xff] %vm321, %v320
      $region48: #{bart_caption_forward.5} parent=43 // pred_fallthru
        _
      %v324 = vld [vmem:[#allocation2] sm:$0xff]
      %v325 = vld [vmem:[#allocation2 + $0x8] sm:$0xff]
      %v326 = vld [vmem:[%s313] sm:$0xff]
      %v327 = vpack.c.bf16 %v325, %v324
      %v328 = vld [vmem:[%s294] sm:$0xf]
      %v329 = vld [vmem:[%s294 + $0x4] sm:$0xf]
      %v330 = vld [vmem:[%s294 + $0x8] sm:$0xf]
      %v331 = vld [vmem:[%s294 + $0xc] sm:$0xf]
      %v332 = vperm.slane %v326, 0
      %v337 = vunpack.c.l.b16 %v328
      %v338 = vunpack.c.l.b16 %v329
      %v339 = vunpack.c.l.b16 %v330
      %v340 = vunpack.c.l.b16 %v331
      %v341 = vpack.c.b16 %v338, %v337
      %v342 = vpack.c.b16 %v340, %v339
      %vm345 = vcmask 261120
      %v347 = vsel %vm345, %v327, 0
      %349 = vmatpush.bf16.msra.mxu0 0
      %350 = vmatpush.bf16.msra.mxu0 0
      %351 = vmatpush.bf16.msra.mxu0 0
      %352 = vmatpush.bf16.msra.mxu0 0
      %353 = vmatpush.bf16.msra.mxu0 0
      %354 = vmatpush.bf16.msra.mxu0 0
      %355 = vmatpush.bf16.msra.mxu0 %v342
      %356 = vmatpush.bf16.msra.mxu0 %v341
      %357 = vmatmul.bf16.gmra.mxu0 %v347
      %v358 = vpop.f32.mrf.mxu0
      %v359 = vadd.f32 %v332, %v358
      %v360 = vpop.f32.mrf.mxu0
      %v361 = vadd.f32 %v332, %v360
      %362 = vdwg.mxu0
      %v363 = vmul.f32 %v359, 0.35355338
      %v364 = vmul.f32 %v361, 0.35355338
      %367 = vrot.lane.b32.xlu0 %v363, 120
      %v368 = vpop.permute.xlu0 %367
      %369 = vrot.lane.b32.xlu0 %v364, 120
      %v370 = vpop.permute.xlu0 %369
      %373 = vrot.lane.b32.xlu0 %v363, 112
      %v374 = vpop.permute.xlu0 %373
      %375 = vrot.lane.b32.xlu0 %v364, 112
      %v376 = vpop.permute.xlu0 %375
      %379 = vrot.lane.b32.xlu0 %v363, 104
      %v380 = vpop.permute.xlu0 %379
      %381 = vrot.lane.b32.xlu0 %v364, 104
      %v382 = vpop.permute.xlu0 %381
      %v385 = vpack.c.bf16 %v363, %v363
      %v386 = vpack.c.bf16 %v364, %v364
      %v387 = vpack.c.bf16 %v368, %v368
      %v388 = vpack.c.bf16 %v370, %v370
      %v389 = vpack.c.bf16 %v374, %v374
      %v390 = vpack.c.bf16 %v376, %v376
      %v391 = vpack.c.bf16 %v380, %v380
      %v392 = vpack.c.bf16 %v382, %v382
      %395 = vrot.lane.b32.xlu0 %v359, 120
      %v396 = vpop.permute.xlu0 %395
      %397 = vrot.lane.b32.xlu0 %v361, 120
      %v398 = vpop.permute.xlu0 %397
      %401 = vrot.lane.b32.xlu0 %v359, 112
      %v402 = vpop.permute.xlu0 %401
      %403 = vrot.lane.b32.xlu0 %v361, 112
      %v404 = vpop.permute.xlu0 %403
      %407 = vrot.lane.b32.xlu0 %v359, 104
      %v408 = vpop.permute.xlu0 %407
      %409 = vrot.lane.b32.xlu0 %v361, 104
      %v410 = vpop.permute.xlu0 %409
      %v413 = vpack.c.bf16 %v359, %v359
      %v414 = vpack.c.bf16 %v361, %v361
      %v415 = vpack.c.bf16 %v396, %v396
      %v416 = vpack.c.bf16 %v398, %v398
      %v417 = vpack.c.bf16 %v402, %v402
      %v418 = vpack.c.bf16 %v404, %v404
      %v419 = vpack.c.bf16 %v408, %v408
      %v420 = vpack.c.bf16 %v410, %v410
      %v422 = vunpack.c.l.b16 %v413
      %v423 = vpack.c.b16 %v422, %v422
      %424 = vrot.lane.b32.xlu0 %v423, 96
      %v425 = vpop.permute.xlu0 %424
      %vm426 = vcmask 64512
      %v428 = vsel %vm426, %v385, 0
      %v431 = vsel %vm426, %v425, 0
      %433 = vmatpush.bf16.xpose.msra.mxu0 0
      %434 = vmatpush.bf16.xpose.msra.mxu0 0
      %435 = vmatpush.bf16.xpose.msra.mxu0 0
      %436 = vmatpush.bf16.xpose.msra.mxu0 0
      %437 = vmatpush.bf16.xpose.msra.mxu0 0
      %438 = vmatpush.bf16.xpose.msra.mxu0 0
      %439 = vmatpush.bf16.xpose.msra.mxu0 0
      %440 = vmatpush.bf16.xpose.msra.mxu0 %v431
      %441 = vmatmul.bf16.gmra.mxu0 %v428
      %v442 = vpop.f32.mrf.mxu0
      %v443 = vadd.f32 0.0, %v442
      %v444 = vpop.f32.mrf.mxu0
      %445 = vdwg.mxu0
      %v447 = vunpack.c.l.b16 %v414
      %v448 = vpack.c.b16 %v447, %v447
      %449 = vrot.lane.b32.xlu0 %v448, 96
      %v450 = vpop.permute.xlu0 %449
      %v452 = vsel %vm426, %v386, 0
      %v455 = vsel %vm426, %v450, 0
      %457 = vmatpush.bf16.xpose.msra.mxu0 0
      %458 = vmatpush.bf16.xpose.msra.mxu0 0
      %459 = vmatpush.bf16.xpose.msra.mxu0 0
      %460 = vmatpush.bf16.xpose.msra.mxu0 0
      %461 = vmatpush.bf16.xpose.msra.mxu0 0
      %462 = vmatpush.bf16.xpose.msra.mxu0 0
      %463 = vmatpush.bf16.xpose.msra.mxu0 0
      %464 = vmatpush.bf16.xpose.msra.mxu0 %v455
      %465 = vmatmul.bf16.gmra.mxu0 %v452
      %v466 = vpop.f32.mrf.mxu0
      %v467 = vadd.f32 0.0, %v466
      %v468 = vpop.f32.mrf.mxu0
      %469 = vdwg.mxu0
      %v471 = vunpack.c.l.b16 %v415
      %v472 = vpack.c.b16 %v471, %v471
      %473 = vrot.lane.b32.xlu0 %v472, 96
      %v474 = vpop.permute.xlu0 %473
      %v476 = vsel %vm426, %v387, 0
      %v479 = vsel %vm426, %v474, 0
      %481 = vmatpush.bf16.xpose.msra.mxu0 0
      %482 = vmatpush.bf16.xpose.msra.mxu0 0
      %483 = vmatpush.bf16.xpose.msra.mxu0 0
      %484 = vmatpush.bf16.xpose.msra.mxu0 0
      %485 = vmatpush.bf16.xpose.msra.mxu0 0
      %486 = vmatpush.bf16.xpose.msra.mxu0 0
      %487 = vmatpush.bf16.xpose.msra.mxu0 0
      %488 = vmatpush.bf16.xpose.msra.mxu0 %v479
      %489 = vmatmul.bf16.gmra.mxu0 %v476
      %v490 = vpop.f32.mrf.mxu0
      %v491 = vadd.f32 0.0, %v490
      %v492 = vpop.f32.mrf.mxu0
      %493 = vdwg.mxu0
      %v495 = vunpack.c.l.b16 %v416
      %v496 = vpack.c.b16 %v495, %v495
      %497 = vrot.lane.b32.xlu0 %v496, 96
      %v498 = vpop.permute.xlu0 %497
      %v500 = vsel %vm426, %v388, 0
      %v503 = vsel %vm426, %v498, 0
      %505 = vmatpush.bf16.xpose.msra.mxu0 0
      %506 = vmatpush.bf16.xpose.msra.mxu0 0
      %507 = vmatpush.bf16.xpose.msra.mxu0 0
      %508 = vmatpush.bf16.xpose.msra.mxu0 0
      %509 = vmatpush.bf16.xpose.msra.mxu0 0
      %510 = vmatpush.bf16.xpose.msra.mxu0 0
      %511 = vmatpush.bf16.xpose.msra.mxu0 0
      %512 = vmatpush.bf16.xpose.msra.mxu0 %v503
      %513 = vmatmul.bf16.gmra.mxu0 %v500
      %v514 = vpop.f32.mrf.mxu0
      %v515 = vadd.f32 0.0, %v514
      %v516 = vpop.f32.mrf.mxu0
      %517 = vdwg.mxu0
      %v519 = vunpack.c.l.b16 %v417
      %v520 = vpack.c.b16 %v519, %v519
      %521 = vrot.lane.b32.xlu0 %v520, 96
      %v522 = vpop.permute.xlu0 %521
      %v524 = vsel %vm426, %v389, 0
      %v527 = vsel %vm426, %v522, 0
      %529 = vmatpush.bf16.xpose.msra.mxu0 0
      %530 = vmatpush.bf16.xpose.msra.mxu0 0
      %531 = vmatpush.bf16.xpose.msra.mxu0 0
      %532 = vmatpush.bf16.xpose.msra.mxu0 0
      %533 = vmatpush.bf16.xpose.msra.mxu0 0
      %534 = vmatpush.bf16.xpose.msra.mxu0 0
      %535 = vmatpush.bf16.xpose.msra.mxu0 0
      %536 = vmatpush.bf16.xpose.msra.mxu0 %v527
      %537 = vmatmul.bf16.gmra.mxu0 %v524
      %v538 = vpop.f32.mrf.mxu0
      %v539 = vadd.f32 0.0, %v538
      %v540 = vpop.f32.mrf.mxu0
      %541 = vdwg.mxu0
      %v543 = vunpack.c.l.b16 %v418
      %v544 = vpack.c.b16 %v543, %v543
      %545 = vrot.lane.b32.xlu0 %v544, 96
      %v546 = vpop.permute.xlu0 %545
      %v548 = vsel %vm426, %v390, 0
      %v551 = vsel %vm426, %v546, 0
      %553 = vmatpush.bf16.xpose.msra.mxu0 0
      %554 = vmatpush.bf16.xpose.msra.mxu0 0
      %555 = vmatpush.bf16.xpose.msra.mxu0 0
      %556 = vmatpush.bf16.xpose.msra.mxu0 0
      %557 = vmatpush.bf16.xpose.msra.mxu0 0
      %558 = vmatpush.bf16.xpose.msra.mxu0 0
      %559 = vmatpush.bf16.xpose.msra.mxu0 0
      %560 = vmatpush.bf16.xpose.msra.mxu0 %v551
      %561 = vmatmul.bf16.gmra.mxu0 %v548
      %v562 = vpop.f32.mrf.mxu0
      %v563 = vadd.f32 0.0, %v562
      %v564 = vpop.f32.mrf.mxu0
      %565 = vdwg.mxu0
      %v567 = vunpack.c.l.b16 %v419
      %v568 = vpack.c.b16 %v567, %v567
      %569 = vrot.lane.b32.xlu0 %v568, 96
      %v570 = vpop.permute.xlu0 %569
      %v572 = vsel %vm426, %v391, 0
      %v575 = vsel %vm426, %v570, 0
      %577 = vmatpush.bf16.xpose.msra.mxu0 0
      %578 = vmatpush.bf16.xpose.msra.mxu0 0
      %579 = vmatpush.bf16.xpose.msra.mxu0 0
      %580 = vmatpush.bf16.xpose.msra.mxu0 0
      %581 = vmatpush.bf16.xpose.msra.mxu0 0
      %582 = vmatpush.bf16.xpose.msra.mxu0 0
      %583 = vmatpush.bf16.xpose.msra.mxu0 0
      %584 = vmatpush.bf16.xpose.msra.mxu0 %v575
      %585 = vmatmul.bf16.gmra.mxu0 %v572
      %v586 = vpop.f32.mrf.mxu0
      %v587 = vadd.f32 0.0, %v586
      %v588 = vpop.f32.mrf.mxu0
      %589 = vdwg.mxu0
      %v591 = vunpack.c.l.b16 %v420
      %v592 = vpack.c.b16 %v591, %v591
      %593 = vrot.lane.b32.xlu0 %v592, 96
      %v594 = vpop.permute.xlu0 %593
      %v596 = vsel %vm426, %v392, 0
      %v599 = vsel %vm426, %v594, 0
      %601 = vmatpush.bf16.xpose.msra.mxu0 0
      %602 = vmatpush.bf16.xpose.msra.mxu0 0
      %603 = vmatpush.bf16.xpose.msra.mxu0 0
      %604 = vmatpush.bf16.xpose.msra.mxu0 0
      %605 = vmatpush.bf16.xpose.msra.mxu0 0
      %606 = vmatpush.bf16.xpose.msra.mxu0 0
      %607 = vmatpush.bf16.xpose.msra.mxu0 0
      %608 = vmatpush.bf16.xpose.msra.mxu0 %v599
      %609 = vmatmul.bf16.gmra.mxu0 %v596
      %v610 = vpop.f32.mrf.mxu0
      %v611 = vadd.f32 0.0, %v610
      %v612 = vpop.f32.mrf.mxu0
      %613 = vdwg.mxu0
      %v614 = vsel %vm426, %v443, -inf
      %615 = vmax.xlane.f32.xlu0 %v614
      %v616 = vpop.xlane.xlu0 %615
      %v617 = vsel %vm426, %v467, -inf
      %618 = vmax.xlane.f32.xlu0 %v617
      %v619 = vpop.xlane.xlu0 %618
      %v620 = vsel %vm426, %v491, -inf
      %621 = vmax.xlane.f32.xlu0 %v620
      %v622 = vpop.xlane.xlu0 %621
      %v623 = vsel %vm426, %v515, -inf
      %624 = vmax.xlane.f32.xlu0 %v623
      %v625 = vpop.xlane.xlu0 %624
      %v626 = vsel %vm426, %v539, -inf
      %627 = vmax.xlane.f32.xlu0 %v626
      %v628 = vpop.xlane.xlu0 %627
      %v629 = vsel %vm426, %v563, -inf
      %630 = vmax.xlane.f32.xlu0 %v629
      %v631 = vpop.xlane.xlu0 %630
      %v632 = vsel %vm426, %v587, -inf
      %633 = vmax.xlane.f32.xlu0 %v632
      %v634 = vpop.xlane.xlu0 %633
      %v635 = vsel %vm426, %v611, -inf
      %636 = vmax.xlane.f32.xlu0 %v635
      %v637 = vpop.xlane.xlu0 %636
      %v638 = vsub.f32 %v443, %v616
      %v639 = vsub.f32 %v467, %v619
      %v640 = vsub.f32 %v491, %v622
      %v641 = vsub.f32 %v515, %v625
      %v642 = vsub.f32 %v539, %v628
      %v643 = vsub.f32 %v563, %v631
      %v644 = vsub.f32 %v587, %v634
      %v645 = vsub.f32 %v611, %v637
      %v646 = vmul.f32 %v638, 1.442695
      %v647 = vpow.pop %v646
      %v648 = vmul.f32 %v639, 1.442695
      %v649 = vpow.pop %v648
      %v650 = vmul.f32 %v640, 1.442695
      %v651 = vpow.pop %v650
      %v652 = vmul.f32 %v641, 1.442695
      %v653 = vpow.pop %v652
      %v654 = vmul.f32 %v642, 1.442695
      %v655 = vpow.pop %v654
      %v656 = vmul.f32 %v643, 1.442695
      %v657 = vpow.pop %v656
      %v658 = vmul.f32 %v644, 1.442695
      %v659 = vpow.pop %v658
      %v660 = vmul.f32 %v645, 1.442695
      %v661 = vpow.pop %v660
      %v662 = vsel %vm426, %v647, 0.0
      %663 = vadd.xlane.f32.xlu0 %v662
      %v664 = vpop.xlane.xlu0 %663
      %v665 = vsel %vm426, %v649, 0.0
      %666 = vadd.xlane.f32.xlu0 %v665
      %v667 = vpop.xlane.xlu0 %666
      %v668 = vsel %vm426, %v651, 0.0
      %669 = vadd.xlane.f32.xlu0 %v668
      %v670 = vpop.xlane.xlu0 %669
      %v671 = vsel %vm426, %v653, 0.0
      %672 = vadd.xlane.f32.xlu0 %v671
      %v673 = vpop.xlane.xlu0 %672
      %v674 = vsel %vm426, %v655, 0.0
      %675 = vadd.xlane.f32.xlu0 %v674
      %v676 = vpop.xlane.xlu0 %675
      %v677 = vsel %vm426, %v657, 0.0
      %678 = vadd.xlane.f32.xlu0 %v677
      %v679 = vpop.xlane.xlu0 %678
      %v680 = vsel %vm426, %v659, 0.0
      %681 = vadd.xlane.f32.xlu0 %v680
      %v682 = vpop.xlane.xlu0 %681
      %v683 = vsel %vm426, %v661, 0.0
      %684 = vadd.xlane.f32.xlu0 %v683
      %v685 = vpop.xlane.xlu0 %684
      %v686 = vrcp.pop %v664
      %v687 = vrcp.pop %v667
      %v688 = vrcp.pop %v670
      %v689 = vrcp.pop %v673
      %v690 = vrcp.pop %v676
      %v691 = vrcp.pop %v679
      %v692 = vrcp.pop %v682
      %v693 = vrcp.pop %v685
      %v694 = vmul.f32 %v647, %v686
      %v695 = vmul.f32 %v649, %v687
      %v696 = vmul.f32 %v651, %v688
      %v697 = vmul.f32 %v653, %v689
      %v698 = vmul.f32 %v655, %v690
      %v699 = vmul.f32 %v657, %v691
      %v700 = vmul.f32 %v659, %v692
      %v701 = vmul.f32 %v661, %v693
      %v702 = vpack.c.bf16 %v694, %v694
      %v703 = vpack.c.bf16 %v695, %v695
      %v704 = vpack.c.bf16 %v696, %v696
      %v705 = vpack.c.bf16 %v697, %v697
      %v706 = vpack.c.bf16 %v698, %v698
      %v707 = vpack.c.bf16 %v699, %v699
      %v708 = vpack.c.bf16 %v700, %v700
      %v709 = vpack.c.bf16 %v701, %v701
      %710 = vrot.lane.b32.xlu0 %v423, 64
      %v711 = vpop.permute.xlu0 %710
      %v713 = vsel %vm426, %v702, 0
      %vm715 = vcmask 1043456
      %v717 = vsel %vm715, %v711, 0
      %719 = vmatpush.bf16.msra.mxu0 0
      %720 = vmatpush.bf16.msra.mxu0 0
      %721 = vmatpush.bf16.msra.mxu0 0
      %722 = vmatpush.bf16.msra.mxu0 0
      %723 = vmatpush.bf16.msra.mxu0 0
      %724 = vmatpush.bf16.msra.mxu0 0
      %725 = vmatpush.bf16.msra.mxu0 0
      %726 = vmatpush.bf16.msra.mxu0 %v717
      %727 = vmatmul.bf16.gmra.mxu0 %v713
      %v728 = vpop.f32.mrf.mxu0
      %v729 = vadd.f32 0.0, %v728
      %v730 = vpop.f32.mrf.mxu0
      %731 = vdwg.mxu0
      %732 = vrot.lane.b32.xlu0 %v448, 64
      %v733 = vpop.permute.xlu0 %732
      %v735 = vsel %vm426, %v703, 0
      %v738 = vsel %vm715, %v733, 0
      %740 = vmatpush.bf16.msra.mxu0 0
      %741 = vmatpush.bf16.msra.mxu0 0
      %742 = vmatpush.bf16.msra.mxu0 0
      %743 = vmatpush.bf16.msra.mxu0 0
      %744 = vmatpush.bf16.msra.mxu0 0
      %745 = vmatpush.bf16.msra.mxu0 0
      %746 = vmatpush.bf16.msra.mxu0 0
      %747 = vmatpush.bf16.msra.mxu0 %v738
      %748 = vmatmul.bf16.gmra.mxu0 %v735
      %v749 = vpop.f32.mrf.mxu0
      %v750 = vadd.f32 0.0, %v749
      %v751 = vpop.f32.mrf.mxu0
      %752 = vdwg.mxu0
      %753 = vrot.lane.b32.xlu0 %v472, 64
      %v754 = vpop.permute.xlu0 %753
      %v756 = vsel %vm426, %v704, 0
      %v759 = vsel %vm715, %v754, 0
      %761 = vmatpush.bf16.msra.mxu0 0
      %762 = vmatpush.bf16.msra.mxu0 0
      %763 = vmatpush.bf16.msra.mxu0 0
      %764 = vmatpush.bf16.msra.mxu0 0
      %765 = vmatpush.bf16.msra.mxu0 0
      %766 = vmatpush.bf16.msra.mxu0 0
      %767 = vmatpush.bf16.msra.mxu0 0
      %768 = vmatpush.bf16.msra.mxu0 %v759
      %769 = vmatmul.bf16.gmra.mxu0 %v756
      %v770 = vpop.f32.mrf.mxu0
      %v771 = vadd.f32 0.0, %v770
      %v772 = vpop.f32.mrf.mxu0
      %773 = vdwg.mxu0
      %774 = vrot.lane.b32.xlu0 %v496, 64
      %v775 = vpop.permute.xlu0 %774
      %v777 = vsel %vm426, %v705, 0
      %v780 = vsel %vm715, %v775, 0
      %782 = vmatpush.bf16.msra.mxu0 0
      %783 = vmatpush.bf16.msra.mxu0 0
      %784 = vmatpush.bf16.msra.mxu0 0
      %785 = vmatpush.bf16.msra.mxu0 0
      %786 = vmatpush.bf16.msra.mxu0 0
      %787 = vmatpush.bf16.msra.mxu0 0
      %788 = vmatpush.bf16.msra.mxu0 0
      %789 = vmatpush.bf16.msra.mxu0 %v780
      %790 = vmatmul.bf16.gmra.mxu0 %v777
      %v791 = vpop.f32.mrf.mxu0
      %v792 = vadd.f32 0.0, %v791
      %v793 = vpop.f32.mrf.mxu0
      %794 = vdwg.mxu0
      %795 = vrot.lane.b32.xlu0 %v520, 64
      %v796 = vpop.permute.xlu0 %795
      %v798 = vsel %vm426, %v706, 0
      %v801 = vsel %vm715, %v796, 0
      %803 = vmatpush.bf16.msra.mxu0 0
      %804 = vmatpush.bf16.msra.mxu0 0
      %805 = vmatpush.bf16.msra.mxu0 0
      %806 = vmatpush.bf16.msra.mxu0 0
      %807 = vmatpush.bf16.msra.mxu0 0
      %808 = vmatpush.bf16.msra.mxu0 0
      %809 = vmatpush.bf16.msra.mxu0 0
      %810 = vmatpush.bf16.msra.mxu0 %v801
      %811 = vmatmul.bf16.gmra.mxu0 %v798
      %v812 = vpop.f32.mrf.mxu0
      %v813 = vadd.f32 0.0, %v812
      %v814 = vpop.f32.mrf.mxu0
      %815 = vdwg.mxu0
      %816 = vrot.lane.b32.xlu0 %v544, 64
      %v817 = vpop.permute.xlu0 %816
      %v819 = vsel %vm426, %v707, 0
      %v822 = vsel %vm715, %v817, 0
      %824 = vmatpush.bf16.msra.mxu0 0
      %825 = vmatpush.bf16.msra.mxu0 0
      %826 = vmatpush.bf16.msra.mxu0 0
      %827 = vmatpush.bf16.msra.mxu0 0
      %828 = vmatpush.bf16.msra.mxu0 0
      %829 = vmatpush.bf16.msra.mxu0 0
      %830 = vmatpush.bf16.msra.mxu0 0
      %831 = vmatpush.bf16.msra.mxu0 %v822
      %832 = vmatmul.bf16.gmra.mxu0 %v819
      %v833 = vpop.f32.mrf.mxu0
      %v834 = vadd.f32 0.0, %v833
      %v835 = vpop.f32.mrf.mxu0
      %836 = vdwg.mxu0
      %837 = vrot.lane.b32.xlu0 %v568, 64
      %v838 = vpop.permute.xlu0 %837
      %v840 = vsel %vm426, %v708, 0
      %v843 = vsel %vm715, %v838, 0
      %845 = vmatpush.bf16.msra.mxu0 0
      %846 = vmatpush.bf16.msra.mxu0 0
      %847 = vmatpush.bf16.msra.mxu0 0
      %848 = vmatpush.bf16.msra.mxu0 0
      %849 = vmatpush.bf16.msra.mxu0 0
      %850 = vmatpush.bf16.msra.mxu0 0
      %851 = vmatpush.bf16.msra.mxu0 0
      %852 = vmatpush.bf16.msra.mxu0 %v843
      %853 = vmatmul.bf16.gmra.mxu0 %v840
      %v854 = vpop.f32.mrf.mxu0
      %v855 = vadd.f32 0.0, %v854
      %v856 = vpop.f32.mrf.mxu0
      %857 = vdwg.mxu0
      %858 = vrot.lane.b32.xlu0 %v592, 64
      %v859 = vpop.permute.xlu0 %858
      %v861 = vsel %vm426, %v709, 0
      %v864 = vsel %vm715, %v859, 0
      %866 = vmatpush.bf16.msra.mxu0 0
      %867 = vmatpush.bf16.msra.mxu0 0
      %868 = vmatpush.bf16.msra.mxu0 0
      %869 = vmatpush.bf16.msra.mxu0 0
      %870 = vmatpush.bf16.msra.mxu0 0
      %871 = vmatpush.bf16.msra.mxu0 0
      %872 = vmatpush.bf16.msra.mxu0 0
      %873 = vmatpush.bf16.msra.mxu0 %v864
      %874 = vmatmul.bf16.gmra.mxu0 %v861
      %v875 = vpop.f32.mrf.mxu0
      %v876 = vadd.f32 0.0, %v875
      %v877 = vpop.f32.mrf.mxu0
      %878 = vdwg.mxu0
      %881 = vrot.lane.b32.xlu0 %v771, 8
      %v882 = vpop.permute.xlu0 %881
      %883 = vrot.lane.b32.xlu0 %v792, 8
      %v884 = vpop.permute.xlu0 %883
      %889 = vrot.lane.b32.xlu0 %v813, 16
      %v890 = vpop.permute.xlu0 %889
      %891 = vrot.lane.b32.xlu0 %v834, 16
      %v892 = vpop.permute.xlu0 %891
      %897 = vrot.lane.b32.xlu0 %v855, 24
      %v898 = vpop.permute.xlu0 %897
      %899 = vrot.lane.b32.xlu0 %v876, 24
      %v900 = vpop.permute.xlu0 %899
      %v903 = vsel %vm426, %v729, %v882
      %v904 = vsel %vm426, %v750, %v884
      %vm905 = vcmask 130048
      %v906 = vsel %vm905, %v903, %v890
      %v907 = vsel %vm905, %v904, %v892
      %vm908 = vcmask 195584
      %v909 = vsel %vm908, %v906, %v898
      %v910 = vsel %vm908, %v907, %v900
      %v911 = vpack.c.bf16 %v910, %v909
      %v912 = vld [vmem:[%s299] sm:$0xf]
      %v913 = vld [vmem:[%s299 + $0x4] sm:$0xf]
      %v914 = vld [vmem:[%s299 + $0x8] sm:$0xf]
      %v915 = vld [vmem:[%s299 + $0xc] sm:$0xf]
      %v916 = vperm.slane %v326, 1
      %v921 = vunpack.c.l.b16 %v912
      %v922 = vunpack.c.l.b16 %v913
      %v923 = vunpack.c.l.b16 %v914
      %v924 = vunpack.c.l.b16 %v915
      %v925 = vpack.c.b16 %v922, %v921
      %v926 = vpack.c.b16 %v924, %v923
      %v930 = vsel %vm345, %v911, 0
      %932 = vmatpush.bf16.msra.mxu0 0
      %933 = vmatpush.bf16.msra.mxu0 0
      %934 = vmatpush.bf16.msra.mxu0 0
      %935 = vmatpush.bf16.msra.mxu0 0
      %936 = vmatpush.bf16.msra.mxu0 0
      %937 = vmatpush.bf16.msra.mxu0 0
      %938 = vmatpush.bf16.msra.mxu0 %v926
      %939 = vmatpush.bf16.msra.mxu0 %v925
      %940 = vmatmul.bf16.gmra.mxu0 %v930
      %v941 = vpop.f32.mrf.mxu0
      %v942 = vadd.f32 %v916, %v941
      %v943 = vpop.f32.mrf.mxu0
      %v944 = vadd.f32 %v916, %v943
      %945 = vdwg.mxu0
      %v946 = vadd.f32 %v324, %v942
      %v947 = vadd.f32 %v325, %v944
      %v948 = vsel %vm345, %v946, 0.0
      %949 = vadd.xlane.f32.xlu0 %v948
      %v950 = vpop.xlane.xlu0 %949
      %v951 = vsel %vm345, %v947, 0.0
      %952 = vadd.xlane.f32.xlu0 %v951
      %v953 = vpop.xlane.xlu0 %952
      %v954 = vrcp.pop 32.0
      %v955 = vmul.f32 32.0, %v954
      %v956 = vsub.f32 1.0, %v955
      %v957 = vmul.f32 %v954, %v956
      %v958 = vadd.f32 %v954, %v957
      %vm959 = vweird.f32 %v954
      %v960 = vsel %vm959, %v954, %v958
      %v961 = vmul.f32 %v950, %v960
      %v962 = vmul.f32 %v953, %v960
      %v963 = vsub.f32 %v946, %v961
      %v964 = vsub.f32 %v947, %v962
      %v965 = vmul.f32 %v963, %v963
      %v966 = vmul.f32 %v964, %v964
      %v967 = vsel %vm345, %v965, 0.0
      %968 = vadd.xlane.f32.xlu0 %v967
      %v969 = vpop.xlane.xlu0 %968
      %v970 = vsel %vm345, %v966, 0.0
      %971 = vadd.xlane.f32.xlu0 %v970
      %v972 = vpop.xlane.xlu0 %971
      %v973 = vmul.f32 %v969, %v960
      %v974 = vmul.f32 %v972, %v960
      %v975 = vadd.f32 %v973, 1e-05
      %v976 = vadd.f32 %v974, 1e-05
      %v977 = vrsqrt.pop %v975
      %v978 = vmul.f32 %v977, %v975
      %v979 = vmul.f32 %v978, %v977
      %v980 = vmul.f32 0.5, %v979
      %v981 = vsub.f32 1.5, %v980
      %v982 = vmul.f32 %v977, %v981
      %vm983 = vweird.f32 %v975
      %vm984 = vweird.f32 %v977
      %vm985 = vmor %vm983, %vm984
      %v986 = vsel %vm985, %v977, %v982
      %v987 = vrsqrt.pop %v976
      %v988 = vmul.f32 %v987, %v976
      %v989 = vmul.f32 %v988, %v987
      %v990 = vmul.f32 0.5, %v989
      %v991 = vsub.f32 1.5, %v990
      %v992 = vmul.f32 %v987, %v991
      %vm993 = vweird.f32 %v976
      %vm994 = vweird.f32 %v987
      %vm995 = vmor %vm993, %vm994
      %v996 = vsel %vm995, %v987, %v992
      %v997 = vmul.f32 %v963, %v986
      %v998 = vmul.f32 %v964, %v996
      %v999 = vperm.slane %v326, 2
      %v1000 = vmul.f32 %v997, %v999
      %v1001 = vmul.f32 %v998, %v999
      %v1002 = vperm.slane %v326, 3
      %v1003 = vadd.f32 %v1000, %v1002
      %v1004 = vadd.f32 %v1001, %v1002
      %v1005 = vpack.c.bf16 %v1004, %v1003
      %v1006 = vld [vmem:[%s304] sm:$0xf]
      %v1007 = vld [vmem:[%s304 + $0x4] sm:$0xf]
      %v1008 = vld [vmem:[%s304 + $0x8] sm:$0xf]
      %v1009 = vld [vmem:[%s304 + $0xc] sm:$0xf]
      %v1010 = vperm.slane %v326, 4
      %v1015 = vunpack.c.l.b16 %v1006
      %v1016 = vunpack.c.l.b16 %v1007
      %v1017 = vunpack.c.l.b16 %v1008
      %v1018 = vunpack.c.l.b16 %v1009
      %v1019 = vpack.c.b16 %v1016, %v1015
      %v1020 = vpack.c.b16 %v1018, %v1017
      %v1024 = vsel %vm345, %v1005, 0
      %1026 = vmatpush.bf16.msra.mxu0 0
      %1027 = vmatpush.bf16.msra.mxu0 0
      %1028 = vmatpush.bf16.msra.mxu0 0
      %1029 = vmatpush.bf16.msra.mxu0 0
      %1030 = vmatpush.bf16.msra.mxu0 0
      %1031 = vmatpush.bf16.msra.mxu0 0
      %1032 = vmatpush.bf16.msra.mxu0 %v1020
      %1033 = vmatpush.bf16.msra.mxu0 %v1019
      %1034 = vmatmul.bf16.gmra.mxu0 %v1024
      %v1035 = vpop.f32.mrf.mxu0
      %v1036 = vadd.f32 %v1010, %v1035
      %v1037 = vpop.f32.mrf.mxu0
      %v1038 = vadd.f32 %v1010, %v1037
      %1039 = vdwg.mxu0
      %v1040 = vmul.f32 %v1036, 0.5
      %v1041 = vmul.f32 %v1038, 0.5
      %v1042 = vmul.f32 %v1036, 0.70710677
      %v1043 = vmul.f32 %v1038, 0.70710677
      %v1044 = vmul.f32 %v1042, %v1042
      %v1045 = vmin.f32 16.0, %v1044
      %v1046 = vmul.f32 %v1045, 2.1237322e-06
      %v1047 = vadd.f32 %v1046, 0.00028619796
      %v1048 = vmul.f32 %v1045, %v1047
      %v1049 = vadd.f32 %v1048, 0.0036580483
      %v1050 = vmul.f32 %v1045, %v1049
      %v1051 = vadd.f32 %v1050, 0.05243302
      %v1052 = vmul.f32 %v1045, %v1051
      %v1053 = vadd.f32 %v1052, 0.18741608
      %v1054 = vmul.f32 %v1045, %v1053
      %v1055 = vadd.f32 %v1054, 1.1283791
      %v1056 = vmul.f32 %v1042, %v1055
      %v1057 = vmul.f32 %v1045, 3.8918573e-05
      %v1058 = vadd.f32 %v1057, 0.001143296
      %v1059 = vmul.f32 %v1045, %v1058
      %v1060 = vadd.f32 %v1059, 0.014752088
      %v1061 = vmul.f32 %v1045, %v1060
      %v1062 = vadd.f32 %v1061, 0.112945676
      %v1063 = vmul.f32 %v1045, %v1062
      %v1064 = vadd.f32 %v1063, 0.4994258
      %v1065 = vmul.f32 %v1045, %v1064
      %v1066 = vadd.f32 %v1065, 1.0
      %v1067 = vrcp.pop %v1066
      %v1068 = vmul.f32 %v1066, %v1067
      %v1069 = vsub.f32 1.0, %v1068
      %v1070 = vmul.f32 %v1067, %v1069
      %v1071 = vadd.f32 %v1067, %v1070
      %vm1072 = vweird.f32 %v1066
      %vm1073 = vweird.f32 %v1067
      %vm1074 = vmor %vm1072, %vm1073
      %v1075 = vsel %vm1074, %v1067, %v1071
      %v1076 = vand.u32 2147483647, %v1066
      %vm1077 = vcmp.eq.f32.partialorder %v1076, 8.507059e+37
      %v1078 = vand.u32 %v1066, 2147483648
      %v1079 = vor.u32 1.1754944e-38, %v1078
      %v1080 = vsel %vm1077, %v1079, %v1075
      %v1081 = vmul.f32 %v1056, %v1080
      %v1082 = vmin.f32 %v1081, 1.0
      %v1083 = vmax.f32 %v1082, -1.0
      %v1084 = vmul.f32 %v1043, %v1043
      %v1085 = vmin.f32 16.0, %v1084
      %v1086 = vmul.f32 %v1085, 2.1237322e-06
      %v1087 = vadd.f32 %v1086, 0.00028619796
      %v1088 = vmul.f32 %v1085, %v1087
      %v1089 = vadd.f32 %v1088, 0.0036580483
      %v1090 = vmul.f32 %v1085, %v1089
      %v1091 = vadd.f32 %v1090, 0.05243302
      %v1092 = vmul.f32 %v1085, %v1091
      %v1093 = vadd.f32 %v1092, 0.18741608
      %v1094 = vmul.f32 %v1085, %v1093
      %v1095 = vadd.f32 %v1094, 1.1283791
      %v1096 = vmul.f32 %v1043, %v1095
      %v1097 = vmul.f32 %v1085, 3.8918573e-05
      %v1098 = vadd.f32 %v1097, 0.001143296
      %v1099 = vmul.f32 %v1085, %v1098
      %v1100 = vadd.f32 %v1099, 0.014752088
      %v1101 = vmul.f32 %v1085, %v1100
      %v1102 = vadd.f32 %v1101, 0.112945676
      %v1103 = vmul.f32 %v1085, %v1102
      %v1104 = vadd.f32 %v1103, 0.4994258
      %v1105 = vmul.f32 %v1085, %v1104
      %v1106 = vadd.f32 %v1105, 1.0
      %v1107 = vrcp.pop %v1106
      %v1108 = vmul.f32 %v1106, %v1107
      %v1109 = vsub.f32 1.0, %v1108
      %v1110 = vmul.f32 %v1107, %v1109
      %v1111 = vadd.f32 %v1107, %v1110
      %vm1112 = vweird.f32 %v1106
      %vm1113 = vweird.f32 %v1107
      %vm1114 = vmor %vm1112, %vm1113
      %v1115 = vsel %vm1114, %v1107, %v1111
      %v1116 = vand.u32 2147483647, %v1106
      %vm1117 = vcmp.eq.f32.partialorder %v1116, 8.507059e+37
      %v1118 = vand.u32 %v1106, 2147483648
      %v1119 = vor.u32 1.1754944e-38, %v1118
      %v1120 = vsel %vm1117, %v1119, %v1115
      %v1121 = vmul.f32 %v1096, %v1120
      %v1122 = vmin.f32 %v1121, 1.0
      %v1123 = vmax.f32 %v1122, -1.0
      %v1124 = vadd.f32 %v1083, 1.0
      %v1125 = vadd.f32 %v1123, 1.0
      %v1126 = vmul.f32 %v1040, %v1124
      %v1127 = vmul.f32 %v1041, %v1125
      %v1128 = vpack.c.bf16 %v1127, %v1126
      %v1129 = vld [vmem:[%s309] sm:$0xf]
      %v1130 = vld [vmem:[%s309 + $0x4] sm:$0xf]
      %v1131 = vld [vmem:[%s309 + $0x8] sm:$0xf]
      %v1132 = vld [vmem:[%s309 + $0xc] sm:$0xf]
      %v1133 = vld [vmem:[%s309 + $0x10] sm:$0xf]
      %v1134 = vld [vmem:[%s309 + $0x14] sm:$0xf]
      %v1135 = vld [vmem:[%s309 + $0x18] sm:$0xf]
      %v1136 = vld [vmem:[%s309 + $0x1c] sm:$0xf]
      %v1137 = vperm.slane %v326, 5
      %v1146 = vunpack.c.l.b16 %v1129
      %v1147 = vunpack.c.l.b16 %v1130
      %v1148 = vunpack.c.l.b16 %v1131
      %v1149 = vunpack.c.l.b16 %v1132
      %v1150 = vunpack.c.l.b16 %v1133
      %v1151 = vunpack.c.l.b16 %v1134
      %v1152 = vunpack.c.l.b16 %v1135
      %v1153 = vunpack.c.l.b16 %v1136
      %v1154 = vpack.c.b16 %v1147, %v1146
      %v1155 = vpack.c.b16 %v1149, %v1148
      %v1156 = vpack.c.b16 %v1151, %v1150
      %v1157 = vpack.c.b16 %v1153, %v1152
      %vm1162 = vcmask 523264
      %v1164 = vsel %vm1162, %v1128, 0
      %1166 = vmatpush.bf16.msra.mxu0 0
      %1167 = vmatpush.bf16.msra.mxu0 0
      %1168 = vmatpush.bf16.msra.mxu0 0
      %1169 = vmatpush.bf16.msra.mxu0 0
      %1170 = vmatpush.bf16.msra.mxu0 %v1157
      %1171 = vmatpush.bf16.msra.mxu0 %v1156
      %1172 = vmatpush.bf16.msra.mxu0 %v1155
      %1173 = vmatpush.bf16.msra.mxu0 %v1154
      %1174 = vmatmul.bf16.gmra.mxu0 %v1164
      %v1175 = vpop.f32.mrf.mxu0
      %v1176 = vadd.f32 %v1137, %v1175
      %v1177 = vpop.f32.mrf.mxu0
      %v1178 = vadd.f32 %v1137, %v1177
      %1179 = vdwg.mxu0
      %v1180 = vadd.f32 %v1003, %v1176
      %v1181 = vadd.f32 %v1004, %v1178
      %v1182 = vsel %vm345, %v1180, 0.0
      %1183 = vadd.xlane.f32.xlu0 %v1182
      %v1184 = vpop.xlane.xlu0 %1183
      %v1185 = vsel %vm345, %v1181, 0.0
      %1186 = vadd.xlane.f32.xlu0 %v1185
      %v1187 = vpop.xlane.xlu0 %1186
      %v1188 = vmul.f32 %v1184, %v960
      %v1189 = vmul.f32 %v1187, %v960
      %v1190 = vsub.f32 %v1180, %v1188
      %v1191 = vsub.f32 %v1181, %v1189
      %v1192 = vmul.f32 %v1190, %v1190
      %v1193 = vmul.f32 %v1191, %v1191
      %v1194 = vsel %vm345, %v1192, 0.0
      %1195 = vadd.xlane.f32.xlu0 %v1194
      %v1196 = vpop.xlane.xlu0 %1195
      %v1197 = vsel %vm345, %v1193, 0.0
      %1198 = vadd.xlane.f32.xlu0 %v1197
      %v1199 = vpop.xlane.xlu0 %1198
      %v1200 = vmul.f32 %v1196, %v960
      %v1201 = vmul.f32 %v1199, %v960
      %v1202 = vadd.f32 %v1200, 1e-05
      %v1203 = vadd.f32 %v1201, 1e-05
      %v1204 = vrsqrt.pop %v1202
      %v1205 = vmul.f32 %v1204, %v1202
      %v1206 = vmul.f32 %v1205, %v1204
      %v1207 = vmul.f32 0.5, %v1206
      %v1208 = vsub.f32 1.5, %v1207
      %v1209 = vmul.f32 %v1204, %v1208
      %vm1210 = vweird.f32 %v1202
      %vm1211 = vweird.f32 %v1204
      %vm1212 = vmor %vm1210, %vm1211
      %v1213 = vsel %vm1212, %v1204, %v1209
      %v1214 = vrsqrt.pop %v1203
      %v1215 = vmul.f32 %v1214, %v1203
      %v1216 = vmul.f32 %v1215, %v1214
      %v1217 = vmul.f32 0.5, %v1216
      %v1218 = vsub.f32 1.5, %v1217
      %v1219 = vmul.f32 %v1214, %v1218
      %vm1220 = vweird.f32 %v1203
      %vm1221 = vweird.f32 %v1214
      %vm1222 = vmor %vm1220, %vm1221
      %v1223 = vsel %vm1222, %v1214, %v1219
      %v1224 = vmul.f32 %v1190, %v1213
      %v1225 = vmul.f32 %v1191, %v1223
      %v1226 = vperm.slane %v326, 6
      %v1227 = vmul.f32 %v1224, %v1226
      %v1228 = vmul.f32 %v1225, %v1226
      %v1229 = vperm.slane %v326, 7
      %v1230 = vadd.f32 %v1227, %v1229
      %v1231 = vadd.f32 %v1228, %v1229
      %1232 = vst.msk [vmem:[#allocation2] sm:$0xff] %vm345, %v1230
      %1233 = vst.msk [vmem:[#allocation2 + $0x8] sm:$0xff] %vm345, %v1231
      %p1234 = scmp.eq.s32.totalorder %s17, 1
      // Predicated region
      $region49: #{bart_caption_forward.5} parent=43 // pred_check
        %p1235 = pneg %p1234
      $region50: #{bart_caption_forward.5} parent=43 // pred_check_branch
        %1237 = sbr.rel (%p1235) target = $region52
      $region51: #{bart_caption_forward.5} parent=43 // pred_region
        %v1238 = vld [vmem:[#allocation2] sm:$0xff]
        %v1239 = vld [vmem:[#allocation2 + $0x8] sm:$0xff]
        %v1240 = vpack.c.bf16 %v1238, %v1238
        %v1241 = vpack.c.bf16 %v1239, %v1239
        %vm1242 = vcmask 257024
        %1243 = vst.msk [vmem:[%s6] sm:$0xf] %vm1242, %v1240
        %1244 = vst.msk [vmem:[%s6 + $0x4] sm:$0xf] %vm1242, %v1241
      $region52: #{bart_caption_forward.5} parent=43 // pred_fallthru
        _
      // Predicated region
      $region53: #{bart_caption_forward.5} parent=43 // pred_check
        %p1245 = pneg %p181
      $region54: #{bart_caption_forward.5} parent=43 // pred_check_branch
        %1247 = sbr.rel (%p1245) target = $region56
      $region55: #{bart_caption_forward.5} parent=43 // pred_region
        _
      $region56: #{bart_caption_forward.5} parent=43 // pred_fallthru
        _
      // Predicated region
      $region57: #{bart_caption_forward.5} parent=43 // pred_check
        %p1248 = pneg %p181
      $region58: #{bart_caption_forward.5} parent=43 // pred_check_branch
        %1250 = sbr.rel (%p1248) target = $region60
      $region59: #{bart_caption_forward.5} parent=43 // pred_region
        _
      $region60: #{bart_caption_forward.5} parent=43 // pred_fallthru
        _
    $region44: #{bart_caption_forward.5} parent=5 // pred_fallthru
      _
    %p1251 = scmp.le.s32.totalorder 2, %s12
    // Predicated region
    $region61: #{bart_caption_forward.5} parent=5 // pred_check
      %p1252 = pneg %p1251
    $region62: #{bart_caption_forward.5} parent=5 // pred_check_branch
      %1254 = sbr.rel (%p1252) target = $region64
    $region63: #{bart_caption_forward.5} parent=5 // pred_region
      %s1255 = ssub.s32 %s12, 2
    $region64: #{bart_caption_forward.5} parent=5 // pred_fallthru
      _
  $region6: #{bart_caption_forward.5} parent=0 // loop_footer
    %s16 = sadd.s32 1, %s12
  $region7: #{bart_caption_forward.5} parent=0 // loop_footer_branch
    %11 = sbr.rel target = $region3
  $region8: #{bart_caption_forward.5} parent=0 // loop_exit
    _

// kernel: bart_caption_forward.6
$region0: #{bart_caption_forward.6}
  #allocation0 [shape = 'u32[]', space=smem, size = 0x4, offset = 0x4, fixed_abs, tag = 'smem constant byte address 0x4 - core index']
  #allocation1 [shape = 'u32[72,128]{1,0:T(1,128)}', space=vmem, size = 0x9000, scoped, tag = 'internal scratch']
  #allocation2 [shape = 'f32[16,32]{1,0:T(8,128)}', space=vmem, size = 0x2000, scoped, tag = 'scratch operand']
  #allocation3 [shape = 'f32[2,8,8]{2,1,0:T(8,128)}', space=vmem, size = 0x2000, scoped, tag = 'scratch operand']
  %s0 = inlined_call_operand.vmem [shape: bf16[2,8,32], index: 0, kind: input, shape index: {}]
  %s1 = inlined_call_operand.vmem [shape: f32[8,32], index: 1, kind: input, shape index: {}]
  %s2 = inlined_call_operand.vmem [shape: f32[2,32], index: 2, kind: input, shape index: {}]
  %s3 = inlined_call_operand.vmem [shape: bf16[16,32], index: 3, kind: input, shape index: {}]
  %s4 = inlined_call_operand.vmem [shape: f32[2,8], index: 4, kind: input, shape index: {}]
  %s5 = inlined_call_operand.vmem [shape: bf16[2,32,96], index: 5, kind: input, shape index: {}]
  %s6 = inlined_call_operand.vmem [shape: bf16[2,32,32], index: 6, kind: input, shape index: {}]
  %s7 = inlined_call_operand.vmem [shape: bf16[2,32,32], index: 7, kind: input, shape index: {}]
  %s8 = inlined_call_operand.vmem [shape: bf16[2,32,64], index: 8, kind: input, shape index: {}]
  %s9 = inlined_call_operand.vmem [shape: bf16[2,32,32], index: 9, kind: input, shape index: {}]
  %s10 = inlined_call_operand.vmem [shape: bf16[2,32,64], index: 10, kind: input, shape index: {}]
  %s11 = inlined_call_operand.vmem [shape: bf16[2,64,32], index: 11, kind: input, shape index: {}]
  %s12 = inlined_call_operand.vmem [shape: f32[2,13,128], index: 12, kind: input, shape index: {}]
  %s13 = inlined_call_operand.vmem [shape: bf16[16,32], index: 13, kind: output, shape index: {}]
  %s14 = sld [smem:[#allocation0]]
  $region93: #{bart_caption_forward.6} parent=0
    _
  %s16 = ssub.s32 1, %s14
  %s17 = scalar_select 0, %s16, %s14
  loop: start=0, step=1, limit=4
  $region2: #{bart_caption_forward.6} parent=0 // loop_pre_header
    _
  $region3: #{bart_caption_forward.6} parent=0 // loop_header
    %s19 = sphi 0, %s23
    %p20 = scmp.ge.s32.totalorder %s19, 4
    %s27 = sphi 0, %s27
    %s29 = sphi 0, %s27
    %s30 = sphi 0, %s29
    %s44 = sphi 0, %s30
    %s48 = sphi 0, %s48
    %s50 = sphi 0, %s48
    %s51 = sphi 0, %s50
    %s65 = sphi 0, %s51
    %s69 = sphi 0, %s69
    %s71 = sphi 0, %s69
    %s72 = sphi 0, %s71
    %s86 = sphi 0, %s72
    %s90 = sphi 0, %s90
    %s92 = sphi 0, %s90
    %s93 = sphi 0, %s92
    %s107 = sphi 0, %s93
    %s111 = sphi 0, %s111
    %s113 = sphi 0, %s111
    %s114 = sphi 0, %s113
    %s128 = sphi 0, %s114
    %s134 = sphi 0, %s136
    %s137 = sphi 0, %s134
    %s138 = sphi 0, %s137
    %s154 = sphi 0, %s138
    %s160 = sphi 0, %s162
    %s163 = sphi 0, %s160
    %s164 = sphi 0, %s163
    %s180 = sphi 0, %s164
    %s186 = sphi 0, %s188
    %s189 = sphi 0, %s186
    %s190 = sphi 0, %s189
    %s206 = sphi 0, %s190
    %s212 = sphi 0, %s214
    %s215 = sphi 0, %s212
    %s216 = sphi 0, %s215
    %s232 = sphi 0, %s216
    %s238 = sphi 0, %s240
    %s241 = sphi 0, %s238
    %s242 = sphi 0, %s241
    %s258 = sphi 0, %s242
    %s264 = sphi 0, %s266
    %s267 = sphi 0, %s264
    %s268 = sphi 0, %s267
    %s284 = sphi 0, %s268
    %s290 = sphi 0, %s292
    %s293 = sphi 0, %s290
    %s294 = sphi 0, %s293
    %s310 = sphi 0, %s294
    %s316 = sphi 0, %s318
    %s319 = sphi 0, %s316
    %s320 = sphi 0, %s319
    %s336 = sphi 0, %s320
    %s340 = sphi 0, %s340
    %s342 = sphi 0, %s340
    %s343 = sphi 0, %s342
    %s357 = sphi 0, %s343
  $region4: #{bart_caption_forward.6} parent=0 // loop_header_branch
    %22 = sbr.rel (%p20) target = $region8
  $region5: #{bart_caption_forward.6} parent=0 // loop_body
    %s24 = ssub.s32 %s19, 1
    %s25 = ssub.s32 %s19, 2
    %s26 = sadd.s32 %s19, 1
    %s28 = sadd.s32 %s27, 1
    %p31 = scmp.eq.s32.totalorder %s19, 1
    %p32 = scmp.ne.s32.totalorder %s27, %s29
    %p33 = scmp.eq.s32.totalorder %s19, 0
    %p34 = por %p32, %p33
    %p35 = scmp.ne.s32.totalorder %s27, %s29
    %p36 = scmp.eq.s32.totalorder %s24, 1
    %p37 = por %p35, %p36
    %p38 = scmp.ne.s32.totalorder %s29, %s30
    %p39 = scmp.eq.s32.totalorder %s24, 0
    %p40 = por %p38, %p39
    %p41 = scmp.ne.s32.totalorder %s29, %s30
    %p42 = scmp.eq.s32.totalorder %s25, 1
    %p43 = por %p41, %p42
    %p45 = scmp.ne.s32.totalorder %s30, %s44
    %p46 = scmp.eq.s32.totalorder %s25, 0
    %p47 = por %p45, %p46
    %s49 = sadd.s32 %s48, 1
    %p52 = scmp.eq.s32.totalorder %s19, 1
    %p53 = scmp.ne.s32.totalorder %s48, %s50
    %p54 = scmp.eq.s32.totalorder %s19, 0
    %p55 = por %p53, %p54
    %p56 = scmp.ne.s32.totalorder %s48, %s50
    %p57 = scmp.eq.s32.totalorder %s24, 1
    %p58 = por %p56, %p57
    %p59 = scmp.ne.s32.totalorder %s50, %s51
    %p60 = scmp.eq.s32.totalorder %s24, 0
    %p61 = por %p59, %p60
    %p62 = scmp.ne.s32.totalorder %s50, %s51
    %p63 = scmp.eq.s32.totalorder %s25, 1
    %p64 = por %p62, %p63
    %p66 = scmp.ne.s32.totalorder %s51, %s65
    %p67 = scmp.eq.s32.totalorder %s25, 0
    %p68 = por %p66, %p67
    %s70 = sadd.s32 %s69, 1
    %p73 = scmp.eq.s32.totalorder %s19, 1
    %p74 = scmp.ne.s32.totalorder %s69, %s71
    %p75 = scmp.eq.s32.totalorder %s19, 0
    %p76 = por %p74, %p75
    %p77 = scmp.ne.s32.totalorder %s69, %s71
    %p78 = scmp.eq.s32.totalorder %s24, 1
    %p79 = por %p77, %p78
    %p80 = scmp.ne.s32.totalorder %s71, %s72
    %p81 = scmp.eq.s32.totalorder %s24, 0
    %p82 = por %p80, %p81
    %p83 = scmp.ne.s32.totalorder %s71, %s72
    %p84 = scmp.eq.s32.totalorder %s25, 1
    %p85 = por %p83, %p84
    %p87 = scmp.ne.s32.totalorder %s72, %s86
    %p88 = scmp.eq.s32.totalorder %s25, 0
    %p89 = por %p87, %p88
    %s91 = sadd.s32 %s90, 1
    %p94 = scmp.eq.s32.totalorder %s19, 1
    %p95 = scmp.ne.s32.totalorder %s90, %s92
    %p96 = scmp.eq.s32.totalorder %s19, 0
    %p97 = por %p95, %p96
    %p98 = scmp.ne.s32.totalorder %s90, %s92
    %p99 = scmp.eq.s32.totalorder %s24, 1
    %p100 = por %p98, %p99
    %p101 = scmp.ne.s32.totalorder %s92, %s93
    %p102 = scmp.eq.s32.totalorder %s24, 0
    %p103 = por %p101, %p102
    %p104 = scmp.ne.s32.totalorder %s92, %s93
    %p105 = scmp.eq.s32.totalorder %s25, 1
    %p106 = por %p104, %p105
    %p108 = scmp.ne.s32.totalorder %s93, %s107
    %p109 = scmp.eq.s32.totalorder %s25, 0
    %p110 = por %p108, %p109
    %s112 = sadd.s32 %s111, 1
    %p115 = scmp.eq.s32.totalorder %s19, 1
    %p116 = scmp.ne.s32.totalorder %s111, %s113
    %p117 = scmp.eq.s32.totalorder %s19, 0
    %p118 = por %p116, %p117
    %p119 = scmp.ne.s32.totalorder %s111, %s113
    %p120 = scmp.eq.s32.totalorder %s24, 1
    %p121 = por %p119, %p120
    %p122 = scmp.ne.s32.totalorder %s113, %s114
    %p123 = scmp.eq.s32.totalorder %s24, 0
    %p124 = por %p122, %p123
    %p125 = scmp.ne.s32.totalorder %s113, %s114
    %p126 = scmp.eq.s32.totalorder %s25, 1
    %p127 = por %p125, %p126
    %p129 = scmp.ne.s32.totalorder %s114, %s128
    %p130 = scmp.eq.s32.totalorder %s25, 0
    %p131 = por %p129, %p130
    %s132 = ssub.s32 %s19, %s26
    %p133 = scmp.eq.s32.totalorder %s132, 0
    %s135 = sadd.s32 %s134, 1
    %s136 = scalar_select %p133, %s134, %s135
    %p139 = pneg %p133
    %p140 = scmp.eq.s32.totalorder %s19, 1
    %p141 = por %p139, %p140
    %p142 = scmp.ne.s32.totalorder %s134, %s137
    %p143 = scmp.eq.s32.totalorder %s19, 0
    %p144 = por %p142, %p143
    %p145 = scmp.ne.s32.totalorder %s134, %s137
    %p146 = scmp.eq.s32.totalorder %s24, 1
    %p147 = por %p145, %p146
    %p148 = scmp.ne.s32.totalorder %s137, %s138
    %p149 = scmp.eq.s32.totalorder %s24, 0
    %p150 = por %p148, %p149
    %p151 = scmp.ne.s32.totalorder %s137, %s138
    %p152 = scmp.eq.s32.totalorder %s25, 1
    %p153 = por %p151, %p152
    %p155 = scmp.ne.s32.totalorder %s138, %s154
    %p156 = scmp.eq.s32.totalorder %s25, 0
    %p157 = por %p155, %p156
    %s158 = ssub.s32 %s19, %s26
    %p159 = scmp.eq.s32.totalorder %s158, 0
    %s161 = sadd.s32 %s160, 1
    %s162 = scalar_select %p159, %s160, %s161
    %p165 = pneg %p159
    %p166 = scmp.eq.s32.totalorder %s19, 1
    %p167 = por %p165, %p166
    %p168 = scmp.ne.s32.totalorder %s160, %s163
    %p169 = scmp.eq.s32.totalorder %s19, 0
    %p170 = por %p168, %p169
    %p171 = scmp.ne.s32.totalorder %s160, %s163
    %p172 = scmp.eq.s32.totalorder %s24, 1
    %p173 = por %p171, %p172
    %p174 = scmp.ne.s32.totalorder %s163, %s164
    %p175 = scmp.eq.s32.totalorder %s24, 0
    %p176 = por %p174, %p175
    %p177 = scmp.ne.s32.totalorder %s163, %s164
    %p178 = scmp.eq.s32.totalorder %s25, 1
    %p179 = por %p177, %p178
    %p181 = scmp.ne.s32.totalorder %s164, %s180
    %p182 = scmp.eq.s32.totalorder %s25, 0
    %p183 = por %p181, %p182
    %s184 = ssub.s32 %s19, %s26
    %p185 = scmp.eq.s32.totalorder %s184, 0
    %s187 = sadd.s32 %s186, 1
    %s188 = scalar_select %p185, %s186, %s187
    %p191 = pneg %p185
    %p192 = scmp.eq.s32.totalorder %s19, 1
    %p193 = por %p191, %p192
    %p194 = scmp.ne.s32.totalorder %s186, %s189
    %p195 = scmp.eq.s32.totalorder %s19, 0
    %p196 = por %p194, %p195
    %p197 = scmp.ne.s32.totalorder %s186, %s189
    %p198 = scmp.eq.s32.totalorder %s24, 1
    %p199 = por %p197, %p198
    %p200 = scmp.ne.s32.totalorder %s189, %s190
    %p201 = scmp.eq.s32.totalorder %s24, 0
    %p202 = por %p200, %p201
    %p203 = scmp.ne.s32.totalorder %s189, %s190
    %p204 = scmp.eq.s32.totalorder %s25, 1
    %p205 = por %p203, %p204
    %p207 = scmp.ne.s32.totalorder %s190, %s206
    %p208 = scmp.eq.s32.totalorder %s25, 0
    %p209 = por %p207, %p208
    %s210 = ssub.s32 %s19, %s26
    %p211 = scmp.eq.s32.totalorder %s210, 0
    %s213 = sadd.s32 %s212, 1
    %s214 = scalar_select %p211, %s212, %s213
    %p217 = pneg %p211
    %p218 = scmp.eq.s32.totalorder %s19, 1
    %p219 = por %p217, %p218
    %p220 = scmp.ne.s32.totalorder %s212, %s215
    %p221 = scmp.eq.s32.totalorder %s19, 0
    %p222 = por %p220, %p221
    %p223 = scmp.ne.s32.totalorder %s212, %s215
    %p224 = scmp.eq.s32.totalorder %s24, 1
    %p225 = por %p223, %p224
    %p226 = scmp.ne.s32.totalorder %s215, %s216
    %p227 = scmp.eq.s32.totalorder %s24, 0
    %p228 = por %p226, %p227
    %p229 = scmp.ne.s32.totalorder %s215, %s216
    %p230 = scmp.eq.s32.totalorder %s25, 1
    %p231 = por %p229, %p230
    %p233 = scmp.ne.s32.totalorder %s216, %s232
    %p234 = scmp.eq.s32.totalorder %s25, 0
    %p235 = por %p233, %p234
    %s236 = ssub.s32 %s19, %s26
    %p237 = scmp.eq.s32.totalorder %s236, 0
    %s239 = sadd.s32 %s238, 1
    %s240 = scalar_select %p237, %s238, %s239
    %p243 = pneg %p237
    %p244 = scmp.eq.s32.totalorder %s19, 1
    %p245 = por %p243, %p244
    %p246 = scmp.ne.s32.totalorder %s238, %s241
    %p247 = scmp.eq.s32.totalorder %s19, 0
    %p248 = por %p246, %p247
    %p249 = scmp.ne.s32.totalorder %s238, %s241
    %p250 = scmp.eq.s32.totalorder %s24, 1
    %p251 = por %p249, %p250
    %p252 = scmp.ne.s32.totalorder %s241, %s242
    %p253 = scmp.eq.s32.totalorder %s24, 0
    %p254 = por %p252, %p253
    %p255 = scmp.ne.s32.totalorder %s241, %s242
    %p256 = scmp.eq.s32.totalorder %s25, 1
    %p257 = por %p255, %p256
    %p259 = scmp.ne.s32.totalorder %s242, %s258
    %p260 = scmp.eq.s32.totalorder %s25, 0
    %p261 = por %p259, %p260
    %s262 = ssub.s32 %s19, %s26
    %p263 = scmp.eq.s32.totalorder %s262, 0
    %s265 = sadd.s32 %s264, 1
    %s266 = scalar_select %p263, %s264, %s265
    %p269 = pneg %p263
    %p270 = scmp.eq.s32.totalorder %s19, 1
    %p271 = por %p269, %p270
    %p272 = scmp.ne.s32.totalorder %s264, %s267
    %p273 = scmp.eq.s32.totalorder %s19, 0
    %p274 = por %p272, %p273
    %p275 = scmp.ne.s32.totalorder %s264, %s267
    %p276 = scmp.eq.s32.totalorder %s24, 1
    %p277 = por %p275, %p276
    %p278 = scmp.ne.s32.totalorder %s267, %s268
    %p279 = scmp.eq.s32.totalorder %s24, 0
    %p280 = por %p278, %p279
    %p281 = scmp.ne.s32.totalorder %s267, %s268
    %p282 = scmp.eq.s32.totalorder %s25, 1
    %p283 = por %p281, %p282
    %p285 = scmp.ne.s32.totalorder %s268, %s284
    %p286 = scmp.eq.s32.totalorder %s25, 0
    %p287 = por %p285, %p286
    %s288 = ssub.s32 %s19, %s26
    %p289 = scmp.eq.s32.totalorder %s288, 0
    %s291 = sadd.s32 %s290, 1
    %s292 = scalar_select %p289, %s290, %s291
    %p295 = pneg %p289
    %p296 = scmp.eq.s32.totalorder %s19, 1
    %p297 = por %p295, %p296
    %p298 = scmp.ne.s32.totalorder %s290, %s293
    %p299 = scmp.eq.s32.totalorder %s19, 0
    %p300 = por %p298, %p299
    %p301 = scmp.ne.s32.totalorder %s290, %s293
    %p302 = scmp.eq.s32.totalorder %s24, 1
    %p303 = por %p301, %p302
    %p304 = scmp.ne.s32.totalorder %s293, %s294
    %p305 = scmp.eq.s32.totalorder %s24, 0
    %p306 = por %p304, %p305
    %p307 = scmp.ne.s32.totalorder %s293, %s294
    %p308 = scmp.eq.s32.totalorder %s25, 1
    %p309 = por %p307, %p308
    %p311 = scmp.ne.s32.totalorder %s294, %s310
    %p312 = scmp.eq.s32.totalorder %s25, 0
    %p313 = por %p311, %p312
    %s314 = ssub.s32 %s19, %s26
    %p315 = scmp.eq.s32.totalorder %s314, 0
    %s317 = sadd.s32 %s316, 1
    %s318 = scalar_select %p315, %s316, %s317
    %p321 = pneg %p315
    %p322 = scmp.eq.s32.totalorder %s19, 1
    %p323 = por %p321, %p322
    %p324 = scmp.ne.s32.totalorder %s316, %s319
    %p325 = scmp.eq.s32.totalorder %s19, 0
    %p326 = por %p324, %p325
    %p327 = scmp.ne.s32.totalorder %s316, %s319
    %p328 = scmp.eq.s32.totalorder %s24, 1
    %p329 = por %p327, %p328
    %p330 = scmp.ne.s32.totalorder %s319, %s320
    %p331 = scmp.eq.s32.totalorder %s24, 0
    %p332 = por %p330, %p331
    %p333 = scmp.ne.s32.totalorder %s319, %s320
    %p334 = scmp.eq.s32.totalorder %s25, 1
    %p335 = por %p333, %p334
    %p337 = scmp.ne.s32.totalorder %s320, %s336
    %p338 = scmp.eq.s32.totalorder %s25, 0
    %p339 = por %p337, %p338
    %s341 = sadd.s32 %s340, 1
    %p344 = scmp.eq.s32.totalorder %s19, 1
    %p345 = scmp.ne.s32.totalorder %s340, %s342
    %p346 = scmp.eq.s32.totalorder %s19, 0
    %p347 = por %p345, %p346
    %p348 = scmp.ne.s32.totalorder %s340, %s342
    %p349 = scmp.eq.s32.totalorder %s24, 1
    %p350 = por %p348, %p349
    %p351 = scmp.ne.s32.totalorder %s342, %s343
    %p352 = scmp.eq.s32.totalorder %s24, 0
    %p353 = por %p351, %p352
    %p354 = scmp.ne.s32.totalorder %s342, %s343
    %p355 = scmp.eq.s32.totalorder %s25, 1
    %p356 = por %p354, %p355
    %p358 = scmp.ne.s32.totalorder %s343, %s357
    %p359 = scmp.eq.s32.totalorder %s25, 0
    %p360 = por %p358, %p359
    %p361 = scmp.le.s32.totalorder 1, %s19
    %p362 = scmp.lt.s32.totalorder %s19, 3
    %p363 = pnand %p361, %p362
    %p364 = pneg %p363
    // Predicated region
    $region9: #{bart_caption_forward.6} parent=5 // pred_check
      _
    $region10: #{bart_caption_forward.6} parent=5 // pred_check_branch
      %366 = sbr.rel (%p363) target = $region12
    $region11: #{bart_caption_forward.6} parent=5 // pred_region
      %s367 = ssub.s32 %s19, 1
      // Predicated region
      $region13: #{bart_caption_forward.6} parent=11 // pred_check
        %p368 = pneg %p40
      $region14: #{bart_caption_forward.6} parent=11 // pred_check_branch
        %370 = sbr.rel (%p368) target = $region16
      $region15: #{bart_caption_forward.6} parent=11 // pred_region
        _
      $region16: #{bart_caption_forward.6} parent=11 // pred_fallthru
        _
      // Predicated region
      $region17: #{bart_caption_forward.6} parent=11 // pred_check
        %p371 = pneg %p61
      $region18: #{bart_caption_forward.6} parent=11 // pred_check_branch
        %373 = sbr.rel (%p371) target = $region20
      $region19: #{bart_caption_forward.6} parent=11 // pred_region
        _
      $region20: #{bart_caption_forward.6} parent=11 // pred_fallthru
        _
      // Predicated region
      $region21: #{bart_caption_forward.6} parent=11 // pred_check
        %p374 = pneg %p82
      $region22: #{bart_caption_forward.6} parent=11 // pred_check_branch
        %376 = sbr.rel (%p374) target = $region24
      $region23: #{bart_caption_forward.6} parent=11 // pred_region
        _
      $region24: #{bart_caption_forward.6} parent=11 // pred_fallthru
        _
      // Predicated region
      $region25: #{bart_caption_forward.6} parent=11 // pred_check
        %p377 = pneg %p103
      $region26: #{bart_caption_forward.6} parent=11 // pred_check_branch
        %379 = sbr.rel (%p377) target = $region28
      $region27: #{bart_caption_forward.6} parent=11 // pred_region
        _
      $region28: #{bart_caption_forward.6} parent=11 // pred_fallthru
        _
      // Predicated region
      $region29: #{bart_caption_forward.6} parent=11 // pred_check
        %p380 = pneg %p124
      $region30: #{bart_caption_forward.6} parent=11 // pred_check_branch
        %382 = sbr.rel (%p380) target = $region32
      $region31: #{bart_caption_forward.6} parent=11 // pred_region
        _
      $region32: #{bart_caption_forward.6} parent=11 // pred_fallthru
        _
    $region12: #{bart_caption_forward.6} parent=5 // pred_fallthru
      _
    %p383 = scmp.lt.s32.totalorder %s19, 2
    // Predicated region
    $region33: #{bart_caption_forward.6} parent=5 // pred_check
      %p384 = pneg %p383
    $region34: #{bart_caption_forward.6} parent=5 // pred_check_branch
      %386 = sbr.rel (%p384) target = $region36
    $region35: #{bart_caption_forward.6} parent=5 // pred_region
      // Predicated region
      $region37: #{bart_caption_forward.6} parent=35 // pred_check
        %p387 = pneg %p144
      $region38: #{bart_caption_forward.6} parent=35 // pred_check_branch
        %389 = sbr.rel (%p387) target = $region40
      $region39: #{bart_caption_forward.6} parent=35 // pred_region
        %p390 = scmp.lt.s32.totalorder %s19, 1
        %s391 = scalar_select %p390, %s19, 1
        %s392 = smul.addr %s391, 4
        %s393 = smul.addr %s392, 4
        %s394 = scalar_lea.vmem %s5, %s393
      $region40: #{bart_caption_forward.6} parent=35 // pred_fallthru
        _
      // Predicated region
      $region41: #{bart_caption_forward.6} parent=35 // pred_check
        %p395 = pneg %p170
      $region42: #{bart_caption_forward.6} parent=35 // pred_check_branch
        %397 = sbr.rel (%p395) target = $region44
      $region43: #{bart_caption_forward.6} parent=35 // pred_region
        %p398 = scmp.lt.s32.totalorder %s19, 1
        %s399 = scalar_select %p398, %s19, 1
        %s400 = smul.addr %s399, 4
        %s401 = smul.addr %s400, 4
        %s402 = scalar_lea.vmem %s6, %s401
      $region44: #{bart_caption_forward.6} parent=35 // pred_fallthru
        _
      // Predicated region
      $region45: #{bart_caption_forward.6} parent=35 // pred_check
        %p403 = pneg %p196
      $region46: #{bart_caption_forward.6} parent=35 // pred_check_branch
        %405 = sbr.rel (%p403) target = $region48
      $region47: #{bart_caption_forward.6} parent=35 // pred_region
        %p406 = scmp.lt.s32.totalorder %s19, 1
        %s407 = scalar_select %p406, %s19, 1
        %s408 = smul.addr %s407, 4
        %s409 = smul.addr %s408, 4
        %s410 = scalar_lea.vmem %s7, %s409
      $region48: #{bart_caption_forward.6} parent=35 // pred_fallthru
        _
      // Predicated region
      $region49: #{bart_caption_forward.6} parent=35 // pred_check
        %p411 = pneg %p222
      $region50: #{bart_caption_forward.6} parent=35 // pred_check_branch
        %413 = sbr.rel (%p411) target = $region52
      $region51: #{bart_caption_forward.6} parent=35 // pred_region
        %p414 = scmp.lt.s32.totalorder %s19, 1
        %s415 = scalar_select %p414, %s19, 1
        %s416 = smul.addr %s415, 4
        %s417 = smul.addr %s416, 4
        %s418 = scalar_lea.vmem %s8, %s417
      $region52: #{bart_caption_forward.6} parent=35 // pred_fallthru
        _
      // Predicated region
      $region53: #{bart_caption_forward.6} parent=35 // pred_check
        %p419 = pneg %p248
      $region54: #{bart_caption_forward.6} parent=35 // pred_check_branch
        %421 = sbr.rel (%p419) target = $region56
      $region55: #{bart_caption_forward.6} parent=35 // pred_region
        %p422 = scmp.lt.s32.totalorder %s19, 1
        %s423 = scalar_select %p422, %s19, 1
        %s424 = smul.addr %s423, 4
        %s425 = smul.addr %s424, 4
        %s426 = scalar_lea.vmem %s9, %s425
      $region56: #{bart_caption_forward.6} parent=35 // pred_fallthru
        _
      // Predicated region
      $region57: #{bart_caption_forward.6} parent=35 // pred_check
        %p427 = pneg %p274
      $region58: #{bart_caption_forward.6} parent=35 // pred_check_branch
        %429 = sbr.rel (%p427) target = $region60
      $region59: #{bart_caption_forward.6} parent=35 // pred_region
        %p430 = scmp.lt.s32.totalorder %s19, 1
        %s431 = scalar_select %p430, %s19, 1
        %s432 = smul.addr %s431, 4
        %s433 = smul.addr %s432, 4
        %s434 = scalar_lea.vmem %s10, %s433
      $region60: #{bart_caption_forward.6} parent=35 // pred_fallthru
        _
      // Predicated region
      $region61: #{bart_caption_forward.6} parent=35 // pred_check
        %p435 = pneg %p300
      $region62: #{bart_caption_forward.6} parent=35 // pred_check_branch
        %437 = sbr.rel (%p435) target = $region64
      $region63: #{bart_caption_forward.6} parent=35 // pred_region
        %p438 = scmp.lt.s32.totalorder %s19, 1
        %s439 = scalar_select %p438, %s19, 1
        %s440 = smul.addr %s439, 8
        %s441 = smul.addr %s440, 4
        %s442 = scalar_lea.vmem %s11, %s441
      $region64: #{bart_caption_forward.6} parent=35 // pred_fallthru
        _
      // Predicated region
      $region65: #{bart_caption_forward.6} parent=35 // pred_check
        %p443 = pneg %p326
      $region66: #{bart_caption_forward.6} parent=35 // pred_check_branch
        %445 = sbr.rel (%p443) target = $region68
      $region67: #{bart_caption_forward.6} parent=35 // pred_region
        %p446 = scmp.lt.s32.totalorder %s19, 1
        %s447 = scalar_select %p446, %s19, 1
        %s448 = smul.addr %s447, 2
        %s449 = smul.addr %s448, 8
        %s450 = scalar_lea.vmem %s12, %s449
      $region68: #{bart_caption_forward.6} parent=35 // pred_fallthru
        _
    $region36: #{bart_caption_forward.6} parent=5 // pred_fallthru
      _
    %p451 = scmp.le.s32.totalorder 1, %s19
    %p452 = scmp.lt.s32.totalorder %s19, 3
    %p453 = pnand %p451, %p452
    %p454 = pneg %p453
    // Predicated region
    $region69: #{bart_caption_forward.6} parent=5 // pred_check
      _
    $region70: #{bart_caption_forward.6} parent=5 // pred_check_branch
      %456 = sbr.rel (%p453) target = $region72
    $region71: #{bart_caption_forward.6} parent=5 // pred_region
      %s457 = ssub.s32 %s19, 1
      %p458 = pneg %p40
      %p459 = pneg %p37
      %p460 = pneg %p61
      %p461 = pneg %p58
      %p462 = pneg %p82
      %p463 = pneg %p79
      %p464 = pneg %p103
      %p465 = pneg %p100
      %p466 = pneg %p124
      %p467 = pneg %p121
      %p468 = scmp.lt.s32.totalorder %s24, 1
      %s469 = scalar_select %p468, %s24, 1
      %s470 = smul.addr %s469, 4
      %s471 = smul.addr %s470, 4
      %s472 = scalar_lea.vmem %s5, %s471
      %p473 = pneg %p150
      %p474 = pneg %p147
      %p475 = scmp.lt.s32.totalorder %s24, 1
      %s476 = scalar_select %p475, %s24, 1
      %s477 = smul.addr %s476, 4
      %s478 = smul.addr %s477, 4
      %s479 = scalar_lea.vmem %s6, %s478
      %p480 = pneg %p176
      %p481 = pneg %p173
      %p482 = scmp.lt.s32.totalorder %s24, 1
      %s483 = scalar_select %p482, %s24, 1
      %s484 = smul.addr %s483, 4
      %s485 = smul.addr %s484, 4
      %s486 = scalar_lea.vmem %s7, %s485
      %p487 = pneg %p202
      %p488 = pneg %p199
      %p489 = scmp.lt.s32.totalorder %s24, 1
      %s490 = scalar_select %p489, %s24, 1
      %s491 = smul.addr %s490, 4
      %s492 = smul.addr %s491, 4
      %s493 = scalar_lea.vmem %s8, %s492
      %p494 = pneg %p228
      %p495 = pneg %p225
      %p496 = scmp.lt.s32.totalorder %s24, 1
      %s497 = scalar_select %p496, %s24, 1
      %s498 = smul.addr %s497, 4
      %s499 = smul.addr %s498, 4
      %s500 = scalar_lea.vmem %s9, %s499
      %p501 = pneg %p254
      %p502 = pneg %p251
      %p503 = scmp.lt.s32.totalorder %s24, 1
      %s504 = scalar_select %p503, %s24, 1
      %s505 = smul.addr %s504, 4
      %s506 = smul.addr %s505, 4
      %s507 = scalar_lea.vmem %s10, %s506
      %p508 = pneg %p280
      %p509 = pneg %p277
      %p510 = scmp.lt.s32.totalorder %s24, 1
      %s511 = scalar_select %p510, %s24, 1
      %s512 = smul.addr %s511, 8
      %s513 = smul.addr %s512, 4
      %s514 = scalar_lea.vmem %s11, %s513
      %p515 = pneg %p306
      %p516 = pneg %p303
      %p517 = scmp.lt.s32.totalorder %s24, 1
      %s518 = scalar_select %p517, %s24, 1
      %s519 = smul.addr %s518, 2
      %s520 = smul.addr %s519, 8
      %s521 = scalar_lea.vmem %s12, %s520
      %p522 = pneg %p332
      %p523 = pneg %p329
      %p524 = pneg %p353
      %p525 = pneg %p350
      %p526 = scmp.lt.s32.totalorder %s24, 1
      %s527 = scalar_select %p526, %s24, 1
      %s528 = smul.addr %s527, 4
      %s529 = smul.addr %s528, 4
      %s530 = scalar_lea.vmem %s5, %s529
      %p531 = scmp.lt.s32.totalorder %s24, 1
      %s532 = scalar_select %p531, %s24, 1
      %s533 = smul.addr %s532, 4
      %s534 = smul.addr %s533, 4
      %s535 = scalar_lea.vmem %s6, %s534
      %p536 = scmp.lt.s32.totalorder %s24, 1
      %s537 = scalar_select %p536, %s24, 1
      %s538 = smul.addr %s537, 4
      %s539 = smul.addr %s538, 4
      %s540 = scalar_lea.vmem %s7, %s539
      %p541 = scmp.lt.s32.totalorder %s24, 1
      %s542 = scalar_select %p541, %s24, 1
      %s543 = smul.addr %s542, 4
      %s544 = smul.addr %s543, 4
      %s545 = scalar_lea.vmem %s8, %s544
      %p546 = scmp.lt.s32.totalorder %s24, 1
      %s547 = scalar_select %p546, %s24, 1
      %s548 = smul.addr %s547, 4
      %s549 = smul.addr %s548, 4
      %s550 = scalar_lea.vmem %s9, %s549
      %p551 = scmp.lt.s32.totalorder %s24, 1
      %s552 = scalar_select %p551, %s24, 1
      %s553 = smul.addr %s552, 4
      %s554 = smul.addr %s553, 4
      %s555 = scalar_lea.vmem %s10, %s554
      %p556 = scmp.lt.s32.totalorder %s24, 1
      %s557 = scalar_select %p556, %s24, 1
      %s558 = smul.addr %s557, 8
      %s559 = smul.addr %s558, 4
      %s560 = scalar_lea.vmem %s11, %s559
      %p561 = scmp.lt.s32.totalorder %s24, 1
      %s562 = scalar_select %p561, %s24, 1
      %s563 = smul.addr %s562, 2
      %s564 = smul.addr %s563, 8
      %s565 = scalar_lea.vmem %s12, %s564
      %p567 = scmp.eq.s32.totalorder %s24, 0
      // Predicated region
      $region73: #{bart_caption_forward.6} parent=71 // pred_check
        %p568 = pneg %p567
      $region74: #{bart_caption_forward.6} parent=71 // pred_check_branch
        %570 = sbr.rel (%p568) target = $region76
      $region75: #{bart_caption_forward.6} parent=71 // pred_region
        %v571 = vld [vmem:[%s0] sm:$0xf]
        %v572 = vld [vmem:[%s0 + $0x4] sm:$0xf]
        %v573 = vunpack.c.l.bf16 %v571
        %v574 = vunpack.c.l.bf16 %v572
        %v575 = vld [vmem:[%s1] sm:$0xff]
        %v576 = vadd.f32 %v573, %v575
        %v577 = vadd.f32 %v574, %v575
        %v578 = vld [vmem:[%s2] sm:$0x1]
        %v579 = vld [vmem:[%s2 + $0x1] sm:$0x1]
        %vm580 = vcmask 261120
        %v581 = vsel %vm580, %v576, 0.0
        %582 = vadd.xlane.f32.xlu0 %v581
        %v583 = vpop.xlane.xlu0 %582
        %v584 = vsel %vm580, %v577, 0.0
        %585 = vadd.xlane.f32.xlu0 %v584
        %v586 = vpop.xlane.xlu0 %585
        %v587 = vrcp.pop 32.0
        %v588 = vmul.f32 32.0, %v587
        %v589 = vsub.f32 1.0, %v588
        %v590 = vmul.f32 %v587, %v589
        %v591 = vadd.f32 %v587, %v590
        %vm592 = vweird.f32 %v587
        %v593 = vsel %vm592, %v587, %v591
        %v594 = vmul.f32 %v583, %v593
        %v595 = vmul.f32 %v586, %v593
        %v596 = vsub.f32 %v576, %v594
        %v597 = vsub.f32 %v577, %v595
        %v598 = vmul.f32 %v596, %v596
        %v599 = vmul.f32 %v597, %v597
        %v600 = vsel %vm580, %v598, 0.0
        %601 = vadd.xlane.f32.xlu0 %v600
        %v602 = vpop.xlane.xlu0 %601
        %v603 = vsel %vm580, %v599, 0.0
        %604 = vadd.xlane.f32.xlu0 %v603
        %v605 = vpop.xlane.xlu0 %604
        %v606 = vmul.f32 %v602, %v593
        %v607 = vmul.f32 %v605, %v593
        %v608 = vadd.f32 %v606, 1e-05
        %v609 = vadd.f32 %v607, 1e-05
        %v610 = vrsqrt.pop %v608
        %v611 = vmul.f32 %v610, %v608
        %v612 = vmul.f32 %v611, %v610
        %v613 = vmul.f32 0.5, %v612
        %v614 = vsub.f32 1.5, %v613
        %v615 = vmul.f32 %v610, %v614
        %vm616 = vweird.f32 %v608
        %vm617 = vweird.f32 %v610
        %vm618 = vmor %vm616, %vm617
        %v619 = vsel %vm618, %v610, %v615
        %v620 = vrsqrt.pop %v609
        %v621 = vmul.f32 %v620, %v609
        %v622 = vmul.f32 %v621, %v620
        %v623 = vmul.f32 0.5, %v622
        %v624 = vsub.f32 1.5, %v623
        %v625 = vmul.f32 %v620, %v624
        %vm626 = vweird.f32 %v609
        %vm627 = vweird.f32 %v620
        %vm628 = vmor %vm626, %vm627
        %v629 = vsel %vm628, %v620, %v625
        %v630 = vmul.f32 %v596, %v619
        %v631 = vmul.f32 %v597, %v629
        %v632 = vperm.slane %v578, 0
        %v633 = vmul.f32 %v630, %v632
        %v634 = vmul.f32 %v631, %v632
        %v635 = vperm.slane %v579, 0
        %v636 = vadd.f32 %v633, %v635
        %v637 = vadd.f32 %v634, %v635
        %638 = vst.msk [vmem:[#allocation2] sm:$0xff] %vm580, %v636
        %639 = vst.msk [vmem:[#allocation2 + $0x8] sm:$0xff] %vm580, %v637
        %v640 = vlaneseq
        %v641 = vshrl.u32 %v640, 7
        %v642 = vlaneseq
        %v643 = vand.u32 %v642, 127
        %vm644 = vcmp.ge.s32.totalorder %v641, %v643
        %v645 = vsel %vm644, 0.0, -1e+09
        %v646 = vld [vmem:[%s4] sm:$0x3]
        %v647 = vsub.f32 1.0, %v646
        %v649 = vrot.slane %v647, 1
        %v651 = vmul.f32 %v647, -1e+09
        %v652 = vmul.f32 %v649, -1e+09
        %v655 = vperm.slane %v651, 0
        %v656 = vperm.slane %v652, 0
        %v659 = vadd.f32 %v645, %v655
        %v660 = vadd.f32 %v645, %v656
        %vm661 = vcmask 64512
        %662 = vst.msk [vmem:[#allocation3] sm:$0xff] %vm661, %v659
        %663 = vst.msk [vmem:[#allocation3 + $0x8] sm:$0xff] %vm661, %v660
      $region76: #{bart_caption_forward.6} parent=71 // pred_fallthru
        _
      %v664 = vld [vmem:[#allocation2] sm:$0xff]
      %v665 = vld [vmem:[#allocation2 + $0x8] sm:$0xff]
      %v666 = vld [vmem:[%s565] sm:$0xff]
      %v667 = vld [vmem:[%s565 + $0x8] sm:$0x1f]
      %v668 = vpack.c.bf16 %v665, %v664
      %v669 = vld [vmem:[%s530] sm:$0xf]
      %v670 = vld [vmem:[%s530 + $0x4] sm:$0xf]
      %v671 = vld [vmem:[%s530 + $0x8] sm:$0xf]
      %v672 = vld [vmem:[%s530 + $0xc] sm:$0xf]
      %v673 = vperm.slane %v666, 0
      %v678 = vunpack.c.l.b16 %v669
      %v679 = vunpack.c.l.b16 %v670
      %v680 = vunpack.c.l.b16 %v671
      %v681 = vunpack.c.l.b16 %v672
      %v682 = vpack.c.b16 %v679, %v678
      %v683 = vpack.c.b16 %v681, %v680
      %vm686 = vcmask 261120
      %v688 = vsel %vm686, %v668, 0
      %690 = vmatpush.bf16.msra.mxu0 0
      %691 = vmatpush.bf16.msra.mxu0 0
      %692 = vmatpush.bf16.msra.mxu0 0
      %693 = vmatpush.bf16.msra.mxu0 0
      %694 = vmatpush.bf16.msra.mxu0 0
      %695 = vmatpush.bf16.msra.mxu0 0
      %696 = vmatpush.bf16.msra.mxu0 %v683
      %697 = vmatpush.bf16.msra.mxu0 %v682
      %698 = vmatmul.bf16.gmra.mxu0 %v688
      %v699 = vpop.f32.mrf.mxu0
      %v700 = vadd.f32 %v673, %v699
      %v701 = vpop.f32.mrf.mxu0
      %v702 = vadd.f32 %v673, %v701
      %703 = vdwg.mxu0
      %v704 = vld [vmem:[#allocation3] sm:$0xff]
      %v705 = vld [vmem:[#allocation3 + $0x8] sm:$0xff]
      %v706 = vmul.f32 %v700, 0.35355338
      %v707 = vmul.f32 %v702, 0.35355338
      %710 = vrot.lane.b32.xlu0 %v706, 120
      %v711 = vpop.permute.xlu0 %710
      %712 = vrot.lane.b32.xlu0 %v707, 120
      %v713 = vpop.permute.xlu0 %712
      %716 = vrot.lane.b32.xlu0 %v706, 112
      %v717 = vpop.permute.xlu0 %716
      %718 = vrot.lane.b32.xlu0 %v707, 112
      %v719 = vpop.permute.xlu0 %718
      %722 = vrot.lane.b32.xlu0 %v706, 104
      %v723 = vpop.permute.xlu0 %722
      %724 = vrot.lane.b32.xlu0 %v707, 104
      %v725 = vpop.permute.xlu0 %724
      %v728 = vpack.c.bf16 %v706, %v706
      %v729 = vpack.c.bf16 %v707, %v707
      %v730 = vpack.c.bf16 %v711, %v711
      %v731 = vpack.c.bf16 %v713, %v713
      %v732 = vpack.c.bf16 %v717, %v717
      %v733 = vpack.c.bf16 %v719, %v719
      %v734 = vpack.c.bf16 %v723, %v723
      %v735 = vpack.c.bf16 %v725, %v725
      %738 = vrot.lane.b32.xlu0 %v700, 120
      %v739 = vpop.permute.xlu0 %738
      %740 = vrot.lane.b32.xlu0 %v702, 120
      %v741 = vpop.permute.xlu0 %740
      %744 = vrot.lane.b32.xlu0 %v700, 112
      %v745 = vpop.permute.xlu0 %744
      %746 = vrot.lane.b32.xlu0 %v702, 112
      %v747 = vpop.permute.xlu0 %746
      %750 = vrot.lane.b32.xlu0 %v700, 104
      %v751 = vpop.permute.xlu0 %750
      %752 = vrot.lane.b32.xlu0 %v702, 104
      %v753 = vpop.permute.xlu0 %752
      %v756 = vpack.c.bf16 %v700, %v700
      %v757 = vpack.c.bf16 %v702, %v702
      %v758 = vpack.c.bf16 %v739, %v739
      %v759 = vpack.c.bf16 %v741, %v741
      %v760 = vpack.c.bf16 %v745, %v745
      %v761 = vpack.c.bf16 %v747, %v747
      %v762 = vpack.c.bf16 %v751, %v751
      %v763 = vpack.c.bf16 %v753, %v753
      %v765 = vunpack.c.l.b16 %v756
      %v766 = vpack.c.b16 %v765, %v765
      %767 = vrot.lane.b32.xlu0 %v766, 96
      %v768 = vpop.permute.xlu0 %767
      %vm769 = vcmask 64512
      %v771 = vsel %vm769, %v728, 0
      %v774 = vsel %vm769, %v768, 0
      %776 = vmatpush.bf16.xpose.msra.mxu0 0
      %777 = vmatpush.bf16.xpose.msra.mxu0 0
      %778 = vmatpush.bf16.xpose.msra.mxu0 0
      %779 = vmatpush.bf16.xpose.msra.mxu0 0
      %780 = vmatpush.bf16.xpose.msra.mxu0 0
      %781 = vmatpush.bf16.xpose.msra.mxu0 0
      %782 = vmatpush.bf16.xpose.msra.mxu0 0
      %783 = vmatpush.bf16.xpose.msra.mxu0 %v774
      %784 = vmatmul.bf16.gmra.mxu0 %v771
      %v785 = vpop.f32.mrf.mxu0
      %v786 = vadd.f32 %v704, %v785
      %v787 = vpop.f32.mrf.mxu0
      %788 = vdwg.mxu0
      %v790 = vunpack.c.l.b16 %v757
      %v791 = vpack.c.b16 %v790, %v790
      %792 = vrot.lane.b32.xlu0 %v791, 96
      %v793 = vpop.permute.xlu0 %792
      %v795 = vsel %vm769, %v729, 0
      %v798 = vsel %vm769, %v793, 0
      %800 = vmatpush.bf16.xpose.msra.mxu0 0
      %801 = vmatpush.bf16.xpose.msra.mxu0 0
      %802 = vmatpush.bf16.xpose.msra.mxu0 0
      %803 = vmatpush.bf16.xpose.msra.mxu0 0
      %804 = vmatpush.bf16.xpose.msra.mxu0 0
      %805 = vmatpush.bf16.xpose.msra.mxu0 0
      %806 = vmatpush.bf16.xpose.msra.mxu0 0
      %807 = vmatpush.bf16.xpose.msra.mxu0 %v798
      %808 = vmatmul.bf16.gmra.mxu0 %v795
      %v809 = vpop.f32.mrf.mxu0
      %v810 = vadd.f32 %v705, %v809
      %v811 = vpop.f32.mrf.mxu0
      %812 = vdwg.mxu0
      %v814 = vunpack.c.l.b16 %v758
      %v815 = vpack.c.b16 %v814, %v814
      %816 = vrot.lane.b32.xlu0 %v815, 96
      %v817 = vpop.permute.xlu0 %816
      %v819 = vsel %vm769, %v730, 0
      %v822 = vsel %vm769, %v817, 0
      %824 = vmatpush.bf16.xpose.msra.mxu0 0
      %825 = vmatpush.bf16.xpose.msra.mxu0 0
      %826 = vmatpush.bf16.xpose.msra.mxu0 0
      %827 = vmatpush.bf16.xpose.msra.mxu0 0
      %828 = vmatpush.bf16.xpose.msra.mxu0 0
      %829 = vmatpush.bf16.xpose.msra.mxu0 0
      %830 = vmatpush.bf16.xpose.msra.mxu0 0
      %831 = vmatpush.bf16.xpose.msra.mxu0 %v822
      %832 = vmatmul.bf16.gmra.mxu0 %v819
      %v833 = vpop.f32.mrf.mxu0
      %v834 = vadd.f32 %v704, %v833
      %v835 = vpop.f32.mrf.mxu0
      %836 = vdwg.mxu0
      %v838 = vunpack.c.l.b16 %v759
      %v839 = vpack.c.b16 %v838, %v838
      %840 = vrot.lane.b32.xlu0 %v839, 96
      %v841 = vpop.permute.xlu0 %840
      %v843 = vsel %vm769, %v731, 0
      %v846 = vsel %vm769, %v841, 0
      %848 = vmatpush.bf16.xpose.msra.mxu0 0
      %849 = vmatpush.bf16.xpose.msra.mxu0 0
      %850 = vmatpush.bf16.xpose.msra.mxu0 0
      %851 = vmatpush.bf16.xpose.msra.mxu0 0
      %852 = vmatpush.bf16.xpose.msra.mxu0 0
      %853 = vmatpush.bf16.xpose.msra.mxu0 0
      %854 = vmatpush.bf16.xpose.msra.mxu0 0
      %855 = vmatpush.bf16.xpose.msra.mxu0 %v846
      %856 = vmatmul.bf16.gmra.mxu0 %v843
      %v857 = vpop.f32.mrf.mxu0
      %v858 = vadd.f32 %v705, %v857
      %v859 = vpop.f32.mrf.mxu0
      %860 = vdwg.mxu0
      %v862 = vunpack.c.l.b16 %v760
      %v863 = vpack.c.b16 %v862, %v862
      %864 = vrot.lane.b32.xlu0 %v863, 96
      %v865 = vpop.permute.xlu0 %864
      %v867 = vsel %vm769, %v732, 0
      %v870 = vsel %vm769, %v865, 0
      %872 = vmatpush.bf16.xpose.msra.mxu0 0
      %873 = vmatpush.bf16.xpose.msra.mxu0 0
      %874 = vmatpush.bf16.xpose.msra.mxu0 0
      %875 = vmatpush.bf16.xpose.msra.mxu0 0
      %876 = vmatpush.bf16.xpose.msra.mxu0 0
      %877 = vmatpush.bf16.xpose.msra.mxu0 0
      %878 = vmatpush.bf16.xpose.msra.mxu0 0
      %879 = vmatpush.bf16.xpose.msra.mxu0 %v870
      %880 = vmatmul.bf16.gmra.mxu0 %v867
      %v881 = vpop.f32.mrf.mxu0
      %v882 = vadd.f32 %v704, %v881
      %v883 = vpop.f32.mrf.mxu0
      %884 = vdwg.mxu0
      %v886 = vunpack.c.l.b16 %v761
      %v887 = vpack.c.b16 %v886, %v886
      %888 = vrot.lane.b32.xlu0 %v887, 96
      %v889 = vpop.permute.xlu0 %888
      %v891 = vsel %vm769, %v733, 0
      %v894 = vsel %vm769, %v889, 0
      %896 = vmatpush.bf16.xpose.msra.mxu0 0
      %897 = vmatpush.bf16.xpose.msra.mxu0 0
      %898 = vmatpush.bf16.xpose.msra.mxu0 0
      %899 = vmatpush.bf16.xpose.msra.mxu0 0
      %900 = vmatpush.bf16.xpose.msra.mxu0 0
      %901 = vmatpush.bf16.xpose.msra.mxu0 0
      %902 = vmatpush.bf16.xpose.msra.mxu0 0
      %903 = vmatpush.bf16.xpose.msra.mxu0 %v894
      %904 = vmatmul.bf16.gmra.mxu0 %v891
      %v905 = vpop.f32.mrf.mxu0
      %v906 = vadd.f32 %v705, %v905
      %v907 = vpop.f32.mrf.mxu0
      %908 = vdwg.mxu0
      %v910 = vunpack.c.l.b16 %v762
      %v911 = vpack.c.b16 %v910, %v910
      %912 = vrot.lane.b32.xlu0 %v911, 96
      %v913 = vpop.permute.xlu0 %912
      %v915 = vsel %vm769, %v734, 0
      %v918 = vsel %vm769, %v913, 0
      %920 = vmatpush.bf16.xpose.msra.mxu0 0
      %921 = vmatpush.bf16.xpose.msra.mxu0 0
      %922 = vmatpush.bf16.xpose.msra.mxu0 0
      %923 = vmatpush.bf16.xpose.msra.mxu0 0
      %924 = vmatpush.bf16.xpose.msra.mxu0 0
      %925 = vmatpush.bf16.xpose.msra.mxu0 0
      %926 = vmatpush.bf16.xpose.msra.mxu0 0
      %927 = vmatpush.bf16.xpose.msra.mxu0 %v918
      %928 = vmatmul.bf16.gmra.mxu0 %v915
      %v929 = vpop.f32.mrf.mxu0
      %v930 = vadd.f32 %v704, %v929
      %v931 = vpop.f32.mrf.mxu0
      %932 = vdwg.mxu0
      %v934 = vunpack.c.l.b16 %v763
      %v935 = vpack.c.b16 %v934, %v934
      %936 = vrot.lane.b32.xlu0 %v935, 96
      %v937 = vpop.permute.xlu0 %936
      %v939 = vsel %vm769, %v735, 0
      %v942 = vsel %vm769, %v937, 0
      %944 = vmatpush.bf16.xpose.msra.mxu0 0
      %945 = vmatpush.bf16.xpose.msra.mxu0 0
      %946 = vmatpush.bf16.xpose.msra.mxu0 0
      %947 = vmatpush.bf16.xpose.msra.mxu0 0
      %948 = vmatpush.bf16.xpose.msra.mxu0 0
      %949 = vmatpush.bf16.xpose.msra.mxu0 0
      %950 = vmatpush.bf16.xpose.msra.mxu0 0
      %951 = vmatpush.bf16.xpose.msra.mxu0 %v942
      %952 = vmatmul.bf16.gmra.mxu0 %v939
      %v953 = vpop.f32.mrf.mxu0
      %v954 = vadd.f32 %v705, %v953
      %v955 = vpop.f32.mrf.mxu0
      %956 = vdwg.mxu0
      %v957 = vsel %vm769, %v786, -inf
      %958 = vmax.xlane.f32.xlu0 %v957
      %v959 = vpop.xlane.xlu0 %958
      %v960 = vsel %vm769, %v810, -inf
      %961 = vmax.xlane.f32.xlu0 %v960
      %v962 = vpop.xlane.xlu0 %961
      %v963 = vsel %vm769, %v834, -inf
      %964 = vmax.xlane.f32.xlu0 %v963
      %v965 = vpop.xlane.xlu0 %964
      %v966 = vsel %vm769, %v858, -inf
      %967 = vmax.xlane.f32.xlu0 %v966
      %v968 = vpop.xlane.xlu0 %967
      %v969 = vsel %vm769, %v882, -inf
      %970 = vmax.xlane.f32.xlu0 %v969
      %v971 = vpop.xlane.xlu0 %970
      %v972 = vsel %vm769, %v906, -inf
      %973 = vmax.xlane.f32.xlu0 %v972
      %v974 = vpop.xlane.xlu0 %973
      %v975 = vsel %vm769, %v930, -inf
      %976 = vmax.xlane.f32.xlu0 %v975
      %v977 = vpop.xlane.xlu0 %976
      %v978 = vsel %vm769, %v954, -inf
      %979 = vmax.xlane.f32.xlu0 %v978
      %v980 = vpop.xlane.xlu0 %979
      %v981 = vsub.f32 %v786, %v959
      %v982 = vsub.f32 %v810, %v962
      %v983 = vsub.f32 %v834, %v965
      %v984 = vsub.f32 %v858, %v968
      %v985 = vsub.f32 %v882, %v971
      %v986 = vsub.f32 %v906, %v974
      %v987 = vsub.f32 %v930, %v977
      %v988 = vsub.f32 %v954, %v980
      %v989 = vmul.f32 %v981, 1.442695
      %v990 = vpow.pop %v989
      %v991 = vmul.f32 %v982, 1.442695
      %v992 = vpow.pop %v991
      %v993 = vmul.f32 %v983, 1.442695
      %v994 = vpow.pop %v993
      %v995 = vmul.f32 %v984, 1.442695
      %v996 = vpow.pop %v995
      %v997 = vmul.f32 %v985, 1.442695
      %v998 = vpow.pop %v997
      %v999 = vmul.f32 %v986, 1.442695
      %v1000 = vpow.pop %v999
      %v1001 = vmul.f32 %v987, 1.442695
      %v1002 = vpow.pop %v1001
      %v1003 = vmul.f32 %v988, 1.442695
      %v1004 = vpow.pop %v1003
      %v1005 = vsel %vm769, %v990, 0.0
      %1006 = vadd.xlane.f32.xlu0 %v1005
      %v1007 = vpop.xlane.xlu0 %1006
      %v1008 = vsel %vm769, %v992, 0.0
      %1009 = vadd.xlane.f32.xlu0 %v1008
      %v1010 = vpop.xlane.xlu0 %1009
      %v1011 = vsel %vm769, %v994, 0.0
      %1012 = vadd.xlane.f32.xlu0 %v1011
      %v1013 = vpop.xlane.xlu0 %1012
      %v1014 = vsel %vm769, %v996, 0.0
      %1015 = vadd.xlane.f32.xlu0 %v1014
      %v1016 = vpop.xlane.xlu0 %1015
      %v1017 = vsel %vm769, %v998, 0.0
      %1018 = vadd.xlane.f32.xlu0 %v1017
      %v1019 = vpop.xlane.xlu0 %1018
      %v1020 = vsel %vm769, %v1000, 0.0
      %1021 = vadd.xlane.f32.xlu0 %v1020
      %v1022 = vpop.xlane.xlu0 %1021
      %v1023 = vsel %vm769, %v1002, 0.0
      %1024 = vadd.xlane.f32.xlu0 %v1023
      %v1025 = vpop.xlane.xlu0 %1024
      %v1026 = vsel %vm769, %v1004, 0.0
      %1027 = vadd.xlane.f32.xlu0 %v1026
      %v1028 = vpop.xlane.xlu0 %1027
      %v1029 = vrcp.pop %v1007
      %v1030 = vrcp.pop %v1010
      %v1031 = vrcp.pop %v1013
      %v1032 = vrcp.pop %v1016
      %v1033 = vrcp.pop %v1019
      %v1034 = vrcp.pop %v1022
      %v1035 = vrcp.pop %v1025
      %v1036 = vrcp.pop %v1028
      %v1037 = vmul.f32 %v990, %v1029
      %v1038 = vmul.f32 %v992, %v1030
      %v1039 = vmul.f32 %v994, %v1031
      %v1040 = vmul.f32 %v996, %v1032
      %v1041 = vmul.f32 %v998, %v1033
      %v1042 = vmul.f32 %v1000, %v1034
      %v1043 = vmul.f32 %v1002, %v1035
      %v1044 = vmul.f32 %v1004, %v1036
      %v1045 = vpack.c.bf16 %v1037, %v1037
      %v1046 = vpack.c.bf16 %v1038, %v1038
      %v1047 = vpack.c.bf16 %v1039, %v1039
      %v1048 = vpack.c.bf16 %v1040, %v1040
      %v1049 = vpack.c.bf16 %v1041, %v1041
      %v1050 = vpack.c.bf16 %v1042, %v1042
      %v1051 = vpack.c.bf16 %v1043, %v1043
      %v1052 = vpack.c.bf16 %v1044, %v1044
      %1053 = vrot.lane.b32.xlu0 %v766, 64
      %v1054 = vpop.permute.xlu0 %1053
      %v1056 = vsel %vm769, %v1045, 0
      %vm1058 = vcmask 1043456
      %v1060 = vsel %vm1058, %v1054, 0
      %1062 = vmatpush.bf16.msra.mxu0 0
      %1063 = vmatpush.bf16.msra.mxu0 0
      %1064 = vmatpush.bf16.msra.mxu0 0
      %1065 = vmatpush.bf16.msra.mxu0 0
      %1066 = vmatpush.bf16.msra.mxu0 0
      %1067 = vmatpush.bf16.msra.mxu0 0
      %1068 = vmatpush.bf16.msra.mxu0 0
      %1069 = vmatpush.bf16.msra.mxu0 %v1060
      %1070 = vmatmul.bf16.gmra.mxu0 %v1056
      %v1071 = vpop.f32.mrf.mxu0
      %v1072 = vadd.f32 0.0, %v1071
      %v1073 = vpop.f32.mrf.mxu0
      %1074 = vdwg.mxu0
      %1075 = vrot.lane.b32.xlu0 %v791, 64
      %v1076 = vpop.permute.xlu0 %1075
      %v1078 = vsel %vm769, %v1046, 0
      %v1081 = vsel %vm1058, %v1076, 0
      %1083 = vmatpush.bf16.msra.mxu0 0
      %1084 = vmatpush.bf16.msra.mxu0 0
      %1085 = vmatpush.bf16.msra.mxu0 0
      %1086 = vmatpush.bf16.msra.mxu0 0
      %1087 = vmatpush.bf16.msra.mxu0 0
      %1088 = vmatpush.bf16.msra.mxu0 0
      %1089 = vmatpush.bf16.msra.mxu0 0
      %1090 = vmatpush.bf16.msra.mxu0 %v1081
      %1091 = vmatmul.bf16.gmra.mxu0 %v1078
      %v1092 = vpop.f32.mrf.mxu0
      %v1093 = vadd.f32 0.0, %v1092
      %v1094 = vpop.f32.mrf.mxu0
      %1095 = vdwg.mxu0
      %1096 = vrot.lane.b32.xlu0 %v815, 64
      %v1097 = vpop.permute.xlu0 %1096
      %v1099 = vsel %vm769, %v1047, 0
      %v1102 = vsel %vm1058, %v1097, 0
      %1104 = vmatpush.bf16.msra.mxu0 0
      %1105 = vmatpush.bf16.msra.mxu0 0
      %1106 = vmatpush.bf16.msra.mxu0 0
      %1107 = vmatpush.bf16.msra.mxu0 0
      %1108 = vmatpush.bf16.msra.mxu0 0
      %1109 = vmatpush.bf16.msra.mxu0 0
      %1110 = vmatpush.bf16.msra.mxu0 0
      %1111 = vmatpush.bf16.msra.mxu0 %v1102
      %1112 = vmatmul.bf16.gmra.mxu0 %v1099
      %v1113 = vpop.f32.mrf.mxu0
      %v1114 = vadd.f32 0.0, %v1113
      %v1115 = vpop.f32.mrf.mxu0
      %1116 = vdwg.mxu0
      %1117 = vrot.lane.b32.xlu0 %v839, 64
      %v1118 = vpop.permute.xlu0 %1117
      %v1120 = vsel %vm769, %v1048, 0
      %v1123 = vsel %vm1058, %v1118, 0
      %1125 = vmatpush.bf16.msra.mxu0 0
      %1126 = vmatpush.bf16.msra.mxu0 0
      %1127 = vmatpush.bf16.msra.mxu0 0
      %1128 = vmatpush.bf16.msra.mxu0 0
      %1129 = vmatpush.bf16.msra.mxu0 0
      %1130 = vmatpush.bf16.msra.mxu0 0
      %1131 = vmatpush.bf16.msra.mxu0 0
      %1132 = vmatpush.bf16.msra.mxu0 %v1123
      %1133 = vmatmul.bf16.gmra.mxu0 %v1120
      %v1134 = vpop.f32.mrf.mxu0
      %v1135 = vadd.f32 0.0, %v1134
      %v1136 = vpop.f32.mrf.mxu0
      %1137 = vdwg.mxu0
      %1138 = vrot.lane.b32.xlu0 %v863, 64
      %v1139 = vpop.permute.xlu0 %1138
      %v1141 = vsel %vm769, %v1049, 0
      %v1144 = vsel %vm1058, %v1139, 0
      %1146 = vmatpush.bf16.msra.mxu0 0
      %1147 = vmatpush.bf16.msra.mxu0 0
      %1148 = vmatpush.bf16.msra.mxu0 0
      %1149 = vmatpush.bf16.msra.mxu0 0
      %1150 = vmatpush.bf16.msra.mxu0 0
      %1151 = vmatpush.bf16.msra.mxu0 0
      %1152 = vmatpush.bf16.msra.mxu0 0
      %1153 = vmatpush.bf16.msra.mxu0 %v1144
      %1154 = vmatmul.bf16.gmra.mxu0 %v1141
      %v1155 = vpop.f32.mrf.mxu0
      %v1156 = vadd.f32 0.0, %v1155
      %v1157 = vpop.f32.mrf.mxu0
      %1158 = vdwg.mxu0
      %1159 = vrot.lane.b32.xlu0 %v887, 64
      %v1160 = vpop.permute.xlu0 %1159
      %v1162 = vsel %vm769, %v1050, 0
      %v1165 = vsel %vm1058, %v1160, 0
      %1167 = vmatpush.bf16.msra.mxu0 0
      %1168 = vmatpush.bf16.msra.mxu0 0
      %1169 = vmatpush.bf16.msra.mxu0 0
      %1170 = vmatpush.bf16.msra.mxu0 0
      %1171 = vmatpush.bf16.msra.mxu0 0
      %1172 = vmatpush.bf16.msra.mxu0 0
      %1173 = vmatpush.bf16.msra.mxu0 0
      %1174 = vmatpush.bf16.msra.mxu0 %v1165
      %1175 = vmatmul.bf16.gmra.mxu0 %v1162
      %v1176 = vpop.f32.mrf.mxu0
      %v1177 = vadd.f32 0.0, %v1176
      %v1178 = vpop.f32.mrf.mxu0
      %1179 = vdwg.mxu0
      %1180 = vrot.lane.b32.xlu0 %v911, 64
      %v1181 = vpop.permute.xlu0 %1180
      %v1183 = vsel %vm769, %v1051, 0
      %v1186 = vsel %vm1058, %v1181, 0
      %1188 = vmatpush.bf16.msra.mxu0 0
      %1189 = vmatpush.bf16.msra.mxu0 0
      %1190 = vmatpush.bf16.msra.mxu0 0
      %1191 = vmatpush.bf16.msra.mxu0 0
      %1192 = vmatpush.bf16.msra.mxu0 0
      %1193 = vmatpush.bf16.msra.mxu0 0
      %1194 = vmatpush.bf16.msra.mxu0 0
      %1195 = vmatpush.bf16.msra.mxu0 %v1186
      %1196 = vmatmul.bf16.gmra.mxu0 %v1183
      %v1197 = vpop.f32.mrf.mxu0
      %v1198 = vadd.f32 0.0, %v1197
      %v1199 = vpop.f32.mrf.mxu0
      %1200 = vdwg.mxu0
      %1201 = vrot.lane.b32.xlu0 %v935, 64
      %v1202 = vpop.permute.xlu0 %1201
      %v1204 = vsel %vm769, %v1052, 0
      %v1207 = vsel %vm1058, %v1202, 0
      %1209 = vmatpush.bf16.msra.mxu0 0
      %1210 = vmatpush.bf16.msra.mxu0 0
      %1211 = vmatpush.bf16.msra.mxu0 0
      %1212 = vmatpush.bf16.msra.mxu0 0
      %1213 = vmatpush.bf16.msra.mxu0 0
      %1214 = vmatpush.bf16.msra.mxu0 0
      %1215 = vmatpush.bf16.msra.mxu0 0
      %1216 = vmatpush.bf16.msra.mxu0 %v1207
      %1217 = vmatmul.bf16.gmra.mxu0 %v1204
      %v1218 = vpop.f32.mrf.mxu0
      %v1219 = vadd.f32 0.0, %v1218
      %v1220 = vpop.f32.mrf.mxu0
      %1221 = vdwg.mxu0
      %1224 = vrot.lane.b32.xlu0 %v1114, 8
      %v1225 = vpop.permute.xlu0 %1224
      %1226 = vrot.lane.b32.xlu0 %v1135, 8
      %v1227 = vpop.permute.xlu0 %1226
      %1232 = vrot.lane.b32.xlu0 %v1156, 16
      %v1233 = vpop.permute.xlu0 %1232
      %1234 = vrot.lane.b32.xlu0 %v1177, 16
      %v1235 = vpop.permute.xlu0 %1234
      %1240 = vrot.lane.b32.xlu0 %v1198, 24
      %v1241 = vpop.permute.xlu0 %1240
      %1242 = vrot.lane.b32.xlu0 %v1219, 24
      %v1243 = vpop.permute.xlu0 %1242
      %v1246 = vsel %vm769, %v1072, %v1225
      %v1247 = vsel %vm769, %v1093, %v1227
      %vm1248 = vcmask 130048
      %v1249 = vsel %vm1248, %v1246, %v1233
      %v1250 = vsel %vm1248, %v1247, %v1235
      %vm1251 = vcmask 195584
      %v1252 = vsel %vm1251, %v1249, %v1241
      %v1253 = vsel %vm1251, %v1250, %v1243
      %v1254 = vpack.c.bf16 %v1253, %v1252
      %v1255 = vld [vmem:[%s535] sm:$0xf]
      %v1256 = vld [vmem:[%s535 + $0x4] sm:$0xf]
      %v1257 = vld [vmem:[%s535 + $0x8] sm:$0xf]
      %v1258 = vld [vmem:[%s535 + $0xc] sm:$0xf]
      %v1259 = vperm.slane %v666, 1
      %v1264 = vunpack.c.l.b16 %v1255
      %v1265 = vunpack.c.l.b16 %v1256
      %v1266 = vunpack.c.l.b16 %v1257
      %v1267 = vunpack.c.l.b16 %v1258
      %v1268 = vpack.c.b16 %v1265, %v1264
      %v1269 = vpack.c.b16 %v1267, %v1266
      %v1273 = vsel %vm686, %v1254, 0
      %1275 = vmatpush.bf16.msra.mxu0 0
      %1276 = vmatpush.bf16.msra.mxu0 0
      %1277 = vmatpush.bf16.msra.mxu0 0
      %1278 = vmatpush.bf16.msra.mxu0 0
      %1279 = vmatpush.bf16.msra.mxu0 0
      %1280 = vmatpush.bf16.msra.mxu0 0
      %1281 = vmatpush.bf16.msra.mxu0 %v1269
      %1282 = vmatpush.bf16.msra.mxu0 %v1268
      %1283 = vmatmul.bf16.gmra.mxu0 %v1273
      %v1284 = vpop.f32.mrf.mxu0
      %v1285 = vadd.f32 %v1259, %v1284
      %v1286 = vpop.f32.mrf.mxu0
      %v1287 = vadd.f32 %v1259, %v1286
      %1288 = vdwg.mxu0
      %v1289 = vadd.f32 %v664, %v1285
      %v1290 = vadd.f32 %v665, %v1287
      %v1291 = vsel %vm686, %v1289, 0.0
      %1292 = vadd.xlane.f32.xlu0 %v1291
      %v1293 = vpop.xlane.xlu0 %1292
      %v1294 = vsel %vm686, %v1290, 0.0
      %1295 = vadd.xlane.f32.xlu0 %v1294
      %v1296 = vpop.xlane.xlu0 %1295
      %v1297 = vrcp.pop 32.0
      %v1298 = vmul.f32 32.0, %v1297
      %v1299 = vsub.f32 1.0, %v1298
      %v1300 = vmul.f32 %v1297, %v1299
      %v1301 = vadd.f32 %v1297, %v1300
      %vm1302 = vweird.f32 %v1297
      %v1303 = vsel %vm1302, %v1297, %v1301
      %v1304 = vmul.f32 %v1293, %v1303
      %v1305 = vmul.f32 %v1296, %v1303
      %v1306 = vsub.f32 %v1289, %v1304
      %v1307 = vsub.f32 %v1290, %v1305
      %v1308 = vmul.f32 %v1306, %v1306
      %v1309 = vmul.f32 %v1307, %v1307
      %v1310 = vsel %vm686, %v1308, 0.0
      %1311 = vadd.xlane.f32.xlu0 %v1310
      %v1312 = vpop.xlane.xlu0 %1311
      %v1313 = vsel %vm686, %v1309, 0.0
      %1314 = vadd.xlane.f32.xlu0 %v1313
      %v1315 = vpop.xlane.xlu0 %1314
      %v1316 = vmul.f32 %v1312, %v1303
      %v1317 = vmul.f32 %v1315, %v1303
      %v1318 = vadd.f32 %v1316, 1e-05
      %v1319 = vadd.f32 %v1317, 1e-05
      %v1320 = vrsqrt.pop %v1318
      %v1321 = vmul.f32 %v1320, %v1318
      %v1322 = vmul.f32 %v1321, %v1320
      %v1323 = vmul.f32 0.5, %v1322
      %v1324 = vsub.f32 1.5, %v1323
      %v1325 = vmul.f32 %v1320, %v1324
      %vm1326 = vweird.f32 %v1318
      %vm1327 = vweird.f32 %v1320
      %vm1328 = vmor %vm1326, %vm1327
      %v1329 = vsel %vm1328, %v1320, %v1325
      %v1330 = vrsqrt.pop %v1319
      %v1331 = vmul.f32 %v1330, %v1319
      %v1332 = vmul.f32 %v1331, %v1330
      %v1333 = vmul.f32 0.5, %v1332
      %v1334 = vsub.f32 1.5, %v1333
      %v1335 = vmul.f32 %v1330, %v1334
      %vm1336 = vweird.f32 %v1319
      %vm1337 = vweird.f32 %v1330
      %vm1338 = vmor %vm1336, %vm1337
      %v1339 = vsel %vm1338, %v1330, %v1335
      %v1340 = vmul.f32 %v1306, %v1329
      %v1341 = vmul.f32 %v1307, %v1339
      %v1342 = vperm.slane %v666, 2
      %v1343 = vmul.f32 %v1340, %v1342
      %v1344 = vmul.f32 %v1341, %v1342
      %v1345 = vperm.slane %v666, 3
      %v1346 = vadd.f32 %v1343, %v1345
      %v1347 = vadd.f32 %v1344, %v1345
      %v1348 = vpack.c.bf16 %v1347, %v1346
      %v1349 = vld [vmem:[%s540] sm:$0xf]
      %v1350 = vld [vmem:[%s540 + $0x4] sm:$0xf]
      %v1351 = vld [vmem:[%s540 + $0x8] sm:$0xf]
      %v1352 = vld [vmem:[%s540 + $0xc] sm:$0xf]
      %v1353 = vperm.slane %v666, 4
      %v1358 = vunpack.c.l.b16 %v1349
      %v1359 = vunpack.c.l.b16 %v1350
      %v1360 = vunpack.c.l.b16 %v1351
      %v1361 = vunpack.c.l.b16 %v1352
      %v1362 = vpack.c.b16 %v1359, %v1358
      %v1363 = vpack.c.b16 %v1361, %v1360
      %v1367 = vsel %vm686, %v1348, 0
      %1369 = vmatpush.bf16.msra.mxu0 0
      %1370 = vmatpush.bf16.msra.mxu0 0
      %1371 = vmatpush.bf16.msra.mxu0 0
      %1372 = vmatpush.bf16.msra.mxu0 0
      %1373 = vmatpush.bf16.msra.mxu0 0
      %1374 = vmatpush.bf16.msra.mxu0 0
      %1375 = vmatpush.bf16.msra.mxu0 %v1363
      %1376 = vmatpush.bf16.msra.mxu0 %v1362
      %1377 = vmatmul.bf16.gmra.mxu0 %v1367
      %v1378 = vpop.f32.mrf.mxu0
      %v1379 = vadd.f32 %v1353, %v1378
      %v1380 = vpop.f32.mrf.mxu0
      %v1381 = vadd.f32 %v1353, %v1380
      %1382 = vdwg.mxu0
      %v1383 = vld [vmem:[%s3] sm:$0xf]
      %v1384 = vld [vmem:[%s3 + $0x4] sm:$0xf]
      %v1385 = vld [vmem:[%s545] sm:$0xf]
      %v1386 = vld [vmem:[%s545 + $0x4] sm:$0xf]
      %v1387 = vld [vmem:[%s545 + $0x8] sm:$0xf]
      %v1388 = vld [vmem:[%s545 + $0xc] sm:$0xf]
      %v1389 = vperm.slane %v666, 5
      %v1392 = vunpack.c.l.b16 %v1383
      %v1393 = vunpack.c.l.b16 %v1384
      %v1394 = vpack.c.b16 %v1393, %v1392
      %v1399 = vunpack.c.l.b16 %v1385
      %v1400 = vunpack.c.l.b16 %v1386
      %v1401 = vunpack.c.l.b16 %v1387
      %v1402 = vunpack.c.l.b16 %v1388
      %v1403 = vpack.c.b16 %v1400, %v1399
      %v1404 = vpack.c.b16 %v1402, %v1401
      %v1408 = vsel %vm686, %v1394, 0
      %1410 = vmatpush.bf16.msra.mxu0 0
      %1411 = vmatpush.bf16.msra.mxu0 0
      %1412 = vmatpush.bf16.msra.mxu0 0
      %1413 = vmatpush.bf16.msra.mxu0 0
      %1414 = vmatpush.bf16.msra.mxu0 0
      %1415 = vmatpush.bf16.msra.mxu0 0
      %1416 = vmatpush.bf16.msra.mxu0 %v1404
      %1417 = vmatpush.bf16.msra.mxu0 %v1403
      %1418 = vmatmul.bf16.gmra.mxu0 %v1408
      %v1419 = vpop.f32.mrf.mxu0
      %v1420 = vadd.f32 %v1389, %v1419
      %v1421 = vpop.f32.mrf.mxu0
      %v1422 = vadd.f32 %v1389, %v1421
      %1423 = vdwg.mxu0
      %v1424 = vmul.f32 %v1379, 0.35355338
      %v1425 = vmul.f32 %v1381, 0.35355338
      %1428 = vrot.lane.b32.xlu0 %v1424, 120
      %v1429 = vpop.permute.xlu0 %1428
      %1430 = vrot.lane.b32.xlu0 %v1425, 120
      %v1431 = vpop.permute.xlu0 %1430
      %1434 = vrot.lane.b32.xlu0 %v1424, 112
      %v1435 = vpop.permute.xlu0 %1434
      %1436 = vrot.lane.b32.xlu0 %v1425, 112
      %v1437 = vpop.permute.xlu0 %1436
      %1440 = vrot.lane.b32.xlu0 %v1424, 104
      %v1441 = vpop.permute.xlu0 %1440
      %1442 = vrot.lane.b32.xlu0 %v1425, 104
      %v1443 = vpop.permute.xlu0 %1442
      %v1446 = vpack.c.bf16 %v1424, %v1424
      %v1447 = vpack.c.bf16 %v1425, %v1425
      %v1448 = vpack.c.bf16 %v1429, %v1429
      %v1449 = vpack.c.bf16 %v1431, %v1431
      %v1450 = vpack.c.bf16 %v1435, %v1435
      %v1451 = vpack.c.bf16 %v1437, %v1437
      %v1452 = vpack.c.bf16 %v1441, %v1441
      %v1453 = vpack.c.bf16 %v1443, %v1443
      %1456 = vrot.lane.b32.xlu0 %v1420, 120
      %v1457 = vpop.permute.xlu0 %1456
      %1458 = vrot.lane.b32.xlu0 %v1422, 120
      %v1459 = vpop.permute.xlu0 %1458
      %1462 = vrot.lane.b32.xlu0 %v1420, 112
      %v1463 = vpop.permute.xlu0 %1462
      %1464 = vrot.lane.b32.xlu0 %v1422, 112
      %v1465 = vpop.permute.xlu0 %1464
      %1468 = vrot.lane.b32.xlu0 %v1420, 104
      %v1469 = vpop.permute.xlu0 %1468
      %1470 = vrot.lane.b32.xlu0 %v1422, 104
      %v1471 = vpop.permute.xlu0 %1470
      %v1474 = vpack.c.bf16 %v1420, %v1420
      %v1475 = vpack.c.bf16 %v1422, %v1422
      %v1476 = vpack.c.bf16 %v1457, %v1457
      %v1477 = vpack.c.bf16 %v1459, %v1459
      %v1478 = vpack.c.bf16 %v1463, %v1463
      %v1479 = vpack.c.bf16 %v1465, %v1465
      %v1480 = vpack.c.bf16 %v1469, %v1469
      %v1481 = vpack.c.bf16 %v1471, %v1471
      %v1483 = vsel %vm769, %v1446, 0
      %v1486 = vsel %vm769, %v1474, 0
      %1488 = vmatpush.bf16.xpose.msra.mxu0 0
      %1489 = vmatpush.bf16.xpose.msra.mxu0 0
      %1490 = vmatpush.bf16.xpose.msra.mxu0 0
      %1491 = vmatpush.bf16.xpose.msra.mxu0 0
      %1492 = vmatpush.bf16.xpose.msra.mxu0 0
      %1493 = vmatpush.bf16.xpose.msra.mxu0 0
      %1494 = vmatpush.bf16.xpose.msra.mxu0 0
      %1495 = vmatpush.bf16.xpose.msra.mxu0 %v1486
      %1496 = vmatmul.bf16.gmra.mxu0 %v1483
      %v1497 = vpop.f32.mrf.mxu0
      %v1498 = vadd.f32 0.0, %v1497
      %v1499 = vpop.f32.mrf.mxu0
      %1500 = vdwg.mxu0
      %v1502 = vsel %vm769, %v1447, 0
      %v1505 = vsel %vm769, %v1475, 0
      %1507 = vmatpush.bf16.xpose.msra.mxu0 0
      %1508 = vmatpush.bf16.xpose.msra.mxu0 0
      %1509 = vmatpush.bf16.xpose.msra.mxu0 0
      %1510 = vmatpush.bf16.xpose.msra.mxu0 0
      %1511 = vmatpush.bf16.xpose.msra.mxu0 0
      %1512 = vmatpush.bf16.xpose.msra.mxu0 0
      %1513 = vmatpush.bf16.xpose.msra.mxu0 0
      %1514 = vmatpush.bf16.xpose.msra.mxu0 %v1505
      %1515 = vmatmul.bf16.gmra.mxu0 %v1502
      %v1516 = vpop.f32.mrf.mxu0
      %v1517 = vadd.f32 0.0, %v1516
      %v1518 = vpop.f32.mrf.mxu0
      %1519 = vdwg.mxu0
      %v1521 = vsel %vm769, %v1448, 0
      %v1524 = vsel %vm769, %v1476, 0
      %1526 = vmatpush.bf16.xpose.msra.mxu0 0
      %1527 = vmatpush.bf16.xpose.msra.mxu0 0
      %1528 = vmatpush.bf16.xpose.msra.mxu0 0
      %1529 = vmatpush.bf16.xpose.msra.mxu0 0
      %1530 = vmatpush.bf16.xpose.msra.mxu0 0
      %1531 = vmatpush.bf16.xpose.msra.mxu0 0
      %1532 = vmatpush.bf16.xpose.msra.mxu0 0
      %1533 = vmatpush.bf16.xpose.msra.mxu0 %v1524
      %1534 = vmatmul.bf16.gmra.mxu0 %v1521
      %v1535 = vpop.f32.mrf.mxu0
      %v1536 = vadd.f32 0.0, %v1535
      %v1537 = vpop.f32.mrf.mxu0
      %1538 = vdwg.mxu0
      %v1540 = vsel %vm769, %v1449, 0
      %v1543 = vsel %vm769, %v1477, 0
      %1545 = vmatpush.bf16.xpose.msra.mxu0 0
      %1546 = vmatpush.bf16.xpose.msra.mxu0 0
      %1547 = vmatpush.bf16.xpose.msra.mxu0 0
      %1548 = vmatpush.bf16.xpose.msra.mxu0 0
      %1549 = vmatpush.bf16.xpose.msra.mxu0 0
      %1550 = vmatpush.bf16.xpose.msra.mxu0 0
      %1551 = vmatpush.bf16.xpose.msra.mxu0 0
      %1552 = vmatpush.bf16.xpose.msra.mxu0 %v1543
      %1553 = vmatmul.bf16.gmra.mxu0 %v1540
      %v1554 = vpop.f32.mrf.mxu0
      %v1555 = vadd.f32 0.0, %v1554
      %v1556 = vpop.f32.mrf.mxu0
      %1557 = vdwg.mxu0
      %v1559 = vsel %vm769, %v1450, 0
      %v1562 = vsel %vm769, %v1478, 0
      %1564 = vmatpush.bf16.xpose.msra.mxu0 0
      %1565 = vmatpush.bf16.xpose.msra.mxu0 0
      %1566 = vmatpush.bf16.xpose.msra.mxu0 0
      %1567 = vmatpush.bf16.xpose.msra.mxu0 0
      %1568 = vmatpush.bf16.xpose.msra.mxu0 0
      %1569 = vmatpush.bf16.xpose.msra.mxu0 0
      %1570 = vmatpush.bf16.xpose.msra.mxu0 0
      %1571 = vmatpush.bf16.xpose.msra.mxu0 %v1562
      %1572 = vmatmul.bf16.gmra.mxu0 %v1559
      %v1573 = vpop.f32.mrf.mxu0
      %v1574 = vadd.f32 0.0, %v1573
      %v1575 = vpop.f32.mrf.mxu0
      %1576 = vdwg.mxu0
      %v1578 = vsel %vm769, %v1451, 0
      %v1581 = vsel %vm769, %v1479, 0
      %1583 = vmatpush.bf16.xpose.msra.mxu0 0
      %1584 = vmatpush.bf16.xpose.msra.mxu0 0
      %1585 = vmatpush.bf16.xpose.msra.mxu0 0
      %1586 = vmatpush.bf16.xpose.msra.mxu0 0
      %1587 = vmatpush.bf16.xpose.msra.mxu0 0
      %1588 = vmatpush.bf16.xpose.msra.mxu0 0
      %1589 = vmatpush.bf16.xpose.msra.mxu0 0
      %1590 = vmatpush.bf16.xpose.msra.mxu0 %v1581
      %1591 = vmatmul.bf16.gmra.mxu0 %v1578
      %v1592 = vpop.f32.mrf.mxu0
      %v1593 = vadd.f32 0.0, %v1592
      %v1594 = vpop.f32.mrf.mxu0
      %1595 = vdwg.mxu0
      %v1597 = vsel %vm769, %v1452, 0
      %v1600 = vsel %vm769, %v1480, 0
      %1602 = vmatpush.bf16.xpose.msra.mxu0 0
      %1603 = vmatpush.bf16.xpose.msra.mxu0 0
      %1604 = vmatpush.bf16.xpose.msra.mxu0 0
      %1605 = vmatpush.bf16.xpose.msra.mxu0 0
      %1606 = vmatpush.bf16.xpose.msra.mxu0 0
      %1607 = vmatpush.bf16.xpose.msra.mxu0 0
      %1608 = vmatpush.bf16.xpose.msra.mxu0 0
      %1609 = vmatpush.bf16.xpose.msra.mxu0 %v1600
      %1610 = vmatmul.bf16.gmra.mxu0 %v1597
      %v1611 = vpop.f32.mrf.mxu0
      %v1612 = vadd.f32 0.0, %v1611
      %v1613 = vpop.f32.mrf.mxu0
      %1614 = vdwg.mxu0
      %v1616 = vsel %vm769, %v1453, 0
      %v1619 = vsel %vm769, %v1481, 0
      %1621 = vmatpush.bf16.xpose.msra.mxu0 0
      %1622 = vmatpush.bf16.xpose.msra.mxu0 0
      %1623 = vmatpush.bf16.xpose.msra.mxu0 0
      %1624 = vmatpush.bf16.xpose.msra.mxu0 0
      %1625 = vmatpush.bf16.xpose.msra.mxu0 0
      %1626 = vmatpush.bf16.xpose.msra.mxu0 0
      %1627 = vmatpush.bf16.xpose.msra.mxu0 0
      %1628 = vmatpush.bf16.xpose.msra.mxu0 %v1619
      %1629 = vmatmul.bf16.gmra.mxu0 %v1616
      %v1630 = vpop.f32.mrf.mxu0
      %v1631 = vadd.f32 0.0, %v1630
      %v1632 = vpop.f32.mrf.mxu0
      %1633 = vdwg.mxu0
      %v1634 = vsel %vm769, %v1498, -inf
      %1635 = vmax.xlane.f32.xlu0 %v1634
      %v1636 = vpop.xlane.xlu0 %1635
      %v1637 = vsel %vm769, %v1517, -inf
      %1638 = vmax.xlane.f32.xlu0 %v1637
      %v1639 = vpop.xlane.xlu0 %1638
      %v1640 = vsel %vm769, %v1536, -inf
      %1641 = vmax.xlane.f32.xlu0 %v1640
      %v1642 = vpop.xlane.xlu0 %1641
      %v1643 = vsel %vm769, %v1555, -inf
      %1644 = vmax.xlane.f32.xlu0 %v1643
      %v1645 = vpop.xlane.xlu0 %1644
      %v1646 = vsel %vm769, %v1574, -inf
      %1647 = vmax.xlane.f32.xlu0 %v1646
      %v1648 = vpop.xlane.xlu0 %1647
      %v1649 = vsel %vm769, %v1593, -inf
      %1650 = vmax.xlane.f32.xlu0 %v1649
      %v1651 = vpop.xlane.xlu0 %1650
      %v1652 = vsel %vm769, %v1612, -inf
      %1653 = vmax.xlane.f32.xlu0 %v1652
      %v1654 = vpop.xlane.xlu0 %1653
      %v1655 = vsel %vm769, %v1631, -inf
      %1656 = vmax.xlane.f32.xlu0 %v1655
      %v1657 = vpop.xlane.xlu0 %1656
      %v1658 = vsub.f32 %v1498, %v1636
      %v1659 = vsub.f32 %v1517, %v1639
      %v1660 = vsub.f32 %v1536, %v1642
      %v1661 = vsub.f32 %v1555, %v1645
      %v1662 = vsub.f32 %v1574, %v1648
      %v1663 = vsub.f32 %v1593, %v1651
      %v1664 = vsub.f32 %v1612, %v1654
      %v1665 = vsub.f32 %v1631, %v1657
      %v1666 = vmul.f32 %v1658, 1.442695
      %v1667 = vpow.pop %v1666
      %v1668 = vmul.f32 %v1659, 1.442695
      %v1669 = vpow.pop %v1668
      %v1670 = vmul.f32 %v1660, 1.442695
      %v1671 = vpow.pop %v1670
      %v1672 = vmul.f32 %v1661, 1.442695
      %v1673 = vpow.pop %v1672
      %v1674 = vmul.f32 %v1662, 1.442695
      %v1675 = vpow.pop %v1674
      %v1676 = vmul.f32 %v1663, 1.442695
      %v1677 = vpow.pop %v1676
      %v1678 = vmul.f32 %v1664, 1.442695
      %v1679 = vpow.pop %v1678
      %v1680 = vmul.f32 %v1665, 1.442695
      %v1681 = vpow.pop %v1680
      %v1682 = vsel %vm769, %v1667, 0.0
      %1683 = vadd.xlane.f32.xlu0 %v1682
      %v1684 = vpop.xlane.xlu0 %1683
      %v1685 = vsel %vm769, %v1669, 0.0
      %1686 = vadd.xlane.f32.xlu0 %v1685
      %v1687 = vpop.xlane.xlu0 %1686
      %v1688 = vsel %vm769, %v1671, 0.0
      %1689 = vadd.xlane.f32.xlu0 %v1688
      %v1690 = vpop.xlane.xlu0 %1689
      %v1691 = vsel %vm769, %v1673, 0.0
      %1692 = vadd.xlane.f32.xlu0 %v1691
      %v1693 = vpop.xlane.xlu0 %1692
      %v1694 = vsel %vm769, %v1675, 0.0
      %1695 = vadd.xlane.f32.xlu0 %v1694
      %v1696 = vpop.xlane.xlu0 %1695
      %v1697 = vsel %vm769, %v1677, 0.0
      %1698 = vadd.xlane.f32.xlu0 %v1697
      %v1699 = vpop.xlane.xlu0 %1698
      %v1700 = vsel %vm769, %v1679, 0.0
      %1701 = vadd.xlane.f32.xlu0 %v1700
      %v1702 = vpop.xlane.xlu0 %1701
      %v1703 = vsel %vm769, %v1681, 0.0
      %1704 = vadd.xlane.f32.xlu0 %v1703
      %v1705 = vpop.xlane.xlu0 %1704
      %v1706 = vrcp.pop %v1684
      %v1707 = vrcp.pop %v1687
      %v1708 = vrcp.pop %v1690
      %v1709 = vrcp.pop %v1693
      %v1710 = vrcp.pop %v1696
      %v1711 = vrcp.pop %v1699
      %v1712 = vrcp.pop %v1702
      %v1713 = vrcp.pop %v1705
      %v1714 = vmul.f32 %v1667, %v1706
      %v1715 = vmul.f32 %v1669, %v1707
      %v1716 = vmul.f32 %v1671, %v1708
      %v1717 = vmul.f32 %v1673, %v1709
      %v1718 = vmul.f32 %v1675, %v1710
      %v1719 = vmul.f32 %v1677, %v1711
      %v1720 = vmul.f32 %v1679, %v1712
      %v1721 = vmul.f32 %v1681, %v1713
      %v1722 = vpack.c.bf16 %v1714, %v1714
      %v1723 = vpack.c.bf16 %v1715, %v1715
      %v1724 = vpack.c.bf16 %v1716, %v1716
      %v1725 = vpack.c.bf16 %v1717, %v1717
      %v1726 = vpack.c.bf16 %v1718, %v1718
      %v1727 = vpack.c.bf16 %v1719, %v1719
      %v1728 = vpack.c.bf16 %v1720, %v1720
      %v1729 = vpack.c.bf16 %v1721, %v1721
      %v1731 = vunpack.c.l.b16 %v1474
      %v1732 = vpack.c.b16 %v1731, %v1731
      %1733 = vrot.lane.b32.xlu0 %v1732, 96
      %v1734 = vpop.permute.xlu0 %1733
      %v1736 = vsel %vm769, %v1722, 0
      %v1739 = vsel %vm1058, %v1734, 0
      %1741 = vmatpush.bf16.msra.mxu0 0
      %1742 = vmatpush.bf16.msra.mxu0 0
      %1743 = vmatpush.bf16.msra.mxu0 0
      %1744 = vmatpush.bf16.msra.mxu0 0
      %1745 = vmatpush.bf16.msra.mxu0 0
      %1746 = vmatpush.bf16.msra.mxu0 0
      %1747 = vmatpush.bf16.msra.mxu0 0
      %1748 = vmatpush.bf16.msra.mxu0 %v1739
      %1749 = vmatmul.bf16.gmra.mxu0 %v1736
      %v1750 = vpop.f32.mrf.mxu0
      %v1751 = vadd.f32 0.0, %v1750
      %v1752 = vpop.f32.mrf.mxu0
      %1753 = vdwg.mxu0
      %v1755 = vunpack.c.l.b16 %v1475
      %v1756 = vpack.c.b16 %v1755, %v1755
      %1757 = vrot.lane.b32.xlu0 %v1756, 96
      %v1758 = vpop.permute.xlu0 %1757
      %v1760 = vsel %vm769, %v1723, 0
      %v1763 = vsel %vm1058, %v1758, 0
      %1765 = vmatpush.bf16.msra.mxu0 0
      %1766 = vmatpush.bf16.msra.mxu0 0
      %1767 = vmatpush.bf16.msra.mxu0 0
      %1768 = vmatpush.bf16.msra.mxu0 0
      %1769 = vmatpush.bf16.msra.mxu0 0
      %1770 = vmatpush.bf16.msra.mxu0 0
      %1771 = vmatpush.bf16.msra.mxu0 0
      %1772 = vmatpush.bf16.msra.mxu0 %v1763
      %1773 = vmatmul.bf16.gmra.mxu0 %v1760
      %v1774 = vpop.f32.mrf.mxu0
      %v1775 = vadd.f32 0.0, %v1774
      %v1776 = vpop.f32.mrf.mxu0
      %1777 = vdwg.mxu0
      %v1779 = vunpack.c.l.b16 %v1476
      %v1780 = vpack.c.b16 %v1779, %v1779
      %1781 = vrot.lane.b32.xlu0 %v1780, 96
      %v1782 = vpop.permute.xlu0 %1781
      %v1784 = vsel %vm769, %v1724, 0
      %v1787 = vsel %vm1058, %v1782, 0
      %1789 = vmatpush.bf16.msra.mxu0 0
      %1790 = vmatpush.bf16.msra.mxu0 0
      %1791 = vmatpush.bf16.msra.mxu0 0
      %1792 = vmatpush.bf16.msra.mxu0 0
      %1793 = vmatpush.bf16.msra.mxu0 0
      %1794 = vmatpush.bf16.msra.mxu0 0
      %1795 = vmatpush.bf16.msra.mxu0 0
      %1796 = vmatpush.bf16.msra.mxu0 %v1787
      %1797 = vmatmul.bf16.gmra.mxu0 %v1784
      %v1798 = vpop.f32.mrf.mxu0
      %v1799 = vadd.f32 0.0, %v1798
      %v1800 = vpop.f32.mrf.mxu0
      %1801 = vdwg.mxu0
      %v1803 = vunpack.c.l.b16 %v1477
      %v1804 = vpack.c.b16 %v1803, %v1803
      %1805 = vrot.lane.b32.xlu0 %v1804, 96
      %v1806 = vpop.permute.xlu0 %1805
      %v1808 = vsel %vm769, %v1725, 0
      %v1811 = vsel %vm1058, %v1806, 0
      %1813 = vmatpush.bf16.msra.mxu0 0
      %1814 = vmatpush.bf16.msra.mxu0 0
      %1815 = vmatpush.bf16.msra.mxu0 0
      %1816 = vmatpush.bf16.msra.mxu0 0
      %1817 = vmatpush.bf16.msra.mxu0 0
      %1818 = vmatpush.bf16.msra.mxu0 0
      %1819 = vmatpush.bf16.msra.mxu0 0
      %1820 = vmatpush.bf16.msra.mxu0 %v1811
      %1821 = vmatmul.bf16.gmra.mxu0 %v1808
      %v1822 = vpop.f32.mrf.mxu0
      %v1823 = vadd.f32 0.0, %v1822
      %v1824 = vpop.f32.mrf.mxu0
      %1825 = vdwg.mxu0
      %v1827 = vunpack.c.l.b16 %v1478
      %v1828 = vpack.c.b16 %v1827, %v1827
      %1829 = vrot.lane.b32.xlu0 %v1828, 96
      %v1830 = vpop.permute.xlu0 %1829
      %v1832 = vsel %vm769, %v1726, 0
      %v1835 = vsel %vm1058, %v1830, 0
      %1837 = vmatpush.bf16.msra.mxu0 0
      %1838 = vmatpush.bf16.msra.mxu0 0
      %1839 = vmatpush.bf16.msra.mxu0 0
      %1840 = vmatpush.bf16.msra.mxu0 0
      %1841 = vmatpush.bf16.msra.mxu0 0
      %1842 = vmatpush.bf16.msra.mxu0 0
      %1843 = vmatpush.bf16.msra.mxu0 0
      %1844 = vmatpush.bf16.msra.mxu0 %v1835
      %1845 = vmatmul.bf16.gmra.mxu0 %v1832
      %v1846 = vpop.f32.mrf.mxu0
      %v1847 = vadd.f32 0.0, %v1846
      %v1848 = vpop.f32.mrf.mxu0
      %1849 = vdwg.mxu0
      %v1851 = vunpack.c.l.b16 %v1479
      %v1852 = vpack.c.b16 %v1851, %v1851
      %1853 = vrot.lane.b32.xlu0 %v1852, 96
      %v1854 = vpop.permute.xlu0 %1853
      %v1856 = vsel %vm769, %v1727, 0
      %v1859 = vsel %vm1058, %v1854, 0
      %1861 = vmatpush.bf16.msra.mxu0 0
      %1862 = vmatpush.bf16.msra.mxu0 0
      %1863 = vmatpush.bf16.msra.mxu0 0
      %1864 = vmatpush.bf16.msra.mxu0 0
      %1865 = vmatpush.bf16.msra.mxu0 0
      %1866 = vmatpush.bf16.msra.mxu0 0
      %1867 = vmatpush.bf16.msra.mxu0 0
      %1868 = vmatpush.bf16.msra.mxu0 %v1859
      %1869 = vmatmul.bf16.gmra.mxu0 %v1856
      %v1870 = vpop.f32.mrf.mxu0
      %v1871 = vadd.f32 0.0, %v1870
      %v1872 = vpop.f32.mrf.mxu0
      %1873 = vdwg.mxu0
      %v1875 = vunpack.c.l.b16 %v1480
      %v1876 = vpack.c.b16 %v1875, %v1875
      %1877 = vrot.lane.b32.xlu0 %v1876, 96
      %v1878 = vpop.permute.xlu0 %1877
      %v1880 = vsel %vm769, %v1728, 0
      %v1883 = vsel %vm1058, %v1878, 0
      %1885 = vmatpush.bf16.msra.mxu0 0
      %1886 = vmatpush.bf16.msra.mxu0 0
      %1887 = vmatpush.bf16.msra.mxu0 0
      %1888 = vmatpush.bf16.msra.mxu0 0
      %1889 = vmatpush.bf16.msra.mxu0 0
      %1890 = vmatpush.bf16.msra.mxu0 0
      %1891 = vmatpush.bf16.msra.mxu0 0
      %1892 = vmatpush.bf16.msra.mxu0 %v1883
      %1893 = vmatmul.bf16.gmra.mxu0 %v1880
      %v1894 = vpop.f32.mrf.mxu0
      %v1895 = vadd.f32 0.0, %v1894
      %v1896 = vpop.f32.mrf.mxu0
      %1897 = vdwg.mxu0
      %v1899 = vunpack.c.l.b16 %v1481
      %v1900 = vpack.c.b16 %v1899, %v1899
      %1901 = vrot.lane.b32.xlu0 %v1900, 96
      %v1902 = vpop.permute.xlu0 %1901
      %v1904 = vsel %vm769, %v1729, 0
      %v1907 = vsel %vm1058, %v1902, 0
      %1909 = vmatpush.bf16.msra.mxu0 0
      %1910 = vmatpush.bf16.msra.mxu0 0
      %1911 = vmatpush.bf16.msra.mxu0 0
      %1912 = vmatpush.bf16.msra.mxu0 0
      %1913 = vmatpush.bf16.msra.mxu0 0
      %1914 = vmatpush.bf16.msra.mxu0 0
      %1915 = vmatpush.bf16.msra.mxu0 0
      %1916 = vmatpush.bf16.msra.mxu0 %v1907
      %1917 = vmatmul.bf16.gmra.mxu0 %v1904
      %v1918 = vpop.f32.mrf.mxu0
      %v1919 = vadd.f32 0.0, %v1918
      %v1920 = vpop.f32.mrf.mxu0
      %1921 = vdwg.mxu0
      %1924 = vrot.lane.b32.xlu0 %v1799, 8
      %v1925 = vpop.permute.xlu0 %1924
      %1926 = vrot.lane.b32.xlu0 %v1823, 8
      %v1927 = vpop.permute.xlu0 %1926
      %1932 = vrot.lane.b32.xlu0 %v1847, 16
      %v1933 = vpop.permute.xlu0 %1932
      %1934 = vrot.lane.b32.xlu0 %v1871, 16
      %v1935 = vpop.permute.xlu0 %1934
      %1940 = vrot.lane.b32.xlu0 %v1895, 24
      %v1941 = vpop.permute.xlu0 %1940
      %1942 = vrot.lane.b32.xlu0 %v1919, 24
      %v1943 = vpop.permute.xlu0 %1942
      %v1946 = vsel %vm769, %v1751, %v1925
      %v1947 = vsel %vm769, %v1775, %v1927
      %v1948 = vsel %vm1248, %v1946, %v1933
      %v1949 = vsel %vm1248, %v1947, %v1935
      %v1950 = vsel %vm1251, %v1948, %v1941
      %v1951 = vsel %vm1251, %v1949, %v1943
      %v1952 = vpack.c.bf16 %v1951, %v1950
      %v1953 = vld [vmem:[%s550] sm:$0xf]
      %v1954 = vld [vmem:[%s550 + $0x4] sm:$0xf]
      %v1955 = vld [vmem:[%s550 + $0x8] sm:$0xf]
      %v1956 = vld [vmem:[%s550 + $0xc] sm:$0xf]
      %v1957 = vperm.slane %v666, 6
      %v1962 = vunpack.c.l.b16 %v1953
      %v1963 = vunpack.c.l.b16 %v1954
      %v1964 = vunpack.c.l.b16 %v1955
      %v1965 = vunpack.c.l.b16 %v1956
      %v1966 = vpack.c.b16 %v1963, %v1962
      %v1967 = vpack.c.b16 %v1965, %v1964
      %v1971 = vsel %vm686, %v1952, 0
      %1973 = vmatpush.bf16.msra.mxu0 0
      %1974 = vmatpush.bf16.msra.mxu0 0
      %1975 = vmatpush.bf16.msra.mxu0 0
      %1976 = vmatpush.bf16.msra.mxu0 0
      %1977 = vmatpush.bf16.msra.mxu0 0
      %1978 = vmatpush.bf16.msra.mxu0 0
      %1979 = vmatpush.bf16.msra.mxu0 %v1967
      %1980 = vmatpush.bf16.msra.mxu0 %v1966
      %1981 = vmatmul.bf16.gmra.mxu0 %v1971
      %v1982 = vpop.f32.mrf.mxu0
      %v1983 = vadd.f32 %v1957, %v1982
      %v1984 = vpop.f32.mrf.mxu0
      %v1985 = vadd.f32 %v1957, %v1984
      %1986 = vdwg.mxu0
      %v1987 = vadd.f32 %v1346, %v1983
      %v1988 = vadd.f32 %v1347, %v1985
      %v1989 = vsel %vm686, %v1987, 0.0
      %1990 = vadd.xlane.f32.xlu0 %v1989
      %v1991 = vpop.xlane.xlu0 %1990
      %v1992 = vsel %vm686, %v1988, 0.0
      %1993 = vadd.xlane.f32.xlu0 %v1992
      %v1994 = vpop.xlane.xlu0 %1993
      %v1995 = vmul.f32 %v1991, %v1303
      %v1996 = vmul.f32 %v1994, %v1303
      %v1997 = vsub.f32 %v1987, %v1995
      %v1998 = vsub.f32 %v1988, %v1996
      %v1999 = vmul.f32 %v1997, %v1997
      %v2000 = vmul.f32 %v1998, %v1998
      %v2001 = vsel %vm686, %v1999, 0.0
      %2002 = vadd.xlane.f32.xlu0 %v2001
      %v2003 = vpop.xlane.xlu0 %2002
      %v2004 = vsel %vm686, %v2000, 0.0
      %2005 = vadd.xlane.f32.xlu0 %v2004
      %v2006 = vpop.xlane.xlu0 %2005
      %v2007 = vmul.f32 %v2003, %v1303
      %v2008 = vmul.f32 %v2006, %v1303
      %v2009 = vadd.f32 %v2007, 1e-05
      %v2010 = vadd.f32 %v2008, 1e-05
      %v2011 = vrsqrt.pop %v2009
      %v2012 = vmul.f32 %v2011, %v2009
      %v2013 = vmul.f32 %v2012, %v2011
      %v2014 = vmul.f32 0.5, %v2013
      %v2015 = vsub.f32 1.5, %v2014
      %v2016 = vmul.f32 %v2011, %v2015
      %vm2017 = vweird.f32 %v2009
      %vm2018 = vweird.f32 %v2011
      %vm2019 = vmor %vm2017, %vm2018
      %v2020 = vsel %vm2019, %v2011, %v2016
      %v2021 = vrsqrt.pop %v2010
      %v2022 = vmul.f32 %v2021, %v2010
      %v2023 = vmul.f32 %v2022, %v2021
      %v2024 = vmul.f32 0.5, %v2023
      %v2025 = vsub.f32 1.5, %v2024
      %v2026 = vmul.f32 %v2021, %v2025
      %vm2027 = vweird.f32 %v2010
      %vm2028 = vweird.f32 %v2021
      %vm2029 = vmor %vm2027, %vm2028
      %v2030 = vsel %vm2029, %v2021, %v2026
      %v2031 = vmul.f32 %v1997, %v2020
      %v2032 = vmul.f32 %v1998, %v2030
      %v2033 = vperm.slane %v666, 7
      %v2034 = vmul.f32 %v2031, %v2033
      %v2035 = vmul.f32 %v2032, %v2033
      %v2036 = vperm.slane %v667, 0
      %v2037 = vadd.f32 %v2034, %v2036
      %v2038 = vadd.f32 %v2035, %v2036
      %v2039 = vpack.c.bf16 %v2038, %v2037
      %v2040 = vld [vmem:[%s555] sm:$0xf]
      %v2041 = vld [vmem:[%s555 + $0x4] sm:$0xf]
      %v2042 = vld [vmem:[%s555 + $0x8] sm:$0xf]
      %v2043 = vld [vmem:[%s555 + $0xc] sm:$0xf]
      %v2044 = vperm.slane %v667, 1
      %v2049 = vunpack.c.l.b16 %v2040
      %v2050 = vunpack.c.l.b16 %v2041
      %v2051 = vunpack.c.l.b16 %v2042
      %v2052 = vunpack.c.l.b16 %v2043
      %v2053 = vpack.c.b16 %v2050, %v2049
      %v2054 = vpack.c.b16 %v2052, %v2051
      %v2058 = vsel %vm686, %v2039, 0
      %2060 = vmatpush.bf16.msra.mxu0 0
      %2061 = vmatpush.bf16.msra.mxu0 0
      %2062 = vmatpush.bf16.msra.mxu0 0
      %2063 = vmatpush.bf16.msra.mxu0 0
      %2064 = vmatpush.bf16.msra.mxu0 0
      %2065 = vmatpush.bf16.msra.mxu0 0
      %2066 = vmatpush.bf16.msra.mxu0 %v2054
      %2067 = vmatpush.bf16.msra.mxu0 %v2053
      %2068 = vmatmul.bf16.gmra.mxu0 %v2058
      %v2069 = vpop.f32.mrf.mxu0
      %v2070 = vadd.f32 %v2044, %v2069
      %v2071 = vpop.f32.mrf.mxu0
      %v2072 = vadd.f32 %v2044, %v2071
      %2073 = vdwg.mxu0
      %v2074 = vmul.f32 %v2070, 0.5
      %v2075 = vmul.f32 %v2072, 0.5
      %v2076 = vmul.f32 %v2070, 0.70710677
      %v2077 = vmul.f32 %v2072, 0.70710677
      %v2078 = vmul.f32 %v2076, %v2076
      %v2079 = vmin.f32 16.0, %v2078
      %v2080 = vmul.f32 %v2079, 2.1237322e-06
      %v2081 = vadd.f32 %v2080, 0.00028619796
      %v2082 = vmul.f32 %v2079, %v2081
      %v2083 = vadd.f32 %v2082, 0.0036580483
      %v2084 = vmul.f32 %v2079, %v2083
      %v2085 = vadd.f32 %v2084, 0.05243302
      %v2086 = vmul.f32 %v2079, %v2085
      %v2087 = vadd.f32 %v2086, 0.18741608
      %v2088 = vmul.f32 %v2079, %v2087
      %v2089 = vadd.f32 %v2088, 1.1283791
      %v2090 = vmul.f32 %v2076, %v2089
      %v2091 = vmul.f32 %v2079, 3.8918573e-05
      %v2092 = vadd.f32 %v2091, 0.001143296
      %v2093 = vmul.f32 %v2079, %v2092
      %v2094 = vadd.f32 %v2093, 0.014752088
      %v2095 = vmul.f32 %v2079, %v2094
      %v2096 = vadd.f32 %v2095, 0.112945676
      %v2097 = vmul.f32 %v2079, %v2096
      %v2098 = vadd.f32 %v2097, 0.4994258
      %v2099 = vmul.f32 %v2079, %v2098
      %v2100 = vadd.f32 %v2099, 1.0
      %v2101 = vrcp.pop %v2100
      %v2102 = vmul.f32 %v2100, %v2101
      %v2103 = vsub.f32 1.0, %v2102
      %v2104 = vmul.f32 %v2101, %v2103
      %v2105 = vadd.f32 %v2101, %v2104
      %vm2106 = vweird.f32 %v2100
      %vm2107 = vweird.f32 %v2101
      %vm2108 = vmor %vm2106, %vm2107
      %v2109 = vsel %vm2108, %v2101, %v2105
      %v2110 = vand.u32 2147483647, %v2100
      %vm2111 = vcmp.eq.f32.partialorder %v2110, 8.507059e+37
      %v2112 = vand.u32 %v2100, 2147483648
      %v2113 = vor.u32 1.1754944e-38, %v2112
      %v2114 = vsel %vm2111, %v2113, %v2109
      %v2115 = vmul.f32 %v2090, %v2114
      %v2116 = vmin.f32 %v2115, 1.0
      %v2117 = vmax.f32 %v2116, -1.0
      %v2118 = vmul.f32 %v2077, %v2077
      %v2119 = vmin.f32 16.0, %v2118
      %v2120 = vmul.f32 %v2119, 2.1237322e-06
      %v2121 = vadd.f32 %v2120, 0.00028619796
      %v2122 = vmul.f32 %v2119, %v2121
      %v2123 = vadd.f32 %v2122, 0.0036580483
      %v2124 = vmul.f32 %v2119, %v2123
      %v2125 = vadd.f32 %v2124, 0.05243302
      %v2126 = vmul.f32 %v2119, %v2125
      %v2127 = vadd.f32 %v2126, 0.18741608
      %v2128 = vmul.f32 %v2119, %v2127
      %v2129 = vadd.f32 %v2128, 1.1283791
      %v2130 = vmul.f32 %v2077, %v2129
      %v2131 = vmul.f32 %v2119, 3.8918573e-05
      %v2132 = vadd.f32 %v2131, 0.001143296
      %v2133 = vmul.f32 %v2119, %v2132
      %v2134 = vadd.f32 %v2133, 0.014752088
      %v2135 = vmul.f32 %v2119, %v2134
      %v2136 = vadd.f32 %v2135, 0.112945676
      %v2137 = vmul.f32 %v2119, %v2136
      %v2138 = vadd.f32 %v2137, 0.4994258
      %v2139 = vmul.f32 %v2119, %v2138
      %v2140 = vadd.f32 %v2139, 1.0
      %v2141 = vrcp.pop %v2140
      %v2142 = vmul.f32 %v2140, %v2141
      %v2143 = vsub.f32 1.0, %v2142
      %v2144 = vmul.f32 %v2141, %v2143
      %v2145 = vadd.f32 %v2141, %v2144
      %vm2146 = vweird.f32 %v2140
      %vm2147 = vweird.f32 %v2141
      %vm2148 = vmor %vm2146, %vm2147
      %v2149 = vsel %vm2148, %v2141, %v2145
      %v2150 = vand.u32 2147483647, %v2140
      %vm2151 = vcmp.eq.f32.partialorder %v2150, 8.507059e+37
      %v2152 = vand.u32 %v2140, 2147483648
      %v2153 = vor.u32 1.1754944e-38, %v2152
      %v2154 = vsel %vm2151, %v2153, %v2149
      %v2155 = vmul.f32 %v2130, %v2154
      %v2156 = vmin.f32 %v2155, 1.0
      %v2157 = vmax.f32 %v2156, -1.0
      %v2158 = vadd.f32 %v2117, 1.0
      %v2159 = vadd.f32 %v2157, 1.0
      %v2160 = vmul.f32 %v2074, %v2158
      %v2161 = vmul.f32 %v2075, %v2159
      %v2162 = vpack.c.bf16 %v2161, %v2160
      %v2163 = vld [vmem:[%s560] sm:$0xf]
      %v2164 = vld [vmem:[%s560 + $0x4] sm:$0xf]
      %v2165 = vld [vmem:[%s560 + $0x8] sm:$0xf]
      %v2166 = vld [vmem:[%s560 + $0xc] sm:$0xf]
      %v2167 = vld [vmem:[%s560 + $0x10] sm:$0xf]
      %v2168 = vld [vmem:[%s560 + $0x14] sm:$0xf]
      %v2169 = vld [vmem:[%s560 + $0x18] sm:$0xf]
      %v2170 = vld [vmem:[%s560 + $0x1c] sm:$0xf]
      %v2171 = vperm.slane %v667, 2
      %v2180 = vunpack.c.l.b16 %v2163
      %v2181 = vunpack.c.l.b16 %v2164
      %v2182 = vunpack.c.l.b16 %v2165
      %v2183 = vunpack.c.l.b16 %v2166
      %v2184 = vunpack.c.l.b16 %v2167
      %v2185 = vunpack.c.l.b16 %v2168
      %v2186 = vunpack.c.l.b16 %v2169
      %v2187 = vunpack.c.l.b16 %v2170
      %v2188 = vpack.c.b16 %v2181, %v2180
      %v2189 = vpack.c.b16 %v2183, %v2182
      %v2190 = vpack.c.b16 %v2185, %v2184
      %v2191 = vpack.c.b16 %v2187, %v2186
      %vm2196 = vcmask 523264
      %v2198 = vsel %vm2196, %v2162, 0
      %2200 = vmatpush.bf16.msra.mxu0 0
      %2201 = vmatpush.bf16.msra.mxu0 0
      %2202 = vmatpush.bf16.msra.mxu0 0
      %2203 = vmatpush.bf16.msra.mxu0 0
      %2204 = vmatpush.bf16.msra.mxu0 %v2191
      %2205 = vmatpush.bf16.msra.mxu0 %v2190
      %2206 = vmatpush.bf16.msra.mxu0 %v2189
      %2207 = vmatpush.bf16.msra.mxu0 %v2188
      %2208 = vmatmul.bf16.gmra.mxu0 %v2198
      %v2209 = vpop.f32.mrf.mxu0
      %v2210 = vadd.f32 %v2171, %v2209
      %v2211 = vpop.f32.mrf.mxu0
      %v2212 = vadd.f32 %v2171, %v2211
      %2213 = vdwg.mxu0
      %v2214 = vadd.f32 %v2037, %v2210
      %v2215 = vadd.f32 %v2038, %v2212
      %v2216 = vsel %vm686, %v2214, 0.0
      %2217 = vadd.xlane.f32.xlu0 %v2216
      %v2218 = vpop.xlane.xlu0 %2217
      %v2219 = vsel %vm686, %v2215, 0.0
      %2220 = vadd.xlane.f32.xlu0 %v2219
      %v2221 = vpop.xlane.xlu0 %2220
      %v2222 = vmul.f32 %v2218, %v1303
      %v2223 = vmul.f32 %v2221, %v1303
      %v2224 = vsub.f32 %v2214, %v2222
      %v2225 = vsub.f32 %v2215, %v2223
      %v2226 = vmul.f32 %v2224, %v2224
      %v2227 = vmul.f32 %v2225, %v2225
      %v2228 = vsel %vm686, %v2226, 0.0
      %2229 = vadd.xlane.f32.xlu0 %v2228
      %v2230 = vpop.xlane.xlu0 %2229
      %v2231 = vsel %vm686, %v2227, 0.0
      %2232 = vadd.xlane.f32.xlu0 %v2231
      %v2233 = vpop.xlane.xlu0 %2232
      %v2234 = vmul.f32 %v2230, %v1303
      %v2235 = vmul.f32 %v2233, %v1303
      %v2236 = vadd.f32 %v2234, 1e-05
      %v2237 = vadd.f32 %v2235, 1e-05
      %v2238 = vrsqrt.pop %v2236
      %v2239 = vmul.f32 %v2238, %v2236
      %v2240 = vmul.f32 %v2239, %v2238
      %v2241 = vmul.f32 0.5, %v2240
      %v2242 = vsub.f32 1.5, %v2241
      %v2243 = vmul.f32 %v2238, %v2242
      %vm2244 = vweird.f32 %v2236
      %vm2245 = vweird.f32 %v2238
      %vm2246 = vmor %vm2244, %vm2245
      %v2247 = vsel %vm2246, %v2238, %v2243
      %v2248 = vrsqrt.pop %v2237
      %v2249 = vmul.f32 %v2248, %v2237
      %v2250 = vmul.f32 %v2249, %v2248
      %v2251 = vmul.f32 0.5, %v2250
      %v2252 = vsub.f32 1.5, %v2251
      %v2253 = vmul.f32 %v2248, %v2252
      %vm2254 = vweird.f32 %v2237
      %vm2255 = vweird.f32 %v2248
      %vm2256 = vmor %vm2254, %vm2255
      %v2257 = vsel %vm2256, %v2248, %v2253
      %v2258 = vmul.f32 %v2224, %v2247
      %v2259 = vmul.f32 %v2225, %v2257
      %v2260 = vperm.slane %v667, 3
      %v2261 = vmul.f32 %v2258, %v2260
      %v2262 = vmul.f32 %v2259, %v2260
      %v2263 = vperm.slane %v667, 4
      %v2264 = vadd.f32 %v2261, %v2263
      %v2265 = vadd.f32 %v2262, %v2263
      %2266 = vst.msk [vmem:[#allocation2] sm:$0xff] %vm686, %v2264
      %2267 = vst.msk [vmem:[#allocation2 + $0x8] sm:$0xff] %vm686, %v2265
      %p2268 = scmp.eq.s32.totalorder %s24, 1
      // Predicated region
      $region77: #{bart_caption_forward.6} parent=71 // pred_check
        %p2269 = pneg %p2268
      $region78: #{bart_caption_forward.6} parent=71 // pred_check_branch
        %2271 = sbr.rel (%p2269) target = $region80
      $region79: #{bart_caption_forward.6} parent=71 // pred_region
        %v2272 = vld [vmem:[#allocation2] sm:$0xff]
        %v2273 = vld [vmem:[#allocation2 + $0x8] sm:$0xff]
        %v2274 = vpack.c.bf16 %v2272, %v2272
        %v2275 = vpack.c.bf16 %v2273, %v2273
        %vm2276 = vcmask 257024
        %2277 = vst.msk [vmem:[%s13] sm:$0xf] %vm2276, %v2274
        %2278 = vst.msk [vmem:[%s13 + $0x4] sm:$0xf] %vm2276, %v2275
      $region80: #{bart_caption_forward.6} parent=71 // pred_fallthru
        _
      // Predicated region
      $region81: #{bart_caption_forward.6} parent=71 // pred_check
        %p2279 = pneg %p350
      $region82: #{bart_caption_forward.6} parent=71 // pred_check_branch
        %2281 = sbr.rel (%p2279) target = $region84
      $region83: #{bart_caption_forward.6} parent=71 // pred_region
        _
      $region84: #{bart_caption_forward.6} parent=71 // pred_fallthru
        _
      // Predicated region
      $region85: #{bart_caption_forward.6} parent=71 // pred_check
        %p2282 = pneg %p350
      $region86: #{bart_caption_forward.6} parent=71 // pred_check_branch
        %2284 = sbr.rel (%p2282) target = $region88
      $region87: #{bart_caption_forward.6} parent=71 // pred_region
        _
      $region88: #{bart_caption_forward.6} parent=71 // pred_fallthru
        _
    $region72: #{bart_caption_forward.6} parent=5 // pred_fallthru
      _
    %p2285 = scmp.le.s32.totalorder 2, %s19
    // Predicated region
    $region89: #{bart_caption_forward.6} parent=5 // pred_check
      %p2286 = pneg %p2285
    $region90: #{bart_caption_forward.6} parent=5 // pred_check_branch
      %2288 = sbr.rel (%p2286) target = $region92
    $region91: #{bart_caption_forward.6} parent=5 // pred_region
      %s2289 = ssub.s32 %s19, 2
    $region92: #{bart_caption_forward.6} parent=5 // pred_fallthru
      _
  $region6: #{bart_caption_forward.6} parent=0 // loop_footer
    %s23 = sadd.s32 1, %s19
  $region7: #{bart_caption_forward.6} parent=0 // loop_footer_branch
    %18 = sbr.rel target = $region3
  $region8: #{bart_caption_forward.6} parent=0 // loop_exit
    _

// kernel: bart_caption_forward.4
$region0: #{bart_caption_forward.4}
  #allocation0 [shape = 'u32[]', space=smem, size = 0x4, offset = 0x4, fixed_abs, tag = 'smem constant byte address 0x4 - core index']
  #allocation1 [shape = 'u32[72,128]{1,0:T(1,128)}', space=vmem, size = 0x9000, scoped, tag = 'internal scratch']
  #allocation2 [shape = 'f32[2,34,16]{2,1,0:T(8,128)}', space=vmem, size = 0xa000, scoped, tag = 'scratch operand']
  #allocation3 [shape = 'f32[2,34,32]{2,1,0:T(8,128)}', space=vmem, size = 0xa000, scoped, tag = 'scratch operand']
  #allocation4 [shape = 'f32[2,18,32]{2,1,0:T(8,128)}', space=vmem, size = 0x6000, scoped, tag = 'scratch operand']
  %s0 = inlined_call_operand.vmem [shape: f32[2,32,16], index: 0, kind: input, shape index: {}]
  %s1 = inlined_call_operand.vmem [shape: bf16[48,32], index: 1, kind: input, shape index: {}]
  %s2 = inlined_call_operand.vmem [shape: bf16[96,32], index: 2, kind: input, shape index: {}]
  %s3 = inlined_call_operand.vmem [shape: bf16[96,32], index: 3, kind: input, shape index: {}]
  %s4 = inlined_call_operand.vmem [shape: bf16[32,32], index: 4, kind: input, shape index: {}]
  %s5 = inlined_call_operand.vmem [shape: f32[8,32], index: 5, kind: input, shape index: {}]
  %s6 = inlined_call_operand.vmem [shape: f32[8,32], index: 6, kind: input, shape index: {}]
  %s7 = inlined_call_operand.vmem [shape: f32[5,128], index: 7, kind: input, shape index: {}]
  %s8 = inlined_call_operand.vmem [shape: f32[16,32], index: 8, kind: output, shape index: {}]
  %s9 = sld [smem:[#allocation0]]
  $region42: #{bart_caption_forward.4} parent=0
    _
  %s11 = ssub.s32 1, %s9
  %s12 = scalar_select 0, %s11, %s9
  // Predicated region
  $region2: #{bart_caption_forward.4} parent=0 // pred_check
    _
  $region3: #{bart_caption_forward.4} parent=0 // pred_check_branch
    %14 = sbr.rel (0) target = $region5
  $region4: #{bart_caption_forward.4} parent=0 // pred_region
    _
  $region5: #{bart_caption_forward.4} parent=0 // pred_fallthru
    _
  // Predicated region
  $region6: #{bart_caption_forward.4} parent=0 // pred_check
    _
  $region7: #{bart_caption_forward.4} parent=0 // pred_check_branch
    %16 = sbr.rel (0) target = $region9
  $region8: #{bart_caption_forward.4} parent=0 // pred_region
    _
  $region9: #{bart_caption_forward.4} parent=0 // pred_fallthru
    _
  // Predicated region
  $region10: #{bart_caption_forward.4} parent=0 // pred_check
    _
  $region11: #{bart_caption_forward.4} parent=0 // pred_check_branch
    %18 = sbr.rel (0) target = $region13
  $region12: #{bart_caption_forward.4} parent=0 // pred_region
    _
  $region13: #{bart_caption_forward.4} parent=0 // pred_fallthru
    _
  // Predicated region
  $region14: #{bart_caption_forward.4} parent=0 // pred_check
    _
  $region15: #{bart_caption_forward.4} parent=0 // pred_check_branch
    %20 = sbr.rel (0) target = $region17
  $region16: #{bart_caption_forward.4} parent=0 // pred_region
    _
  $region17: #{bart_caption_forward.4} parent=0 // pred_fallthru
    _
  // Predicated region
  $region18: #{bart_caption_forward.4} parent=0 // pred_check
    _
  $region19: #{bart_caption_forward.4} parent=0 // pred_check_branch
    %22 = sbr.rel (0) target = $region21
  $region20: #{bart_caption_forward.4} parent=0 // pred_region
    _
  $region21: #{bart_caption_forward.4} parent=0 // pred_fallthru
    _
  // Predicated region
  $region22: #{bart_caption_forward.4} parent=0 // pred_check
    _
  $region23: #{bart_caption_forward.4} parent=0 // pred_check_branch
    %24 = sbr.rel (0) target = $region25
  $region24: #{bart_caption_forward.4} parent=0 // pred_region
    _
  $region25: #{bart_caption_forward.4} parent=0 // pred_fallthru
    _
  // Predicated region
  $region26: #{bart_caption_forward.4} parent=0 // pred_check
    _
  $region27: #{bart_caption_forward.4} parent=0 // pred_check_branch
    %26 = sbr.rel (0) target = $region29
  $region28: #{bart_caption_forward.4} parent=0 // pred_region
    _
  $region29: #{bart_caption_forward.4} parent=0 // pred_fallthru
    _
  // Predicated region
  $region30: #{bart_caption_forward.4} parent=0 // pred_check
    _
  $region31: #{bart_caption_forward.4} parent=0 // pred_check_branch
    %28 = sbr.rel (0) target = $region33
  $region32: #{bart_caption_forward.4} parent=0 // pred_region
    _
  $region33: #{bart_caption_forward.4} parent=0 // pred_fallthru
    _
  %v30 = vld [vmem:[%s7] sm:$0x1f]
  %vm31 = vcmask 130048
  %32 = vst.msk [vmem:[#allocation2] sm:$0xff] %vm31, 0.0
  %33 = vst.msk [vmem:[#allocation2 + $0x8] sm:$0xff] %vm31, 0.0
  %34 = vst.msk [vmem:[#allocation2 + $0x10] sm:$0xff] %vm31, 0.0
  %35 = vst.msk [vmem:[#allocation2 + $0x18] sm:$0xff] %vm31, 0.0
  %vm36 = vcmask 123904
  %37 = vst.msk [vmem:[#allocation2 + $0x20] sm:$0x3] %vm36, 0.0
  %38 = vst.msk [vmem:[#allocation2 + $0x28] sm:$0xff] %vm31, 0.0
  %39 = vst.msk [vmem:[#allocation2 + $0x30] sm:$0xff] %vm31, 0.0
  %40 = vst.msk [vmem:[#allocation2 + $0x38] sm:$0xff] %vm31, 0.0
  %41 = vst.msk [vmem:[#allocation2 + $0x40] sm:$0xff] %vm31, 0.0
  %42 = vst.msk [vmem:[#allocation2 + $0x48] sm:$0x3] %vm36, 0.0
  %v43 = vld [vmem:[%s0] sm:$0xff]
  %v44 = vld [vmem:[%s0 + $0x8] sm:$0xff]
  %v45 = vld [vmem:[%s0 + $0x10] sm:$0xff]
  %v46 = vld [vmem:[%s0 + $0x18] sm:$0xff]
  %v47 = vld [vmem:[%s0 + $0x20] sm:$0xff]
  %v48 = vld [vmem:[%s0 + $0x28] sm:$0xff]
  %v49 = vld [vmem:[%s0 + $0x30] sm:$0xff]
  %v50 = vld [vmem:[%s0 + $0x38] sm:$0xff]
  %51 = vst.msk [vmem:[#allocation2 + $0x1] sm:$0xff] %vm31, %v43
  %52 = vst.msk [vmem:[#allocation2 + $0x9] sm:$0xff] %vm31, %v44
  %53 = vst.msk [vmem:[#allocation2 + $0x11] sm:$0xff] %vm31, %v45
  %54 = vst.msk [vmem:[#allocation2 + $0x19] sm:$0xff] %vm31, %v46
  %55 = vst.msk [vmem:[#allocation2 + $0x29] sm:$0xff] %vm31, %v47
  %56 = vst.msk [vmem:[#allocation2 + $0x31] sm:$0xff] %vm31, %v48
  %57 = vst.msk [vmem:[#allocation2 + $0x39] sm:$0xff] %vm31, %v49
  %58 = vst.msk [vmem:[#allocation2 + $0x41] sm:$0xff] %vm31, %v50
  %v59 = vld [vmem:[#allocation2] sm:$0xff]
  %v60 = vld [vmem:[#allocation2 + $0x8] sm:$0xff]
  %v61 = vld [vmem:[#allocation2 + $0x10] sm:$0xff]
  %v62 = vld [vmem:[#allocation2 + $0x18] sm:$0xff]
  %v63 = vld [vmem:[#allocation2 + $0x28] sm:$0xff]
  %v64 = vld [vmem:[#allocation2 + $0x30] sm:$0xff]
  %v65 = vld [vmem:[#allocation2 + $0x38] sm:$0xff]
  %v66 = vld [vmem:[#allocation2 + $0x40] sm:$0xff]
  %v67 = vld [vmem:[%s1] sm:$0xf]
  %v68 = vld [vmem:[%s1 + $0x4] sm:$0xf]
  %v69 = vpack.c.bf16 %v60, %v59
  %v70 = vpack.c.bf16 %v62, %v61
  %v71 = vpack.c.bf16 %v64, %v63
  %v72 = vpack.c.bf16 %v66, %v65
  %v73 = vld [vmem:[#allocation2 + $0x1] sm:$0xff]
  %v74 = vld [vmem:[#allocation2 + $0x9] sm:$0xff]
  %v75 = vld [vmem:[#allocation2 + $0x11] sm:$0xff]
  %v76 = vld [vmem:[#allocation2 + $0x19] sm:$0xff]
  %v77 = vld [vmem:[#allocation2 + $0x29] sm:$0xff]
  %v78 = vld [vmem:[#allocation2 + $0x31] sm:$0xff]
  %v79 = vld [vmem:[#allocation2 + $0x39] sm:$0xff]
  %v80 = vld [vmem:[#allocation2 + $0x41] sm:$0xff]
  %v81 = vld [vmem:[%s1 + $0x8] sm:$0xf]
  %v82 = vld [vmem:[%s1 + $0xc] sm:$0xf]
  %v83 = vpack.c.bf16 %v74, %v73
  %v84 = vpack.c.bf16 %v76, %v75
  %v85 = vpack.c.bf16 %v78, %v77
  %v86 = vpack.c.bf16 %v80, %v79
  %v89 = vunpack.c.l.b16 %v81
  %v90 = vunpack.c.l.b16 %v82
  %v91 = vpack.c.b16 %v90, %v89
  %v94 = vsel %vm31, %v83, 0
  %v97 = vsel %vm31, %v84, 0
  %v100 = vsel %vm31, %v85, 0
  %v103 = vsel %vm31, %v86, 0
  %105 = vmatpush.bf16.msra.mxu0 0
  %106 = vmatpush.bf16.msra.mxu0 0
  %107 = vmatpush.bf16.msra.mxu0 0
  %108 = vmatpush.bf16.msra.mxu0 0
  %109 = vmatpush.bf16.msra.mxu0 0
  %110 = vmatpush.bf16.msra.mxu0 0
  %111 = vmatpush.bf16.msra.mxu0 0
  %112 = vmatpush.bf16.msra.mxu0 %v91
  %113 = vmatmul.bf16.gmra.mxu0 %v94
  %v114 = vpop.f32.mrf.mxu0
  %v115 = vadd.f32 0.0, %v114
  %v116 = vpop.f32.mrf.mxu0
  %v117 = vadd.f32 0.0, %v116
  %118 = vmatmul.bf16.gmra.mxu0 %v97
  %v119 = vpop.f32.mrf.mxu0
  %v120 = vadd.f32 0.0, %v119
  %v121 = vpop.f32.mrf.mxu0
  %v122 = vadd.f32 0.0, %v121
  %123 = vmatmul.bf16.gmra.mxu0 %v100
  %v124 = vpop.f32.mrf.mxu0
  %v125 = vadd.f32 0.0, %v124
  %v126 = vpop.f32.mrf.mxu0
  %v127 = vadd.f32 0.0, %v126
  %128 = vmatmul.bf16.gmra.mxu0 %v103
  %v129 = vpop.f32.mrf.mxu0
  %v130 = vadd.f32 0.0, %v129
  %v131 = vpop.f32.mrf.mxu0
  %v132 = vadd.f32 0.0, %v131
  %133 = vdwg.mxu0
  %v136 = vunpack.c.l.b16 %v67
  %v137 = vunpack.c.l.b16 %v68
  %v138 = vpack.c.b16 %v137, %v136
  %v141 = vsel %vm31, %v69, 0
  %v144 = vsel %vm31, %v70, 0
  %v147 = vsel %vm31, %v71, 0
  %v150 = vsel %vm31, %v72, 0
  %152 = vmatpush.bf16.msra.mxu0 0
  %153 = vmatpush.bf16.msra.mxu0 0
  %154 = vmatpush.bf16.msra.mxu0 0
  %155 = vmatpush.bf16.msra.mxu0 0
  %156 = vmatpush.bf16.msra.mxu0 0
  %157 = vmatpush.bf16.msra.mxu0 0
  %158 = vmatpush.bf16.msra.mxu0 0
  %159 = vmatpush.bf16.msra.mxu0 %v138
  %160 = vmatmul.bf16.gmra.mxu0 %v141
  %v161 = vpop.f32.mrf.mxu0
  %v162 = vadd.f32 %v115, %v161
  %v163 = vpop.f32.mrf.mxu0
  %v164 = vadd.f32 %v117, %v163
  %165 = vmatmul.bf16.gmra.mxu0 %v144
  %v166 = vpop.f32.mrf.mxu0
  %v167 = vadd.f32 %v120, %v166
  %v168 = vpop.f32.mrf.mxu0
  %v169 = vadd.f32 %v122, %v168
  %170 = vmatmul.bf16.gmra.mxu0 %v147
  %v171 = vpop.f32.mrf.mxu0
  %v172 = vadd.f32 %v125, %v171
  %v173 = vpop.f32.mrf.mxu0
  %v174 = vadd.f32 %v127, %v173
  %175 = vmatmul.bf16.gmra.mxu0 %v150
  %v176 = vpop.f32.mrf.mxu0
  %v177 = vadd.f32 %v130, %v176
  %v178 = vpop.f32.mrf.mxu0
  %v179 = vadd.f32 %v132, %v178
  %180 = vdwg.mxu0
  %v181 = vld [vmem:[#allocation2 + $0x2] sm:$0xff]
  %v182 = vld [vmem:[#allocation2 + $0xa] sm:$0xff]
  %v183 = vld [vmem:[#allocation2 + $0x12] sm:$0xff]
  %v184 = vld [vmem:[#allocation2 + $0x1a] sm:$0xff]
  %v185 = vld [vmem:[#allocation2 + $0x2a] sm:$0xff]
  %v186 = vld [vmem:[#allocation2 + $0x32] sm:$0xff]
  %v187 = vld [vmem:[#allocation2 + $0x3a] sm:$0xff]
  %v188 = vld [vmem:[#allocation2 + $0x42] sm:$0xff]
  %v189 = vld [vmem:[%s1 + $0x10] sm:$0xf]
  %v190 = vld [vmem:[%s1 + $0x14] sm:$0xf]
  %v191 = vpack.c.bf16 %v182, %v181
  %v192 = vpack.c.bf16 %v184, %v183
  %v193 = vpack.c.bf16 %v186, %v185
  %v194 = vpack.c.bf16 %v188, %v187
  %v197 = vunpack.c.l.b16 %v189
  %v198 = vunpack.c.l.b16 %v190
  %v199 = vpack.c.b16 %v198, %v197
  %v202 = vsel %vm31, %v191, 0
  %v205 = vsel %vm31, %v192, 0
  %v208 = vsel %vm31, %v193, 0
  %v211 = vsel %vm31, %v194, 0
  %213 = vmatpush.bf16.msra.mxu0 0
  %214 = vmatpush.bf16.msra.mxu0 0
  %215 = vmatpush.bf16.msra.mxu0 0
  %216 = vmatpush.bf16.msra.mxu0 0
  %217 = vmatpush.bf16.msra.mxu0 0
  %218 = vmatpush.bf16.msra.mxu0 0
  %219 = vmatpush.bf16.msra.mxu0 0
  %220 = vmatpush.bf16.msra.mxu0 %v199
  %221 = vmatmul.bf16.gmra.mxu0 %v202
  %v222 = vpop.f32.mrf.mxu0
  %v223 = vadd.f32 0.0, %v222
  %v224 = vpop.f32.mrf.mxu0
  %v225 = vadd.f32 0.0, %v224
  %226 = vmatmul.bf16.gmra.mxu0 %v205
  %v227 = vpop.f32.mrf.mxu0
  %v228 = vadd.f32 0.0, %v227
  %v229 = vpop.f32.mrf.mxu0
  %v230 = vadd.f32 0.0, %v229
  %231 = vmatmul.bf16.gmra.mxu0 %v208
  %v232 = vpop.f32.mrf.mxu0
  %v233 = vadd.f32 0.0, %v232
  %v234 = vpop.f32.mrf.mxu0
  %v235 = vadd.f32 0.0, %v234
  %236 = vmatmul.bf16.gmra.mxu0 %v211
  %v237 = vpop.f32.mrf.mxu0
  %v238 = vadd.f32 0.0, %v237
  %v239 = vpop.f32.mrf.mxu0
  %v240 = vadd.f32 0.0, %v239
  %241 = vdwg.mxu0
  %v242 = vadd.f32 %v162, %v223
  %v243 = vadd.f32 %v164, %v225
  %v244 = vadd.f32 %v167, %v228
  %v245 = vadd.f32 %v169, %v230
  %v246 = vadd.f32 %v172, %v233
  %v247 = vadd.f32 %v174, %v235
  %v248 = vadd.f32 %v177, %v238
  %v249 = vadd.f32 %v179, %v240
  %v250 = vperm.slane %v30, 0
  %v251 = vadd.f32 %v242, %v250
  %v252 = vadd.f32 %v243, %v250
  %v253 = vadd.f32 %v244, %v250
  %v254 = vadd.f32 %v245, %v250
  %v255 = vadd.f32 %v246, %v250
  %v256 = vadd.f32 %v247, %v250
  %v257 = vadd.f32 %v248, %v250
  %v258 = vadd.f32 %v249, %v250
  %v259 = vmul.f32 %v251, 0.5
  %v260 = vmul.f32 %v252, 0.5
  %v261 = vmul.f32 %v253, 0.5
  %v262 = vmul.f32 %v254, 0.5
  %v263 = vmul.f32 %v255, 0.5
  %v264 = vmul.f32 %v256, 0.5
  %v265 = vmul.f32 %v257, 0.5
  %v266 = vmul.f32 %v258, 0.5
  %v267 = vmul.f32 %v251, 0.70710677
  %v268 = vmul.f32 %v252, 0.70710677
  %v269 = vmul.f32 %v253, 0.70710677
  %v270 = vmul.f32 %v254, 0.70710677
  %v271 = vmul.f32 %v255, 0.70710677
  %v272 = vmul.f32 %v256, 0.70710677
  %v273 = vmul.f32 %v257, 0.70710677
  %v274 = vmul.f32 %v258, 0.70710677
  %v275 = vmul.f32 %v267, %v267
  %v276 = vmin.f32 16.0, %v275
  %v277 = vmul.f32 %v276, 2.1237322e-06
  %v278 = vadd.f32 %v277, 0.00028619796
  %v279 = vmul.f32 %v276, %v278
  %v280 = vadd.f32 %v279, 0.0036580483
  %v281 = vmul.f32 %v276, %v280
  %v282 = vadd.f32 %v281, 0.05243302
  %v283 = vmul.f32 %v276, %v282
  %v284 = vadd.f32 %v283, 0.18741608
  %v285 = vmul.f32 %v276, %v284
  %v286 = vadd.f32 %v285, 1.1283791
  %v287 = vmul.f32 %v267, %v286
  %v288 = vmul.f32 %v276, 3.8918573e-05
  %v289 = vadd.f32 %v288, 0.001143296
  %v290 = vmul.f32 %v276, %v289
  %v291 = vadd.f32 %v290, 0.014752088
  %v292 = vmul.f32 %v276, %v291
  %v293 = vadd.f32 %v292, 0.112945676
  %v294 = vmul.f32 %v276, %v293
  %v295 = vadd.f32 %v294, 0.4994258
  %v296 = vmul.f32 %v276, %v295
  %v297 = vadd.f32 %v296, 1.0
  %v298 = vrcp.pop %v297
  %v299 = vmul.f32 %v297, %v298
  %v300 = vsub.f32 1.0, %v299
  %v301 = vmul.f32 %v298, %v300
  %v302 = vadd.f32 %v298, %v301
  %vm303 = vweird.f32 %v297
  %vm304 = vweird.f32 %v298
  %vm305 = vmor %vm303, %vm304
  %v306 = vsel %vm305, %v298, %v302
  %v307 = vand.u32 2147483647, %v297
  %vm308 = vcmp.eq.f32.partialorder %v307, 8.507059e+37
  %v309 = vand.u32 %v297, 2147483648
  %v310 = vor.u32 1.1754944e-38, %v309
  %v311 = vsel %vm308, %v310, %v306
  %v312 = vmul.f32 %v287, %v311
  %v313 = vmin.f32 %v312, 1.0
  %v314 = vmax.f32 %v313, -1.0
  %v315 = vmul.f32 %v268, %v268
  %v316 = vmin.f32 16.0, %v315
  %v317 = vmul.f32 %v316, 2.1237322e-06
  %v318 = vadd.f32 %v317, 0.00028619796
  %v319 = vmul.f32 %v316, %v318
  %v320 = vadd.f32 %v319, 0.0036580483
  %v321 = vmul.f32 %v316, %v320
  %v322 = vadd.f32 %v321, 0.05243302
  %v323 = vmul.f32 %v316, %v322
  %v324 = vadd.f32 %v323, 0.18741608
  %v325 = vmul.f32 %v316, %v324
  %v326 = vadd.f32 %v325, 1.1283791
  %v327 = vmul.f32 %v268, %v326
  %v328 = vmul.f32 %v316, 3.8918573e-05
  %v329 = vadd.f32 %v328, 0.001143296
  %v330 = vmul.f32 %v316, %v329
  %v331 = vadd.f32 %v330, 0.014752088
  %v332 = vmul.f32 %v316, %v331
  %v333 = vadd.f32 %v332, 0.112945676
  %v334 = vmul.f32 %v316, %v333
  %v335 = vadd.f32 %v334, 0.4994258
  %v336 = vmul.f32 %v316, %v335
  %v337 = vadd.f32 %v336, 1.0
  %v338 = vrcp.pop %v337
  %v339 = vmul.f32 %v337, %v338
  %v340 = vsub.f32 1.0, %v339
  %v341 = vmul.f32 %v338, %v340
  %v342 = vadd.f32 %v338, %v341
  %vm343 = vweird.f32 %v337
  %vm344 = vweird.f32 %v338
  %vm345 = vmor %vm343, %vm344
  %v346 = vsel %vm345, %v338, %v342
  %v347 = vand.u32 2147483647, %v337
  %vm348 = vcmp.eq.f32.partialorder %v347, 8.507059e+37
  %v349 = vand.u32 %v337, 2147483648
  %v350 = vor.u32 1.1754944e-38, %v349
  %v351 = vsel %vm348, %v350, %v346
  %v352 = vmul.f32 %v327, %v351
  %v353 = vmin.f32 %v352, 1.0
  %v354 = vmax.f32 %v353, -1.0
  %v355 = vmul.f32 %v269, %v269
  %v356 = vmin.f32 16.0, %v355
  %v357 = vmul.f32 %v356, 2.1237322e-06
  %v358 = vadd.f32 %v357, 0.00028619796
  %v359 = vmul.f32 %v356, %v358
  %v360 = vadd.f32 %v359, 0.0036580483
  %v361 = vmul.f32 %v356, %v360
  %v362 = vadd.f32 %v361, 0.05243302
  %v363 = vmul.f32 %v356, %v362
  %v364 = vadd.f32 %v363, 0.18741608
  %v365 = vmul.f32 %v356, %v364
  %v366 = vadd.f32 %v365, 1.1283791
  %v367 = vmul.f32 %v269, %v366
  %v368 = vmul.f32 %v356, 3.8918573e-05
  %v369 = vadd.f32 %v368, 0.001143296
  %v370 = vmul.f32 %v356, %v369
  %v371 = vadd.f32 %v370, 0.014752088
  %v372 = vmul.f32 %v356, %v371
  %v373 = vadd.f32 %v372, 0.112945676
  %v374 = vmul.f32 %v356, %v373
  %v375 = vadd.f32 %v374, 0.4994258
  %v376 = vmul.f32 %v356, %v375
  %v377 = vadd.f32 %v376, 1.0
  %v378 = vrcp.pop %v377
  %v379 = vmul.f32 %v377, %v378
  %v380 = vsub.f32 1.0, %v379
  %v381 = vmul.f32 %v378, %v380
  %v382 = vadd.f32 %v378, %v381
  %vm383 = vweird.f32 %v377
  %vm384 = vweird.f32 %v378
  %vm385 = vmor %vm383, %vm384
  %v386 = vsel %vm385, %v378, %v382
  %v387 = vand.u32 2147483647, %v377
  %vm388 = vcmp.eq.f32.partialorder %v387, 8.507059e+37
  %v389 = vand.u32 %v377, 2147483648
  %v390 = vor.u32 1.1754944e-38, %v389
  %v391 = vsel %vm388, %v390, %v386
  %v392 = vmul.f32 %v367, %v391
  %v393 = vmin.f32 %v392, 1.0
  %v394 = vmax.f32 %v393, -1.0
  %v395 = vmul.f32 %v270, %v270
  %v396 = vmin.f32 16.0, %v395
  %v397 = vmul.f32 %v396, 2.1237322e-06
  %v398 = vadd.f32 %v397, 0.00028619796
  %v399 = vmul.f32 %v396, %v398
  %v400 = vadd.f32 %v399, 0.0036580483
  %v401 = vmul.f32 %v396, %v400
  %v402 = vadd.f32 %v401, 0.05243302
  %v403 = vmul.f32 %v396, %v402
  %v404 = vadd.f32 %v403, 0.18741608
  %v405 = vmul.f32 %v396, %v404
  %v406 = vadd.f32 %v405, 1.1283791
  %v407 = vmul.f32 %v270, %v406
  %v408 = vmul.f32 %v396, 3.8918573e-05
  %v409 = vadd.f32 %v408, 0.001143296
  %v410 = vmul.f32 %v396, %v409
  %v411 = vadd.f32 %v410, 0.014752088
  %v412 = vmul.f32 %v396, %v411
  %v413 = vadd.f32 %v412, 0.112945676
  %v414 = vmul.f32 %v396, %v413
  %v415 = vadd.f32 %v414, 0.4994258
  %v416 = vmul.f32 %v396, %v415
  %v417 = vadd.f32 %v416, 1.0
  %v418 = vrcp.pop %v417
  %v419 = vmul.f32 %v417, %v418
  %v420 = vsub.f32 1.0, %v419
  %v421 = vmul.f32 %v418, %v420
  %v422 = vadd.f32 %v418, %v421
  %vm423 = vweird.f32 %v417
  %vm424 = vweird.f32 %v418
  %vm425 = vmor %vm423, %vm424
  %v426 = vsel %vm425, %v418, %v422
  %v427 = vand.u32 2147483647, %v417
  %vm428 = vcmp.eq.f32.partialorder %v427, 8.507059e+37
  %v429 = vand.u32 %v417, 2147483648
  %v430 = vor.u32 1.1754944e-38, %v429
  %v431 = vsel %vm428, %v430, %v426
  %v432 = vmul.f32 %v407, %v431
  %v433 = vmin.f32 %v432, 1.0
  %v434 = vmax.f32 %v433, -1.0
  %v435 = vmul.f32 %v271, %v271
  %v436 = vmin.f32 16.0, %v435
  %v437 = vmul.f32 %v436, 2.1237322e-06
  %v438 = vadd.f32 %v437, 0.00028619796
  %v439 = vmul.f32 %v436, %v438
  %v440 = vadd.f32 %v439, 0.0036580483
  %v441 = vmul.f32 %v436, %v440
  %v442 = vadd.f32 %v441, 0.05243302
  %v443 = vmul.f32 %v436, %v442
  %v444 = vadd.f32 %v443, 0.18741608
  %v445 = vmul.f32 %v436, %v444
  %v446 = vadd.f32 %v445, 1.1283791
  %v447 = vmul.f32 %v271, %v446
  %v448 = vmul.f32 %v436, 3.8918573e-05
  %v449 = vadd.f32 %v448, 0.001143296
  %v450 = vmul.f32 %v436, %v449
  %v451 = vadd.f32 %v450, 0.014752088
  %v452 = vmul.f32 %v436, %v451
  %v453 = vadd.f32 %v452, 0.112945676
  %v454 = vmul.f32 %v436, %v453
  %v455 = vadd.f32 %v454, 0.4994258
  %v456 = vmul.f32 %v436, %v455
  %v457 = vadd.f32 %v456, 1.0
  %v458 = vrcp.pop %v457
  %v459 = vmul.f32 %v457, %v458
  %v460 = vsub.f32 1.0, %v459
  %v461 = vmul.f32 %v458, %v460
  %v462 = vadd.f32 %v458, %v461
  %vm463 = vweird.f32 %v457
  %vm464 = vweird.f32 %v458
  %vm465 = vmor %vm463, %vm464
  %v466 = vsel %vm465, %v458, %v462
  %v467 = vand.u32 2147483647, %v457
  %vm468 = vcmp.eq.f32.partialorder %v467, 8.507059e+37
  %v469 = vand.u32 %v457, 2147483648
  %v470 = vor.u32 1.1754944e-38, %v469
  %v471 = vsel %vm468, %v470, %v466
  %v472 = vmul.f32 %v447, %v471
  %v473 = vmin.f32 %v472, 1.0
  %v474 = vmax.f32 %v473, -1.0
  %v475 = vmul.f32 %v272, %v272
  %v476 = vmin.f32 16.0, %v475
  %v477 = vmul.f32 %v476, 2.1237322e-06
  %v478 = vadd.f32 %v477, 0.00028619796
  %v479 = vmul.f32 %v476, %v478
  %v480 = vadd.f32 %v479, 0.0036580483
  %v481 = vmul.f32 %v476, %v480
  %v482 = vadd.f32 %v481, 0.05243302
  %v483 = vmul.f32 %v476, %v482
  %v484 = vadd.f32 %v483, 0.18741608
  %v485 = vmul.f32 %v476, %v484
  %v486 = vadd.f32 %v485, 1.1283791
  %v487 = vmul.f32 %v272, %v486
  %v488 = vmul.f32 %v476, 3.8918573e-05
  %v489 = vadd.f32 %v488, 0.001143296
  %v490 = vmul.f32 %v476, %v489
  %v491 = vadd.f32 %v490, 0.014752088
  %v492 = vmul.f32 %v476, %v491
  %v493 = vadd.f32 %v492, 0.112945676
  %v494 = vmul.f32 %v476, %v493
  %v495 = vadd.f32 %v494, 0.4994258
  %v496 = vmul.f32 %v476, %v495
  %v497 = vadd.f32 %v496, 1.0
  %v498 = vrcp.pop %v497
  %v499 = vmul.f32 %v497, %v498
  %v500 = vsub.f32 1.0, %v499
  %v501 = vmul.f32 %v498, %v500
  %v502 = vadd.f32 %v498, %v501
  %vm503 = vweird.f32 %v497
  %vm504 = vweird.f32 %v498
  %vm505 = vmor %vm503, %vm504
  %v506 = vsel %vm505, %v498, %v502
  %v507 = vand.u32 2147483647, %v497
  %vm508 = vcmp.eq.f32.partialorder %v507, 8.507059e+37
  %v509 = vand.u32 %v497, 2147483648
  %v510 = vor.u32 1.1754944e-38, %v509
  %v511 = vsel %vm508, %v510, %v506
  %v512 = vmul.f32 %v487, %v511
  %v513 = vmin.f32 %v512, 1.0
  %v514 = vmax.f32 %v513, -1.0
  %v515 = vmul.f32 %v273, %v273
  %v516 = vmin.f32 16.0, %v515
  %v517 = vmul.f32 %v516, 2.1237322e-06
  %v518 = vadd.f32 %v517, 0.00028619796
  %v519 = vmul.f32 %v516, %v518
  %v520 = vadd.f32 %v519, 0.0036580483
  %v521 = vmul.f32 %v516, %v520
  %v522 = vadd.f32 %v521, 0.05243302
  %v523 = vmul.f32 %v516, %v522
  %v524 = vadd.f32 %v523, 0.18741608
  %v525 = vmul.f32 %v516, %v524
  %v526 = vadd.f32 %v525, 1.1283791
  %v527 = vmul.f32 %v273, %v526
  %v528 = vmul.f32 %v516, 3.8918573e-05
  %v529 = vadd.f32 %v528, 0.001143296
  %v530 = vmul.f32 %v516, %v529
  %v531 = vadd.f32 %v530, 0.014752088
  %v532 = vmul.f32 %v516, %v531
  %v533 = vadd.f32 %v532, 0.112945676
  %v534 = vmul.f32 %v516, %v533
  %v535 = vadd.f32 %v534, 0.4994258
  %v536 = vmul.f32 %v516, %v535
  %v537 = vadd.f32 %v536, 1.0
  %v538 = vrcp.pop %v537
  %v539 = vmul.f32 %v537, %v538
  %v540 = vsub.f32 1.0, %v539
  %v541 = vmul.f32 %v538, %v540
  %v542 = vadd.f32 %v538, %v541
  %vm543 = vweird.f32 %v537
  %vm544 = vweird.f32 %v538
  %vm545 = vmor %vm543, %vm544
  %v546 = vsel %vm545, %v538, %v542
  %v547 = vand.u32 2147483647, %v537
  %vm548 = vcmp.eq.f32.partialorder %v547, 8.507059e+37
  %v549 = vand.u32 %v537, 2147483648
  %v550 = vor.u32 1.1754944e-38, %v549
  %v551 = vsel %vm548, %v550, %v546
  %v552 = vmul.f32 %v527, %v551
  %v553 = vmin.f32 %v552, 1.0
  %v554 = vmax.f32 %v553, -1.0
  %v555 = vmul.f32 %v274, %v274
  %v556 = vmin.f32 16.0, %v555
  %v557 = vmul.f32 %v556, 2.1237322e-06
  %v558 = vadd.f32 %v557, 0.00028619796
  %v559 = vmul.f32 %v556, %v558
  %v560 = vadd.f32 %v559, 0.0036580483
  %v561 = vmul.f32 %v556, %v560
  %v562 = vadd.f32 %v561, 0.05243302
  %v563 = vmul.f32 %v556, %v562
  %v564 = vadd.f32 %v563, 0.18741608
  %v565 = vmul.f32 %v556, %v564
  %v566 = vadd.f32 %v565, 1.1283791
  %v567 = vmul.f32 %v274, %v566
  %v568 = vmul.f32 %v556, 3.8918573e-05
  %v569 = vadd.f32 %v568, 0.001143296
  %v570 = vmul.f32 %v556, %v569
  %v571 = vadd.f32 %v570, 0.014752088
  %v572 = vmul.f32 %v556, %v571
  %v573 = vadd.f32 %v572, 0.112945676
  %v574 = vmul.f32 %v556, %v573
  %v575 = vadd.f32 %v574, 0.4994258
  %v576 = vmul.f32 %v556, %v575
  %v577 = vadd.f32 %v576, 1.0
  %v578 = vrcp.pop %v577
  %v579 = vmul.f32 %v577, %v578
  %v580 = vsub.f32 1.0, %v579
  %v581 = vmul.f32 %v578, %v580
  %v582 = vadd.f32 %v578, %v581
  %vm583 = vweird.f32 %v577
  %vm584 = vweird.f32 %v578
  %vm585 = vmor %vm583, %vm584
  %v586 = vsel %vm585, %v578, %v582
  %v587 = vand.u32 2147483647, %v577
  %vm588 = vcmp.eq.f32.partialorder %v587, 8.507059e+37
  %v589 = vand.u32 %v577, 2147483648
  %v590 = vor.u32 1.1754944e-38, %v589
  %v591 = vsel %vm588, %v590, %v586
  %v592 = vmul.f32 %v567, %v591
  %v593 = vmin.f32 %v592, 1.0
  %v594 = vmax.f32 %v593, -1.0
  %v595 = vadd.f32 %v314, 1.0
  %v596 = vadd.f32 %v354, 1.0
  %v597 = vadd.f32 %v394, 1.0
  %v598 = vadd.f32 %v434, 1.0
  %v599 = vadd.f32 %v474, 1.0
  %v600 = vadd.f32 %v514, 1.0
  %v601 = vadd.f32 %v554, 1.0
  %v602 = vadd.f32 %v594, 1.0
  %v603 = vmul.f32 %v259, %v595
  %v604 = vmul.f32 %v260, %v596
  %v605 = vmul.f32 %v261, %v597
  %v606 = vmul.f32 %v262, %v598
  %v607 = vmul.f32 %v263, %v599
  %v608 = vmul.f32 %v264, %v600
  %v609 = vmul.f32 %v265, %v601
  %v610 = vmul.f32 %v266, %v602
  %vm611 = vcmask 261120
  %612 = vst.msk [vmem:[#allocation3] sm:$0xff] %vm611, 0.0
  %613 = vst.msk [vmem:[#allocation3 + $0x8] sm:$0xff] %vm611, 0.0
  %614 = vst.msk [vmem:[#allocation3 + $0x10] sm:$0xff] %vm611, 0.0
  %615 = vst.msk [vmem:[#allocation3 + $0x18] sm:$0xff] %vm611, 0.0
  %vm616 = vcmask 254976
  %617 = vst.msk [vmem:[#allocation3 + $0x20] sm:$0x3] %vm616, 0.0
  %618 = vst.msk [vmem:[#allocation3 + $0x28] sm:$0xff] %vm611, 0.0
  %619 = vst.msk [vmem:[#allocation3 + $0x30] sm:$0xff] %vm611, 0.0
  %620 = vst.msk [vmem:[#allocation3 + $0x38] sm:$0xff] %vm611, 0.0
  %621 = vst.msk [vmem:[#allocation3 + $0x40] sm:$0xff] %vm611, 0.0
  %622 = vst.msk [vmem:[#allocation3 + $0x48] sm:$0x3] %vm616, 0.0
  %623 = vst.msk [vmem:[#allocation3 + $0x1] sm:$0xff] %vm611, %v603
  %624 = vst.msk [vmem:[#allocation3 + $0x9] sm:$0xff] %vm611, %v604
  %625 = vst.msk [vmem:[#allocation3 + $0x11] sm:$0xff] %vm611, %v605
  %626 = vst.msk [vmem:[#allocation3 + $0x19] sm:$0xff] %vm611, %v606
  %627 = vst.msk [vmem:[#allocation3 + $0x29] sm:$0xff] %vm611, %v607
  %628 = vst.msk [vmem:[#allocation3 + $0x31] sm:$0xff] %vm611, %v608
  %629 = vst.msk [vmem:[#allocation3 + $0x39] sm:$0xff] %vm611, %v609
  %630 = vst.msk [vmem:[#allocation3 + $0x41] sm:$0xff] %vm611, %v610
  %v631 = vld [vmem:[#allocation3] sm:$0xff]
  %v632 = vld [vmem:[#allocation3 + $0x8] sm:$0xff]
  %v633 = vld [vmem:[#allocation3 + $0x10] sm:$0xff]
  %v634 = vld [vmem:[#allocation3 + $0x18] sm:$0xff]
  %v635 = vld [vmem:[#allocation3 + $0x28] sm:$0xff]
  %v636 = vld [vmem:[#allocation3 + $0x30] sm:$0xff]
  %v637 = vld [vmem:[#allocation3 + $0x38] sm:$0xff]
  %v638 = vld [vmem:[#allocation3 + $0x40] sm:$0xff]
  %v647 = vrot.slane %v631, 2
  %v648 = vrot.slane %v631, 4
  %v649 = vrot.slane %v631, 6
  %v650 = vrot.slane %v632, 2
  %v651 = vrot.slane %v632, 4
  %v652 = vrot.slane %v632, 6
  %v653 = vrot.slane %v633, 2
  %v654 = vrot.slane %v633, 4
  %v655 = vrot.slane %v633, 6
  %v656 = vrot.slane %v634, 2
  %v657 = vrot.slane %v634, 4
  %v658 = vrot.slane %v634, 6
  %v659 = vrot.slane %v635, 2
  %v660 = vrot.slane %v635, 4
  %v661 = vrot.slane %v635, 6
  %v662 = vrot.slane %v636, 2
  %v663 = vrot.slane %v636, 4
  %v664 = vrot.slane %v636, 6
  %v665 = vrot.slane %v637, 2
  %v666 = vrot.slane %v637, 4
  %v667 = vrot.slane %v637, 6
  %v668 = vrot.slane %v638, 2
  %v669 = vrot.slane %v638, 4
  %v670 = vrot.slane %v638, 6
  %v695 = vld [vmem:[%s2] sm:$0xf]
  %v696 = vld [vmem:[%s2 + $0x4] sm:$0xf]
  %v697 = vld [vmem:[%s2 + $0x8] sm:$0xf]
  %v698 = vld [vmem:[%s2 + $0xc] sm:$0xf]
  %v699 = vpack.c.bf16 %v631, %v631
  %v700 = vpack.c.bf16 %v647, %v647
  %v701 = vpack.c.bf16 %v648, %v648
  %v702 = vpack.c.bf16 %v649, %v649
  %v703 = vpack.c.bf16 %v632, %v632
  %v704 = vpack.c.bf16 %v650, %v650
  %v705 = vpack.c.bf16 %v651, %v651
  %v706 = vpack.c.bf16 %v652, %v652
  %v707 = vpack.c.bf16 %v633, %v633
  %v708 = vpack.c.bf16 %v653, %v653
  %v709 = vpack.c.bf16 %v654, %v654
  %v710 = vpack.c.bf16 %v655, %v655
  %v711 = vpack.c.bf16 %v634, %v634
  %v712 = vpack.c.bf16 %v656, %v656
  %v713 = vpack.c.bf16 %v657, %v657
  %v714 = vpack.c.bf16 %v658, %v658
  %v715 = vpack.c.bf16 %v635, %v635
  %v716 = vpack.c.bf16 %v659, %v659
  %v717 = vpack.c.bf16 %v660, %v660
  %v718 = vpack.c.bf16 %v661, %v661
  %v719 = vpack.c.bf16 %v636, %v636
  %v720 = vpack.c.bf16 %v662, %v662
  %v721 = vpack.c.bf16 %v663, %v663
  %v722 = vpack.c.bf16 %v664, %v664
  %v723 = vpack.c.bf16 %v637, %v637
  %v724 = vpack.c.bf16 %v665, %v665
  %v725 = vpack.c.bf16 %v666, %v666
  %v726 = vpack.c.bf16 %v667, %v667
  %v727 = vpack.c.bf16 %v638, %v638
  %v728 = vpack.c.bf16 %v668, %v668
  %v729 = vpack.c.bf16 %v669, %v669
  %v730 = vpack.c.bf16 %v670, %v670
  %v731 = vld [vmem:[#allocation3 + $0x1] sm:$0xff]
  %v732 = vld [vmem:[#allocation3 + $0x9] sm:$0xff]
  %v733 = vld [vmem:[#allocation3 + $0x11] sm:$0xff]
  %v734 = vld [vmem:[#allocation3 + $0x19] sm:$0xff]
  %v735 = vld [vmem:[#allocation3 + $0x29] sm:$0xff]
  %v736 = vld [vmem:[#allocation3 + $0x31] sm:$0xff]
  %v737 = vld [vmem:[#allocation3 + $0x39] sm:$0xff]
  %v738 = vld [vmem:[#allocation3 + $0x41] sm:$0xff]
  %v747 = vrot.slane %v731, 2
  %v748 = vrot.slane %v731, 4
  %v749 = vrot.slane %v731, 6
  %v750 = vrot.slane %v732, 2
  %v751 = vrot.slane %v732, 4
  %v752 = vrot.slane %v732, 6
  %v753 = vrot.slane %v733, 2
  %v754 = vrot.slane %v733, 4
  %v755 = vrot.slane %v733, 6
  %v756 = vrot.slane %v734, 2
  %v757 = vrot.slane %v734, 4
  %v758 = vrot.slane %v734, 6
  %v759 = vrot.slane %v735, 2
  %v760 = vrot.slane %v735, 4
  %v761 = vrot.slane %v735, 6
  %v762 = vrot.slane %v736, 2
  %v763 = vrot.slane %v736, 4
  %v764 = vrot.slane %v736, 6
  %v765 = vrot.slane %v737, 2
  %v766 = vrot.slane %v737, 4
  %v767 = vrot.slane %v737, 6
  %v768 = vrot.slane %v738, 2
  %v769 = vrot.slane %v738, 4
  %v770 = vrot.slane %v738, 6
  %v795 = vld [vmem:[%s2 + $0x10] sm:$0xf]
  %v796 = vld [vmem:[%s2 + $0x14] sm:$0xf]
  %v797 = vld [vmem:[%s2 + $0x18] sm:$0xf]
  %v798 = vld [vmem:[%s2 + $0x1c] sm:$0xf]
  %v799 = vpack.c.bf16 %v731, %v731
  %v800 = vpack.c.bf16 %v747, %v747
  %v801 = vpack.c.bf16 %v748, %v748
  %v802 = vpack.c.bf16 %v749, %v749
  %v803 = vpack.c.bf16 %v732, %v732
  %v804 = vpack.c.bf16 %v750, %v750
  %v805 = vpack.c.bf16 %v751, %v751
  %v806 = vpack.c.bf16 %v752, %v752
  %v807 = vpack.c.bf16 %v733, %v733
  %v808 = vpack.c.bf16 %v753, %v753
  %v809 = vpack.c.bf16 %v754, %v754
  %v810 = vpack.c.bf16 %v755, %v755
  %v811 = vpack.c.bf16 %v734, %v734
  %v812 = vpack.c.bf16 %v756, %v756
  %v813 = vpack.c.bf16 %v757, %v757
  %v814 = vpack.c.bf16 %v758, %v758
  %v815 = vpack.c.bf16 %v735, %v735
  %v816 = vpack.c.bf16 %v759, %v759
  %v817 = vpack.c.bf16 %v760, %v760
  %v818 = vpack.c.bf16 %v761, %v761
  %v819 = vpack.c.bf16 %v736, %v736
  %v820 = vpack.c.bf16 %v762, %v762
  %v821 = vpack.c.bf16 %v763, %v763
  %v822 = vpack.c.bf16 %v764, %v764
  %v823 = vpack.c.bf16 %v737, %v737
  %v824 = vpack.c.bf16 %v765, %v765
  %v825 = vpack.c.bf16 %v766, %v766
  %v826 = vpack.c.bf16 %v767, %v767
  %v827 = vpack.c.bf16 %v738, %v738
  %v828 = vpack.c.bf16 %v768, %v768
  %v829 = vpack.c.bf16 %v769, %v769
  %v830 = vpack.c.bf16 %v770, %v770
  %v863 = vunpack.c.l.b16 %v799
  %v864 = vunpack.c.l.b16 %v800
  %v865 = vunpack.c.l.b16 %v801
  %v866 = vunpack.c.l.b16 %v802
  %v867 = vunpack.c.l.b16 %v803
  %v868 = vunpack.c.l.b16 %v804
  %v869 = vunpack.c.l.b16 %v805
  %v870 = vunpack.c.l.b16 %v806
  %v871 = vunpack.c.l.b16 %v807
  %v872 = vunpack.c.l.b16 %v808
  %v873 = vunpack.c.l.b16 %v809
  %v874 = vunpack.c.l.b16 %v810
  %v875 = vunpack.c.l.b16 %v811
  %v876 = vunpack.c.l.b16 %v812
  %v877 = vunpack.c.l.b16 %v813
  %v878 = vunpack.c.l.b16 %v814
  %v879 = vunpack.c.l.b16 %v815
  %v880 = vunpack.c.l.b16 %v816
  %v881 = vunpack.c.l.b16 %v817
  %v882 = vunpack.c.l.b16 %v818
  %v883 = vunpack.c.l.b16 %v819
  %v884 = vunpack.c.l.b16 %v820
  %v885 = vunpack.c.l.b16 %v821
  %v886 = vunpack.c.l.b16 %v822
  %v887 = vunpack.c.l.b16 %v823
  %v888 = vunpack.c.l.b16 %v824
  %v889 = vunpack.c.l.b16 %v825
  %v890 = vunpack.c.l.b16 %v826
  %v891 = vunpack.c.l.b16 %v827
  %v892 = vunpack.c.l.b16 %v828
  %v893 = vunpack.c.l.b16 %v829
  %v894 = vunpack.c.l.b16 %v830
  %v895 = vrot.slane %v864, 7
  %vm896 = vcmask 1041409
  %v897 = vsel %vm896, %v895, %v863
  %v898 = vrot.slane %v865, 6
  %vm899 = vcmask 1042434
  %v900 = vsel %vm899, %v898, %v897
  %v901 = vrot.slane %v866, 5
  %vm902 = vcmask 1043459
  %v903 = vsel %vm902, %v901, %v900
  %v904 = vrot.slane %v867, 4
  %vm905 = vcmask 1044484
  %v906 = vsel %vm905, %v904, %v903
  %v907 = vrot.slane %v868, 3
  %vm908 = vcmask 1045509
  %v909 = vsel %vm908, %v907, %v906
  %v910 = vrot.slane %v869, 2
  %vm911 = vcmask 1046534
  %v912 = vsel %vm911, %v910, %v909
  %v913 = vrot.slane %v870, 1
  %vm914 = vcmask 1047559
  %v915 = vsel %vm914, %v913, %v912
  %v916 = vrot.slane %v872, 7
  %v917 = vsel %vm896, %v916, %v871
  %v918 = vrot.slane %v873, 6
  %v919 = vsel %vm899, %v918, %v917
  %v920 = vrot.slane %v874, 5
  %v921 = vsel %vm902, %v920, %v919
  %v922 = vrot.slane %v875, 4
  %v923 = vsel %vm905, %v922, %v921
  %v924 = vrot.slane %v876, 3
  %v925 = vsel %vm908, %v924, %v923
  %v926 = vrot.slane %v877, 2
  %v927 = vsel %vm911, %v926, %v925
  %v928 = vrot.slane %v878, 1
  %v929 = vsel %vm914, %v928, %v927
  %v930 = vrot.slane %v880, 7
  %v931 = vsel %vm896, %v930, %v879
  %v932 = vrot.slane %v881, 6
  %v933 = vsel %vm899, %v932, %v931
  %v934 = vrot.slane %v882, 5
  %v935 = vsel %vm902, %v934, %v933
  %v936 = vrot.slane %v883, 4
  %v937 = vsel %vm905, %v936, %v935
  %v938 = vrot.slane %v884, 3
  %v939 = vsel %vm908, %v938, %v937
  %v940 = vrot.slane %v885, 2
  %v941 = vsel %vm911, %v940, %v939
  %v942 = vrot.slane %v886, 1
  %v943 = vsel %vm914, %v942, %v941
  %v944 = vrot.slane %v888, 7
  %v945 = vsel %vm896, %v944, %v887
  %v946 = vrot.slane %v889, 6
  %v947 = vsel %vm899, %v946, %v945
  %v948 = vrot.slane %v890, 5
  %v949 = vsel %vm902, %v948, %v947
  %v950 = vrot.slane %v891, 4
  %v951 = vsel %vm905, %v950, %v949
  %v952 = vrot.slane %v892, 3
  %v953 = vsel %vm908, %v952, %v951
  %v954 = vrot.slane %v893, 2
  %v955 = vsel %vm911, %v954, %v953
  %v956 = vrot.slane %v894, 1
  %v957 = vsel %vm914, %v956, %v955
  %v958 = vpack.c.b16 %v929, %v915
  %v959 = vpack.c.b16 %v957, %v943
  %v964 = vunpack.c.l.b16 %v795
  %v965 = vunpack.c.l.b16 %v796
  %v966 = vunpack.c.l.b16 %v797
  %v967 = vunpack.c.l.b16 %v798
  %v968 = vpack.c.b16 %v965, %v964
  %v969 = vpack.c.b16 %v967, %v966
  %v973 = vsel %vm611, %v958, 0
  %v976 = vsel %vm611, %v959, 0
  %978 = vmatpush.bf16.msra.mxu0 0
  %979 = vmatpush.bf16.msra.mxu0 0
  %980 = vmatpush.bf16.msra.mxu0 0
  %981 = vmatpush.bf16.msra.mxu0 0
  %982 = vmatpush.bf16.msra.mxu0 0
  %983 = vmatpush.bf16.msra.mxu0 0
  %984 = vmatpush.bf16.msra.mxu0 %v969
  %985 = vmatpush.bf16.msra.mxu0 %v968
  %986 = vmatmul.bf16.gmra.mxu0 %v973
  %v987 = vpop.f32.mrf.mxu0
  %v988 = vadd.f32 0.0, %v987
  %v989 = vpop.f32.mrf.mxu0
  %v990 = vadd.f32 0.0, %v989
  %991 = vmatmul.bf16.gmra.mxu0 %v976
  %v992 = vpop.f32.mrf.mxu0
  %v993 = vadd.f32 0.0, %v992
  %v994 = vpop.f32.mrf.mxu0
  %v995 = vadd.f32 0.0, %v994
  %996 = vdwg.mxu0
  %v1029 = vunpack.c.l.b16 %v699
  %v1030 = vunpack.c.l.b16 %v700
  %v1031 = vunpack.c.l.b16 %v701
  %v1032 = vunpack.c.l.b16 %v702
  %v1033 = vunpack.c.l.b16 %v703
  %v1034 = vunpack.c.l.b16 %v704
  %v1035 = vunpack.c.l.b16 %v705
  %v1036 = vunpack.c.l.b16 %v706
  %v1037 = vunpack.c.l.b16 %v707
  %v1038 = vunpack.c.l.b16 %v708
  %v1039 = vunpack.c.l.b16 %v709
  %v1040 = vunpack.c.l.b16 %v710
  %v1041 = vunpack.c.l.b16 %v711
  %v1042 = vunpack.c.l.b16 %v712
  %v1043 = vunpack.c.l.b16 %v713
  %v1044 = vunpack.c.l.b16 %v714
  %v1045 = vunpack.c.l.b16 %v715
  %v1046 = vunpack.c.l.b16 %v716
  %v1047 = vunpack.c.l.b16 %v717
  %v1048 = vunpack.c.l.b16 %v718
  %v1049 = vunpack.c.l.b16 %v719
  %v1050 = vunpack.c.l.b16 %v720
  %v1051 = vunpack.c.l.b16 %v721
  %v1052 = vunpack.c.l.b16 %v722
  %v1053 = vunpack.c.l.b16 %v723
  %v1054 = vunpack.c.l.b16 %v724
  %v1055 = vunpack.c.l.b16 %v725
  %v1056 = vunpack.c.l.b16 %v726
  %v1057 = vunpack.c.l.b16 %v727
  %v1058 = vunpack.c.l.b16 %v728
  %v1059 = vunpack.c.l.b16 %v729
  %v1060 = vunpack.c.l.b16 %v730
  %v1061 = vrot.slane %v1030, 7
  %v1062 = vsel %vm896, %v1061, %v1029
  %v1063 = vrot.slane %v1031, 6
  %v1064 = vsel %vm899, %v1063, %v1062
  %v1065 = vrot.slane %v1032, 5
  %v1066 = vsel %vm902, %v1065, %v1064
  %v1067 = vrot.slane %v1033, 4
  %v1068 = vsel %vm905, %v1067, %v1066
  %v1069 = vrot.slane %v1034, 3
  %v1070 = vsel %vm908, %v1069, %v1068
  %v1071 = vrot.slane %v1035, 2
  %v1072 = vsel %vm911, %v1071, %v1070
  %v1073 = vrot.slane %v1036, 1
  %v1074 = vsel %vm914, %v1073, %v1072
  %v1075 = vrot.slane %v1038, 7
  %v1076 = vsel %vm896, %v1075, %v1037
  %v1077 = vrot.slane %v1039, 6
  %v1078 = vsel %vm899, %v1077, %v1076
  %v1079 = vrot.slane %v1040, 5
  %v1080 = vsel %vm902, %v1079, %v1078
  %v1081 = vrot.slane %v1041, 4
  %v1082 = vsel %vm905, %v1081, %v1080
  %v1083 = vrot.slane %v1042, 3
  %v1084 = vsel %vm908, %v1083, %v1082
  %v1085 = vrot.slane %v1043, 2
  %v1086 = vsel %vm911, %v1085, %v1084
  %v1087 = vrot.slane %v1044, 1
  %v1088 = vsel %vm914, %v1087, %v1086
  %v1089 = vrot.slane %v1046, 7
  %v1090 = vsel %vm896, %v1089, %v1045
  %v1091 = vrot.slane %v1047, 6
  %v1092 = vsel %vm899, %v1091, %v1090
  %v1093 = vrot.slane %v1048, 5
  %v1094 = vsel %vm902, %v1093, %v1092
  %v1095 = vrot.slane %v1049, 4
  %v1096 = vsel %vm905, %v1095, %v1094
  %v1097 = vrot.slane %v1050, 3
  %v1098 = vsel %vm908, %v1097, %v1096
  %v1099 = vrot.slane %v1051, 2
  %v1100 = vsel %vm911, %v1099, %v1098
  %v1101 = vrot.slane %v1052, 1
  %v1102 = vsel %vm914, %v1101, %v1100
  %v1103 = vrot.slane %v1054, 7
  %v1104 = vsel %vm896, %v1103, %v1053
  %v1105 = vrot.slane %v1055, 6
  %v1106 = vsel %vm899, %v1105, %v1104
  %v1107 = vrot.slane %v1056, 5
  %v1108 = vsel %vm902, %v1107, %v1106
  %v1109 = vrot.slane %v1057, 4
  %v1110 = vsel %vm905, %v1109, %v1108
  %v1111 = vrot.slane %v1058, 3
  %v1112 = vsel %vm908, %v1111, %v1110
  %v1113 = vrot.slane %v1059, 2
  %v1114 = vsel %vm911, %v1113, %v1112
  %v1115 = vrot.slane %v1060, 1
  %v1116 = vsel %vm914, %v1115, %v1114
  %v1117 = vpack.c.b16 %v1088, %v1074
  %v1118 = vpack.c.b16 %v1116, %v1102
  %v1123 = vunpack.c.l.b16 %v695
  %v1124 = vunpack.c.l.b16 %v696
  %v1125 = vunpack.c.l.b16 %v697
  %v1126 = vunpack.c.l.b16 %v698
  %v1127 = vpack.c.b16 %v1124, %v1123
  %v1128 = vpack.c.b16 %v1126, %v1125
  %v1132 = vsel %vm611, %v1117, 0
  %v1135 = vsel %vm611, %v1118, 0
  %1137 = vmatpush.bf16.msra.mxu0 0
  %1138 = vmatpush.bf16.msra.mxu0 0
  %1139 = vmatpush.bf16.msra.mxu0 0
  %1140 = vmatpush.bf16.msra.mxu0 0
  %1141 = vmatpush.bf16.msra.mxu0 0
  %1142 = vmatpush.bf16.msra.mxu0 0
  %1143 = vmatpush.bf16.msra.mxu0 %v1128
  %1144 = vmatpush.bf16.msra.mxu0 %v1127
  %1145 = vmatmul.bf16.gmra.mxu0 %v1132
  %v1146 = vpop.f32.mrf.mxu0
  %v1147 = vadd.f32 %v988, %v1146
  %v1148 = vpop.f32.mrf.mxu0
  %v1149 = vadd.f32 %v990, %v1148
  %1150 = vmatmul.bf16.gmra.mxu0 %v1135
  %v1151 = vpop.f32.mrf.mxu0
  %v1152 = vadd.f32 %v993, %v1151
  %v1153 = vpop.f32.mrf.mxu0
  %v1154 = vadd.f32 %v995, %v1153
  %1155 = vdwg.mxu0
  %v1156 = vld [vmem:[#allocation3 + $0x2] sm:$0xff]
  %v1157 = vld [vmem:[#allocation3 + $0xa] sm:$0xff]
  %v1158 = vld [vmem:[#allocation3 + $0x12] sm:$0xff]
  %v1159 = vld [vmem:[#allocation3 + $0x1a] sm:$0xff]
  %v1160 = vld [vmem:[#allocation3 + $0x2a] sm:$0xff]
  %v1161 = vld [vmem:[#allocation3 + $0x32] sm:$0xff]
  %v1162 = vld [vmem:[#allocation3 + $0x3a] sm:$0xff]
  %v1163 = vld [vmem:[#allocation3 + $0x42] sm:$0xff]
  %v1172 = vrot.slane %v1156, 2
  %v1173 = vrot.slane %v1156, 4
  %v1174 = vrot.slane %v1156, 6
  %v1175 = vrot.slane %v1157, 2
  %v1176 = vrot.slane %v1157, 4
  %v1177 = vrot.slane %v1157, 6
  %v1178 = vrot.slane %v1158, 2
  %v1179 = vrot.slane %v1158, 4
  %v1180 = vrot.slane %v1158, 6
  %v1181 = vrot.slane %v1159, 2
  %v1182 = vrot.slane %v1159, 4
  %v1183 = vrot.slane %v1159, 6
  %v1184 = vrot.slane %v1160, 2
  %v1185 = vrot.slane %v1160, 4
  %v1186 = vrot.slane %v1160, 6
  %v1187 = vrot.slane %v1161, 2
  %v1188 = vrot.slane %v1161, 4
  %v1189 = vrot.slane %v1161, 6
  %v1190 = vrot.slane %v1162, 2
  %v1191 = vrot.slane %v1162, 4
  %v1192 = vrot.slane %v1162, 6
  %v1193 = vrot.slane %v1163, 2
  %v1194 = vrot.slane %v1163, 4
  %v1195 = vrot.slane %v1163, 6
  %v1220 = vld [vmem:[%s2 + $0x20] sm:$0xf]
  %v1221 = vld [vmem:[%s2 + $0x24] sm:$0xf]
  %v1222 = vld [vmem:[%s2 + $0x28] sm:$0xf]
  %v1223 = vld [vmem:[%s2 + $0x2c] sm:$0xf]
  %v1224 = vpack.c.bf16 %v1156, %v1156
  %v1225 = vpack.c.bf16 %v1172, %v1172
  %v1226 = vpack.c.bf16 %v1173, %v1173
  %v1227 = vpack.c.bf16 %v1174, %v1174
  %v1228 = vpack.c.bf16 %v1157, %v1157
  %v1229 = vpack.c.bf16 %v1175, %v1175
  %v1230 = vpack.c.bf16 %v1176, %v1176
  %v1231 = vpack.c.bf16 %v1177, %v1177
  %v1232 = vpack.c.bf16 %v1158, %v1158
  %v1233 = vpack.c.bf16 %v1178, %v1178
  %v1234 = vpack.c.bf16 %v1179, %v1179
  %v1235 = vpack.c.bf16 %v1180, %v1180
  %v1236 = vpack.c.bf16 %v1159, %v1159
  %v1237 = vpack.c.bf16 %v1181, %v1181
  %v1238 = vpack.c.bf16 %v1182, %v1182
  %v1239 = vpack.c.bf16 %v1183, %v1183
  %v1240 = vpack.c.bf16 %v1160, %v1160
  %v1241 = vpack.c.bf16 %v1184, %v1184
  %v1242 = vpack.c.bf16 %v1185, %v1185
  %v1243 = vpack.c.bf16 %v1186, %v1186
  %v1244 = vpack.c.bf16 %v1161, %v1161
  %v1245 = vpack.c.bf16 %v1187, %v1187
  %v1246 = vpack.c.bf16 %v1188, %v1188
  %v1247 = vpack.c.bf16 %v1189, %v1189
  %v1248 = vpack.c.bf16 %v1162, %v1162
  %v1249 = vpack.c.bf16 %v1190, %v1190
  %v1250 = vpack.c.bf16 %v1191, %v1191
  %v1251 = vpack.c.bf16 %v1192, %v1192
  %v1252 = vpack.c.bf16 %v1163, %v1163
  %v1253 = vpack.c.bf16 %v1193, %v1193
  %v1254 = vpack.c.bf16 %v1194, %v1194
  %v1255 = vpack.c.bf16 %v1195, %v1195
  %v1288 = vunpack.c.l.b16 %v1224
  %v1289 = vunpack.c.l.b16 %v1225
  %v1290 = vunpack.c.l.b16 %v1226
  %v1291 = vunpack.c.l.b16 %v1227
  %v1292 = vunpack.c.l.b16 %v1228
  %v1293 = vunpack.c.l.b16 %v1229
  %v1294 = vunpack.c.l.b16 %v1230
  %v1295 = vunpack.c.l.b16 %v1231
  %v1296 = vunpack.c.l.b16 %v1232
  %v1297 = vunpack.c.l.b16 %v1233
  %v1298 = vunpack.c.l.b16 %v1234
  %v1299 = vunpack.c.l.b16 %v1235
  %v1300 = vunpack.c.l.b16 %v1236
  %v1301 = vunpack.c.l.b16 %v1237
  %v1302 = vunpack.c.l.b16 %v1238
  %v1303 = vunpack.c.l.b16 %v1239
  %v1304 = vunpack.c.l.b16 %v1240
  %v1305 = vunpack.c.l.b16 %v1241
  %v1306 = vunpack.c.l.b16 %v1242
  %v1307 = vunpack.c.l.b16 %v1243
  %v1308 = vunpack.c.l.b16 %v1244
  %v1309 = vunpack.c.l.b16 %v1245
  %v1310 = vunpack.c.l.b16 %v1246
  %v1311 = vunpack.c.l.b16 %v1247
  %v1312 = vunpack.c.l.b16 %v1248
  %v1313 = vunpack.c.l.b16 %v1249
  %v1314 = vunpack.c.l.b16 %v1250
  %v1315 = vunpack.c.l.b16 %v1251
  %v1316 = vunpack.c.l.b16 %v1252
  %v1317 = vunpack.c.l.b16 %v1253
  %v1318 = vunpack.c.l.b16 %v1254
  %v1319 = vunpack.c.l.b16 %v1255
  %v1320 = vrot.slane %v1289, 7
  %v1321 = vsel %vm896, %v1320, %v1288
  %v1322 = vrot.slane %v1290, 6
  %v1323 = vsel %vm899, %v1322, %v1321
  %v1324 = vrot.slane %v1291, 5
  %v1325 = vsel %vm902, %v1324, %v1323
  %v1326 = vrot.slane %v1292, 4
  %v1327 = vsel %vm905, %v1326, %v1325
  %v1328 = vrot.slane %v1293, 3
  %v1329 = vsel %vm908, %v1328, %v1327
  %v1330 = vrot.slane %v1294, 2
  %v1331 = vsel %vm911, %v1330, %v1329
  %v1332 = vrot.slane %v1295, 1
  %v1333 = vsel %vm914, %v1332, %v1331
  %v1334 = vrot.slane %v1297, 7
  %v1335 = vsel %vm896, %v1334, %v1296
  %v1336 = vrot.slane %v1298, 6
  %v1337 = vsel %vm899, %v1336, %v1335
  %v1338 = vrot.slane %v1299, 5
  %v1339 = vsel %vm902, %v1338, %v1337
  %v1340 = vrot.slane %v1300, 4
  %v1341 = vsel %vm905, %v1340, %v1339
  %v1342 = vrot.slane %v1301, 3
  %v1343 = vsel %vm908, %v1342, %v1341
  %v1344 = vrot.slane %v1302, 2
  %v1345 = vsel %vm911, %v1344, %v1343
  %v1346 = vrot.slane %v1303, 1
  %v1347 = vsel %vm914, %v1346, %v1345
  %v1348 = vrot.slane %v1305, 7
  %v1349 = vsel %vm896, %v1348, %v1304
  %v1350 = vrot.slane %v1306, 6
  %v1351 = vsel %vm899, %v1350, %v1349
  %v1352 = vrot.slane %v1307, 5
  %v1353 = vsel %vm902, %v1352, %v1351
  %v1354 = vrot.slane %v1308, 4
  %v1355 = vsel %vm905, %v1354, %v1353
  %v1356 = vrot.slane %v1309, 3
  %v1357 = vsel %vm908, %v1356, %v1355
  %v1358 = vrot.slane %v1310, 2
  %v1359 = vsel %vm911, %v1358, %v1357
  %v1360 = vrot.slane %v1311, 1
  %v1361 = vsel %vm914, %v1360, %v1359
  %v1362 = vrot.slane %v1313, 7
  %v1363 = vsel %vm896, %v1362, %v1312
  %v1364 = vrot.slane %v1314, 6
  %v1365 = vsel %vm899, %v1364, %v1363
  %v1366 = vrot.slane %v1315, 5
  %v1367 = vsel %vm902, %v1366, %v1365
  %v1368 = vrot.slane %v1316, 4
  %v1369 = vsel %vm905, %v1368, %v1367
  %v1370 = vrot.slane %v1317, 3
  %v1371 = vsel %vm908, %v1370, %v1369
  %v1372 = vrot.slane %v1318, 2
  %v1373 = vsel %vm911, %v1372, %v1371
  %v1374 = vrot.slane %v1319, 1
  %v1375 = vsel %vm914, %v1374, %v1373
  %v1376 = vpack.c.b16 %v1347, %v1333
  %v1377 = vpack.c.b16 %v1375, %v1361
  %v1382 = vunpack.c.l.b16 %v1220
  %v1383 = vunpack.c.l.b16 %v1221
  %v1384 = vunpack.c.l.b16 %v1222
  %v1385 = vunpack.c.l.b16 %v1223
  %v1386 = vpack.c.b16 %v1383, %v1382
  %v1387 = vpack.c.b16 %v1385, %v1384
  %v1391 = vsel %vm611, %v1376, 0
  %v1394 = vsel %vm611, %v1377, 0
  %1396 = vmatpush.bf16.msra.mxu0 0
  %1397 = vmatpush.bf16.msra.mxu0 0
  %1398 = vmatpush.bf16.msra.mxu0 0
  %1399 = vmatpush.bf16.msra.mxu0 0
  %1400 = vmatpush.bf16.msra.mxu0 0
  %1401 = vmatpush.bf16.msra.mxu0 0
  %1402 = vmatpush.bf16.msra.mxu0 %v1387
  %1403 = vmatpush.bf16.msra.mxu0 %v1386
  %1404 = vmatmul.bf16.gmra.mxu0 %v1391
  %v1405 = vpop.f32.mrf.mxu0
  %v1406 = vadd.f32 0.0, %v1405
  %v1407 = vpop.f32.mrf.mxu0
  %v1408 = vadd.f32 0.0, %v1407
  %1409 = vmatmul.bf16.gmra.mxu0 %v1394
  %v1410 = vpop.f32.mrf.mxu0
  %v1411 = vadd.f32 0.0, %v1410
  %v1412 = vpop.f32.mrf.mxu0
  %v1413 = vadd.f32 0.0, %v1412
  %1414 = vdwg.mxu0
  %v1415 = vadd.f32 %v1147, %v1406
  %v1416 = vadd.f32 %v1149, %v1408
  %v1417 = vadd.f32 %v1152, %v1411
  %v1418 = vadd.f32 %v1154, %v1413
  %v1419 = vperm.slane %v30, 1
  %v1420 = vadd.f32 %v1415, %v1419
  %v1421 = vadd.f32 %v1416, %v1419
  %v1422 = vadd.f32 %v1417, %v1419
  %v1423 = vadd.f32 %v1418, %v1419
  %v1424 = vmul.f32 %v1420, 0.5
  %v1425 = vmul.f32 %v1421, 0.5
  %v1426 = vmul.f32 %v1422, 0.5
  %v1427 = vmul.f32 %v1423, 0.5
  %v1428 = vmul.f32 %v1420, 0.70710677
  %v1429 = vmul.f32 %v1421, 0.70710677
  %v1430 = vmul.f32 %v1422, 0.70710677
  %v1431 = vmul.f32 %v1423, 0.70710677
  %v1432 = vmul.f32 %v1428, %v1428
  %v1433 = vmin.f32 16.0, %v1432
  %v1434 = vmul.f32 %v1433, 2.1237322e-06
  %v1435 = vadd.f32 %v1434, 0.00028619796
  %v1436 = vmul.f32 %v1433, %v1435
  %v1437 = vadd.f32 %v1436, 0.0036580483
  %v1438 = vmul.f32 %v1433, %v1437
  %v1439 = vadd.f32 %v1438, 0.05243302
  %v1440 = vmul.f32 %v1433, %v1439
  %v1441 = vadd.f32 %v1440, 0.18741608
  %v1442 = vmul.f32 %v1433, %v1441
  %v1443 = vadd.f32 %v1442, 1.1283791
  %v1444 = vmul.f32 %v1428, %v1443
  %v1445 = vmul.f32 %v1433, 3.8918573e-05
  %v1446 = vadd.f32 %v1445, 0.001143296
  %v1447 = vmul.f32 %v1433, %v1446
  %v1448 = vadd.f32 %v1447, 0.014752088
  %v1449 = vmul.f32 %v1433, %v1448
  %v1450 = vadd.f32 %v1449, 0.112945676
  %v1451 = vmul.f32 %v1433, %v1450
  %v1452 = vadd.f32 %v1451, 0.4994258
  %v1453 = vmul.f32 %v1433, %v1452
  %v1454 = vadd.f32 %v1453, 1.0
  %v1455 = vrcp.pop %v1454
  %v1456 = vmul.f32 %v1454, %v1455
  %v1457 = vsub.f32 1.0, %v1456
  %v1458 = vmul.f32 %v1455, %v1457
  %v1459 = vadd.f32 %v1455, %v1458
  %vm1460 = vweird.f32 %v1454
  %vm1461 = vweird.f32 %v1455
  %vm1462 = vmor %vm1460, %vm1461
  %v1463 = vsel %vm1462, %v1455, %v1459
  %v1464 = vand.u32 2147483647, %v1454
  %vm1465 = vcmp.eq.f32.partialorder %v1464, 8.507059e+37
  %v1466 = vand.u32 %v1454, 2147483648
  %v1467 = vor.u32 1.1754944e-38, %v1466
  %v1468 = vsel %vm1465, %v1467, %v1463
  %v1469 = vmul.f32 %v1444, %v1468
  %v1470 = vmin.f32 %v1469, 1.0
  %v1471 = vmax.f32 %v1470, -1.0
  %v1472 = vmul.f32 %v1429, %v1429
  %v1473 = vmin.f32 16.0, %v1472
  %v1474 = vmul.f32 %v1473, 2.1237322e-06
  %v1475 = vadd.f32 %v1474, 0.00028619796
  %v1476 = vmul.f32 %v1473, %v1475
  %v1477 = vadd.f32 %v1476, 0.0036580483
  %v1478 = vmul.f32 %v1473, %v1477
  %v1479 = vadd.f32 %v1478, 0.05243302
  %v1480 = vmul.f32 %v1473, %v1479
  %v1481 = vadd.f32 %v1480, 0.18741608
  %v1482 = vmul.f32 %v1473, %v1481
  %v1483 = vadd.f32 %v1482, 1.1283791
  %v1484 = vmul.f32 %v1429, %v1483
  %v1485 = vmul.f32 %v1473, 3.8918573e-05
  %v1486 = vadd.f32 %v1485, 0.001143296
  %v1487 = vmul.f32 %v1473, %v1486
  %v1488 = vadd.f32 %v1487, 0.014752088
  %v1489 = vmul.f32 %v1473, %v1488
  %v1490 = vadd.f32 %v1489, 0.112945676
  %v1491 = vmul.f32 %v1473, %v1490
  %v1492 = vadd.f32 %v1491, 0.4994258
  %v1493 = vmul.f32 %v1473, %v1492
  %v1494 = vadd.f32 %v1493, 1.0
  %v1495 = vrcp.pop %v1494
  %v1496 = vmul.f32 %v1494, %v1495
  %v1497 = vsub.f32 1.0, %v1496
  %v1498 = vmul.f32 %v1495, %v1497
  %v1499 = vadd.f32 %v1495, %v1498
  %vm1500 = vweird.f32 %v1494
  %vm1501 = vweird.f32 %v1495
  %vm1502 = vmor %vm1500, %vm1501
  %v1503 = vsel %vm1502, %v1495, %v1499
  %v1504 = vand.u32 2147483647, %v1494
  %vm1505 = vcmp.eq.f32.partialorder %v1504, 8.507059e+37
  %v1506 = vand.u32 %v1494, 2147483648
  %v1507 = vor.u32 1.1754944e-38, %v1506
  %v1508 = vsel %vm1505, %v1507, %v1503
  %v1509 = vmul.f32 %v1484, %v1508
  %v1510 = vmin.f32 %v1509, 1.0
  %v1511 = vmax.f32 %v1510, -1.0
  %v1512 = vmul.f32 %v1430, %v1430
  %v1513 = vmin.f32 16.0, %v1512
  %v1514 = vmul.f32 %v1513, 2.1237322e-06
  %v1515 = vadd.f32 %v1514, 0.00028619796
  %v1516 = vmul.f32 %v1513, %v1515
  %v1517 = vadd.f32 %v1516, 0.0036580483
  %v1518 = vmul.f32 %v1513, %v1517
  %v1519 = vadd.f32 %v1518, 0.05243302
  %v1520 = vmul.f32 %v1513, %v1519
  %v1521 = vadd.f32 %v1520, 0.18741608
  %v1522 = vmul.f32 %v1513, %v1521
  %v1523 = vadd.f32 %v1522, 1.1283791
  %v1524 = vmul.f32 %v1430, %v1523
  %v1525 = vmul.f32 %v1513, 3.8918573e-05
  %v1526 = vadd.f32 %v1525, 0.001143296
  %v1527 = vmul.f32 %v1513, %v1526
  %v1528 = vadd.f32 %v1527, 0.014752088
  %v1529 = vmul.f32 %v1513, %v1528
  %v1530 = vadd.f32 %v1529, 0.112945676
  %v1531 = vmul.f32 %v1513, %v1530
  %v1532 = vadd.f32 %v1531, 0.4994258
  %v1533 = vmul.f32 %v1513, %v1532
  %v1534 = vadd.f32 %v1533, 1.0
  %v1535 = vrcp.pop %v1534
  %v1536 = vmul.f32 %v1534, %v1535
  %v1537 = vsub.f32 1.0, %v1536
  %v1538 = vmul.f32 %v1535, %v1537
  %v1539 = vadd.f32 %v1535, %v1538
  %vm1540 = vweird.f32 %v1534
  %vm1541 = vweird.f32 %v1535
  %vm1542 = vmor %vm1540, %vm1541
  %v1543 = vsel %vm1542, %v1535, %v1539
  %v1544 = vand.u32 2147483647, %v1534
  %vm1545 = vcmp.eq.f32.partialorder %v1544, 8.507059e+37
  %v1546 = vand.u32 %v1534, 2147483648
  %v1547 = vor.u32 1.1754944e-38, %v1546
  %v1548 = vsel %vm1545, %v1547, %v1543
  %v1549 = vmul.f32 %v1524, %v1548
  %v1550 = vmin.f32 %v1549, 1.0
  %v1551 = vmax.f32 %v1550, -1.0
  %v1552 = vmul.f32 %v1431, %v1431
  %v1553 = vmin.f32 16.0, %v1552
  %v1554 = vmul.f32 %v1553, 2.1237322e-06
  %v1555 = vadd.f32 %v1554, 0.00028619796
  %v1556 = vmul.f32 %v1553, %v1555
  %v1557 = vadd.f32 %v1556, 0.0036580483
  %v1558 = vmul.f32 %v1553, %v1557
  %v1559 = vadd.f32 %v1558, 0.05243302
  %v1560 = vmul.f32 %v1553, %v1559
  %v1561 = vadd.f32 %v1560, 0.18741608
  %v1562 = vmul.f32 %v1553, %v1561
  %v1563 = vadd.f32 %v1562, 1.1283791
  %v1564 = vmul.f32 %v1431, %v1563
  %v1565 = vmul.f32 %v1553, 3.8918573e-05
  %v1566 = vadd.f32 %v1565, 0.001143296
  %v1567 = vmul.f32 %v1553, %v1566
  %v1568 = vadd.f32 %v1567, 0.014752088
  %v1569 = vmul.f32 %v1553, %v1568
  %v1570 = vadd.f32 %v1569, 0.112945676
  %v1571 = vmul.f32 %v1553, %v1570
  %v1572 = vadd.f32 %v1571, 0.4994258
  %v1573 = vmul.f32 %v1553, %v1572
  %v1574 = vadd.f32 %v1573, 1.0
  %v1575 = vrcp.pop %v1574
  %v1576 = vmul.f32 %v1574, %v1575
  %v1577 = vsub.f32 1.0, %v1576
  %v1578 = vmul.f32 %v1575, %v1577
  %v1579 = vadd.f32 %v1575, %v1578
  %vm1580 = vweird.f32 %v1574
  %vm1581 = vweird.f32 %v1575
  %vm1582 = vmor %vm1580, %vm1581
  %v1583 = vsel %vm1582, %v1575, %v1579
  %v1584 = vand.u32 2147483647, %v1574
  %vm1585 = vcmp.eq.f32.partialorder %v1584, 8.507059e+37
  %v1586 = vand.u32 %v1574, 2147483648
  %v1587 = vor.u32 1.1754944e-38, %v1586
  %v1588 = vsel %vm1585, %v1587, %v1583
  %v1589 = vmul.f32 %v1564, %v1588
  %v1590 = vmin.f32 %v1589, 1.0
  %v1591 = vmax.f32 %v1590, -1.0
  %v1592 = vadd.f32 %v1471, 1.0
  %v1593 = vadd.f32 %v1511, 1.0
  %v1594 = vadd.f32 %v1551, 1.0
  %v1595 = vadd.f32 %v1591, 1.0
  %v1596 = vmul.f32 %v1424, %v1592
  %v1597 = vmul.f32 %v1425, %v1593
  %v1598 = vmul.f32 %v1426, %v1594
  %v1599 = vmul.f32 %v1427, %v1595
  %1600 = vst.msk [vmem:[#allocation4] sm:$0xff] %vm611, 0.0
  %1601 = vst.msk [vmem:[#allocation4 + $0x8] sm:$0xff] %vm611, 0.0
  %1602 = vst.msk [vmem:[#allocation4 + $0x10] sm:$0x3] %vm616, 0.0
  %1603 = vst.msk [vmem:[#allocation4 + $0x18] sm:$0xff] %vm611, 0.0
  %1604 = vst.msk [vmem:[#allocation4 + $0x20] sm:$0xff] %vm611, 0.0
  %1605 = vst.msk [vmem:[#allocation4 + $0x28] sm:$0x3] %vm616, 0.0
  %1606 = vst.msk [vmem:[#allocation4 + $0x1] sm:$0xff] %vm611, %v1596
  %1607 = vst.msk [vmem:[#allocation4 + $0x9] sm:$0xff] %vm611, %v1597
  %1608 = vst.msk [vmem:[#allocation4 + $0x19] sm:$0xff] %vm611, %v1598
  %1609 = vst.msk [vmem:[#allocation4 + $0x21] sm:$0xff] %vm611, %v1599
  %v1610 = vld [vmem:[#allocation4] sm:$0xff]
  %v1611 = vld [vmem:[#allocation4 + $0x8] sm:$0xff]
  %v1612 = vld [vmem:[#allocation4 + $0x18] sm:$0xff]
  %v1613 = vld [vmem:[#allocation4 + $0x20] sm:$0xff]
  %v1618 = vrot.slane %v1610, 2
  %v1619 = vrot.slane %v1610, 4
  %v1620 = vrot.slane %v1610, 6
  %v1621 = vrot.slane %v1611, 2
  %v1622 = vrot.slane %v1611, 4
  %v1623 = vrot.slane %v1611, 6
  %v1624 = vrot.slane %v1612, 2
  %v1625 = vrot.slane %v1612, 4
  %v1626 = vrot.slane %v1612, 6
  %v1627 = vrot.slane %v1613, 2
  %v1628 = vrot.slane %v1613, 4
  %v1629 = vrot.slane %v1613, 6
  %v1642 = vld [vmem:[%s3] sm:$0xf]
  %v1643 = vld [vmem:[%s3 + $0x4] sm:$0xf]
  %v1644 = vld [vmem:[%s3 + $0x8] sm:$0xf]
  %v1645 = vld [vmem:[%s3 + $0xc] sm:$0xf]
  %v1646 = vpack.c.bf16 %v1610, %v1610
  %v1647 = vpack.c.bf16 %v1618, %v1618
  %v1648 = vpack.c.bf16 %v1619, %v1619
  %v1649 = vpack.c.bf16 %v1620, %v1620
  %v1650 = vpack.c.bf16 %v1611, %v1611
  %v1651 = vpack.c.bf16 %v1621, %v1621
  %v1652 = vpack.c.bf16 %v1622, %v1622
  %v1653 = vpack.c.bf16 %v1623, %v1623
  %v1654 = vpack.c.bf16 %v1612, %v1612
  %v1655 = vpack.c.bf16 %v1624, %v1624
  %v1656 = vpack.c.bf16 %v1625, %v1625
  %v1657 = vpack.c.bf16 %v1626, %v1626
  %v1658 = vpack.c.bf16 %v1613, %v1613
  %v1659 = vpack.c.bf16 %v1627, %v1627
  %v1660 = vpack.c.bf16 %v1628, %v1628
  %v1661 = vpack.c.bf16 %v1629, %v1629
  %v1662 = vld [vmem:[#allocation4 + $0x1] sm:$0xff]
  %v1663 = vld [vmem:[#allocation4 + $0x9] sm:$0xff]
  %v1664 = vld [vmem:[#allocation4 + $0x19] sm:$0xff]
  %v1665 = vld [vmem:[#allocation4 + $0x21] sm:$0xff]
  %v1670 = vrot.slane %v1662, 2
  %v1671 = vrot.slane %v1662, 4
  %v1672 = vrot.slane %v1662, 6
  %v1673 = vrot.slane %v1663, 2
  %v1674 = vrot.slane %v1663, 4
  %v1675 = vrot.slane %v1663, 6
  %v1676 = vrot.slane %v1664, 2
  %v1677 = vrot.slane %v1664, 4
  %v1678 = vrot.slane %v1664, 6
  %v1679 = vrot.slane %v1665, 2
  %v1680 = vrot.slane %v1665, 4
  %v1681 = vrot.slane %v1665, 6
  %v1694 = vld [vmem:[%s3 + $0x10] sm:$0xf]
  %v1695 = vld [vmem:[%s3 + $0x14] sm:$0xf]
  %v1696 = vld [vmem:[%s3 + $0x18] sm:$0xf]
  %v1697 = vld [vmem:[%s3 + $0x1c] sm:$0xf]
  %v1698 = vpack.c.bf16 %v1662, %v1662
  %v1699 = vpack.c.bf16 %v1670, %v1670
  %v1700 = vpack.c.bf16 %v1671, %v1671
  %v1701 = vpack.c.bf16 %v1672, %v1672
  %v1702 = vpack.c.bf16 %v1663, %v1663
  %v1703 = vpack.c.bf16 %v1673, %v1673
  %v1704 = vpack.c.bf16 %v1674, %v1674
  %v1705 = vpack.c.bf16 %v1675, %v1675
  %v1706 = vpack.c.bf16 %v1664, %v1664
  %v1707 = vpack.c.bf16 %v1676, %v1676
  %v1708 = vpack.c.bf16 %v1677, %v1677
  %v1709 = vpack.c.bf16 %v1678, %v1678
  %v1710 = vpack.c.bf16 %v1665, %v1665
  %v1711 = vpack.c.bf16 %v1679, %v1679
  %v1712 = vpack.c.bf16 %v1680, %v1680
  %v1713 = vpack.c.bf16 %v1681, %v1681
  %v1730 = vunpack.c.l.b16 %v1698
  %v1731 = vunpack.c.l.b16 %v1699
  %v1732 = vunpack.c.l.b16 %v1700
  %v1733 = vunpack.c.l.b16 %v1701
  %v1734 = vunpack.c.l.b16 %v1702
  %v1735 = vunpack.c.l.b16 %v1703
  %v1736 = vunpack.c.l.b16 %v1704
  %v1737 = vunpack.c.l.b16 %v1705
  %v1738 = vunpack.c.l.b16 %v1706
  %v1739 = vunpack.c.l.b16 %v1707
  %v1740 = vunpack.c.l.b16 %v1708
  %v1741 = vunpack.c.l.b16 %v1709
  %v1742 = vunpack.c.l.b16 %v1710
  %v1743 = vunpack.c.l.b16 %v1711
  %v1744 = vunpack.c.l.b16 %v1712
  %v1745 = vunpack.c.l.b16 %v1713
  %v1746 = vrot.slane %v1731, 7
  %v1747 = vsel %vm896, %v1746, %v1730
  %v1748 = vrot.slane %v1732, 6
  %v1749 = vsel %vm899, %v1748, %v1747
  %v1750 = vrot.slane %v1733, 5
  %v1751 = vsel %vm902, %v1750, %v1749
  %v1752 = vrot.slane %v1734, 4
  %v1753 = vsel %vm905, %v1752, %v1751
  %v1754 = vrot.slane %v1735, 3
  %v1755 = vsel %vm908, %v1754, %v1753
  %v1756 = vrot.slane %v1736, 2
  %v1757 = vsel %vm911, %v1756, %v1755
  %v1758 = vrot.slane %v1737, 1
  %v1759 = vsel %vm914, %v1758, %v1757
  %v1760 = vrot.slane %v1739, 7
  %v1761 = vsel %vm896, %v1760, %v1738
  %v1762 = vrot.slane %v1740, 6
  %v1763 = vsel %vm899, %v1762, %v1761
  %v1764 = vrot.slane %v1741, 5
  %v1765 = vsel %vm902, %v1764, %v1763
  %v1766 = vrot.slane %v1742, 4
  %v1767 = vsel %vm905, %v1766, %v1765
  %v1768 = vrot.slane %v1743, 3
  %v1769 = vsel %vm908, %v1768, %v1767
  %v1770 = vrot.slane %v1744, 2
  %v1771 = vsel %vm911, %v1770, %v1769
  %v1772 = vrot.slane %v1745, 1
  %v1773 = vsel %vm914, %v1772, %v1771
  %v1774 = vpack.c.b16 %v1773, %v1759
  %v1779 = vunpack.c.l.b16 %v1694
  %v1780 = vunpack.c.l.b16 %v1695
  %v1781 = vunpack.c.l.b16 %v1696
  %v1782 = vunpack.c.l.b16 %v1697
  %v1783 = vpack.c.b16 %v1780, %v1779
  %v1784 = vpack.c.b16 %v1782, %v1781
  %v1788 = vsel %vm611, %v1774, 0
  %1790 = vmatpush.bf16.msra.mxu0 0
  %1791 = vmatpush.bf16.msra.mxu0 0
  %1792 = vmatpush.bf16.msra.mxu0 0
  %1793 = vmatpush.bf16.msra.mxu0 0
  %1794 = vmatpush.bf16.msra.mxu0 0
  %1795 = vmatpush.bf16.msra.mxu0 0
  %1796 = vmatpush.bf16.msra.mxu0 %v1784
  %1797 = vmatpush.bf16.msra.mxu0 %v1783
  %1798 = vmatmul.bf16.gmra.mxu0 %v1788
  %v1799 = vpop.f32.mrf.mxu0
  %v1800 = vadd.f32 0.0, %v1799
  %v1801 = vpop.f32.mrf.mxu0
  %v1802 = vadd.f32 0.0, %v1801
  %1803 = vdwg.mxu0
  %v1820 = vunpack.c.l.b16 %v1646
  %v1821 = vunpack.c.l.b16 %v1647
  %v1822 = vunpack.c.l.b16 %v1648
  %v1823 = vunpack.c.l.b16 %v1649
  %v1824 = vunpack.c.l.b16 %v1650
  %v1825 = vunpack.c.l.b16 %v1651
  %v1826 = vunpack.c.l.b16 %v1652
  %v1827 = vunpack.c.l.b16 %v1653
  %v1828 = vunpack.c.l.b16 %v1654
  %v1829 = vunpack.c.l.b16 %v1655
  %v1830 = vunpack.c.l.b16 %v1656
  %v1831 = vunpack.c.l.b16 %v1657
  %v1832 = vunpack.c.l.b16 %v1658
  %v1833 = vunpack.c.l.b16 %v1659
  %v1834 = vunpack.c.l.b16 %v1660
  %v1835 = vunpack.c.l.b16 %v1661
  %v1836 = vrot.slane %v1821, 7
  %v1837 = vsel %vm896, %v1836, %v1820
  %v1838 = vrot.slane %v1822, 6
  %v1839 = vsel %vm899, %v1838, %v1837
  %v1840 = vrot.slane %v1823, 5
  %v1841 = vsel %vm902, %v1840, %v1839
  %v1842 = vrot.slane %v1824, 4
  %v1843 = vsel %vm905, %v1842, %v1841
  %v1844 = vrot.slane %v1825, 3
  %v1845 = vsel %vm908, %v1844, %v1843
  %v1846 = vrot.slane %v1826, 2
  %v1847 = vsel %vm911, %v1846, %v1845
  %v1848 = vrot.slane %v1827, 1
  %v1849 = vsel %vm914, %v1848, %v1847
  %v1850 = vrot.slane %v1829, 7
  %v1851 = vsel %vm896, %v1850, %v1828
  %v1852 = vrot.slane %v1830, 6
  %v1853 = vsel %vm899, %v1852, %v1851
  %v1854 = vrot.slane %v1831, 5
  %v1855 = vsel %vm902, %v1854, %v1853
  %v1856 = vrot.slane %v1832, 4
  %v1857 = vsel %vm905, %v1856, %v1855
  %v1858 = vrot.slane %v1833, 3
  %v1859 = vsel %vm908, %v1858, %v1857
  %v1860 = vrot.slane %v1834, 2
  %v1861 = vsel %vm911, %v1860, %v1859
  %v1862 = vrot.slane %v1835, 1
  %v1863 = vsel %vm914, %v1862, %v1861
  %v1864 = vpack.c.b16 %v1863, %v1849
  %v1869 = vunpack.c.l.b16 %v1642
  %v1870 = vunpack.c.l.b16 %v1643
  %v1871 = vunpack.c.l.b16 %v1644
  %v1872 = vunpack.c.l.b16 %v1645
  %v1873 = vpack.c.b16 %v1870, %v1869
  %v1874 = vpack.c.b16 %v1872, %v1871
  %v1878 = vsel %vm611, %v1864, 0
  %1880 = vmatpush.bf16.msra.mxu0 0
  %1881 = vmatpush.bf16.msra.mxu0 0
  %1882 = vmatpush.bf16.msra.mxu0 0
  %1883 = vmatpush.bf16.msra.mxu0 0
  %1884 = vmatpush.bf16.msra.mxu0 0
  %1885 = vmatpush.bf16.msra.mxu0 0
  %1886 = vmatpush.bf16.msra.mxu0 %v1874
  %1887 = vmatpush.bf16.msra.mxu0 %v1873
  %1888 = vmatmul.bf16.gmra.mxu0 %v1878
  %v1889 = vpop.f32.mrf.mxu0
  %v1890 = vadd.f32 %v1800, %v1889
  %v1891 = vpop.f32.mrf.mxu0
  %v1892 = vadd.f32 %v1802, %v1891
  %1893 = vdwg.mxu0
  %v1894 = vld [vmem:[#allocation4 + $0x2] sm:$0xff]
  %v1895 = vld [vmem:[#allocation4 + $0xa] sm:$0xff]
  %v1896 = vld [vmem:[#allocation4 + $0x1a] sm:$0xff]
  %v1897 = vld [vmem:[#allocation4 + $0x22] sm:$0xff]
  %v1902 = vrot.slane %v1894, 2
  %v1903 = vrot.slane %v1894, 4
  %v1904 = vrot.slane %v1894, 6
  %v1905 = vrot.slane %v1895, 2
  %v1906 = vrot.slane %v1895, 4
  %v1907 = vrot.slane %v1895, 6
  %v1908 = vrot.slane %v1896, 2
  %v1909 = vrot.slane %v1896, 4
  %v1910 = vrot.slane %v1896, 6
  %v1911 = vrot.slane %v1897, 2
  %v1912 = vrot.slane %v1897, 4
  %v1913 = vrot.slane %v1897, 6
  %v1926 = vld [vmem:[%s3 + $0x20] sm:$0xf]
  %v1927 = vld [vmem:[%s3 + $0x24] sm:$0xf]
  %v1928 = vld [vmem:[%s3 + $0x28] sm:$0xf]
  %v1929 = vld [vmem:[%s3 + $0x2c] sm:$0xf]
  %v1930 = vpack.c.bf16 %v1894, %v1894
  %v1931 = vpack.c.bf16 %v1902, %v1902
  %v1932 = vpack.c.bf16 %v1903, %v1903
  %v1933 = vpack.c.bf16 %v1904, %v1904
  %v1934 = vpack.c.bf16 %v1895, %v1895
  %v1935 = vpack.c.bf16 %v1905, %v1905
  %v1936 = vpack.c.bf16 %v1906, %v1906
  %v1937 = vpack.c.bf16 %v1907, %v1907
  %v1938 = vpack.c.bf16 %v1896, %v1896
  %v1939 = vpack.c.bf16 %v1908, %v1908
  %v1940 = vpack.c.bf16 %v1909, %v1909
  %v1941 = vpack.c.bf16 %v1910, %v1910
  %v1942 = vpack.c.bf16 %v1897, %v1897
  %v1943 = vpack.c.bf16 %v1911, %v1911
  %v1944 = vpack.c.bf16 %v1912, %v1912
  %v1945 = vpack.c.bf16 %v1913, %v1913
  %v1962 = vunpack.c.l.b16 %v1930
  %v1963 = vunpack.c.l.b16 %v1931
  %v1964 = vunpack.c.l.b16 %v1932
  %v1965 = vunpack.c.l.b16 %v1933
  %v1966 = vunpack.c.l.b16 %v1934
  %v1967 = vunpack.c.l.b16 %v1935
  %v1968 = vunpack.c.l.b16 %v1936
  %v1969 = vunpack.c.l.b16 %v1937
  %v1970 = vunpack.c.l.b16 %v1938
  %v1971 = vunpack.c.l.b16 %v1939
  %v1972 = vunpack.c.l.b16 %v1940
  %v1973 = vunpack.c.l.b16 %v1941
  %v1974 = vunpack.c.l.b16 %v1942
  %v1975 = vunpack.c.l.b16 %v1943
  %v1976 = vunpack.c.l.b16 %v1944
  %v1977 = vunpack.c.l.b16 %v1945
  %v1978 = vrot.slane %v1963, 7
  %v1979 = vsel %vm896, %v1978, %v1962
  %v1980 = vrot.slane %v1964, 6
  %v1981 = vsel %vm899, %v1980, %v1979
  %v1982 = vrot.slane %v1965, 5
  %v1983 = vsel %vm902, %v1982, %v1981
  %v1984 = vrot.slane %v1966, 4
  %v1985 = vsel %vm905, %v1984, %v1983
  %v1986 = vrot.slane %v1967, 3
  %v1987 = vsel %vm908, %v1986, %v1985
  %v1988 = vrot.slane %v1968, 2
  %v1989 = vsel %vm911, %v1988, %v1987
  %v1990 = vrot.slane %v1969, 1
  %v1991 = vsel %vm914, %v1990, %v1989
  %v1992 = vrot.slane %v1971, 7
  %v1993 = vsel %vm896, %v1992, %v1970
  %v1994 = vrot.slane %v1972, 6
  %v1995 = vsel %vm899, %v1994, %v1993
  %v1996 = vrot.slane %v1973, 5
  %v1997 = vsel %vm902, %v1996, %v1995
  %v1998 = vrot.slane %v1974, 4
  %v1999 = vsel %vm905, %v1998, %v1997
  %v2000 = vrot.slane %v1975, 3
  %v2001 = vsel %vm908, %v2000, %v1999
  %v2002 = vrot.slane %v1976, 2
  %v2003 = vsel %vm911, %v2002, %v2001
  %v2004 = vrot.slane %v1977, 1
  %v2005 = vsel %vm914, %v2004, %v2003
  %v2006 = vpack.c.b16 %v2005, %v1991
  %v2011 = vunpack.c.l.b16 %v1926
  %v2012 = vunpack.c.l.b16 %v1927
  %v2013 = vunpack.c.l.b16 %v1928
  %v2014 = vunpack.c.l.b16 %v1929
  %v2015 = vpack.c.b16 %v2012, %v2011
  %v2016 = vpack.c.b16 %v2014, %v2013
  %v2020 = vsel %vm611, %v2006, 0
  %2022 = vmatpush.bf16.msra.mxu0 0
  %2023 = vmatpush.bf16.msra.mxu0 0
  %2024 = vmatpush.bf16.msra.mxu0 0
  %2025 = vmatpush.bf16.msra.mxu0 0
  %2026 = vmatpush.bf16.msra.mxu0 0
  %2027 = vmatpush.bf16.msra.mxu0 0
  %2028 = vmatpush.bf16.msra.mxu0 %v2016
  %2029 = vmatpush.bf16.msra.mxu0 %v2015
  %2030 = vmatmul.bf16.gmra.mxu0 %v2020
  %v2031 = vpop.f32.mrf.mxu0
  %v2032 = vadd.f32 0.0, %v2031
  %v2033 = vpop.f32.mrf.mxu0
  %v2034 = vadd.f32 0.0, %v2033
  %2035 = vdwg.mxu0
  %v2036 = vadd.f32 %v1890, %v2032
  %v2037 = vadd.f32 %v1892, %v2034
  %v2038 = vperm.slane %v30, 2
  %v2039 = vadd.f32 %v2036, %v2038
  %v2040 = vadd.f32 %v2037, %v2038
  %v2041 = vmul.f32 %v2039, 0.5
  %v2042 = vmul.f32 %v2040, 0.5
  %v2043 = vmul.f32 %v2039, 0.70710677
  %v2044 = vmul.f32 %v2040, 0.70710677
  %v2045 = vmul.f32 %v2043, %v2043
  %v2046 = vmin.f32 16.0, %v2045
  %v2047 = vmul.f32 %v2046, 2.1237322e-06
  %v2048 = vadd.f32 %v2047, 0.00028619796
  %v2049 = vmul.f32 %v2046, %v2048
  %v2050 = vadd.f32 %v2049, 0.0036580483
  %v2051 = vmul.f32 %v2046, %v2050
  %v2052 = vadd.f32 %v2051, 0.05243302
  %v2053 = vmul.f32 %v2046, %v2052
  %v2054 = vadd.f32 %v2053, 0.18741608
  %v2055 = vmul.f32 %v2046, %v2054
  %v2056 = vadd.f32 %v2055, 1.1283791
  %v2057 = vmul.f32 %v2043, %v2056
  %v2058 = vmul.f32 %v2046, 3.8918573e-05
  %v2059 = vadd.f32 %v2058, 0.001143296
  %v2060 = vmul.f32 %v2046, %v2059
  %v2061 = vadd.f32 %v2060, 0.014752088
  %v2062 = vmul.f32 %v2046, %v2061
  %v2063 = vadd.f32 %v2062, 0.112945676
  %v2064 = vmul.f32 %v2046, %v2063
  %v2065 = vadd.f32 %v2064, 0.4994258
  %v2066 = vmul.f32 %v2046, %v2065
  %v2067 = vadd.f32 %v2066, 1.0
  %v2068 = vrcp.pop %v2067
  %v2069 = vmul.f32 %v2067, %v2068
  %v2070 = vsub.f32 1.0, %v2069
  %v2071 = vmul.f32 %v2068, %v2070
  %v2072 = vadd.f32 %v2068, %v2071
  %vm2073 = vweird.f32 %v2067
  %vm2074 = vweird.f32 %v2068
  %vm2075 = vmor %vm2073, %vm2074
  %v2076 = vsel %vm2075, %v2068, %v2072
  %v2077 = vand.u32 2147483647, %v2067
  %vm2078 = vcmp.eq.f32.partialorder %v2077, 8.507059e+37
  %v2079 = vand.u32 %v2067, 2147483648
  %v2080 = vor.u32 1.1754944e-38, %v2079
  %v2081 = vsel %vm2078, %v2080, %v2076
  %v2082 = vmul.f32 %v2057, %v2081
  %v2083 = vmin.f32 %v2082, 1.0
  %v2084 = vmax.f32 %v2083, -1.0
  %v2085 = vmul.f32 %v2044, %v2044
  %v2086 = vmin.f32 16.0, %v2085
  %v2087 = vmul.f32 %v2086, 2.1237322e-06
  %v2088 = vadd.f32 %v2087, 0.00028619796
  %v2089 = vmul.f32 %v2086, %v2088
  %v2090 = vadd.f32 %v2089, 0.0036580483
  %v2091 = vmul.f32 %v2086, %v2090
  %v2092 = vadd.f32 %v2091, 0.05243302
  %v2093 = vmul.f32 %v2086, %v2092
  %v2094 = vadd.f32 %v2093, 0.18741608
  %v2095 = vmul.f32 %v2086, %v2094
  %v2096 = vadd.f32 %v2095, 1.1283791
  %v2097 = vmul.f32 %v2044, %v2096
  %v2098 = vmul.f32 %v2086, 3.8918573e-05
  %v2099 = vadd.f32 %v2098, 0.001143296
  %v2100 = vmul.f32 %v2086, %v2099
  %v2101 = vadd.f32 %v2100, 0.014752088
  %v2102 = vmul.f32 %v2086, %v2101
  %v2103 = vadd.f32 %v2102, 0.112945676
  %v2104 = vmul.f32 %v2086, %v2103
  %v2105 = vadd.f32 %v2104, 0.4994258
  %v2106 = vmul.f32 %v2086, %v2105
  %v2107 = vadd.f32 %v2106, 1.0
  %v2108 = vrcp.pop %v2107
  %v2109 = vmul.f32 %v2107, %v2108
  %v2110 = vsub.f32 1.0, %v2109
  %v2111 = vmul.f32 %v2108, %v2110
  %v2112 = vadd.f32 %v2108, %v2111
  %vm2113 = vweird.f32 %v2107
  %vm2114 = vweird.f32 %v2108
  %vm2115 = vmor %vm2113, %vm2114
  %v2116 = vsel %vm2115, %v2108, %v2112
  %v2117 = vand.u32 2147483647, %v2107
  %vm2118 = vcmp.eq.f32.partialorder %v2117, 8.507059e+37
  %v2119 = vand.u32 %v2107, 2147483648
  %v2120 = vor.u32 1.1754944e-38, %v2119
  %v2121 = vsel %vm2118, %v2120, %v2116
  %v2122 = vmul.f32 %v2097, %v2121
  %v2123 = vmin.f32 %v2122, 1.0
  %v2124 = vmax.f32 %v2123, -1.0
  %v2125 = vadd.f32 %v2084, 1.0
  %v2126 = vadd.f32 %v2124, 1.0
  %v2127 = vmul.f32 %v2041, %v2125
  %v2128 = vmul.f32 %v2042, %v2126
  %v2129 = vld [vmem:[%s5] sm:$0xff]
  %v2130 = vadd.f32 %v2127, %v2129
  %v2131 = vadd.f32 %v2128, %v2129
  %v2132 = vpack.c.bf16 %v2131, %v2130
  %v2133 = vld [vmem:[%s4] sm:$0xf]
  %v2134 = vld [vmem:[%s4 + $0x4] sm:$0xf]
  %v2135 = vld [vmem:[%s4 + $0x8] sm:$0xf]
  %v2136 = vld [vmem:[%s4 + $0xc] sm:$0xf]
  %v2141 = vunpack.c.l.b16 %v2133
  %v2142 = vunpack.c.l.b16 %v2134
  %v2143 = vunpack.c.l.b16 %v2135
  %v2144 = vunpack.c.l.b16 %v2136
  %v2145 = vpack.c.b16 %v2142, %v2141
  %v2146 = vpack.c.b16 %v2144, %v2143
  %v2150 = vsel %vm611, %v2132, 0
  %2152 = vmatpush.bf16.msra.mxu0 0
  %2153 = vmatpush.bf16.msra.mxu0 0
  %2154 = vmatpush.bf16.msra.mxu0 0
  %2155 = vmatpush.bf16.msra.mxu0 0
  %2156 = vmatpush.bf16.msra.mxu0 0
  %2157 = vmatpush.bf16.msra.mxu0 0
  %2158 = vmatpush.bf16.msra.mxu0 %v2146
  %2159 = vmatpush.bf16.msra.mxu0 %v2145
  %2160 = vmatmul.bf16.gmra.mxu0 %v2150
  %v2161 = vpop.f32.mrf.mxu0
  %v2162 = vadd.f32 0.0, %v2161
  %v2163 = vpop.f32.mrf.mxu0
  %v2164 = vadd.f32 0.0, %v2163
  %2165 = vdwg.mxu0
  %v2166 = vld [vmem:[%s6] sm:$0xff]
  %v2167 = vadd.f32 %v2162, %v2166
  %v2168 = vadd.f32 %v2164, %v2166
  %v2169 = vsel %vm611, %v2167, 0.0
  %2170 = vadd.xlane.f32.xlu0 %v2169
  %v2171 = vpop.xlane.xlu0 %2170
  %v2172 = vsel %vm611, %v2168, 0.0
  %2173 = vadd.xlane.f32.xlu0 %v2172
  %v2174 = vpop.xlane.xlu0 %2173
  %v2175 = vrcp.pop 32.0
  %v2176 = vmul.f32 32.0, %v2175
  %v2177 = vsub.f32 1.0, %v2176
  %v2178 = vmul.f32 %v2175, %v2177
  %v2179 = vadd.f32 %v2175, %v2178
  %vm2180 = vweird.f32 %v2175
  %v2181 = vsel %vm2180, %v2175, %v2179
  %v2182 = vmul.f32 %v2171, %v2181
  %v2183 = vmul.f32 %v2174, %v2181
  %v2184 = vsub.f32 %v2167, %v2182
  %v2185 = vsub.f32 %v2168, %v2183
  %v2186 = vmul.f32 %v2184, %v2184
  %v2187 = vmul.f32 %v2185, %v2185
  %v2188 = vsel %vm611, %v2186, 0.0
  %2189 = vadd.xlane.f32.xlu0 %v2188
  %v2190 = vpop.xlane.xlu0 %2189
  %v2191 = vsel %vm611, %v2187, 0.0
  %2192 = vadd.xlane.f32.xlu0 %v2191
  %v2193 = vpop.xlane.xlu0 %2192
  %v2194 = vmul.f32 %v2190, %v2181
  %v2195 = vmul.f32 %v2193, %v2181
  %v2196 = vadd.f32 %v2194, 1e-05
  %v2197 = vadd.f32 %v2195, 1e-05
  %v2198 = vrsqrt.pop %v2196
  %v2199 = vmul.f32 %v2198, %v2196
  %v2200 = vmul.f32 %v2199, %v2198
  %v2201 = vmul.f32 0.5, %v2200
  %v2202 = vsub.f32 1.5, %v2201
  %v2203 = vmul.f32 %v2198, %v2202
  %vm2204 = vweird.f32 %v2196
  %vm2205 = vweird.f32 %v2198
  %vm2206 = vmor %vm2204, %vm2205
  %v2207 = vsel %vm2206, %v2198, %v2203
  %v2208 = vrsqrt.pop %v2197
  %v2209 = vmul.f32 %v2208, %v2197
  %v2210 = vmul.f32 %v2209, %v2208
  %v2211 = vmul.f32 0.5, %v2210
  %v2212 = vsub.f32 1.5, %v2211
  %v2213 = vmul.f32 %v2208, %v2212
  %vm2214 = vweird.f32 %v2197
  %vm2215 = vweird.f32 %v2208
  %vm2216 = vmor %vm2214, %vm2215
  %v2217 = vsel %vm2216, %v2208, %v2213
  %v2218 = vmul.f32 %v2184, %v2207
  %v2219 = vmul.f32 %v2185, %v2217
  %v2220 = vperm.slane %v30, 3
  %v2221 = vmul.f32 %v2218, %v2220
  %v2222 = vmul.f32 %v2219, %v2220
  %v2223 = vperm.slane %v30, 4
  %v2224 = vadd.f32 %v2221, %v2223
  %v2225 = vadd.f32 %v2222, %v2223
  %2226 = vst.msk [vmem:[%s8] sm:$0xff] %vm611, %v2224
  %2227 = vst.msk [vmem:[%s8 + $0x8] sm:$0xff] %vm611, %v2225
  // Predicated region
  $region34: #{bart_caption_forward.4} parent=0 // pred_check
    _
  $region35: #{bart_caption_forward.4} parent=0 // pred_check_branch
    %2229 = sbr.rel (0) target = $region37
  $region36: #{bart_caption_forward.4} parent=0 // pred_region
    _
  $region37: #{bart_caption_forward.4} parent=0 // pred_fallthru
    _
  // Predicated region
  $region38: #{bart_caption_forward.4} parent=0 // pred_check
    _
  $region39: #{bart_caption_forward.4} parent=0 // pred_check_branch
    %2231 = sbr.rel (0) target = $region41
  $region40: #{bart_caption_forward.4} parent=0 // pred_region
    _
  $region41: #{bart_caption_forward.4} parent=0 // pred_fallthru
    _

</llo_original>
